<compile_context>
chip_gen: v7x
topology: tpu7x:2x2x1
jax: 0.10.0
libtpu: 0.0.40
codegen_flags: <defaults>
</compile_context>

<pallas_src>
import jax
import jax.numpy as jnp
from jax.experimental import pallas as pl
from jax.experimental.pallas import tpu as pltpu

BN_EPS = 1e-5
LANE = 128


def _rup(x, m):
    return ((x + m - 1) // m) * m


def _pad_last(a, c):
    pad = [(0, 0)] * (a.ndim - 1) + [(0, c - a.shape[-1])]
    return jnp.pad(a, pad)


def _vmem_limit_bytes():
    """Per-generation scoped-VMEM budget (v7x has only 64 MiB physical)."""
    try:
        kind = jax.devices()[0].device_kind.lower()
    except Exception:
        kind = ""
    if "v7" in kind:
        return 48 * 1024 * 1024
    if "v5" in kind or "v6" in kind:
        return 80 * 1024 * 1024
    return 32 * 1024 * 1024


def _pick_tr(ho, w_pad, max_rows=1024, tr_max=32):
    """Largest divisor of ho <= tr_max keeping tr*w_pad <= max_rows (exact tiling)."""
    limit = max(1, min(tr_max, max_rows // max(w_pad, 1)))
    tr = 1
    for d in range(1, min(ho, limit) + 1):
        if ho % d == 0:
            tr = d
    return tr


# ---------------- Pallas kernels ----------------

def _conv_tile_body(xm_ref, xa_ref, xb_ref, w_ref, b_ref, y_ref, s_ref, q_ref,
                    acc_ref, wo, scale=None, shift=None):
    """TR output rows of a 3x3 valid conv as 9 offset-slice matmuls.

    xm_ref: (1, TR, W_pad, Cin_p)  main input rows   [j*TR, j*TR+TR)
    xa_ref/xb_ref: (1, 1, W_pad, Cin_p) halo rows j*TR+TR and j*TR+TR+1
    w_ref:  (9, Cin_p, Cout_p) bf16, tap index = ky*3 + kx
    b_ref:  (1, Cout_p) f32 conv bias
    y_ref:  (1, TR, W_pad, Cout_p) bf16 raw (pre-BN) conv output (full width;
            cols >= wo are wrap garbage, excluded from stats / sliced later)
    s_ref/q_ref: (1, 1, 1, Cout_p) per-tile partial sum / sum-of-squares
    acc_ref: (TR*W_pad, Cout_p) f32 VMEM scratch accumulator
    If scale/shift are given, the previous layer's BN+ReLU is fused into the
    input load (applied exactly once per input row, in f32).
    """
    tr, wp, cin = xm_ref.shape[1], xm_ref.shape[2], xm_ref.shape[3]
    cout = y_ref.shape[3]
    m = tr * wp

    xm = xm_ref[0].reshape(m, cin)
    xa = xa_ref[0].reshape(wp, cin)
    xb = xb_ref[0].reshape(wp, cin)
    tail = jnp.zeros((8, cin), xm.dtype)          # only feeds garbage columns
    xin = jnp.concatenate([xm, xa, xb, tail], axis=0)   # (m + 2*wp + 8, cin)

    if scale is not None:                          # fused BN+ReLU of the input
        xin = jnp.maximum(xin.astype(jnp.float32) * scale + shift, 0.0)
    xin = xin.astype(jnp.bfloat16)                 # MXU operand

    acc_ref[...] = jnp.dot(xin[0:m], w_ref[0], preferred_element_type=jnp.float32)
    for ky in range(3):
        for kx in range(3):
            if ky == 0 and kx == 0:
                continue
            off = ky * wp + kx
            acc_ref[...] += jnp.dot(xin[off:off + m], w_ref[ky * 3 + kx],
                                    preferred_element_type=jnp.float32)

    acc = acc_ref[...] + b_ref[...]                # (m, cout) f32
    acc3 = acc.reshape(tr, wp, cout)
    y_ref[0] = acc3.astype(y_ref.dtype)            # bf16 store, lane-dense
    valid = acc3[:, :wo, :]                        # stats over valid cols only
    s_ref[0] = jnp.sum(valid, axis=(0, 1), keepdims=True)
    q_ref[0] = jnp.sum(valid * valid, axis=(0, 1), keepdims=True)


# ---------------- pallas_call wrappers ----------------

def conv3x3_stats(x, w9, b, *, wo, tr, scale=None, shift=None):
    """3x3 valid conv (+ optional fused BN+ReLU of its input) + BN partials."""
    n, h_in, w_pad, cin_p = x.shape
    cout_p = w9.shape[2]
    ho = h_in - 2
    assert ho % tr == 0 and w_pad % 8 == 0
    n_tiles = ho // tr
    fused = scale is not None
    single = dict(pipeline_mode=pl.Buffered(buffer_count=1))   # constant blocks

    in_specs = [
        pl.BlockSpec((1, tr, w_pad, cin_p), lambda i, j: (i, j, 0, 0)),
        pl.BlockSpec((1, 1, w_pad, cin_p), lambda i, j: (i, (j + 1) * tr, 0, 0)),
        pl.BlockSpec((1, 1, w_pad, cin_p), lambda i, j: (i, (j + 1) * tr + 1, 0, 0)),
    ]
    args = [x, x, x]
    if fused:
        in_specs += [pl.BlockSpec((1, cin_p), lambda i, j: (0, 0), **single),
                     pl.BlockSpec((1, cin_p), lambda i, j: (0, 0), **single)]
        args += [scale, shift]
    in_specs += [pl.BlockSpec((9, cin_p, cout_p), lambda i, j: (0, 0, 0), **single),
                 pl.BlockSpec((1, cout_p), lambda i, j: (0, 0), **single)]
    args += [w9, b]

    if fused:
        def kernel(xm, xa, xb, sc, sh, wr, br, yr, sr, qr, acc):
            _conv_tile_body(xm, xa, xb, wr, br, yr, sr, qr, acc, wo,
                            scale=sc[...], shift=sh[...])
    else:
        def kernel(xm, xa, xb, wr, br, yr, sr, qr, acc):
            _conv_tile_body(xm, xa, xb, wr, br, yr, sr, qr, acc, wo)

    flops = 2 * n * ho * w_pad * 9 * cin_p * cout_p
    bytes_accessed = (n * h_in * w_pad * cin_p * 2 * (1.0 + 2.0 / tr)
                      + w9.size * 2
                      + n * ho * w_pad * cout_p * 2
                      + 2 * n * n_tiles * cout_p * 4)

    return pl.pallas_call(
        kernel,
        grid=(n, n_tiles),
        in_specs=in_specs,
        out_specs=(
            pl.BlockSpec((1, tr, w_pad, cout_p), lambda i, j: (i, j, 0, 0)),
            pl.BlockSpec((1, 1, 1, cout_p), lambda i, j: (i, j, 0, 0)),
            pl.BlockSpec((1, 1, 1, cout_p), lambda i, j: (i, j, 0, 0)),
        ),
        out_shape=(
            jax.ShapeDtypeStruct((n, ho, w_pad, cout_p), jnp.bfloat16),
            jax.ShapeDtypeStruct((n, n_tiles, 1, cout_p), jnp.float32),
            jax.ShapeDtypeStruct((n, n_tiles, 1, cout_p), jnp.float32),
        ),
        scratch_shapes=[pltpu.VMEM((tr * w_pad, cout_p), jnp.float32)],
        compiler_params=pltpu.CompilerParams(
            dimension_semantics=("parallel", "parallel"),
            vmem_limit_bytes=_vmem_limit_bytes()),
        cost_estimate=pl.CostEstimate(flops=int(flops), transcendentals=0,
                                      bytes_accessed=int(bytes_accessed)),
    )(*args)


def bn_relu_deconv_matmul(y, scale, shift, wd, bd, *, tr):
    """Fused BN+ReLU then per-pixel matmul (the k=2,s=2 transposed conv),
    consuming the padded NHWC activation directly (no reshape HBM pass)."""
    n, ho, w_pad, cm_p = y.shape
    cd_p = wd.shape[1]
    assert ho % tr == 0 and w_pad % 8 == 0
    n_tiles = ho // tr
    single = dict(pipeline_mode=pl.Buffered(buffer_count=1))

    def kernel(x_ref, sc_ref, sh_ref, w_ref, b_ref, o_ref):
        trk, wp, cp = x_ref.shape[1], x_ref.shape[2], x_ref.shape[3]
        cd = o_ref.shape[3]
        xx = x_ref[0].reshape(trk * wp, cp).astype(jnp.float32)
        act = jnp.maximum(xx * sc_ref[...] + sh_ref[...], 0.0).astype(jnp.bfloat16)
        zz = jnp.dot(act, w_ref[...], preferred_element_type=jnp.float32) + b_ref[...]
        o_ref[0] = zz.reshape(trk, wp, cd)

    flops = 2 * n * ho * w_pad * cm_p * cd_p
    bytes_accessed = (n * ho * w_pad * cm_p * 2 + wd.size * 2
                      + n * ho * w_pad * cd_p * 4)

    return pl.pallas_call(
        kernel,
        grid=(n, n_tiles),
        in_specs=[pl.BlockSpec((1, tr, w_pad, cm_p), lambda i, j: (i, j, 0, 0)),
                  pl.BlockSpec((1, cm_p), lambda i, j: (0, 0), **single),
                  pl.BlockSpec((1, cm_p), lambda i, j: (0, 0), **single),
                  pl.BlockSpec((cm_p, cd_p), lambda i, j: (0, 0), **single),
                  pl.BlockSpec((1, cd_p), lambda i, j: (0, 0), **single)],
        out_specs=pl.BlockSpec((1, tr, w_pad, cd_p), lambda i, j: (i, j, 0, 0)),
        out_shape=jax.ShapeDtypeStruct((n, ho, w_pad, cd_p), jnp.float32),
        compiler_params=pltpu.CompilerParams(
            dimension_semantics=("parallel", "parallel"),
            vmem_limit_bytes=_vmem_limit_bytes()),
        cost_estimate=pl.CostEstimate(flops=int(flops), transcendentals=0,
                                      bytes_accessed=int(bytes_accessed)),
    )(y, scale, shift, wd, bd)


# ---------------- JAX glue (layout / params / BN reduction) ----------------

def _prep_conv_w(w_torch, cin_p, cout_p):
    # torch Conv2d weight (Cout, Cin, 3, 3) -> (9, Cin_p, Cout_p) bf16, k = ky*3+kx
    cout, cin = w_torch.shape[0], w_torch.shape[1]
    w = jnp.transpose(w_torch, (2, 3, 1, 0)).reshape(9, cin, cout)
    w = jnp.pad(w, ((0, 0), (0, cin_p - cin), (0, cout_p - cout)))
    return w.astype(jnp.bfloat16)


def _bn_affine(s, q, gamma, beta, count):
    """Per-channel scale/shift from partial (sum, sum_sq): train-mode BN."""
    # TODO(synk): E[x^2]-E[x]^2 in f32 can cancel for very large N*H*W; a
    #             shifted/Welford reduction would be more robust.
    cp = s.shape[-1]
    tot = jnp.sum(s.reshape(-1, cp), axis=0)
    tot2 = jnp.sum(q.reshape(-1, cp), axis=0)
    mean = tot / count
    var = jnp.maximum(tot2 / count - mean * mean, 0.0)
    g = _pad_last(gamma.reshape(1, -1), cp)
    bt = _pad_last(beta.reshape(1, -1), cp)
    scale = g * jax.lax.rsqrt(var + BN_EPS)
    shift = bt - mean * scale
    return scale, shift                                  # (1, cp) f32 each


def init_params(key, in_ch, mid_ch, out_ch):
    ks = jax.random.split(key, 10)
    p = {}
    # torch layouts: Conv2d weight (Cout, Cin, kh, kw); ConvTranspose2d (Cin, Cout, kh, kw)
    p["w1"] = 0.1 * jax.random.normal(ks[0], (mid_ch, in_ch, 3, 3), jnp.float32)
    p["b1"] = 0.1 * jax.random.normal(ks[1], (mid_ch,), jnp.float32)
    p["g1"] = 1.0 + 0.1 * jax.random.normal(ks[2], (mid_ch,), jnp.float32)
    p["beta1"] = 0.1 * jax.random.normal(ks[3], (mid_ch,), jnp.float32)
    p["w2"] = 0.1 * jax.random.normal(ks[4], (mid_ch, mid_ch, 3, 3), jnp.float32)
    p["b2"] = 0.1 * jax.random.normal(ks[5], (mid_ch,), jnp.float32)
    p["g2"] = 1.0 + 0.1 * jax.random.normal(ks[6], (mid_ch,), jnp.float32)
    p["beta2"] = 0.1 * jax.random.normal(ks[7], (mid_ch,), jnp.float32)
    p["wd"] = 0.1 * jax.random.normal(ks[8], (mid_ch, out_ch, 2, 2), jnp.float32)
    p["bd"] = 0.1 * jax.random.normal(ks[9], (out_ch,), jnp.float32)
    return p


def decoder_block_forward(x_nchw, p):
    x = jnp.transpose(x_nchw, (0, 2, 3, 1)).astype(jnp.float32)   # NCHW -> NHWC
    n, h, w, cin = x.shape
    mid = p["w1"].shape[0]
    out_ch = p["wd"].shape[1]
    cin_p = _rup(cin, LANE)
    cm_p = _rup(mid, LANE)
    cd_p = _rup(4 * out_ch, LANE)
    w_pad = _rup(w, 8)                       # sublane-aligned width, kept throughout

    # --- Conv2d(in, mid, 3) + per-tile BN partial stats ----------------------
    ho1, wo1 = h - 2, w - 2
    x_p = jnp.pad(x, ((0, 0), (0, 0), (0, w_pad - w), (0, cin_p - cin)))
    x_p = x_p.astype(jnp.bfloat16)
    w1 = _prep_conv_w(p["w1"], cin_p, cm_p)
    b1 = _pad_last(p["b1"].reshape(1, -1), cm_p)
    tr1 = _pick_tr(ho1, w_pad)
    y1, s1, q1 = conv3x3_stats(x_p, w1, b1, wo=wo1, tr=tr1)        # y1 bf16
    scale1, shift1 = _bn_affine(s1, q1, p["g1"], p["beta1"], n * ho1 * wo1)

    # --- BN1+ReLU (fused) -> Conv2d(mid, mid, 3) + stats ----------------------
    ho2, wo2 = ho1 - 2, wo1 - 2
    w2 = _prep_conv_w(p["w2"], cm_p, cm_p)
    b2 = _pad_last(p["b2"].reshape(1, -1), cm_p)
    tr2 = _pick_tr(ho2, w_pad)
    y2, s2, q2 = conv3x3_stats(y1, w2, b2, wo=wo2, tr=tr2,
                               scale=scale1, shift=shift1)          # y2 bf16
    scale2, shift2 = _bn_affine(s2, q2, p["g2"], p["beta2"], n * ho2 * wo2)

    # --- BN2+ReLU (fused) -> ConvTranspose2d(mid, out, k=2, s=2) --------------
    # columns ordered (dy, dx, cout): out[2i+dy, 2j+dx, c] = act[i,j,:] @ wd[:,c,dy,dx] + bd[c]
    wd = jnp.transpose(p["wd"], (0, 2, 3, 1)).reshape(mid, 4 * out_ch)
    wd = jnp.pad(wd, ((0, cm_p - mid), (0, cd_p - 4 * out_ch))).astype(jnp.bfloat16)
    bd = jnp.pad(jnp.tile(p["bd"], 4), (0, cd_p - 4 * out_ch)).reshape(1, cd_p)
    z = bn_relu_deconv_matmul(y2, scale2, shift2, wd, bd, tr=tr2)   # (n,ho2,w_pad,cd_p)

    # valid cols -> (dy,dx) interleave + NCHW in a single fused XLA transpose
    z = z[:, :, :wo2, :4 * out_ch].reshape(n, ho2, wo2, 2, 2, out_ch)
    z = jnp.transpose(z, (0, 5, 1, 3, 2, 4)).reshape(n, out_ch, 2 * ho2, 2 * wo2)
    return z


# ---------------- pure-JAX reference (for self-check) ----------------

def _ref_forward(x_nchw, p):
    x = jnp.transpose(x_nchw, (0, 2, 3, 1)).astype(jnp.float32)

    def conv3(x, w, b):                                     # valid 3x3, stride 1
        ho, wo = x.shape[1] - 2, x.shape[2] - 2
        out = jnp.zeros(x.shape[:1] + (ho, wo, w.shape[0]), jnp.float32) + b
        for ky in range(3):
            for kx in range(3):
                out = out + jnp.einsum('nhwi,oi->nhwo',
                                       x[:, ky:ky + ho, kx:kx + wo, :],
                                       w[:, :, ky, kx])
        return out

    def bn_relu(y, g, bt):
        mean = jnp.mean(y, axis=(0, 1, 2))
        var = jnp.mean((y - mean) ** 2, axis=(0, 1, 2))
        return jnp.maximum((y - mean) * jax.lax.rsqrt(var + BN_EPS) * g + bt, 0.0)

    y = bn_relu(conv3(x, p["w1"], p["b1"]), p["g1"], p["beta1"])
    y = bn_relu(conv3(y, p["w2"], p["b2"]), p["g2"], p["beta2"])
    n, ho, wo, _ = y.shape
    out_ch = p["wd"].shape[1]
    z = jnp.einsum('nhwc,codx->nhdwxo', y, p["wd"]) + p["bd"]
    z = z.reshape(n, 2 * ho, 2 * wo, out_ch)
    return jnp.transpose(z, (0, 3, 1, 2))


if __name__ == "__main__":
    key = jax.random.PRNGKey(0)
    kx_, kp = jax.random.split(key)
    in_ch, mid_ch, out_ch = 4, 8, 4
    x = jax.random.normal(kx_, (2, in_ch, 16, 16), jnp.float32)
    params = init_params(kp, in_ch, mid_ch, out_ch)

    out = jax.jit(decoder_block_forward)(x, params)
    out = jax.block_until_ready(out)
    # 16 -> 14 (conv3) -> 12 (conv3) -> 24 (deconv k2 s2)
    assert out.shape == (2, out_ch, 24, 24), out.shape
    assert bool(jnp.all(jnp.isfinite(out)))

    ref = _ref_forward(x, params)
    assert bool(jnp.allclose(out, ref, atol=0.1, rtol=0.1)), \
        float(jnp.max(jnp.abs(out - ref)))
    print("KERNEL_OK")
</pallas_src>

<mosaic_0001>
module attributes {stable_mosaic.version = 11 : i64} {
  func.func @kernel(%arg0: i32, %arg1: i32, %arg2: memref<1x14x16x128xbf16, #tpu.memory_space<vmem>>, %arg3: memref<1x1x16x128xbf16, #tpu.memory_space<vmem>>, %arg4: memref<1x1x16x128xbf16, #tpu.memory_space<vmem>>, %arg5: memref<9x128x128xbf16, #tpu.memory_space<vmem>>, %arg6: memref<1x128xf32, #tpu.memory_space<vmem>>, %arg7: memref<1x14x16x128xbf16, #tpu.memory_space<vmem>>, %arg8: memref<1x1x1x128xf32, #tpu.memory_space<vmem>>, %arg9: memref<1x1x1x128xf32, #tpu.memory_space<vmem>>, %arg10: memref<224x128xf32, #tpu.memory_space<vmem>>) attributes {dimension_semantics = [#tpu.dimension_semantics<parallel>, #tpu.dimension_semantics<parallel>], iteration_bounds = array<i64: 2, 1>, scalar_prefetch = 0 : i64, scratch_operands = 1 : i64, tpu.core_type = #tpu.core_type<tc>, window_params = [{transform_indices = @transform_0, window_bounds = array<i64: 1, 14, 16, 128>}, {transform_indices = @transform_1, window_bounds = array<i64: 1, 1, 16, 128>}, {transform_indices = @transform_2, window_bounds = array<i64: 1, 1, 16, 128>}, {pipeline_mode = #tpu.pipeline_mode<synchronous>, transform_indices = @transform_3, window_bounds = array<i64: 9, 128, 128>}, {pipeline_mode = #tpu.pipeline_mode<synchronous>, transform_indices = @transform_4, window_bounds = array<i64: 1, 128>}, {transform_indices = @transform_5, window_bounds = array<i64: 1, 14, 16, 128>}, {transform_indices = @transform_6, window_bounds = array<i64: 1, 1, 1, 128>}, {transform_indices = @transform_7, window_bounds = array<i64: 1, 1, 1, 128>}]} {
    %c0 = arith.constant 0 : index
    %c0_0 = arith.constant 0 : index
    %c0_1 = arith.constant 0 : index
    %c0_2 = arith.constant 0 : index
    %0 = vector.load %arg2[%c0, %c0_0, %c0_1, %c0_2] : memref<1x14x16x128xbf16, #tpu.memory_space<vmem>>, vector<1x14x16x128xbf16>
    %1 = vector.shape_cast %0 : vector<1x14x16x128xbf16> to vector<14x16x128xbf16>
    %2 = vector.shape_cast %1 : vector<14x16x128xbf16> to vector<224x128xbf16>
    %c0_3 = arith.constant 0 : index
    %c0_4 = arith.constant 0 : index
    %c0_5 = arith.constant 0 : index
    %c0_6 = arith.constant 0 : index
    %3 = vector.load %arg3[%c0_3, %c0_4, %c0_5, %c0_6] : memref<1x1x16x128xbf16, #tpu.memory_space<vmem>>, vector<1x1x16x128xbf16>
    %4 = vector.shape_cast %3 : vector<1x1x16x128xbf16> to vector<1x16x128xbf16>
    %5 = vector.shape_cast %4 : vector<1x16x128xbf16> to vector<16x128xbf16>
    %c0_7 = arith.constant 0 : index
    %c0_8 = arith.constant 0 : index
    %c0_9 = arith.constant 0 : index
    %c0_10 = arith.constant 0 : index
    %6 = vector.load %arg4[%c0_7, %c0_8, %c0_9, %c0_10] : memref<1x1x16x128xbf16, #tpu.memory_space<vmem>>, vector<1x1x16x128xbf16>
    %7 = vector.shape_cast %6 : vector<1x1x16x128xbf16> to vector<1x16x128xbf16>
    %8 = vector.shape_cast %7 : vector<1x16x128xbf16> to vector<16x128xbf16>
    %cst = arith.constant 0.000000e+00 : bf16
    %9 = vector.broadcast %cst : bf16 to vector<8x128xbf16>
    %10 = tpu.concatenate %2, %5, %8, %9 in 0 : vector<224x128xbf16>, vector<16x128xbf16>, vector<16x128xbf16>, vector<8x128xbf16> -> vector<264x128xbf16>
    %11 = vector.extract_strided_slice %10 {offsets = [0, 0], sizes = [224, 128], strides = [1, 1]} : vector<264x128xbf16> to vector<224x128xbf16>
    %c0_11 = arith.constant 0 : index
    %c0_12 = arith.constant 0 : index
    %c0_13 = arith.constant 0 : index
    %12 = vector.load %arg5[%c0_11, %c0_12, %c0_13] : memref<9x128x128xbf16, #tpu.memory_space<vmem>>, vector<1x128x128xbf16>
    %13 = vector.shape_cast %12 : vector<1x128x128xbf16> to vector<128x128xbf16>
    %cst_14 = arith.constant dense<0.000000e+00> : vector<224x128xf32>
    %14 = tpu.matmul %11, %13, %cst_14 {dimension_numbers = #tpu.dot_dimension_numbers<[1], [0], [0], [1], [0, 0, 1, 1], [], []>} : vector<224x128xbf16>, vector<128x128xbf16>, vector<224x128xf32> -> vector<224x128xf32>
    %c0_15 = arith.constant 0 : index
    %c0_16 = arith.constant 0 : index
    %15 = vector.load %arg10[%c0_15, %c0_16] : memref<224x128xf32, #tpu.memory_space<vmem>>, vector<224x128xf32>
    tpu.vector_store %arg10[%c0_15, %c0_16], %14 {strides = array<i32>} : memref<224x128xf32, #tpu.memory_space<vmem>>, vector<224x128xf32>,
    %c0_17 = arith.constant 0 : index
    %c0_18 = arith.constant 0 : index
    %16 = vector.load %arg10[%c0_17, %c0_18] : memref<224x128xf32, #tpu.memory_space<vmem>>, vector<224x128xf32>
    %17 = vector.extract_strided_slice %10 {offsets = [1, 0], sizes = [224, 128], strides = [1, 1]} : vector<264x128xbf16> to vector<224x128xbf16>
    %c1 = arith.constant 1 : index
    %c0_19 = arith.constant 0 : index
    %c0_20 = arith.constant 0 : index
    %18 = vector.load %arg5[%c1, %c0_19, %c0_20] : memref<9x128x128xbf16, #tpu.memory_space<vmem>>, vector<1x128x128xbf16>
    %19 = vector.shape_cast %18 : vector<1x128x128xbf16> to vector<128x128xbf16>
    %cst_21 = arith.constant dense<0.000000e+00> : vector<224x128xf32>
    %20 = tpu.matmul %17, %19, %cst_21 {dimension_numbers = #tpu.dot_dimension_numbers<[1], [0], [0], [1], [0, 0, 1, 1], [], []>} : vector<224x128xbf16>, vector<128x128xbf16>, vector<224x128xf32> -> vector<224x128xf32>
    %21 = arith.addf %16, %20 : vector<224x128xf32>
    %c0_22 = arith.constant 0 : index
    %c0_23 = arith.constant 0 : index
    %22 = vector.load %arg10[%c0_22, %c0_23] : memref<224x128xf32, #tpu.memory_space<vmem>>, vector<224x128xf32>
    tpu.vector_store %arg10[%c0_22, %c0_23], %21 {strides = array<i32>} : memref<224x128xf32, #tpu.memory_space<vmem>>, vector<224x128xf32>,
    %c0_24 = arith.constant 0 : index
    %c0_25 = arith.constant 0 : index
    %23 = vector.load %arg10[%c0_24, %c0_25] : memref<224x128xf32, #tpu.memory_space<vmem>>, vector<224x128xf32>
    %24 = vector.extract_strided_slice %10 {offsets = [2, 0], sizes = [224, 128], strides = [1, 1]} : vector<264x128xbf16> to vector<224x128xbf16>
    %c2 = arith.constant 2 : index
    %c0_26 = arith.constant 0 : index
    %c0_27 = arith.constant 0 : index
    %25 = vector.load %arg5[%c2, %c0_26, %c0_27] : memref<9x128x128xbf16, #tpu.memory_space<vmem>>, vector<1x128x128xbf16>
    %26 = vector.shape_cast %25 : vector<1x128x128xbf16> to vector<128x128xbf16>
    %cst_28 = arith.constant dense<0.000000e+00> : vector<224x128xf32>
    %27 = tpu.matmul %24, %26, %cst_28 {dimension_numbers = #tpu.dot_dimension_numbers<[1], [0], [0], [1], [0, 0, 1, 1], [], []>} : vector<224x128xbf16>, vector<128x128xbf16>, vector<224x128xf32> -> vector<224x128xf32>
    %28 = arith.addf %23, %27 : vector<224x128xf32>
    %c0_29 = arith.constant 0 : index
    %c0_30 = arith.constant 0 : index
    %29 = vector.load %arg10[%c0_29, %c0_30] : memref<224x128xf32, #tpu.memory_space<vmem>>, vector<224x128xf32>
    tpu.vector_store %arg10[%c0_29, %c0_30], %28 {strides = array<i32>} : memref<224x128xf32, #tpu.memory_space<vmem>>, vector<224x128xf32>,
    %c0_31 = arith.constant 0 : index
    %c0_32 = arith.constant 0 : index
    %30 = vector.load %arg10[%c0_31, %c0_32] : memref<224x128xf32, #tpu.memory_space<vmem>>, vector<224x128xf32>
    %31 = vector.extract_strided_slice %10 {offsets = [16, 0], sizes = [224, 128], strides = [1, 1]} : vector<264x128xbf16> to vector<224x128xbf16>
    %c3 = arith.constant 3 : index
    %c0_33 = arith.constant 0 : index
    %c0_34 = arith.constant 0 : index
    %32 = vector.load %arg5[%c3, %c0_33, %c0_34] : memref<9x128x128xbf16, #tpu.memory_space<vmem>>, vector<1x128x128xbf16>
    %33 = vector.shape_cast %32 : vector<1x128x128xbf16> to vector<128x128xbf16>
    %cst_35 = arith.constant dense<0.000000e+00> : vector<224x128xf32>
    %34 = tpu.matmul %31, %33, %cst_35 {dimension_numbers = #tpu.dot_dimension_numbers<[1], [0], [0], [1], [0, 0, 1, 1], [], []>} : vector<224x128xbf16>, vector<128x128xbf16>, vector<224x128xf32> -> vector<224x128xf32>
    %35 = arith.addf %30, %34 : vector<224x128xf32>
    %c0_36 = arith.constant 0 : index
    %c0_37 = arith.constant 0 : index
    %36 = vector.load %arg10[%c0_36, %c0_37] : memref<224x128xf32, #tpu.memory_space<vmem>>, vector<224x128xf32>
    tpu.vector_store %arg10[%c0_36, %c0_37], %35 {strides = array<i32>} : memref<224x128xf32, #tpu.memory_space<vmem>>, vector<224x128xf32>,
    %c0_38 = arith.constant 0 : index
    %c0_39 = arith.constant 0 : index
    %37 = vector.load %arg10[%c0_38, %c0_39] : memref<224x128xf32, #tpu.memory_space<vmem>>, vector<224x128xf32>
    %38 = vector.extract_strided_slice %10 {offsets = [17, 0], sizes = [224, 128], strides = [1, 1]} : vector<264x128xbf16> to vector<224x128xbf16>
    %c4 = arith.constant 4 : index
    %c0_40 = arith.constant 0 : index
    %c0_41 = arith.constant 0 : index
    %39 = vector.load %arg5[%c4, %c0_40, %c0_41] : memref<9x128x128xbf16, #tpu.memory_space<vmem>>, vector<1x128x128xbf16>
    %40 = vector.shape_cast %39 : vector<1x128x128xbf16> to vector<128x128xbf16>
    %cst_42 = arith.constant dense<0.000000e+00> : vector<224x128xf32>
    %41 = tpu.matmul %38, %40, %cst_42 {dimension_numbers = #tpu.dot_dimension_numbers<[1], [0], [0], [1], [0, 0, 1, 1], [], []>} : vector<224x128xbf16>, vector<128x128xbf16>, vector<224x128xf32> -> vector<224x128xf32>
    %42 = arith.addf %37, %41 : vector<224x128xf32>
    %c0_43 = arith.constant 0 : index
    %c0_44 = arith.constant 0 : index
    %43 = vector.load %arg10[%c0_43, %c0_44] : memref<224x128xf32, #tpu.memory_space<vmem>>, vector<224x128xf32>
    tpu.vector_store %arg10[%c0_43, %c0_44], %42 {strides = array<i32>} : memref<224x128xf32, #tpu.memory_space<vmem>>, vector<224x128xf32>,
    %c0_45 = arith.constant 0 : index
    %c0_46 = arith.constant 0 : index
    %44 = vector.load %arg10[%c0_45, %c0_46] : memref<224x128xf32, #tpu.memory_space<vmem>>, vector<224x128xf32>
    %45 = vector.extract_strided_slice %10 {offsets = [18, 0], sizes = [224, 128], strides = [1, 1]} : vector<264x128xbf16> to vector<224x128xbf16>
    %c5 = arith.constant 5 : index
    %c0_47 = arith.constant 0 : index
    %c0_48 = arith.constant 0 : index
    %46 = vector.load %arg5[%c5, %c0_47, %c0_48] : memref<9x128x128xbf16, #tpu.memory_space<vmem>>, vector<1x128x128xbf16>
    %47 = vector.shape_cast %46 : vector<1x128x128xbf16> to vector<128x128xbf16>
    %cst_49 = arith.constant dense<0.000000e+00> : vector<224x128xf32>
    %48 = tpu.matmul %45, %47, %cst_49 {dimension_numbers = #tpu.dot_dimension_numbers<[1], [0], [0], [1], [0, 0, 1, 1], [], []>} : vector<224x128xbf16>, vector<128x128xbf16>, vector<224x128xf32> -> vector<224x128xf32>
    %49 = arith.addf %44, %48 : vector<224x128xf32>
    %c0_50 = arith.constant 0 : index
    %c0_51 = arith.constant 0 : index
    %50 = vector.load %arg10[%c0_50, %c0_51] : memref<224x128xf32, #tpu.memory_space<vmem>>, vector<224x128xf32>
    tpu.vector_store %arg10[%c0_50, %c0_51], %49 {strides = array<i32>} : memref<224x128xf32, #tpu.memory_space<vmem>>, vector<224x128xf32>,
    %c0_52 = arith.constant 0 : index
    %c0_53 = arith.constant 0 : index
    %51 = vector.load %arg10[%c0_52, %c0_53] : memref<224x128xf32, #tpu.memory_space<vmem>>, vector<224x128xf32>
    %52 = vector.extract_strided_slice %10 {offsets = [32, 0], sizes = [224, 128], strides = [1, 1]} : vector<264x128xbf16> to vector<224x128xbf16>
    %c6 = arith.constant 6 : index
    %c0_54 = arith.constant 0 : index
    %c0_55 = arith.constant 0 : index
    %53 = vector.load %arg5[%c6, %c0_54, %c0_55] : memref<9x128x128xbf16, #tpu.memory_space<vmem>>, vector<1x128x128xbf16>
    %54 = vector.shape_cast %53 : vector<1x128x128xbf16> to vector<128x128xbf16>
    %cst_56 = arith.constant dense<0.000000e+00> : vector<224x128xf32>
    %55 = tpu.matmul %52, %54, %cst_56 {dimension_numbers = #tpu.dot_dimension_numbers<[1], [0], [0], [1], [0, 0, 1, 1], [], []>} : vector<224x128xbf16>, vector<128x128xbf16>, vector<224x128xf32> -> vector<224x128xf32>
    %56 = arith.addf %51, %55 : vector<224x128xf32>
    %c0_57 = arith.constant 0 : index
    %c0_58 = arith.constant 0 : index
    %57 = vector.load %arg10[%c0_57, %c0_58] : memref<224x128xf32, #tpu.memory_space<vmem>>, vector<224x128xf32>
    tpu.vector_store %arg10[%c0_57, %c0_58], %56 {strides = array<i32>} : memref<224x128xf32, #tpu.memory_space<vmem>>, vector<224x128xf32>,
    %c0_59 = arith.constant 0 : index
    %c0_60 = arith.constant 0 : index
    %58 = vector.load %arg10[%c0_59, %c0_60] : memref<224x128xf32, #tpu.memory_space<vmem>>, vector<224x128xf32>
    %59 = vector.extract_strided_slice %10 {offsets = [33, 0], sizes = [224, 128], strides = [1, 1]} : vector<264x128xbf16> to vector<224x128xbf16>
    %c7 = arith.constant 7 : index
    %c0_61 = arith.constant 0 : index
    %c0_62 = arith.constant 0 : index
    %60 = vector.load %arg5[%c7, %c0_61, %c0_62] : memref<9x128x128xbf16, #tpu.memory_space<vmem>>, vector<1x128x128xbf16>
    %61 = vector.shape_cast %60 : vector<1x128x128xbf16> to vector<128x128xbf16>
    %cst_63 = arith.constant dense<0.000000e+00> : vector<224x128xf32>
    %62 = tpu.matmul %59, %61, %cst_63 {dimension_numbers = #tpu.dot_dimension_numbers<[1], [0], [0], [1], [0, 0, 1, 1], [], []>} : vector<224x128xbf16>, vector<128x128xbf16>, vector<224x128xf32> -> vector<224x128xf32>
    %63 = arith.addf %58, %62 : vector<224x128xf32>
    %c0_64 = arith.constant 0 : index
    %c0_65 = arith.constant 0 : index
    %64 = vector.load %arg10[%c0_64, %c0_65] : memref<224x128xf32, #tpu.memory_space<vmem>>, vector<224x128xf32>
    tpu.vector_store %arg10[%c0_64, %c0_65], %63 {strides = array<i32>} : memref<224x128xf32, #tpu.memory_space<vmem>>, vector<224x128xf32>,
    %c0_66 = arith.constant 0 : index
    %c0_67 = arith.constant 0 : index
    %65 = vector.load %arg10[%c0_66, %c0_67] : memref<224x128xf32, #tpu.memory_space<vmem>>, vector<224x128xf32>
    %66 = vector.extract_strided_slice %10 {offsets = [34, 0], sizes = [224, 128], strides = [1, 1]} : vector<264x128xbf16> to vector<224x128xbf16>
    %c8 = arith.constant 8 : index
    %c0_68 = arith.constant 0 : index
    %c0_69 = arith.constant 0 : index
    %67 = vector.load %arg5[%c8, %c0_68, %c0_69] : memref<9x128x128xbf16, #tpu.memory_space<vmem>>, vector<1x128x128xbf16>
    %68 = vector.shape_cast %67 : vector<1x128x128xbf16> to vector<128x128xbf16>
    %cst_70 = arith.constant dense<0.000000e+00> : vector<224x128xf32>
    %69 = tpu.matmul %66, %68, %cst_70 {dimension_numbers = #tpu.dot_dimension_numbers<[1], [0], [0], [1], [0, 0, 1, 1], [], []>} : vector<224x128xbf16>, vector<128x128xbf16>, vector<224x128xf32> -> vector<224x128xf32>
    %70 = arith.addf %65, %69 : vector<224x128xf32>
    %c0_71 = arith.constant 0 : index
    %c0_72 = arith.constant 0 : index
    %71 = vector.load %arg10[%c0_71, %c0_72] : memref<224x128xf32, #tpu.memory_space<vmem>>, vector<224x128xf32>
    tpu.vector_store %arg10[%c0_71, %c0_72], %70 {strides = array<i32>} : memref<224x128xf32, #tpu.memory_space<vmem>>, vector<224x128xf32>,
    %c0_73 = arith.constant 0 : index
    %c0_74 = arith.constant 0 : index
    %72 = vector.load %arg10[%c0_73, %c0_74] : memref<224x128xf32, #tpu.memory_space<vmem>>, vector<224x128xf32>
    %c0_75 = arith.constant 0 : index
    %c0_76 = arith.constant 0 : index
    %73 = vector.load %arg6[%c0_75, %c0_76] : memref<1x128xf32, #tpu.memory_space<vmem>>, vector<1x128xf32>
    %74 = vector.broadcast %73 : vector<1x128xf32> to vector<224x128xf32>
    %75 = arith.addf %72, %74 : vector<224x128xf32>
    %76 = vector.shape_cast %75 : vector<224x128xf32> to vector<14x16x128xf32>
    %77 = arith.truncf %76 : vector<14x16x128xf32> to vector<14x16x128xbf16>
    %c0_77 = arith.constant 0 : index
    %c0_78 = arith.constant 0 : index
    %c0_79 = arith.constant 0 : index
    %c0_80 = arith.constant 0 : index
    %78 = vector.load %arg7[%c0_77, %c0_78, %c0_79, %c0_80] : memref<1x14x16x128xbf16, #tpu.memory_space<vmem>>, vector<1x14x16x128xbf16>
    %79 = vector.shape_cast %78 : vector<1x14x16x128xbf16> to vector<14x16x128xbf16>
    %80 = vector.shape_cast %77 : vector<14x16x128xbf16> to vector<1x14x16x128xbf16>
    tpu.vector_store %arg7[%c0_77, %c0_78, %c0_79, %c0_80], %80 {strides = array<i32>} : memref<1x14x16x128xbf16, #tpu.memory_space<vmem>>, vector<1x14x16x128xbf16>,
    %81 = vector.extract_strided_slice %76 {offsets = [0, 0, 0], sizes = [14, 14, 128], strides = [1, 1, 1]} : vector<14x16x128xf32> to vector<14x14x128xf32>
    %cst_81 = arith.constant dense<0.000000e+00> : vector<128xf32>
    %82 = vector.multi_reduction <add>, %81, %cst_81 [0, 1] : vector<14x14x128xf32> to vector<128xf32>
    %83 = vector.shape_cast %82 : vector<128xf32> to vector<1x1x128xf32>
    %c0_82 = arith.constant 0 : index
    %c0_83 = arith.constant 0 : index
    %c0_84 = arith.constant 0 : index
    %c0_85 = arith.constant 0 : index
    %84 = vector.load %arg8[%c0_82, %c0_83, %c0_84, %c0_85] : memref<1x1x1x128xf32, #tpu.memory_space<vmem>>, vector<1x1x1x128xf32>
    %85 = vector.shape_cast %84 : vector<1x1x1x128xf32> to vector<1x1x128xf32>
    %86 = vector.shape_cast %83 : vector<1x1x128xf32> to vector<1x1x1x128xf32>
    tpu.vector_store %arg8[%c0_82, %c0_83, %c0_84, %c0_85], %86 {strides = array<i32>} : memref<1x1x1x128xf32, #tpu.memory_space<vmem>>, vector<1x1x1x128xf32>,
    %87 = arith.mulf %81, %81 : vector<14x14x128xf32>
    %cst_86 = arith.constant dense<0.000000e+00> : vector<128xf32>
    %88 = vector.multi_reduction <add>, %87, %cst_86 [0, 1] : vector<14x14x128xf32> to vector<128xf32>
    %89 = vector.shape_cast %88 : vector<128xf32> to vector<1x1x128xf32>
    %c0_87 = arith.constant 0 : index
    %c0_88 = arith.constant 0 : index
    %c0_89 = arith.constant 0 : index
    %c0_90 = arith.constant 0 : index
    %90 = vector.load %arg9[%c0_87, %c0_88, %c0_89, %c0_90] : memref<1x1x1x128xf32, #tpu.memory_space<vmem>>, vector<1x1x1x128xf32>
    %91 = vector.shape_cast %90 : vector<1x1x1x128xf32> to vector<1x1x128xf32>
    %92 = vector.shape_cast %89 : vector<1x1x128xf32> to vector<1x1x1x128xf32>
    tpu.vector_store %arg9[%c0_87, %c0_88, %c0_89, %c0_90], %92 {strides = array<i32>} : memref<1x1x1x128xf32, #tpu.memory_space<vmem>>, vector<1x1x1x128xf32>,
    return
  }
  func.func @transform_0(%arg0: i32, %arg1: i32) -> (i32, i32, i32, i32) {
    %c0_i32 = arith.constant 0 : i32
    %c0_i32_0 = arith.constant 0 : i32
    %c0_i32_1 = arith.constant 0 : i32
    return %arg0, %arg1, %c0_i32, %c0_i32_0 : i32, i32, i32, i32
  }
  func.func @transform_1(%arg0: i32, %arg1: i32) -> (i32, i32, i32, i32) {
    %c1_i32 = arith.constant 1 : i32
    %0 = arith.addi %arg1, %c1_i32 : i32
    %c14_i32 = arith.constant 14 : i32
    %1 = arith.muli %0, %c14_i32 : i32
    %c0_i32 = arith.constant 0 : i32
    %c0_i32_0 = arith.constant 0 : i32
    %c0_i32_1 = arith.constant 0 : i32
    return %arg0, %1, %c0_i32, %c0_i32_0 : i32, i32, i32, i32
  }
  func.func @transform_2(%arg0: i32, %arg1: i32) -> (i32, i32, i32, i32) {
    %c1_i32 = arith.constant 1 : i32
    %0 = arith.addi %arg1, %c1_i32 : i32
    %c14_i32 = arith.constant 14 : i32
    %1 = arith.muli %0, %c14_i32 : i32
    %c1_i32_0 = arith.constant 1 : i32
    %2 = arith.addi %1, %c1_i32_0 : i32
    %c0_i32 = arith.constant 0 : i32
    %c0_i32_1 = arith.constant 0 : i32
    %c0_i32_2 = arith.constant 0 : i32
    return %arg0, %2, %c0_i32, %c0_i32_1 : i32, i32, i32, i32
  }
  func.func @transform_3(%arg0: i32, %arg1: i32) -> (i32, i32, i32) {
    %c0_i32 = arith.constant 0 : i32
    %c0_i32_0 = arith.constant 0 : i32
    %c0_i32_1 = arith.constant 0 : i32
    %c0_i32_2 = arith.constant 0 : i32
    return %c0_i32, %c0_i32_0, %c0_i32_1 : i32, i32, i32
  }
  func.func @transform_4(%arg0: i32, %arg1: i32) -> (i32, i32) {
    %c0_i32 = arith.constant 0 : i32
    %c0_i32_0 = arith.constant 0 : i32
    %c0_i32_1 = arith.constant 0 : i32
    return %c0_i32, %c0_i32_0 : i32, i32
  }
  func.func @transform_5(%arg0: i32, %arg1: i32) -> (i32, i32, i32, i32) {
    %c0_i32 = arith.constant 0 : i32
    %c0_i32_0 = arith.constant 0 : i32
    %c0_i32_1 = arith.constant 0 : i32
    return %arg0, %arg1, %c0_i32, %c0_i32_0 : i32, i32, i32, i32
  }
  func.func @transform_6(%arg0: i32, %arg1: i32) -> (i32, i32, i32, i32) {
    %c0_i32 = arith.constant 0 : i32
    %c0_i32_0 = arith.constant 0 : i32
    %c0_i32_1 = arith.constant 0 : i32
    return %arg0, %arg1, %c0_i32, %c0_i32_0 : i32, i32, i32, i32
  }
  func.func @transform_7(%arg0: i32, %arg1: i32) -> (i32, i32, i32, i32) {
    %c0_i32 = arith.constant 0 : i32
    %c0_i32_0 = arith.constant 0 : i32
    %c0_i32_1 = arith.constant 0 : i32
    return %arg0, %arg1, %c0_i32, %c0_i32_0 : i32, i32, i32, i32
  }
}

module attributes {stable_mosaic.version = 11 : i64} {
  func.func @kernel(%arg0: i32, %arg1: i32, %arg2: memref<1x12x16x128xbf16, #tpu.memory_space<vmem>>, %arg3: memref<1x1x16x128xbf16, #tpu.memory_space<vmem>>, %arg4: memref<1x1x16x128xbf16, #tpu.memory_space<vmem>>, %arg5: memref<1x128xf32, #tpu.memory_space<vmem>>, %arg6: memref<1x128xf32, #tpu.memory_space<vmem>>, %arg7: memref<9x128x128xbf16, #tpu.memory_space<vmem>>, %arg8: memref<1x128xf32, #tpu.memory_space<vmem>>, %arg9: memref<1x12x16x128xbf16, #tpu.memory_space<vmem>>, %arg10: memref<1x1x1x128xf32, #tpu.memory_space<vmem>>, %arg11: memref<1x1x1x128xf32, #tpu.memory_space<vmem>>, %arg12: memref<192x128xf32, #tpu.memory_space<vmem>>) attributes {dimension_semantics = [#tpu.dimension_semantics<parallel>, #tpu.dimension_semantics<parallel>], iteration_bounds = array<i64: 2, 1>, scalar_prefetch = 0 : i64, scratch_operands = 1 : i64, tpu.core_type = #tpu.core_type<tc>, window_params = [{transform_indices = @transform_0, window_bounds = array<i64: 1, 12, 16, 128>}, {transform_indices = @transform_1, window_bounds = array<i64: 1, 1, 16, 128>}, {transform_indices = @transform_2, window_bounds = array<i64: 1, 1, 16, 128>}, {pipeline_mode = #tpu.pipeline_mode<synchronous>, transform_indices = @transform_3, window_bounds = array<i64: 1, 128>}, {pipeline_mode = #tpu.pipeline_mode<synchronous>, transform_indices = @transform_4, window_bounds = array<i64: 1, 128>}, {pipeline_mode = #tpu.pipeline_mode<synchronous>, transform_indices = @transform_5, window_bounds = array<i64: 9, 128, 128>}, {pipeline_mode = #tpu.pipeline_mode<synchronous>, transform_indices = @transform_6, window_bounds = array<i64: 1, 128>}, {transform_indices = @transform_7, window_bounds = array<i64: 1, 12, 16, 128>}, {transform_indices = @transform_8, window_bounds = array<i64: 1, 1, 1, 128>}, {transform_indices = @transform_9, window_bounds = array<i64: 1, 1, 1, 128>}]} {
    %c0 = arith.constant 0 : index
    %c0_0 = arith.constant 0 : index
    %0 = vector.load %arg5[%c0, %c0_0] : memref<1x128xf32, #tpu.memory_space<vmem>>, vector<1x128xf32>
    %c0_1 = arith.constant 0 : index
    %c0_2 = arith.constant 0 : index
    %1 = vector.load %arg6[%c0_1, %c0_2] : memref<1x128xf32, #tpu.memory_space<vmem>>, vector<1x128xf32>
    %c0_3 = arith.constant 0 : index
    %c0_4 = arith.constant 0 : index
    %c0_5 = arith.constant 0 : index
    %c0_6 = arith.constant 0 : index
    %2 = vector.load %arg2[%c0_3, %c0_4, %c0_5, %c0_6] : memref<1x12x16x128xbf16, #tpu.memory_space<vmem>>, vector<1x12x16x128xbf16>
    %3 = vector.shape_cast %2 : vector<1x12x16x128xbf16> to vector<12x16x128xbf16>
    %4 = vector.shape_cast %3 : vector<12x16x128xbf16> to vector<192x128xbf16>
    %c0_7 = arith.constant 0 : index
    %c0_8 = arith.constant 0 : index
    %c0_9 = arith.constant 0 : index
    %c0_10 = arith.constant 0 : index
    %5 = vector.load %arg3[%c0_7, %c0_8, %c0_9, %c0_10] : memref<1x1x16x128xbf16, #tpu.memory_space<vmem>>, vector<1x1x16x128xbf16>
    %6 = vector.shape_cast %5 : vector<1x1x16x128xbf16> to vector<1x16x128xbf16>
    %7 = vector.shape_cast %6 : vector<1x16x128xbf16> to vector<16x128xbf16>
    %c0_11 = arith.constant 0 : index
    %c0_12 = arith.constant 0 : index
    %c0_13 = arith.constant 0 : index
    %c0_14 = arith.constant 0 : index
    %8 = vector.load %arg4[%c0_11, %c0_12, %c0_13, %c0_14] : memref<1x1x16x128xbf16, #tpu.memory_space<vmem>>, vector<1x1x16x128xbf16>
    %9 = vector.shape_cast %8 : vector<1x1x16x128xbf16> to vector<1x16x128xbf16>
    %10 = vector.shape_cast %9 : vector<1x16x128xbf16> to vector<16x128xbf16>
    %cst = arith.constant 0.000000e+00 : bf16
    %11 = vector.broadcast %cst : bf16 to vector<8x128xbf16>
    %12 = tpu.concatenate %4, %7, %10, %11 in 0 : vector<192x128xbf16>, vector<16x128xbf16>, vector<16x128xbf16>, vector<8x128xbf16> -> vector<232x128xbf16>
    %13 = arith.extf %12 : vector<232x128xbf16> to vector<232x128xf32>
    %14 = vector.broadcast %0 : vector<1x128xf32> to vector<232x128xf32>
    %15 = arith.mulf %13, %14 : vector<232x128xf32>
    %16 = vector.broadcast %1 : vector<1x128xf32> to vector<232x128xf32>
    %17 = arith.addf %15, %16 : vector<232x128xf32>
    %cst_15 = arith.constant 0.000000e+00 : f32
    %18 = vector.broadcast %cst_15 : f32 to vector<232x128xf32>
    %19 = arith.maximumf %17, %18 : vector<232x128xf32>
    %20 = arith.truncf %19 : vector<232x128xf32> to vector<232x128xbf16>
    %21 = vector.extract_strided_slice %20 {offsets = [0, 0], sizes = [192, 128], strides = [1, 1]} : vector<232x128xbf16> to vector<192x128xbf16>
    %c0_16 = arith.constant 0 : index
    %c0_17 = arith.constant 0 : index
    %c0_18 = arith.constant 0 : index
    %22 = vector.load %arg7[%c0_16, %c0_17, %c0_18] : memref<9x128x128xbf16, #tpu.memory_space<vmem>>, vector<1x128x128xbf16>
    %23 = vector.shape_cast %22 : vector<1x128x128xbf16> to vector<128x128xbf16>
    %cst_19 = arith.constant dense<0.000000e+00> : vector<192x128xf32>
    %24 = tpu.matmul %21, %23, %cst_19 {dimension_numbers = #tpu.dot_dimension_numbers<[1], [0], [0], [1], [0, 0, 1, 1], [], []>} : vector<192x128xbf16>, vector<128x128xbf16>, vector<192x128xf32> -> vector<192x128xf32>
    %c0_20 = arith.constant 0 : index
    %c0_21 = arith.constant 0 : index
    %25 = vector.load %arg12[%c0_20, %c0_21] : memref<192x128xf32, #tpu.memory_space<vmem>>, vector<192x128xf32>
    tpu.vector_store %arg12[%c0_20, %c0_21], %24 {strides = array<i32>} : memref<192x128xf32, #tpu.memory_space<vmem>>, vector<192x128xf32>,
    %c0_22 = arith.constant 0 : index
    %c0_23 = arith.constant 0 : index
    %26 = vector.load %arg12[%c0_22, %c0_23] : memref<192x128xf32, #tpu.memory_space<vmem>>, vector<192x128xf32>
    %27 = vector.extract_strided_slice %20 {offsets = [1, 0], sizes = [192, 128], strides = [1, 1]} : vector<232x128xbf16> to vector<192x128xbf16>
    %c1 = arith.constant 1 : index
    %c0_24 = arith.constant 0 : index
    %c0_25 = arith.constant 0 : index
    %28 = vector.load %arg7[%c1, %c0_24, %c0_25] : memref<9x128x128xbf16, #tpu.memory_space<vmem>>, vector<1x128x128xbf16>
    %29 = vector.shape_cast %28 : vector<1x128x128xbf16> to vector<128x128xbf16>
    %cst_26 = arith.constant dense<0.000000e+00> : vector<192x128xf32>
    %30 = tpu.matmul %27, %29, %cst_26 {dimension_numbers = #tpu.dot_dimension_numbers<[1], [0], [0], [1], [0, 0, 1, 1], [], []>} : vector<192x128xbf16>, vector<128x128xbf16>, vector<192x128xf32> -> vector<192x128xf32>
    %31 = arith.addf %26, %30 : vector<192x128xf32>
    %c0_27 = arith.constant 0 : index
    %c0_28 = arith.constant 0 : index
    %32 = vector.load %arg12[%c0_27, %c0_28] : memref<192x128xf32, #tpu.memory_space<vmem>>, vector<192x128xf32>
    tpu.vector_store %arg12[%c0_27, %c0_28], %31 {strides = array<i32>} : memref<192x128xf32, #tpu.memory_space<vmem>>, vector<192x128xf32>,
    %c0_29 = arith.constant 0 : index
    %c0_30 = arith.constant 0 : index
    %33 = vector.load %arg12[%c0_29, %c0_30] : memref<192x128xf32, #tpu.memory_space<vmem>>, vector<192x128xf32>
    %34 = vector.extract_strided_slice %20 {offsets = [2, 0], sizes = [192, 128], strides = [1, 1]} : vector<232x128xbf16> to vector<192x128xbf16>
    %c2 = arith.constant 2 : index
    %c0_31 = arith.constant 0 : index
    %c0_32 = arith.constant 0 : index
    %35 = vector.load %arg7[%c2, %c0_31, %c0_32] : memref<9x128x128xbf16, #tpu.memory_space<vmem>>, vector<1x128x128xbf16>
    %36 = vector.shape_cast %35 : vector<1x128x128xbf16> to vector<128x128xbf16>
    %cst_33 = arith.constant dense<0.000000e+00> : vector<192x128xf32>
    %37 = tpu.matmul %34, %36, %cst_33 {dimension_numbers = #tpu.dot_dimension_numbers<[1], [0], [0], [1], [0, 0, 1, 1], [], []>} : vector<192x128xbf16>, vector<128x128xbf16>, vector<192x128xf32> -> vector<192x128xf32>
    %38 = arith.addf %33, %37 : vector<192x128xf32>
    %c0_34 = arith.constant 0 : index
    %c0_35 = arith.constant 0 : index
    %39 = vector.load %arg12[%c0_34, %c0_35] : memref<192x128xf32, #tpu.memory_space<vmem>>, vector<192x128xf32>
    tpu.vector_store %arg12[%c0_34, %c0_35], %38 {strides = array<i32>} : memref<192x128xf32, #tpu.memory_space<vmem>>, vector<192x128xf32>,
    %c0_36 = arith.constant 0 : index
    %c0_37 = arith.constant 0 : index
    %40 = vector.load %arg12[%c0_36, %c0_37] : memref<192x128xf32, #tpu.memory_space<vmem>>, vector<192x128xf32>
    %41 = vector.extract_strided_slice %20 {offsets = [16, 0], sizes = [192, 128], strides = [1, 1]} : vector<232x128xbf16> to vector<192x128xbf16>
    %c3 = arith.constant 3 : index
    %c0_38 = arith.constant 0 : index
    %c0_39 = arith.constant 0 : index
    %42 = vector.load %arg7[%c3, %c0_38, %c0_39] : memref<9x128x128xbf16, #tpu.memory_space<vmem>>, vector<1x128x128xbf16>
    %43 = vector.shape_cast %42 : vector<1x128x128xbf16> to vector<128x128xbf16>
    %cst_40 = arith.constant dense<0.000000e+00> : vector<192x128xf32>
    %44 = tpu.matmul %41, %43, %cst_40 {dimension_numbers = #tpu.dot_dimension_numbers<[1], [0], [0], [1], [0, 0, 1, 1], [], []>} : vector<192x128xbf16>, vector<128x128xbf16>, vector<192x128xf32> -> vector<192x128xf32>
    %45 = arith.addf %40, %44 : vector<192x128xf32>
    %c0_41 = arith.constant 0 : index
    %c0_42 = arith.constant 0 : index
    %46 = vector.load %arg12[%c0_41, %c0_42] : memref<192x128xf32, #tpu.memory_space<vmem>>, vector<192x128xf32>
    tpu.vector_store %arg12[%c0_41, %c0_42], %45 {strides = array<i32>} : memref<192x128xf32, #tpu.memory_space<vmem>>, vector<192x128xf32>,
    %c0_43 = arith.constant 0 : index
    %c0_44 = arith.constant 0 : index
    %47 = vector.load %arg12[%c0_43, %c0_44] : memref<192x128xf32, #tpu.memory_space<vmem>>, vector<192x128xf32>
    %48 = vector.extract_strided_slice %20 {offsets = [17, 0], sizes = [192, 128], strides = [1, 1]} : vector<232x128xbf16> to vector<192x128xbf16>
    %c4 = arith.constant 4 : index
    %c0_45 = arith.constant 0 : index
    %c0_46 = arith.constant 0 : index
    %49 = vector.load %arg7[%c4, %c0_45, %c0_46] : memref<9x128x128xbf16, #tpu.memory_space<vmem>>, vector<1x128x128xbf16>
    %50 = vector.shape_cast %49 : vector<1x128x128xbf16> to vector<128x128xbf16>
    %cst_47 = arith.constant dense<0.000000e+00> : vector<192x128xf32>
    %51 = tpu.matmul %48, %50, %cst_47 {dimension_numbers = #tpu.dot_dimension_numbers<[1], [0], [0], [1], [0, 0, 1, 1], [], []>} : vector<192x128xbf16>, vector<128x128xbf16>, vector<192x128xf32> -> vector<192x128xf32>
    %52 = arith.addf %47, %51 : vector<192x128xf32>
    %c0_48 = arith.constant 0 : index
    %c0_49 = arith.constant 0 : index
    %53 = vector.load %arg12[%c0_48, %c0_49] : memref<192x128xf32, #tpu.memory_space<vmem>>, vector<192x128xf32>
    tpu.vector_store %arg12[%c0_48, %c0_49], %52 {strides = array<i32>} : memref<192x128xf32, #tpu.memory_space<vmem>>, vector<192x128xf32>,
    %c0_50 = arith.constant 0 : index
    %c0_51 = arith.constant 0 : index
    %54 = vector.load %arg12[%c0_50, %c0_51] : memref<192x128xf32, #tpu.memory_space<vmem>>, vector<192x128xf32>
    %55 = vector.extract_strided_slice %20 {offsets = [18, 0], sizes = [192, 128], strides = [1, 1]} : vector<232x128xbf16> to vector<192x128xbf16>
    %c5 = arith.constant 5 : index
    %c0_52 = arith.constant 0 : index
    %c0_53 = arith.constant 0 : index
    %56 = vector.load %arg7[%c5, %c0_52, %c0_53] : memref<9x128x128xbf16, #tpu.memory_space<vmem>>, vector<1x128x128xbf16>
    %57 = vector.shape_cast %56 : vector<1x128x128xbf16> to vector<128x128xbf16>
    %cst_54 = arith.constant dense<0.000000e+00> : vector<192x128xf32>
    %58 = tpu.matmul %55, %57, %cst_54 {dimension_numbers = #tpu.dot_dimension_numbers<[1], [0], [0], [1], [0, 0, 1, 1], [], []>} : vector<192x128xbf16>, vector<128x128xbf16>, vector<192x128xf32> -> vector<192x128xf32>
    %59 = arith.addf %54, %58 : vector<192x128xf32>
    %c0_55 = arith.constant 0 : index
    %c0_56 = arith.constant 0 : index
    %60 = vector.load %arg12[%c0_55, %c0_56] : memref<192x128xf32, #tpu.memory_space<vmem>>, vector<192x128xf32>
    tpu.vector_store %arg12[%c0_55, %c0_56], %59 {strides = array<i32>} : memref<192x128xf32, #tpu.memory_space<vmem>>, vector<192x128xf32>,
    %c0_57 = arith.constant 0 : index
    %c0_58 = arith.constant 0 : index
    %61 = vector.load %arg12[%c0_57, %c0_58] : memref<192x128xf32, #tpu.memory_space<vmem>>, vector<192x128xf32>
    %62 = vector.extract_strided_slice %20 {offsets = [32, 0], sizes = [192, 128], strides = [1, 1]} : vector<232x128xbf16> to vector<192x128xbf16>
    %c6 = arith.constant 6 : index
    %c0_59 = arith.constant 0 : index
    %c0_60 = arith.constant 0 : index
    %63 = vector.load %arg7[%c6, %c0_59, %c0_60] : memref<9x128x128xbf16, #tpu.memory_space<vmem>>, vector<1x128x128xbf16>
    %64 = vector.shape_cast %63 : vector<1x128x128xbf16> to vector<128x128xbf16>
    %cst_61 = arith.constant dense<0.000000e+00> : vector<192x128xf32>
    %65 = tpu.matmul %62, %64, %cst_61 {dimension_numbers = #tpu.dot_dimension_numbers<[1], [0], [0], [1], [0, 0, 1, 1], [], []>} : vector<192x128xbf16>, vector<128x128xbf16>, vector<192x128xf32> -> vector<192x128xf32>
    %66 = arith.addf %61, %65 : vector<192x128xf32>
    %c0_62 = arith.constant 0 : index
    %c0_63 = arith.constant 0 : index
    %67 = vector.load %arg12[%c0_62, %c0_63] : memref<192x128xf32, #tpu.memory_space<vmem>>, vector<192x128xf32>
    tpu.vector_store %arg12[%c0_62, %c0_63], %66 {strides = array<i32>} : memref<192x128xf32, #tpu.memory_space<vmem>>, vector<192x128xf32>,
    %c0_64 = arith.constant 0 : index
    %c0_65 = arith.constant 0 : index
    %68 = vector.load %arg12[%c0_64, %c0_65] : memref<192x128xf32, #tpu.memory_space<vmem>>, vector<192x128xf32>
    %69 = vector.extract_strided_slice %20 {offsets = [33, 0], sizes = [192, 128], strides = [1, 1]} : vector<232x128xbf16> to vector<192x128xbf16>
    %c7 = arith.constant 7 : index
    %c0_66 = arith.constant 0 : index
    %c0_67 = arith.constant 0 : index
    %70 = vector.load %arg7[%c7, %c0_66, %c0_67] : memref<9x128x128xbf16, #tpu.memory_space<vmem>>, vector<1x128x128xbf16>
    %71 = vector.shape_cast %70 : vector<1x128x128xbf16> to vector<128x128xbf16>
    %cst_68 = arith.constant dense<0.000000e+00> : vector<192x128xf32>
    %72 = tpu.matmul %69, %71, %cst_68 {dimension_numbers = #tpu.dot_dimension_numbers<[1], [0], [0], [1], [0, 0, 1, 1], [], []>} : vector<192x128xbf16>, vector<128x128xbf16>, vector<192x128xf32> -> vector<192x128xf32>
    %73 = arith.addf %68, %72 : vector<192x128xf32>
    %c0_69 = arith.constant 0 : index
    %c0_70 = arith.constant 0 : index
    %74 = vector.load %arg12[%c0_69, %c0_70] : memref<192x128xf32, #tpu.memory_space<vmem>>, vector<192x128xf32>
    tpu.vector_store %arg12[%c0_69, %c0_70], %73 {strides = array<i32>} : memref<192x128xf32, #tpu.memory_space<vmem>>, vector<192x128xf32>,
    %c0_71 = arith.constant 0 : index
    %c0_72 = arith.constant 0 : index
    %75 = vector.load %arg12[%c0_71, %c0_72] : memref<192x128xf32, #tpu.memory_space<vmem>>, vector<192x128xf32>
    %76 = vector.extract_strided_slice %20 {offsets = [34, 0], sizes = [192, 128], strides = [1, 1]} : vector<232x128xbf16> to vector<192x128xbf16>
    %c8 = arith.constant 8 : index
    %c0_73 = arith.constant 0 : index
    %c0_74 = arith.constant 0 : index
    %77 = vector.load %arg7[%c8, %c0_73, %c0_74] : memref<9x128x128xbf16, #tpu.memory_space<vmem>>, vector<1x128x128xbf16>
    %78 = vector.shape_cast %77 : vector<1x128x128xbf16> to vector<128x128xbf16>
    %cst_75 = arith.constant dense<0.000000e+00> : vector<192x128xf32>
    %79 = tpu.matmul %76, %78, %cst_75 {dimension_numbers = #tpu.dot_dimension_numbers<[1], [0], [0], [1], [0, 0, 1, 1], [], []>} : vector<192x128xbf16>, vector<128x128xbf16>, vector<192x128xf32> -> vector<192x128xf32>
    %80 = arith.addf %75, %79 : vector<192x128xf32>
    %c0_76 = arith.constant 0 : index
    %c0_77 = arith.constant 0 : index
    %81 = vector.load %arg12[%c0_76, %c0_77] : memref<192x128xf32, #tpu.memory_space<vmem>>, vector<192x128xf32>
    tpu.vector_store %arg12[%c0_76, %c0_77], %80 {strides = array<i32>} : memref<192x128xf32, #tpu.memory_space<vmem>>, vector<192x128xf32>,
    %c0_78 = arith.constant 0 : index
    %c0_79 = arith.constant 0 : index
    %82 = vector.load %arg12[%c0_78, %c0_79] : memref<192x128xf32, #tpu.memory_space<vmem>>, vector<192x128xf32>
    %c0_80 = arith.constant 0 : index
    %c0_81 = arith.constant 0 : index
    %83 = vector.load %arg8[%c0_80, %c0_81] : memref<1x128xf32, #tpu.memory_space<vmem>>, vector<1x128xf32>
    %84 = vector.broadcast %83 : vector<1x128xf32> to vector<192x128xf32>
    %85 = arith.addf %82, %84 : vector<192x128xf32>
    %86 = vector.shape_cast %85 : vector<192x128xf32> to vector<12x16x128xf32>
    %87 = arith.truncf %86 : vector<12x16x128xf32> to vector<12x16x128xbf16>
    %c0_82 = arith.constant 0 : index
    %c0_83 = arith.constant 0 : index
    %c0_84 = arith.constant 0 : index
    %c0_85 = arith.constant 0 : index
    %88 = vector.load %arg9[%c0_82, %c0_83, %c0_84, %c0_85] : memref<1x12x16x128xbf16, #tpu.memory_space<vmem>>, vector<1x12x16x128xbf16>
    %89 = vector.shape_cast %88 : vector<1x12x16x128xbf16> to vector<12x16x128xbf16>
    %90 = vector.shape_cast %87 : vector<12x16x128xbf16> to vector<1x12x16x128xbf16>
    tpu.vector_store %arg9[%c0_82, %c0_83, %c0_84, %c0_85], %90 {strides = array<i32>} : memref<1x12x16x128xbf16, #tpu.memory_space<vmem>>, vector<1x12x16x128xbf16>,
    %91 = vector.extract_strided_slice %86 {offsets = [0, 0, 0], sizes = [12, 12, 128], strides = [1, 1, 1]} : vector<12x16x128xf32> to vector<12x12x128xf32>
    %cst_86 = arith.constant dense<0.000000e+00> : vector<128xf32>
    %92 = vector.multi_reduction <add>, %91, %cst_86 [0, 1] : vector<12x12x128xf32> to vector<128xf32>
    %93 = vector.shape_cast %92 : vector<128xf32> to vector<1x1x128xf32>
    %c0_87 = arith.constant 0 : index
    %c0_88 = arith.constant 0 : index
    %c0_89 = arith.constant 0 : index
    %c0_90 = arith.constant 0 : index
    %94 = vector.load %arg10[%c0_87, %c0_88, %c0_89, %c0_90] : memref<1x1x1x128xf32, #tpu.memory_space<vmem>>, vector<1x1x1x128xf32>
    %95 = vector.shape_cast %94 : vector<1x1x1x128xf32> to vector<1x1x128xf32>
    %96 = vector.shape_cast %93 : vector<1x1x128xf32> to vector<1x1x1x128xf32>
    tpu.vector_store %arg10[%c0_87, %c0_88, %c0_89, %c0_90], %96 {strides = array<i32>} : memref<1x1x1x128xf32, #tpu.memory_space<vmem>>, vector<1x1x1x128xf32>,
    %97 = arith.mulf %91, %91 : vector<12x12x128xf32>
    %cst_91 = arith.constant dense<0.000000e+00> : vector<128xf32>
    %98 = vector.multi_reduction <add>, %97, %cst_91 [0, 1] : vector<12x12x128xf32> to vector<128xf32>
    %99 = vector.shape_cast %98 : vector<128xf32> to vector<1x1x128xf32>
    %c0_92 = arith.constant 0 : index
    %c0_93 = arith.constant 0 : index
    %c0_94 = arith.constant 0 : index
    %c0_95 = arith.constant 0 : index
    %100 = vector.load %arg11[%c0_92, %c0_93, %c0_94, %c0_95] : memref<1x1x1x128xf32, #tpu.memory_space<vmem>>, vector<1x1x1x128xf32>
    %101 = vector.shape_cast %100 : vector<1x1x1x128xf32> to vector<1x1x128xf32>
    %102 = vector.shape_cast %99 : vector<1x1x128xf32> to vector<1x1x1x128xf32>
    tpu.vector_store %arg11[%c0_92, %c0_93, %c0_94, %c0_95], %102 {strides = array<i32>} : memref<1x1x1x128xf32, #tpu.memory_space<vmem>>, vector<1x1x1x128xf32>,
    return
  }
  func.func @transform_0(%arg0: i32, %arg1: i32) -> (i32, i32, i32, i32) {
    %c0_i32 = arith.constant 0 : i32
    %c0_i32_0 = arith.constant 0 : i32
    %c0_i32_1 = arith.constant 0 : i32
    return %arg0, %arg1, %c0_i32, %c0_i32_0 : i32, i32, i32, i32
  }
  func.func @transform_1(%arg0: i32, %arg1: i32) -> (i32, i32, i32, i32) {
    %c1_i32 = arith.constant 1 : i32
    %0 = arith.addi %arg1, %c1_i32 : i32
    %c12_i32 = arith.constant 12 : i32
    %1 = arith.muli %0, %c12_i32 : i32
    %c0_i32 = arith.constant 0 : i32
    %c0_i32_0 = arith.constant 0 : i32
    %c0_i32_1 = arith.constant 0 : i32
    return %arg0, %1, %c0_i32, %c0_i32_0 : i32, i32, i32, i32
  }
  func.func @transform_2(%arg0: i32, %arg1: i32) -> (i32, i32, i32, i32) {
    %c1_i32 = arith.constant 1 : i32
    %0 = arith.addi %arg1, %c1_i32 : i32
    %c12_i32 = arith.constant 12 : i32
    %1 = arith.muli %0, %c12_i32 : i32
    %c1_i32_0 = arith.constant 1 : i32
    %2 = arith.addi %1, %c1_i32_0 : i32
    %c0_i32 = arith.constant 0 : i32
    %c0_i32_1 = arith.constant 0 : i32
    %c0_i32_2 = arith.constant 0 : i32
    return %arg0, %2, %c0_i32, %c0_i32_1 : i32, i32, i32, i32
  }
  func.func @transform_3(%arg0: i32, %arg1: i32) -> (i32, i32) {
    %c0_i32 = arith.constant 0 : i32
    %c0_i32_0 = arith.constant 0 : i32
    %c0_i32_1 = arith.constant 0 : i32
    return %c0_i32, %c0_i32_0 : i32, i32
  }
  func.func @transform_4(%arg0: i32, %arg1: i32) -> (i32, i32) {
    %c0_i32 = arith.constant 0 : i32
    %c0_i32_0 = arith.constant 0 : i32
    %c0_i32_1 = arith.constant 0 : i32
    return %c0_i32, %c0_i32_0 : i32, i32
  }
  func.func @transform_5(%arg0: i32, %arg1: i32) -> (i32, i32, i32) {
    %c0_i32 = arith.constant 0 : i32
    %c0_i32_0 = arith.constant 0 : i32
    %c0_i32_1 = arith.constant 0 : i32
    %c0_i32_2 = arith.constant 0 : i32
    return %c0_i32, %c0_i32_0, %c0_i32_1 : i32, i32, i32
  }
  func.func @transform_6(%arg0: i32, %arg1: i32) -> (i32, i32) {
    %c0_i32 = arith.constant 0 : i32
    %c0_i32_0 = arith.constant 0 : i32
    %c0_i32_1 = arith.constant 0 : i32
    return %c0_i32, %c0_i32_0 : i32, i32
  }
  func.func @transform_7(%arg0: i32, %arg1: i32) -> (i32, i32, i32, i32) {
    %c0_i32 = arith.constant 0 : i32
    %c0_i32_0 = arith.constant 0 : i32
    %c0_i32_1 = arith.constant 0 : i32
    return %arg0, %arg1, %c0_i32, %c0_i32_0 : i32, i32, i32, i32
  }
  func.func @transform_8(%arg0: i32, %arg1: i32) -> (i32, i32, i32, i32) {
    %c0_i32 = arith.constant 0 : i32
    %c0_i32_0 = arith.constant 0 : i32
    %c0_i32_1 = arith.constant 0 : i32
    return %arg0, %arg1, %c0_i32, %c0_i32_0 : i32, i32, i32, i32
  }
  func.func @transform_9(%arg0: i32, %arg1: i32) -> (i32, i32, i32, i32) {
    %c0_i32 = arith.constant 0 : i32
    %c0_i32_0 = arith.constant 0 : i32
    %c0_i32_1 = arith.constant 0 : i32
    return %arg0, %arg1, %c0_i32, %c0_i32_0 : i32, i32, i32, i32
  }
}

module attributes {stable_mosaic.version = 11 : i64} {
  func.func @kernel(%arg0: i32, %arg1: i32, %arg2: memref<1x12x16x128xbf16, #tpu.memory_space<vmem>>, %arg3: memref<1x128xf32, #tpu.memory_space<vmem>>, %arg4: memref<1x128xf32, #tpu.memory_space<vmem>>, %arg5: memref<128x128xbf16, #tpu.memory_space<vmem>>, %arg6: memref<1x128xf32, #tpu.memory_space<vmem>>, %arg7: memref<1x12x16x128xf32, #tpu.memory_space<vmem>>) attributes {dimension_semantics = [#tpu.dimension_semantics<parallel>, #tpu.dimension_semantics<parallel>], iteration_bounds = array<i64: 2, 1>, scalar_prefetch = 0 : i64, scratch_operands = 0 : i64, tpu.core_type = #tpu.core_type<tc>, window_params = [{transform_indices = @transform_0, window_bounds = array<i64: 1, 12, 16, 128>}, {pipeline_mode = #tpu.pipeline_mode<synchronous>, transform_indices = @transform_1, window_bounds = array<i64: 1, 128>}, {pipeline_mode = #tpu.pipeline_mode<synchronous>, transform_indices = @transform_2, window_bounds = array<i64: 1, 128>}, {pipeline_mode = #tpu.pipeline_mode<synchronous>, transform_indices = @transform_3, window_bounds = array<i64: 128, 128>}, {pipeline_mode = #tpu.pipeline_mode<synchronous>, transform_indices = @transform_4, window_bounds = array<i64: 1, 128>}, {transform_indices = @transform_5, window_bounds = array<i64: 1, 12, 16, 128>}]} {
    %c0 = arith.constant 0 : index
    %c0_0 = arith.constant 0 : index
    %c0_1 = arith.constant 0 : index
    %c0_2 = arith.constant 0 : index
    %0 = vector.load %arg2[%c0, %c0_0, %c0_1, %c0_2] : memref<1x12x16x128xbf16, #tpu.memory_space<vmem>>, vector<1x12x16x128xbf16>
    %1 = vector.shape_cast %0 : vector<1x12x16x128xbf16> to vector<12x16x128xbf16>
    %2 = vector.shape_cast %1 : vector<12x16x128xbf16> to vector<192x128xbf16>
    %3 = arith.extf %2 : vector<192x128xbf16> to vector<192x128xf32>
    %c0_3 = arith.constant 0 : index
    %c0_4 = arith.constant 0 : index
    %4 = vector.load %arg3[%c0_3, %c0_4] : memref<1x128xf32, #tpu.memory_space<vmem>>, vector<1x128xf32>
    %5 = vector.broadcast %4 : vector<1x128xf32> to vector<192x128xf32>
    %6 = arith.mulf %3, %5 : vector<192x128xf32>
    %c0_5 = arith.constant 0 : index
    %c0_6 = arith.constant 0 : index
    %7 = vector.load %arg4[%c0_5, %c0_6] : memref<1x128xf32, #tpu.memory_space<vmem>>, vector<1x128xf32>
    %8 = vector.broadcast %7 : vector<1x128xf32> to vector<192x128xf32>
    %9 = arith.addf %6, %8 : vector<192x128xf32>
    %cst = arith.constant 0.000000e+00 : f32
    %10 = vector.broadcast %cst : f32 to vector<192x128xf32>
    %11 = arith.maximumf %9, %10 : vector<192x128xf32>
    %12 = arith.truncf %11 : vector<192x128xf32> to vector<192x128xbf16>
    %c0_7 = arith.constant 0 : index
    %c0_8 = arith.constant 0 : index
    %13 = vector.load %arg5[%c0_7, %c0_8] : memref<128x128xbf16, #tpu.memory_space<vmem>>, vector<128x128xbf16>
    %cst_9 = arith.constant dense<0.000000e+00> : vector<192x128xf32>
    %14 = tpu.matmul %12, %13, %cst_9 {dimension_numbers = #tpu.dot_dimension_numbers<[1], [0], [0], [1], [0, 0, 1, 1], [], []>} : vector<192x128xbf16>, vector<128x128xbf16>, vector<192x128xf32> -> vector<192x128xf32>
    %c0_10 = arith.constant 0 : index
    %c0_11 = arith.constant 0 : index
    %15 = vector.load %arg6[%c0_10, %c0_11] : memref<1x128xf32, #tpu.memory_space<vmem>>, vector<1x128xf32>
    %16 = vector.broadcast %15 : vector<1x128xf32> to vector<192x128xf32>
    %17 = arith.addf %14, %16 : vector<192x128xf32>
    %18 = vector.shape_cast %17 : vector<192x128xf32> to vector<12x16x128xf32>
    %c0_12 = arith.constant 0 : index
    %c0_13 = arith.constant 0 : index
    %c0_14 = arith.constant 0 : index
    %c0_15 = arith.constant 0 : index
    %19 = vector.load %arg7[%c0_12, %c0_13, %c0_14, %c0_15] : memref<1x12x16x128xf32, #tpu.memory_space<vmem>>, vector<1x12x16x128xf32>
    %20 = vector.shape_cast %19 : vector<1x12x16x128xf32> to vector<12x16x128xf32>
    %21 = vector.shape_cast %18 : vector<12x16x128xf32> to vector<1x12x16x128xf32>
    tpu.vector_store %arg7[%c0_12, %c0_13, %c0_14, %c0_15], %21 {strides = array<i32>} : memref<1x12x16x128xf32, #tpu.memory_space<vmem>>, vector<1x12x16x128xf32>,
    return
  }
  func.func @transform_0(%arg0: i32, %arg1: i32) -> (i32, i32, i32, i32) {
    %c0_i32 = arith.constant 0 : i32
    %c0_i32_0 = arith.constant 0 : i32
    %c0_i32_1 = arith.constant 0 : i32
    return %arg0, %arg1, %c0_i32, %c0_i32_0 : i32, i32, i32, i32
  }
  func.func @transform_1(%arg0: i32, %arg1: i32) -> (i32, i32) {
    %c0_i32 = arith.constant 0 : i32
    %c0_i32_0 = arith.constant 0 : i32
    %c0_i32_1 = arith.constant 0 : i32
    return %c0_i32, %c0_i32_0 : i32, i32
  }
  func.func @transform_2(%arg0: i32, %arg1: i32) -> (i32, i32) {
    %c0_i32 = arith.constant 0 : i32
    %c0_i32_0 = arith.constant 0 : i32
    %c0_i32_1 = arith.constant 0 : i32
    return %c0_i32, %c0_i32_0 : i32, i32
  }
  func.func @transform_3(%arg0: i32, %arg1: i32) -> (i32, i32) {
    %c0_i32 = arith.constant 0 : i32
    %c0_i32_0 = arith.constant 0 : i32
    %c0_i32_1 = arith.constant 0 : i32
    return %c0_i32, %c0_i32_0 : i32, i32
  }
  func.func @transform_4(%arg0: i32, %arg1: i32) -> (i32, i32) {
    %c0_i32 = arith.constant 0 : i32
    %c0_i32_0 = arith.constant 0 : i32
    %c0_i32_1 = arith.constant 0 : i32
    return %c0_i32, %c0_i32_0 : i32, i32
  }
  func.func @transform_5(%arg0: i32, %arg1: i32) -> (i32, i32, i32, i32) {
    %c0_i32 = arith.constant 0 : i32
    %c0_i32_0 = arith.constant 0 : i32
    %c0_i32_1 = arith.constant 0 : i32
    return %arg0, %arg1, %c0_i32, %c0_i32_0 : i32, i32, i32, i32
  }
}

</mosaic_0001>

<llo_original>
// kernel: tile.8
$region0: #{tile.8}
  #allocation0 [shape = 's32[1]{0}', space=sflag, size = 0x4, scoped, tag = 'scoped memory for tile.8']
  %s0 = inlined_call_operand.vmem [shape: f32[4], index: 0, kind: input, shape index: {}]
  %s1 = inlined_call_operand.vmem [shape: f32[4,4], index: 1, kind: output, shape index: {}]
  // Predicated region
  $region2: #{tile.8} parent=0 // pred_check
    _
  $region3: #{tile.8} parent=0 // pred_check_branch
    %3 = sbr.rel (0) target = $region5
  $region4: #{tile.8} parent=0 // pred_region
    _
  $region5: #{tile.8} parent=0 // pred_fallthru
    _
  %v4 = vld [vmem:[%s0] ss:$0 sm:$0xff]
  %5 = vst [vmem:[%s1] sm:$0xf] %v4

// kernel: tile.9
$region0: #{tile.9}
  %s0 = inlined_call_operand.vmem [shape: f32[4,4], index: 0, kind: input, shape index: {}]
  %s1 = inlined_call_operand.vmem [shape: f32[16], index: 1, kind: output, shape index: {}]
  $region1: #{tile.9} parent=0
    #allocation0 [shape = 'u8[4096]{0}', space=vmem, size = 0x1000, scoped, tag = 'scoped mem for output reshape']
    #allocation1 [shape = 'u8[4096]{0}', space=vmem, size = 0x1000, scoped, tag = 'scoped mem for input reshape']
    %s3 = sshllo.u32 0, 4
    %v4 = vld [vmem:[%s0] sm:%s3]
    %5 = vst [vmem:[#allocation1] sm:%s3] %v4
    %v6 = vld [vmem:[#allocation1] sm:$0x1]
    %vm7 = vcmask 31744
    %8 = vst.msk [vmem:[#allocation0] sm:$0x1] %vm7, %v6
    %s9 = scalar_lea.vmem [#allocation1], 3
    %v10 = vld [vmem:[%s9] sm:$0x1]
    %11 = vrot.lane.b32.xlu0 %v10, 12
    %v12 = vpop.permute.xlu0 %11
    %vm13 = vcmask 130144
    %14 = vst.msk [vmem:[#allocation0] sm:$0x1] %vm13, %v12
    %s15 = scalar_lea.vmem [#allocation1], 2
    %v16 = vld [vmem:[%s15] sm:$0x1]
    %17 = vrot.lane.b32.xlu0 %v16, 8
    %v18 = vpop.permute.xlu0 %17
    %vm19 = vcmask 97344
    %20 = vst.msk [vmem:[#allocation0] sm:$0x1] %vm19, %v18
    %s21 = scalar_lea.vmem [#allocation1], 1
    %v22 = vld [vmem:[%s21] sm:$0x1]
    %23 = vrot.lane.b32.xlu0 %v22, 4
    %v24 = vpop.permute.xlu0 %23
    %vm25 = vcmask 64544
    %26 = vst.msk [vmem:[#allocation0] sm:$0x1] %vm25, %v24
    %s28 = sshllo.u32 0, 1
    %v30 = vld [vmem:[#allocation0] sm:%s28]
    %s31 = sshllo.u32 0, 1
    %32 = vst [vmem:[%s1] sm:%s31] %v30

// kernel: decoder_block_forward.5
$region0: #{decoder_block_forward.5}
  #allocation0 [shape = 'u32[]', space=smem, size = 0x4, offset = 0x4, fixed_abs, tag = 'smem constant byte address 0x4 - core index']
  #allocation1 [shape = 'u32[144,128]{1,0:T(1,128)}', space=vmem, size = 0x12000, scoped, tag = 'internal scratch']
  %s0 = inlined_call_operand.vmem [shape: bf16[2,12,16,128], index: 0, kind: input, shape index: {}]
  %s1 = inlined_call_operand.vmem [shape: f32[1,128], index: 1, kind: input, shape index: {}]
  %s2 = inlined_call_operand.vmem [shape: f32[1,128], index: 2, kind: input, shape index: {}]
  %s3 = inlined_call_operand.vmem [shape: bf16[128,128], index: 3, kind: input, shape index: {}]
  %s4 = inlined_call_operand.vmem [shape: f32[1,128], index: 4, kind: input, shape index: {}]
  %s5 = inlined_call_operand.vmem [shape: f32[2,12,16,128], index: 5, kind: output, shape index: {}]
  %s6 = sld [smem:[#allocation0]]
  $region53: #{decoder_block_forward.5} parent=0
    _
  %s8 = ssub.s32 1, %s6
  %s9 = scalar_select 0, %s8, %s6
  loop: start=0, step=1, limit=4
  $region2: #{decoder_block_forward.5} parent=0 // loop_pre_header
    _
  $region3: #{decoder_block_forward.5} parent=0 // loop_header
    %s11 = sphi 0, %s15
    %p12 = scmp.ge.s32.totalorder %s11, 4
    %s18 = sphi 0, %s30
    %s19 = sphi 0, %s26
    %s20 = sphi 0, %s18
    %s21 = sphi 0, %s19
    %s22 = sphi 0, %s20
    %s23 = sphi 0, %s21
    %s35 = sphi 0, %s37
    %s38 = sphi 0, %s35
    %s39 = sphi 0, %s38
    %s55 = sphi 0, %s39
    %s59 = sphi 0, %s59
    %s61 = sphi 0, %s59
    %s62 = sphi 0, %s61
    %s76 = sphi 0, %s62
    %s80 = sphi 0, %s80
    %s82 = sphi 0, %s80
    %s83 = sphi 0, %s82
    %s97 = sphi 0, %s83
    %s101 = sphi 0, %s101
    %s103 = sphi 0, %s101
    %s104 = sphi 0, %s103
    %s118 = sphi 0, %s104
    %s122 = sphi 0, %s122
    %s124 = sphi 0, %s122
    %s125 = sphi 0, %s124
    %s139 = sphi 0, %s125
    %s147 = sphi 0, %s149
    %s150 = sphi 0, %s147
    %s151 = sphi 0, %s150
    %s167 = sphi 0, %s151
  $region4: #{decoder_block_forward.5} parent=0 // loop_header_branch
    %14 = sbr.rel (%p12) target = $region8
  $region5: #{decoder_block_forward.5} parent=0 // loop_body
    %s16 = ssub.s32 %s11, 1
    %s17 = ssub.s32 %s11, 2
    %s24 = sadd.s32 1, %s19
    %p25 = scmp.ge.s32.totalorder %s24, 1
    %s26 = scalar_select %p25, 0, %s24
    %s27 = sadd.s32 1, %s18
    %s28 = scalar_select %p25, %s27, %s18
    %p29 = scmp.ge.s32.totalorder %s28, 2
    %s30 = scalar_select %p29, 0, %s28
    %s31 = ssub.s32 %s18, %s30
    %s32 = ssub.s32 %s19, %s26
    %s33 = sor.u32 %s31, %s32
    %p34 = scmp.eq.s32.totalorder %s33, 0
    %s36 = sadd.s32 %s35, 1
    %s37 = scalar_select %p34, %s35, %s36
    %p40 = pneg %p34
    %p41 = scmp.eq.s32.totalorder %s11, 1
    %p42 = por %p40, %p41
    %p43 = scmp.ne.s32.totalorder %s35, %s38
    %p44 = scmp.eq.s32.totalorder %s11, 0
    %p45 = por %p43, %p44
    %p46 = scmp.ne.s32.totalorder %s35, %s38
    %p47 = scmp.eq.s32.totalorder %s16, 1
    %p48 = por %p46, %p47
    %p49 = scmp.ne.s32.totalorder %s38, %s39
    %p50 = scmp.eq.s32.totalorder %s16, 0
    %p51 = por %p49, %p50
    %p52 = scmp.ne.s32.totalorder %s38, %s39
    %p53 = scmp.eq.s32.totalorder %s17, 1
    %p54 = por %p52, %p53
    %p56 = scmp.ne.s32.totalorder %s39, %s55
    %p57 = scmp.eq.s32.totalorder %s17, 0
    %p58 = por %p56, %p57
    %s60 = sadd.s32 %s59, 1
    %p63 = scmp.eq.s32.totalorder %s11, 1
    %p64 = scmp.ne.s32.totalorder %s59, %s61
    %p65 = scmp.eq.s32.totalorder %s11, 0
    %p66 = por %p64, %p65
    %p67 = scmp.ne.s32.totalorder %s59, %s61
    %p68 = scmp.eq.s32.totalorder %s16, 1
    %p69 = por %p67, %p68
    %p70 = scmp.ne.s32.totalorder %s61, %s62
    %p71 = scmp.eq.s32.totalorder %s16, 0
    %p72 = por %p70, %p71
    %p73 = scmp.ne.s32.totalorder %s61, %s62
    %p74 = scmp.eq.s32.totalorder %s17, 1
    %p75 = por %p73, %p74
    %p77 = scmp.ne.s32.totalorder %s62, %s76
    %p78 = scmp.eq.s32.totalorder %s17, 0
    %p79 = por %p77, %p78
    %s81 = sadd.s32 %s80, 1
    %p84 = scmp.eq.s32.totalorder %s11, 1
    %p85 = scmp.ne.s32.totalorder %s80, %s82
    %p86 = scmp.eq.s32.totalorder %s11, 0
    %p87 = por %p85, %p86
    %p88 = scmp.ne.s32.totalorder %s80, %s82
    %p89 = scmp.eq.s32.totalorder %s16, 1
    %p90 = por %p88, %p89
    %p91 = scmp.ne.s32.totalorder %s82, %s83
    %p92 = scmp.eq.s32.totalorder %s16, 0
    %p93 = por %p91, %p92
    %p94 = scmp.ne.s32.totalorder %s82, %s83
    %p95 = scmp.eq.s32.totalorder %s17, 1
    %p96 = por %p94, %p95
    %p98 = scmp.ne.s32.totalorder %s83, %s97
    %p99 = scmp.eq.s32.totalorder %s17, 0
    %p100 = por %p98, %p99
    %s102 = sadd.s32 %s101, 1
    %p105 = scmp.eq.s32.totalorder %s11, 1
    %p106 = scmp.ne.s32.totalorder %s101, %s103
    %p107 = scmp.eq.s32.totalorder %s11, 0
    %p108 = por %p106, %p107
    %p109 = scmp.ne.s32.totalorder %s101, %s103
    %p110 = scmp.eq.s32.totalorder %s16, 1
    %p111 = por %p109, %p110
    %p112 = scmp.ne.s32.totalorder %s103, %s104
    %p113 = scmp.eq.s32.totalorder %s16, 0
    %p114 = por %p112, %p113
    %p115 = scmp.ne.s32.totalorder %s103, %s104
    %p116 = scmp.eq.s32.totalorder %s17, 1
    %p117 = por %p115, %p116
    %p119 = scmp.ne.s32.totalorder %s104, %s118
    %p120 = scmp.eq.s32.totalorder %s17, 0
    %p121 = por %p119, %p120
    %s123 = sadd.s32 %s122, 1
    %p126 = scmp.eq.s32.totalorder %s11, 1
    %p127 = scmp.ne.s32.totalorder %s122, %s124
    %p128 = scmp.eq.s32.totalorder %s11, 0
    %p129 = por %p127, %p128
    %p130 = scmp.ne.s32.totalorder %s122, %s124
    %p131 = scmp.eq.s32.totalorder %s16, 1
    %p132 = por %p130, %p131
    %p133 = scmp.ne.s32.totalorder %s124, %s125
    %p134 = scmp.eq.s32.totalorder %s16, 0
    %p135 = por %p133, %p134
    %p136 = scmp.ne.s32.totalorder %s124, %s125
    %p137 = scmp.eq.s32.totalorder %s17, 1
    %p138 = por %p136, %p137
    %p140 = scmp.ne.s32.totalorder %s125, %s139
    %p141 = scmp.eq.s32.totalorder %s17, 0
    %p142 = por %p140, %p141
    %s143 = ssub.s32 %s18, %s30
    %s144 = ssub.s32 %s19, %s26
    %s145 = sor.u32 %s143, %s144
    %p146 = scmp.eq.s32.totalorder %s145, 0
    %s148 = sadd.s32 %s147, 1
    %s149 = scalar_select %p146, %s147, %s148
    %p152 = pneg %p146
    %p153 = scmp.eq.s32.totalorder %s11, 1
    %p154 = por %p152, %p153
    %p155 = scmp.ne.s32.totalorder %s147, %s150
    %p156 = scmp.eq.s32.totalorder %s11, 0
    %p157 = por %p155, %p156
    %p158 = scmp.ne.s32.totalorder %s147, %s150
    %p159 = scmp.eq.s32.totalorder %s16, 1
    %p160 = por %p158, %p159
    %p161 = scmp.ne.s32.totalorder %s150, %s151
    %p162 = scmp.eq.s32.totalorder %s16, 0
    %p163 = por %p161, %p162
    %p164 = scmp.ne.s32.totalorder %s150, %s151
    %p165 = scmp.eq.s32.totalorder %s17, 1
    %p166 = por %p164, %p165
    %p168 = scmp.ne.s32.totalorder %s151, %s167
    %p169 = scmp.eq.s32.totalorder %s17, 0
    %p170 = por %p168, %p169
    %p171 = scmp.le.s32.totalorder 1, %s11
    %p172 = scmp.lt.s32.totalorder %s11, 3
    %p173 = pnand %p171, %p172
    %p174 = pneg %p173
    // Predicated region
    $region9: #{decoder_block_forward.5} parent=5 // pred_check
      _
    $region10: #{decoder_block_forward.5} parent=5 // pred_check_branch
      %176 = sbr.rel (%p173) target = $region12
    $region11: #{decoder_block_forward.5} parent=5 // pred_region
      %s177 = ssub.s32 %s11, 1
      // Predicated region
      $region13: #{decoder_block_forward.5} parent=11 // pred_check
        %p178 = pneg %p72
      $region14: #{decoder_block_forward.5} parent=11 // pred_check_branch
        %180 = sbr.rel (%p178) target = $region16
      $region15: #{decoder_block_forward.5} parent=11 // pred_region
        _
      $region16: #{decoder_block_forward.5} parent=11 // pred_fallthru
        _
      // Predicated region
      $region17: #{decoder_block_forward.5} parent=11 // pred_check
        %p181 = pneg %p93
      $region18: #{decoder_block_forward.5} parent=11 // pred_check_branch
        %183 = sbr.rel (%p181) target = $region20
      $region19: #{decoder_block_forward.5} parent=11 // pred_region
        _
      $region20: #{decoder_block_forward.5} parent=11 // pred_fallthru
        _
      // Predicated region
      $region21: #{decoder_block_forward.5} parent=11 // pred_check
        %p184 = pneg %p114
      $region22: #{decoder_block_forward.5} parent=11 // pred_check_branch
        %186 = sbr.rel (%p184) target = $region24
      $region23: #{decoder_block_forward.5} parent=11 // pred_region
        _
      $region24: #{decoder_block_forward.5} parent=11 // pred_fallthru
        _
      // Predicated region
      $region25: #{decoder_block_forward.5} parent=11 // pred_check
        %p187 = pneg %p135
      $region26: #{decoder_block_forward.5} parent=11 // pred_check_branch
        %189 = sbr.rel (%p187) target = $region28
      $region27: #{decoder_block_forward.5} parent=11 // pred_region
        _
      $region28: #{decoder_block_forward.5} parent=11 // pred_fallthru
        _
    $region12: #{decoder_block_forward.5} parent=5 // pred_fallthru
      _
    %p190 = scmp.lt.s32.totalorder %s11, 2
    // Predicated region
    $region29: #{decoder_block_forward.5} parent=5 // pred_check
      %p191 = pneg %p190
    $region30: #{decoder_block_forward.5} parent=5 // pred_check_branch
      %193 = sbr.rel (%p191) target = $region32
    $region31: #{decoder_block_forward.5} parent=5 // pred_region
      // Predicated region
      $region33: #{decoder_block_forward.5} parent=31 // pred_check
        %p194 = pneg %p45
      $region34: #{decoder_block_forward.5} parent=31 // pred_check_branch
        %196 = sbr.rel (%p194) target = $region36
      $region35: #{decoder_block_forward.5} parent=31 // pred_region
        %s197 = smul.u32 12, %s19
        %p198 = scmp.lt.s32.totalorder %s18, 1
        %s199 = scalar_select %p198, %s18, 1
        %p200 = scmp.lt.s32.totalorder %s197, 11
        %s201 = scalar_select %p200, %s197, 11
        %s202 = smul.addr %s201, 2
        %s203 = smul.addr %s199, 24
        %s204 = sadd.s32 %s202, %s203
        %s205 = smul.addr %s204, 4
        %s206 = scalar_lea.vmem %s0, %s205
        %s207 = smul.u32 12, %s19
      $region36: #{decoder_block_forward.5} parent=31 // pred_fallthru
        _
    $region32: #{decoder_block_forward.5} parent=5 // pred_fallthru
      _
    %p208 = scmp.le.s32.totalorder 1, %s11
    %p209 = scmp.lt.s32.totalorder %s11, 3
    %p210 = pnand %p208, %p209
    %p211 = pneg %p210
    // Predicated region
    $region37: #{decoder_block_forward.5} parent=5 // pred_check
      _
    $region38: #{decoder_block_forward.5} parent=5 // pred_check_branch
      %213 = sbr.rel (%p210) target = $region40
    $region39: #{decoder_block_forward.5} parent=5 // pred_region
      %s214 = ssub.s32 %s11, 1
      %s215 = smul.u32 12, %s21
      %p216 = scmp.lt.s32.totalorder %s20, 1
      %s217 = scalar_select %p216, %s20, 1
      %p218 = scmp.lt.s32.totalorder %s215, 11
      %s219 = scalar_select %p218, %s215, 11
      %s220 = smul.addr %s219, 2
      %s221 = smul.addr %s217, 24
      %s222 = sadd.s32 %s220, %s221
      %s223 = smul.addr %s222, 4
      %s224 = scalar_lea.vmem %s0, %s223
      %p225 = pneg %p51
      %p226 = pneg %p48
      %p227 = pneg %p72
      %p228 = pneg %p69
      %p229 = pneg %p93
      %p230 = pneg %p90
      %p231 = pneg %p114
      %p232 = pneg %p111
      %p233 = pneg %p135
      %p234 = pneg %p132
      %p235 = pneg %p163
      %p236 = pneg %p160
      %s237 = smul.u32 12, %s21
      %p238 = scmp.lt.s32.totalorder %s20, 1
      %s239 = scalar_select %p238, %s20, 1
      %p240 = scmp.lt.s32.totalorder %s237, 11
      %s241 = scalar_select %p240, %s237, 11
      %s242 = smul.addr %s241, 2
      %s243 = smul.addr %s239, 24
      %s244 = sadd.s32 %s242, %s243
      %s245 = smul.addr %s244, 8
      %s246 = scalar_lea.vmem %s5, %s245
      %s247 = smul.u32 12, %s21
      %p248 = scmp.lt.s32.totalorder %s20, 1
      %s249 = scalar_select %p248, %s20, 1
      %p250 = scmp.lt.s32.totalorder %s247, 11
      %s251 = scalar_select %p250, %s247, 11
      %s252 = smul.addr %s251, 2
      %s253 = smul.addr %s249, 24
      %s254 = sadd.s32 %s252, %s253
      %s255 = smul.addr %s254, 4
      %s256 = scalar_lea.vmem %s0, %s255
      %s257 = smul.u32 12, %s21
      %s258 = smul.u32 12, %s21
      %p259 = scmp.lt.s32.totalorder %s20, 1
      %s260 = scalar_select %p259, %s20, 1
      %p261 = scmp.lt.s32.totalorder %s258, 11
      %s262 = scalar_select %p261, %s258, 11
      %s263 = smul.addr %s262, 2
      %s264 = smul.addr %s260, 24
      %s265 = sadd.s32 %s263, %s264
      %s266 = smul.addr %s265, 8
      %s267 = scalar_lea.vmem %s5, %s266
      %s268 = smul.u32 12, %s21
      %v270 = vld [vmem:[%s256] sm:$0xf]
      %v271 = vld [vmem:[%s256 + $0x4] sm:$0xf]
      %v272 = vld [vmem:[%s256 + $0x8] sm:$0xf]
      %v273 = vld [vmem:[%s256 + $0xc] sm:$0xf]
      %v274 = vld [vmem:[%s256 + $0x10] sm:$0xf]
      %v275 = vld [vmem:[%s256 + $0x14] sm:$0xf]
      %v276 = vld [vmem:[%s256 + $0x18] sm:$0xf]
      %v277 = vld [vmem:[%s256 + $0x1c] sm:$0xf]
      %v278 = vld [vmem:[%s256 + $0x20] sm:$0xf]
      %v279 = vld [vmem:[%s256 + $0x24] sm:$0xf]
      %v280 = vld [vmem:[%s256 + $0x28] sm:$0xf]
      %v281 = vld [vmem:[%s256 + $0x2c] sm:$0xf]
      %v282 = vld [vmem:[%s256 + $0x30] sm:$0xf]
      %v283 = vld [vmem:[%s256 + $0x34] sm:$0xf]
      %v284 = vld [vmem:[%s256 + $0x38] sm:$0xf]
      %v285 = vld [vmem:[%s256 + $0x3c] sm:$0xf]
      %v286 = vld [vmem:[%s256 + $0x40] sm:$0xf]
      %v287 = vld [vmem:[%s256 + $0x44] sm:$0xf]
      %v288 = vld [vmem:[%s256 + $0x48] sm:$0xf]
      %v289 = vld [vmem:[%s256 + $0x4c] sm:$0xf]
      %v290 = vld [vmem:[%s256 + $0x50] sm:$0xf]
      %v291 = vld [vmem:[%s256 + $0x54] sm:$0xf]
      %v292 = vld [vmem:[%s256 + $0x58] sm:$0xf]
      %v293 = vld [vmem:[%s256 + $0x5c] sm:$0xf]
      %v294 = vunpack.c.l.bf16 %v270
      %v295 = vunpack.c.l.bf16 %v271
      %v296 = vunpack.c.l.bf16 %v272
      %v297 = vunpack.c.l.bf16 %v273
      %v298 = vunpack.c.l.bf16 %v274
      %v299 = vunpack.c.l.bf16 %v275
      %v300 = vunpack.c.l.bf16 %v276
      %v301 = vunpack.c.l.bf16 %v277
      %v302 = vunpack.c.l.bf16 %v278
      %v303 = vunpack.c.l.bf16 %v279
      %v304 = vunpack.c.l.bf16 %v280
      %v305 = vunpack.c.l.bf16 %v281
      %v306 = vunpack.c.l.bf16 %v282
      %v307 = vunpack.c.l.bf16 %v283
      %v308 = vunpack.c.l.bf16 %v284
      %v309 = vunpack.c.l.bf16 %v285
      %v310 = vunpack.c.l.bf16 %v286
      %v311 = vunpack.c.l.bf16 %v287
      %v312 = vunpack.c.l.bf16 %v288
      %v313 = vunpack.c.l.bf16 %v289
      %v314 = vunpack.c.l.bf16 %v290
      %v315 = vunpack.c.l.bf16 %v291
      %v316 = vunpack.c.l.bf16 %v292
      %v317 = vunpack.c.l.bf16 %v293
      %v318 = vld [vmem:[%s1] sm:$0x1]
      %v320 = vlaneseq
      %v321 = vshrl.u32 %v320, 7
      %v322 = vsub.s32 0, %v321
      %v323 = vrot.slane %v318, %v322
      %v325 = vmul.f32 %v294, %v323
      %v326 = vmul.f32 %v295, %v323
      %v327 = vmul.f32 %v296, %v323
      %v328 = vmul.f32 %v297, %v323
      %v329 = vmul.f32 %v298, %v323
      %v330 = vmul.f32 %v299, %v323
      %v331 = vmul.f32 %v300, %v323
      %v332 = vmul.f32 %v301, %v323
      %v333 = vmul.f32 %v302, %v323
      %v334 = vmul.f32 %v303, %v323
      %v335 = vmul.f32 %v304, %v323
      %v336 = vmul.f32 %v305, %v323
      %v337 = vmul.f32 %v306, %v323
      %v338 = vmul.f32 %v307, %v323
      %v339 = vmul.f32 %v308, %v323
      %v340 = vmul.f32 %v309, %v323
      %v341 = vmul.f32 %v310, %v323
      %v342 = vmul.f32 %v311, %v323
      %v343 = vmul.f32 %v312, %v323
      %v344 = vmul.f32 %v313, %v323
      %v345 = vmul.f32 %v314, %v323
      %v346 = vmul.f32 %v315, %v323
      %v347 = vmul.f32 %v316, %v323
      %v348 = vmul.f32 %v317, %v323
      %v349 = vld [vmem:[%s2] sm:$0x1]
      %v351 = vlaneseq
      %v352 = vshrl.u32 %v351, 7
      %v353 = vsub.s32 0, %v352
      %v354 = vrot.slane %v349, %v353
      %v356 = vadd.f32 %v325, %v354
      %v357 = vadd.f32 %v326, %v354
      %v358 = vadd.f32 %v327, %v354
      %v359 = vadd.f32 %v328, %v354
      %v360 = vadd.f32 %v329, %v354
      %v361 = vadd.f32 %v330, %v354
      %v362 = vadd.f32 %v331, %v354
      %v363 = vadd.f32 %v332, %v354
      %v364 = vadd.f32 %v333, %v354
      %v365 = vadd.f32 %v334, %v354
      %v366 = vadd.f32 %v335, %v354
      %v367 = vadd.f32 %v336, %v354
      %v368 = vadd.f32 %v337, %v354
      %v369 = vadd.f32 %v338, %v354
      %v370 = vadd.f32 %v339, %v354
      %v371 = vadd.f32 %v340, %v354
      %v372 = vadd.f32 %v341, %v354
      %v373 = vadd.f32 %v342, %v354
      %v374 = vadd.f32 %v343, %v354
      %v375 = vadd.f32 %v344, %v354
      %v376 = vadd.f32 %v345, %v354
      %v377 = vadd.f32 %v346, %v354
      %v378 = vadd.f32 %v347, %v354
      %v379 = vadd.f32 %v348, %v354
      %v380 = vmax.f32 %v356, 0.0
      %v381 = vmax.f32 %v357, 0.0
      %v382 = vmax.f32 %v358, 0.0
      %v383 = vmax.f32 %v359, 0.0
      %v384 = vmax.f32 %v360, 0.0
      %v385 = vmax.f32 %v361, 0.0
      %v386 = vmax.f32 %v362, 0.0
      %v387 = vmax.f32 %v363, 0.0
      %v388 = vmax.f32 %v364, 0.0
      %v389 = vmax.f32 %v365, 0.0
      %v390 = vmax.f32 %v366, 0.0
      %v391 = vmax.f32 %v367, 0.0
      %v392 = vmax.f32 %v368, 0.0
      %v393 = vmax.f32 %v369, 0.0
      %v394 = vmax.f32 %v370, 0.0
      %v395 = vmax.f32 %v371, 0.0
      %v396 = vmax.f32 %v372, 0.0
      %v397 = vmax.f32 %v373, 0.0
      %v398 = vmax.f32 %v374, 0.0
      %v399 = vmax.f32 %v375, 0.0
      %v400 = vmax.f32 %v376, 0.0
      %v401 = vmax.f32 %v377, 0.0
      %v402 = vmax.f32 %v378, 0.0
      %v403 = vmax.f32 %v379, 0.0
      %v404 = vpack.c.bf16 %v381, %v380
      %v405 = vpack.c.bf16 %v383, %v382
      %v406 = vpack.c.bf16 %v385, %v384
      %v407 = vpack.c.bf16 %v387, %v386
      %v408 = vpack.c.bf16 %v389, %v388
      %v409 = vpack.c.bf16 %v391, %v390
      %v410 = vpack.c.bf16 %v393, %v392
      %v411 = vpack.c.bf16 %v395, %v394
      %v412 = vpack.c.bf16 %v397, %v396
      %v413 = vpack.c.bf16 %v399, %v398
      %v414 = vpack.c.bf16 %v401, %v400
      %v415 = vpack.c.bf16 %v403, %v402
      %v416 = vld [vmem:[%s3] sm:$0xf]
      %v417 = vld [vmem:[%s3 + $0x4] sm:$0xf]
      %v418 = vld [vmem:[%s3 + $0x8] sm:$0xf]
      %v419 = vld [vmem:[%s3 + $0xc] sm:$0xf]
      %v420 = vld [vmem:[%s3 + $0x10] sm:$0xf]
      %v421 = vld [vmem:[%s3 + $0x14] sm:$0xf]
      %v422 = vld [vmem:[%s3 + $0x18] sm:$0xf]
      %v423 = vld [vmem:[%s3 + $0x1c] sm:$0xf]
      %v424 = vld [vmem:[%s3 + $0x20] sm:$0xf]
      %v425 = vld [vmem:[%s3 + $0x24] sm:$0xf]
      %v426 = vld [vmem:[%s3 + $0x28] sm:$0xf]
      %v427 = vld [vmem:[%s3 + $0x2c] sm:$0xf]
      %v428 = vld [vmem:[%s3 + $0x30] sm:$0xf]
      %v429 = vld [vmem:[%s3 + $0x34] sm:$0xf]
      %v430 = vld [vmem:[%s3 + $0x38] sm:$0xf]
      %v431 = vld [vmem:[%s3 + $0x3c] sm:$0xf]
      %v432 = vld [vmem:[%s4] sm:$0x1]
      %v434 = vlaneseq
      %v435 = vshrl.u32 %v434, 7
      %v436 = vsub.s32 0, %v435
      %v437 = vrot.slane %v432, %v436
      %v455 = vunpack.c.l.b16 %v416
      %v456 = vunpack.c.l.b16 %v417
      %v457 = vunpack.c.l.b16 %v418
      %v458 = vunpack.c.l.b16 %v419
      %v459 = vunpack.c.l.b16 %v420
      %v460 = vunpack.c.l.b16 %v421
      %v461 = vunpack.c.l.b16 %v422
      %v462 = vunpack.c.l.b16 %v423
      %v463 = vunpack.c.l.b16 %v424
      %v464 = vunpack.c.l.b16 %v425
      %v465 = vunpack.c.l.b16 %v426
      %v466 = vunpack.c.l.b16 %v427
      %v467 = vunpack.c.l.b16 %v428
      %v468 = vunpack.c.l.b16 %v429
      %v469 = vunpack.c.l.b16 %v430
      %v470 = vunpack.c.l.b16 %v431
      %v471 = vpack.c.b16 %v456, %v455
      %v472 = vpack.c.b16 %v458, %v457
      %v473 = vpack.c.b16 %v460, %v459
      %v474 = vpack.c.b16 %v462, %v461
      %v475 = vpack.c.b16 %v464, %v463
      %v476 = vpack.c.b16 %v466, %v465
      %v477 = vpack.c.b16 %v468, %v467
      %v478 = vpack.c.b16 %v470, %v469
      %487 = vmatprep.subr.bf16.mxu0 0
      %488 = vmatpush1.bf16.msra.mxu0 %v471
      %489 = vmatprep.subr.bf16.mxu0 0
      %490 = vmatpush1.bf16.msra.mxu0 %v472
      %491 = vmatprep.subr.bf16.mxu0 0
      %492 = vmatpush1.bf16.msra.mxu0 %v473
      %493 = vmatprep.subr.bf16.mxu0 0
      %494 = vmatpush1.bf16.msra.mxu0 %v474
      %495 = vmatprep.subr.bf16.mxu0 0
      %496 = vmatpush1.bf16.msra.mxu0 %v475
      %497 = vmatprep.subr.bf16.mxu0 0
      %498 = vmatpush1.bf16.msra.mxu0 %v476
      %499 = vmatprep.subr.bf16.mxu0 0
      %500 = vmatpush1.bf16.msra.mxu0 %v477
      %501 = vmatprep.subr.bf16.mxu0 0
      %502 = vmatpush1.bf16.msra.mxu0 %v478
      %503 = vmatprep.subr.bf16.mxu0 0
      %504 = vmatpush1.bf16.msra.mxu0 0
      %505 = vmatprep.subr.bf16.mxu0 0
      %506 = vmatpush1.bf16.msra.mxu0 0
      %507 = vmatprep.subr.bf16.mxu0 0
      %508 = vmatpush1.bf16.msra.mxu0 0
      %509 = vmatprep.subr.bf16.mxu0 0
      %510 = vmatpush1.bf16.msra.mxu0 0
      %511 = vmatprep.subr.bf16.mxu0 0
      %512 = vmatpush1.bf16.msra.mxu0 0
      %513 = vmatprep.subr.bf16.mxu0 0
      %514 = vmatpush1.bf16.msra.mxu0 0
      %515 = vmatprep.subr.bf16.mxu0 0
      %516 = vmatpush1.bf16.msra.mxu0 0
      %517 = vmatprep.subr.bf16.mxu0 0
      %518 = vmatpush1.bf16.msra.mxu0 0
      %519 = vmatprep.mubr.bf16.mxu0 0
      %520 = vmatmul.mubr.bf16.gmra.mrb[0].mxu0 %v404
      %v521 = vpop.f32.mrb[0].mxu0
      %v522 = vadd.f32 %v437, %v521
      %v523 = vpop.f32.mrb[0].mxu0
      %v524 = vpop.f32.mrb[0].mxu0
      %v525 = vadd.f32 %v437, %v524
      %v526 = vpop.f32.mrb[0].mxu0
      %527 = vmatprep.mubr.bf16.mxu0 0
      %528 = vmatmul.mubr.bf16.gmra.mrb[0].mxu0 %v405
      %v529 = vpop.f32.mrb[0].mxu0
      %v530 = vadd.f32 %v437, %v529
      %v531 = vpop.f32.mrb[0].mxu0
      %v532 = vpop.f32.mrb[0].mxu0
      %v533 = vadd.f32 %v437, %v532
      %v534 = vpop.f32.mrb[0].mxu0
      %535 = vmatprep.mubr.bf16.mxu0 0
      %536 = vmatmul.mubr.bf16.gmra.mrb[0].mxu0 %v406
      %v537 = vpop.f32.mrb[0].mxu0
      %v538 = vadd.f32 %v437, %v537
      %v539 = vpop.f32.mrb[0].mxu0
      %v540 = vpop.f32.mrb[0].mxu0
      %v541 = vadd.f32 %v437, %v540
      %v542 = vpop.f32.mrb[0].mxu0
      %543 = vmatprep.mubr.bf16.mxu0 0
      %544 = vmatmul.mubr.bf16.gmra.mrb[0].mxu0 %v407
      %v545 = vpop.f32.mrb[0].mxu0
      %v546 = vadd.f32 %v437, %v545
      %v547 = vpop.f32.mrb[0].mxu0
      %v548 = vpop.f32.mrb[0].mxu0
      %v549 = vadd.f32 %v437, %v548
      %v550 = vpop.f32.mrb[0].mxu0
      %551 = vmatprep.mubr.bf16.mxu0 0
      %552 = vmatmul.mubr.bf16.gmra.mrb[0].mxu0 %v408
      %v553 = vpop.f32.mrb[0].mxu0
      %v554 = vadd.f32 %v437, %v553
      %v555 = vpop.f32.mrb[0].mxu0
      %v556 = vpop.f32.mrb[0].mxu0
      %v557 = vadd.f32 %v437, %v556
      %v558 = vpop.f32.mrb[0].mxu0
      %559 = vmatprep.mubr.bf16.mxu0 0
      %560 = vmatmul.mubr.bf16.gmra.mrb[0].mxu0 %v409
      %v561 = vpop.f32.mrb[0].mxu0
      %v562 = vadd.f32 %v437, %v561
      %v563 = vpop.f32.mrb[0].mxu0
      %v564 = vpop.f32.mrb[0].mxu0
      %v565 = vadd.f32 %v437, %v564
      %v566 = vpop.f32.mrb[0].mxu0
      %567 = vmatprep.mubr.bf16.mxu0 0
      %568 = vmatmul.mubr.bf16.gmra.mrb[0].mxu0 %v410
      %v569 = vpop.f32.mrb[0].mxu0
      %v570 = vadd.f32 %v437, %v569
      %v571 = vpop.f32.mrb[0].mxu0
      %v572 = vpop.f32.mrb[0].mxu0
      %v573 = vadd.f32 %v437, %v572
      %v574 = vpop.f32.mrb[0].mxu0
      %575 = vmatprep.mubr.bf16.mxu0 0
      %576 = vmatmul.mubr.bf16.gmra.mrb[0].mxu0 %v411
      %v577 = vpop.f32.mrb[0].mxu0
      %v578 = vadd.f32 %v437, %v577
      %v579 = vpop.f32.mrb[0].mxu0
      %v580 = vpop.f32.mrb[0].mxu0
      %v581 = vadd.f32 %v437, %v580
      %v582 = vpop.f32.mrb[0].mxu0
      %583 = vmatprep.mubr.bf16.mxu0 0
      %584 = vmatmul.mubr.bf16.gmra.mrb[0].mxu0 %v412
      %v585 = vpop.f32.mrb[0].mxu0
      %v586 = vadd.f32 %v437, %v585
      %v587 = vpop.f32.mrb[0].mxu0
      %v588 = vpop.f32.mrb[0].mxu0
      %v589 = vadd.f32 %v437, %v588
      %v590 = vpop.f32.mrb[0].mxu0
      %591 = vmatprep.mubr.bf16.mxu0 0
      %592 = vmatmul.mubr.bf16.gmra.mrb[0].mxu0 %v413
      %v593 = vpop.f32.mrb[0].mxu0
      %v594 = vadd.f32 %v437, %v593
      %v595 = vpop.f32.mrb[0].mxu0
      %v596 = vpop.f32.mrb[0].mxu0
      %v597 = vadd.f32 %v437, %v596
      %v598 = vpop.f32.mrb[0].mxu0
      %599 = vmatprep.mubr.bf16.mxu0 0
      %600 = vmatmul.mubr.bf16.gmra.mrb[0].mxu0 %v414
      %v601 = vpop.f32.mrb[0].mxu0
      %v602 = vadd.f32 %v437, %v601
      %v603 = vpop.f32.mrb[0].mxu0
      %v604 = vpop.f32.mrb[0].mxu0
      %v605 = vadd.f32 %v437, %v604
      %v606 = vpop.f32.mrb[0].mxu0
      %607 = vmatprep.mubr.bf16.mxu0 0
      %608 = vmatmul.mubr.bf16.gmra.mrb[0].mxu0 %v415
      %v609 = vpop.f32.mrb[0].mxu0
      %v610 = vadd.f32 %v437, %v609
      %v611 = vpop.f32.mrb[0].mxu0
      %v612 = vpop.f32.mrb[0].mxu0
      %v613 = vadd.f32 %v437, %v612
      %v614 = vpop.f32.mrb[0].mxu0
      %615 = vdwg.mxu0
      %616 = vst [vmem:[%s267] sm:$0xff] %v522
      %617 = vst [vmem:[%s267 + $0x8] sm:$0xff] %v525
      %618 = vst [vmem:[%s267 + $0x10] sm:$0xff] %v530
      %619 = vst [vmem:[%s267 + $0x18] sm:$0xff] %v533
      %620 = vst [vmem:[%s267 + $0x20] sm:$0xff] %v538
      %621 = vst [vmem:[%s267 + $0x28] sm:$0xff] %v541
      %622 = vst [vmem:[%s267 + $0x30] sm:$0xff] %v546
      %623 = vst [vmem:[%s267 + $0x38] sm:$0xff] %v549
      %624 = vst [vmem:[%s267 + $0x40] sm:$0xff] %v554
      %625 = vst [vmem:[%s267 + $0x48] sm:$0xff] %v557
      %626 = vst [vmem:[%s267 + $0x50] sm:$0xff] %v562
      %627 = vst [vmem:[%s267 + $0x58] sm:$0xff] %v565
      %628 = vst [vmem:[%s267 + $0x60] sm:$0xff] %v570
      %629 = vst [vmem:[%s267 + $0x68] sm:$0xff] %v573
      %630 = vst [vmem:[%s267 + $0x70] sm:$0xff] %v578
      %631 = vst [vmem:[%s267 + $0x78] sm:$0xff] %v581
      %632 = vst [vmem:[%s267 + $0x80] sm:$0xff] %v586
      %633 = vst [vmem:[%s267 + $0x88] sm:$0xff] %v589
      %634 = vst [vmem:[%s267 + $0x90] sm:$0xff] %v594
      %635 = vst [vmem:[%s267 + $0x98] sm:$0xff] %v597
      %636 = vst [vmem:[%s267 + $0xa0] sm:$0xff] %v602
      %637 = vst [vmem:[%s267 + $0xa8] sm:$0xff] %v605
      %638 = vst [vmem:[%s267 + $0xb0] sm:$0xff] %v610
      %639 = vst [vmem:[%s267 + $0xb8] sm:$0xff] %v613
      %s640 = smul.u32 12, %s21
      %p641 = scmp.lt.s32.totalorder %s20, 1
      %s642 = scalar_select %p641, %s20, 1
      %p643 = scmp.lt.s32.totalorder %s640, 11
      %s644 = scalar_select %p643, %s640, 11
      %s645 = smul.addr %s644, 2
      %s646 = smul.addr %s642, 24
      %s647 = sadd.s32 %s645, %s646
      %s648 = smul.addr %s647, 8
      %s649 = scalar_lea.vmem %s5, %s648
      // Predicated region
      $region41: #{decoder_block_forward.5} parent=39 // pred_check
        %p650 = pneg %p160
      $region42: #{decoder_block_forward.5} parent=39 // pred_check_branch
        %652 = sbr.rel (%p650) target = $region44
      $region43: #{decoder_block_forward.5} parent=39 // pred_region
        %s653 = smul.u32 12, %s21
      $region44: #{decoder_block_forward.5} parent=39 // pred_fallthru
        _
    $region40: #{decoder_block_forward.5} parent=5 // pred_fallthru
      _
    %p654 = scmp.le.s32.totalorder 2, %s11
    // Predicated region
    $region45: #{decoder_block_forward.5} parent=5 // pred_check
      %p655 = pneg %p654
    $region46: #{decoder_block_forward.5} parent=5 // pred_check_branch
      %657 = sbr.rel (%p655) target = $region48
    $region47: #{decoder_block_forward.5} parent=5 // pred_region
      %s658 = ssub.s32 %s11, 2
      // Predicated region
      $region49: #{decoder_block_forward.5} parent=47 // pred_check
        %p659 = pneg %p166
      $region50: #{decoder_block_forward.5} parent=47 // pred_check_branch
        %661 = sbr.rel (%p659) target = $region52
      $region51: #{decoder_block_forward.5} parent=47 // pred_region
        %s662 = smul.u32 12, %s23
        %p663 = scmp.lt.s32.totalorder %s22, 1
        %s664 = scalar_select %p663, %s22, 1
        %p665 = scmp.lt.s32.totalorder %s662, 11
        %s666 = scalar_select %p665, %s662, 11
        %s667 = smul.addr %s666, 2
        %s668 = smul.addr %s664, 24
        %s669 = sadd.s32 %s667, %s668
        %s670 = smul.addr %s669, 8
        %s671 = scalar_lea.vmem %s5, %s670
      $region52: #{decoder_block_forward.5} parent=47 // pred_fallthru
        _
    $region48: #{decoder_block_forward.5} parent=5 // pred_fallthru
      _
  $region6: #{decoder_block_forward.5} parent=0 // loop_footer
    %s15 = sadd.s32 1, %s11
  $region7: #{decoder_block_forward.5} parent=0 // loop_footer_branch
    %10 = sbr.rel target = $region3
  $region8: #{decoder_block_forward.5} parent=0 // loop_exit
    _

// kernel: decoder_block_forward.4
$region0: #{decoder_block_forward.4}
  #allocation0 [shape = 'u32[]', space=smem, size = 0x4, offset = 0x4, fixed_abs, tag = 'smem constant byte address 0x4 - core index']
  #allocation1 [shape = 'u32[144,128]{1,0:T(1,128)}', space=vmem, size = 0x12000, scoped, tag = 'internal scratch']
  #allocation2 [shape = 'f32[192,128]{1,0:T(8,128)}', space=vmem, size = 0x18000, scoped, tag = 'scratch operand']
  %s0 = inlined_call_operand.vmem [shape: bf16[2,14,16,128], index: 0, kind: input, shape index: {}, may-alias: {0,1,2}]
  %s1 = inlined_call_operand.vmem [shape: bf16[2,14,16,128], index: 1, kind: input, shape index: {}, may-alias: {0,1,2}]
  %s2 = inlined_call_operand.vmem [shape: bf16[2,14,16,128], index: 2, kind: input, shape index: {}, may-alias: {0,1,2}]
  %s3 = inlined_call_operand.vmem [shape: f32[1,128], index: 3, kind: input, shape index: {}]
  %s4 = inlined_call_operand.vmem [shape: f32[1,128], index: 4, kind: input, shape index: {}]
  %s5 = inlined_call_operand.vmem [shape: bf16[9,128,128], index: 5, kind: input, shape index: {}]
  %s6 = inlined_call_operand.vmem [shape: f32[1,128], index: 6, kind: input, shape index: {}]
  %s7 = inlined_call_operand.vmem [shape: bf16[2,12,16,128], index: 7, kind: output, shape index: {0}]
  %s8 = inlined_call_operand.vmem [shape: f32[2,1,1,128], index: 8, kind: output, shape index: {1}]
  %s9 = inlined_call_operand.vmem [shape: f32[2,1,1,128], index: 9, kind: output, shape index: {2}]
  %10 = xla_tuple %s7, %s8, %s9
  %s11 = sld [smem:[#allocation0]]
  $region77: #{decoder_block_forward.4} parent=0
    _
  %s13 = ssub.s32 1, %s11
  %s14 = scalar_select 0, %s13, %s11
  loop: start=0, step=1, limit=4
  $region2: #{decoder_block_forward.4} parent=0 // loop_pre_header
    _
  $region3: #{decoder_block_forward.4} parent=0 // loop_header
    %s16 = sphi 0, %s20
    %p17 = scmp.ge.s32.totalorder %s16, 4
    %s23 = sphi 0, %s35
    %s24 = sphi 0, %s31
    %s25 = sphi 0, %s23
    %s26 = sphi 0, %s24
    %s27 = sphi 0, %s25
    %s28 = sphi 0, %s26
    %s40 = sphi 0, %s42
    %s43 = sphi 0, %s40
    %s44 = sphi 0, %s43
    %s60 = sphi 0, %s44
    %s72 = sphi 0, %s74
    %s75 = sphi 0, %s72
    %s76 = sphi 0, %s75
    %s92 = sphi 0, %s76
    %s106 = sphi 0, %s108
    %s109 = sphi 0, %s106
    %s110 = sphi 0, %s109
    %s126 = sphi 0, %s110
    %s130 = sphi 0, %s130
    %s132 = sphi 0, %s130
    %s133 = sphi 0, %s132
    %s147 = sphi 0, %s133
    %s151 = sphi 0, %s151
    %s153 = sphi 0, %s151
    %s154 = sphi 0, %s153
    %s168 = sphi 0, %s154
    %s172 = sphi 0, %s172
    %s174 = sphi 0, %s172
    %s175 = sphi 0, %s174
    %s189 = sphi 0, %s175
    %s193 = sphi 0, %s193
    %s195 = sphi 0, %s193
    %s196 = sphi 0, %s195
    %s210 = sphi 0, %s196
    %s218 = sphi 0, %s220
    %s221 = sphi 0, %s218
    %s222 = sphi 0, %s221
    %s238 = sphi 0, %s222
    %s246 = sphi 0, %s248
    %s249 = sphi 0, %s246
    %s250 = sphi 0, %s249
    %s266 = sphi 0, %s250
    %s274 = sphi 0, %s276
    %s277 = sphi 0, %s274
    %s278 = sphi 0, %s277
    %s294 = sphi 0, %s278
  $region4: #{decoder_block_forward.4} parent=0 // loop_header_branch
    %19 = sbr.rel (%p17) target = $region8
  $region5: #{decoder_block_forward.4} parent=0 // loop_body
    %s21 = ssub.s32 %s16, 1
    %s22 = ssub.s32 %s16, 2
    %s29 = sadd.s32 1, %s24
    %p30 = scmp.ge.s32.totalorder %s29, 1
    %s31 = scalar_select %p30, 0, %s29
    %s32 = sadd.s32 1, %s23
    %s33 = scalar_select %p30, %s32, %s23
    %p34 = scmp.ge.s32.totalorder %s33, 2
    %s35 = scalar_select %p34, 0, %s33
    %s36 = ssub.s32 %s23, %s35
    %s37 = ssub.s32 %s24, %s31
    %s38 = sor.u32 %s36, %s37
    %p39 = scmp.eq.s32.totalorder %s38, 0
    %s41 = sadd.s32 %s40, 1
    %s42 = scalar_select %p39, %s40, %s41
    %p45 = pneg %p39
    %p46 = scmp.eq.s32.totalorder %s16, 1
    %p47 = por %p45, %p46
    %p48 = scmp.ne.s32.totalorder %s40, %s43
    %p49 = scmp.eq.s32.totalorder %s16, 0
    %p50 = por %p48, %p49
    %p51 = scmp.ne.s32.totalorder %s40, %s43
    %p52 = scmp.eq.s32.totalorder %s21, 1
    %p53 = por %p51, %p52
    %p54 = scmp.ne.s32.totalorder %s43, %s44
    %p55 = scmp.eq.s32.totalorder %s21, 0
    %p56 = por %p54, %p55
    %p57 = scmp.ne.s32.totalorder %s43, %s44
    %p58 = scmp.eq.s32.totalorder %s22, 1
    %p59 = por %p57, %p58
    %p61 = scmp.ne.s32.totalorder %s44, %s60
    %p62 = scmp.eq.s32.totalorder %s22, 0
    %p63 = por %p61, %p62
    %s64 = sadd.s32 %s24, 1
    %s65 = smul.u32 %s64, 12
    %s66 = sadd.s32 %s31, 1
    %s67 = smul.u32 %s66, 12
    %s68 = ssub.s32 %s23, %s35
    %s69 = ssub.s32 %s65, %s67
    %s70 = sor.u32 %s68, %s69
    %p71 = scmp.eq.s32.totalorder %s70, 0
    %s73 = sadd.s32 %s72, 1
    %s74 = scalar_select %p71, %s72, %s73
    %p77 = pneg %p71
    %p78 = scmp.eq.s32.totalorder %s16, 1
    %p79 = por %p77, %p78
    %p80 = scmp.ne.s32.totalorder %s72, %s75
    %p81 = scmp.eq.s32.totalorder %s16, 0
    %p82 = por %p80, %p81
    %p83 = scmp.ne.s32.totalorder %s72, %s75
    %p84 = scmp.eq.s32.totalorder %s21, 1
    %p85 = por %p83, %p84
    %p86 = scmp.ne.s32.totalorder %s75, %s76
    %p87 = scmp.eq.s32.totalorder %s21, 0
    %p88 = por %p86, %p87
    %p89 = scmp.ne.s32.totalorder %s75, %s76
    %p90 = scmp.eq.s32.totalorder %s22, 1
    %p91 = por %p89, %p90
    %p93 = scmp.ne.s32.totalorder %s76, %s92
    %p94 = scmp.eq.s32.totalorder %s22, 0
    %p95 = por %p93, %p94
    %s96 = sadd.s32 %s24, 1
    %s97 = smul.u32 %s96, 12
    %s98 = sadd.s32 %s97, 1
    %s99 = sadd.s32 %s31, 1
    %s100 = smul.u32 %s99, 12
    %s101 = sadd.s32 %s100, 1
    %s102 = ssub.s32 %s23, %s35
    %s103 = ssub.s32 %s98, %s101
    %s104 = sor.u32 %s102, %s103
    %p105 = scmp.eq.s32.totalorder %s104, 0
    %s107 = sadd.s32 %s106, 1
    %s108 = scalar_select %p105, %s106, %s107
    %p111 = pneg %p105
    %p112 = scmp.eq.s32.totalorder %s16, 1
    %p113 = por %p111, %p112
    %p114 = scmp.ne.s32.totalorder %s106, %s109
    %p115 = scmp.eq.s32.totalorder %s16, 0
    %p116 = por %p114, %p115
    %p117 = scmp.ne.s32.totalorder %s106, %s109
    %p118 = scmp.eq.s32.totalorder %s21, 1
    %p119 = por %p117, %p118
    %p120 = scmp.ne.s32.totalorder %s109, %s110
    %p121 = scmp.eq.s32.totalorder %s21, 0
    %p122 = por %p120, %p121
    %p123 = scmp.ne.s32.totalorder %s109, %s110
    %p124 = scmp.eq.s32.totalorder %s22, 1
    %p125 = por %p123, %p124
    %p127 = scmp.ne.s32.totalorder %s110, %s126
    %p128 = scmp.eq.s32.totalorder %s22, 0
    %p129 = por %p127, %p128
    %s131 = sadd.s32 %s130, 1
    %p134 = scmp.eq.s32.totalorder %s16, 1
    %p135 = scmp.ne.s32.totalorder %s130, %s132
    %p136 = scmp.eq.s32.totalorder %s16, 0
    %p137 = por %p135, %p136
    %p138 = scmp.ne.s32.totalorder %s130, %s132
    %p139 = scmp.eq.s32.totalorder %s21, 1
    %p140 = por %p138, %p139
    %p141 = scmp.ne.s32.totalorder %s132, %s133
    %p142 = scmp.eq.s32.totalorder %s21, 0
    %p143 = por %p141, %p142
    %p144 = scmp.ne.s32.totalorder %s132, %s133
    %p145 = scmp.eq.s32.totalorder %s22, 1
    %p146 = por %p144, %p145
    %p148 = scmp.ne.s32.totalorder %s133, %s147
    %p149 = scmp.eq.s32.totalorder %s22, 0
    %p150 = por %p148, %p149
    %s152 = sadd.s32 %s151, 1
    %p155 = scmp.eq.s32.totalorder %s16, 1
    %p156 = scmp.ne.s32.totalorder %s151, %s153
    %p157 = scmp.eq.s32.totalorder %s16, 0
    %p158 = por %p156, %p157
    %p159 = scmp.ne.s32.totalorder %s151, %s153
    %p160 = scmp.eq.s32.totalorder %s21, 1
    %p161 = por %p159, %p160
    %p162 = scmp.ne.s32.totalorder %s153, %s154
    %p163 = scmp.eq.s32.totalorder %s21, 0
    %p164 = por %p162, %p163
    %p165 = scmp.ne.s32.totalorder %s153, %s154
    %p166 = scmp.eq.s32.totalorder %s22, 1
    %p167 = por %p165, %p166
    %p169 = scmp.ne.s32.totalorder %s154, %s168
    %p170 = scmp.eq.s32.totalorder %s22, 0
    %p171 = por %p169, %p170
    %s173 = sadd.s32 %s172, 1
    %p176 = scmp.eq.s32.totalorder %s16, 1
    %p177 = scmp.ne.s32.totalorder %s172, %s174
    %p178 = scmp.eq.s32.totalorder %s16, 0
    %p179 = por %p177, %p178
    %p180 = scmp.ne.s32.totalorder %s172, %s174
    %p181 = scmp.eq.s32.totalorder %s21, 1
    %p182 = por %p180, %p181
    %p183 = scmp.ne.s32.totalorder %s174, %s175
    %p184 = scmp.eq.s32.totalorder %s21, 0
    %p185 = por %p183, %p184
    %p186 = scmp.ne.s32.totalorder %s174, %s175
    %p187 = scmp.eq.s32.totalorder %s22, 1
    %p188 = por %p186, %p187
    %p190 = scmp.ne.s32.totalorder %s175, %s189
    %p191 = scmp.eq.s32.totalorder %s22, 0
    %p192 = por %p190, %p191
    %s194 = sadd.s32 %s193, 1
    %p197 = scmp.eq.s32.totalorder %s16, 1
    %p198 = scmp.ne.s32.totalorder %s193, %s195
    %p199 = scmp.eq.s32.totalorder %s16, 0
    %p200 = por %p198, %p199
    %p201 = scmp.ne.s32.totalorder %s193, %s195
    %p202 = scmp.eq.s32.totalorder %s21, 1
    %p203 = por %p201, %p202
    %p204 = scmp.ne.s32.totalorder %s195, %s196
    %p205 = scmp.eq.s32.totalorder %s21, 0
    %p206 = por %p204, %p205
    %p207 = scmp.ne.s32.totalorder %s195, %s196
    %p208 = scmp.eq.s32.totalorder %s22, 1
    %p209 = por %p207, %p208
    %p211 = scmp.ne.s32.totalorder %s196, %s210
    %p212 = scmp.eq.s32.totalorder %s22, 0
    %p213 = por %p211, %p212
    %s214 = ssub.s32 %s23, %s35
    %s215 = ssub.s32 %s24, %s31
    %s216 = sor.u32 %s214, %s215
    %p217 = scmp.eq.s32.totalorder %s216, 0
    %s219 = sadd.s32 %s218, 1
    %s220 = scalar_select %p217, %s218, %s219
    %p223 = pneg %p217
    %p224 = scmp.eq.s32.totalorder %s16, 1
    %p225 = por %p223, %p224
    %p226 = scmp.ne.s32.totalorder %s218, %s221
    %p227 = scmp.eq.s32.totalorder %s16, 0
    %p228 = por %p226, %p227
    %p229 = scmp.ne.s32.totalorder %s218, %s221
    %p230 = scmp.eq.s32.totalorder %s21, 1
    %p231 = por %p229, %p230
    %p232 = scmp.ne.s32.totalorder %s221, %s222
    %p233 = scmp.eq.s32.totalorder %s21, 0
    %p234 = por %p232, %p233
    %p235 = scmp.ne.s32.totalorder %s221, %s222
    %p236 = scmp.eq.s32.totalorder %s22, 1
    %p237 = por %p235, %p236
    %p239 = scmp.ne.s32.totalorder %s222, %s238
    %p240 = scmp.eq.s32.totalorder %s22, 0
    %p241 = por %p239, %p240
    %s242 = ssub.s32 %s23, %s35
    %s243 = ssub.s32 %s24, %s31
    %s244 = sor.u32 %s242, %s243
    %p245 = scmp.eq.s32.totalorder %s244, 0
    %s247 = sadd.s32 %s246, 1
    %s248 = scalar_select %p245, %s246, %s247
    %p251 = pneg %p245
    %p252 = scmp.eq.s32.totalorder %s16, 1
    %p253 = por %p251, %p252
    %p254 = scmp.ne.s32.totalorder %s246, %s249
    %p255 = scmp.eq.s32.totalorder %s16, 0
    %p256 = por %p254, %p255
    %p257 = scmp.ne.s32.totalorder %s246, %s249
    %p258 = scmp.eq.s32.totalorder %s21, 1
    %p259 = por %p257, %p258
    %p260 = scmp.ne.s32.totalorder %s249, %s250
    %p261 = scmp.eq.s32.totalorder %s21, 0
    %p262 = por %p260, %p261
    %p263 = scmp.ne.s32.totalorder %s249, %s250
    %p264 = scmp.eq.s32.totalorder %s22, 1
    %p265 = por %p263, %p264
    %p267 = scmp.ne.s32.totalorder %s250, %s266
    %p268 = scmp.eq.s32.totalorder %s22, 0
    %p269 = por %p267, %p268
    %s270 = ssub.s32 %s23, %s35
    %s271 = ssub.s32 %s24, %s31
    %s272 = sor.u32 %s270, %s271
    %p273 = scmp.eq.s32.totalorder %s272, 0
    %s275 = sadd.s32 %s274, 1
    %s276 = scalar_select %p273, %s274, %s275
    %p279 = pneg %p273
    %p280 = scmp.eq.s32.totalorder %s16, 1
    %p281 = por %p279, %p280
    %p282 = scmp.ne.s32.totalorder %s274, %s277
    %p283 = scmp.eq.s32.totalorder %s16, 0
    %p284 = por %p282, %p283
    %p285 = scmp.ne.s32.totalorder %s274, %s277
    %p286 = scmp.eq.s32.totalorder %s21, 1
    %p287 = por %p285, %p286
    %p288 = scmp.ne.s32.totalorder %s277, %s278
    %p289 = scmp.eq.s32.totalorder %s21, 0
    %p290 = por %p288, %p289
    %p291 = scmp.ne.s32.totalorder %s277, %s278
    %p292 = scmp.eq.s32.totalorder %s22, 1
    %p293 = por %p291, %p292
    %p295 = scmp.ne.s32.totalorder %s278, %s294
    %p296 = scmp.eq.s32.totalorder %s22, 0
    %p297 = por %p295, %p296
    %p298 = scmp.le.s32.totalorder 1, %s16
    %p299 = scmp.lt.s32.totalorder %s16, 3
    %p300 = pnand %p298, %p299
    %p301 = pneg %p300
    // Predicated region
    $region9: #{decoder_block_forward.4} parent=5 // pred_check
      _
    $region10: #{decoder_block_forward.4} parent=5 // pred_check_branch
      %303 = sbr.rel (%p300) target = $region12
    $region11: #{decoder_block_forward.4} parent=5 // pred_region
      %s304 = ssub.s32 %s16, 1
      // Predicated region
      $region13: #{decoder_block_forward.4} parent=11 // pred_check
        %p305 = pneg %p143
      $region14: #{decoder_block_forward.4} parent=11 // pred_check_branch
        %307 = sbr.rel (%p305) target = $region16
      $region15: #{decoder_block_forward.4} parent=11 // pred_region
        _
      $region16: #{decoder_block_forward.4} parent=11 // pred_fallthru
        _
      // Predicated region
      $region17: #{decoder_block_forward.4} parent=11 // pred_check
        %p308 = pneg %p164
      $region18: #{decoder_block_forward.4} parent=11 // pred_check_branch
        %310 = sbr.rel (%p308) target = $region20
      $region19: #{decoder_block_forward.4} parent=11 // pred_region
        _
      $region20: #{decoder_block_forward.4} parent=11 // pred_fallthru
        _
      // Predicated region
      $region21: #{decoder_block_forward.4} parent=11 // pred_check
        %p311 = pneg %p185
      $region22: #{decoder_block_forward.4} parent=11 // pred_check_branch
        %313 = sbr.rel (%p311) target = $region24
      $region23: #{decoder_block_forward.4} parent=11 // pred_region
        _
      $region24: #{decoder_block_forward.4} parent=11 // pred_fallthru
        _
      // Predicated region
      $region25: #{decoder_block_forward.4} parent=11 // pred_check
        %p314 = pneg %p206
      $region26: #{decoder_block_forward.4} parent=11 // pred_check_branch
        %316 = sbr.rel (%p314) target = $region28
      $region27: #{decoder_block_forward.4} parent=11 // pred_region
        _
      $region28: #{decoder_block_forward.4} parent=11 // pred_fallthru
        _
    $region12: #{decoder_block_forward.4} parent=5 // pred_fallthru
      _
    %p317 = scmp.lt.s32.totalorder %s16, 2
    // Predicated region
    $region29: #{decoder_block_forward.4} parent=5 // pred_check
      %p318 = pneg %p317
    $region30: #{decoder_block_forward.4} parent=5 // pred_check_branch
      %320 = sbr.rel (%p318) target = $region32
    $region31: #{decoder_block_forward.4} parent=5 // pred_region
      // Predicated region
      $region33: #{decoder_block_forward.4} parent=31 // pred_check
        %p321 = pneg %p50
      $region34: #{decoder_block_forward.4} parent=31 // pred_check_branch
        %323 = sbr.rel (%p321) target = $region36
      $region35: #{decoder_block_forward.4} parent=31 // pred_region
        %s324 = smul.u32 12, %s24
        %s325 = ssub.s32 14, %s324
        %p326 = scmp.lt.s32.totalorder %s325, 12
        %s327 = scalar_select %p326, %s325, 12
        %s328 = smul.u32 64, %s327
        %s329 = smul.u32 %s328, 2
        %p330 = scmp.lt.s32.totalorder %s23, 1
        %s331 = scalar_select %p330, %s23, 1
        %p332 = scmp.lt.s32.totalorder %s324, 13
        %s333 = scalar_select %p332, %s324, 13
        %s334 = smul.addr %s333, 2
        %s335 = smul.addr %s331, 28
        %s336 = sadd.s32 %s334, %s335
        %s337 = smul.addr %s336, 4
        %s338 = scalar_lea.vmem %s0, %s337
        %s339 = smul.u32 12, %s24
        %s340 = ssub.s32 14, %s339
        %p341 = scmp.lt.s32.totalorder %s340, 12
        %s342 = scalar_select %p341, %s340, 12
        %s343 = smul.u32 64, %s342
        %s344 = smul.u32 %s343, 2
      $region36: #{decoder_block_forward.4} parent=31 // pred_fallthru
        _
      // Predicated region
      $region37: #{decoder_block_forward.4} parent=31 // pred_check
        %p345 = pneg %p82
      $region38: #{decoder_block_forward.4} parent=31 // pred_check_branch
        %347 = sbr.rel (%p345) target = $region40
      $region39: #{decoder_block_forward.4} parent=31 // pred_region
        %s348 = sadd.s32 %s24, 1
        %s349 = smul.u32 %s348, 12
        %p350 = scmp.lt.s32.totalorder %s23, 1
        %s351 = scalar_select %p350, %s23, 1
        %p352 = scmp.lt.s32.totalorder %s349, 13
        %s353 = scalar_select %p352, %s349, 13
        %s354 = smul.addr %s353, 2
        %s355 = smul.addr %s351, 28
        %s356 = sadd.s32 %s354, %s355
        %s357 = smul.addr %s356, 4
        %s358 = scalar_lea.vmem %s1, %s357
        %s359 = sadd.s32 %s24, 1
        %s360 = smul.u32 %s359, 12
      $region40: #{decoder_block_forward.4} parent=31 // pred_fallthru
        _
      // Predicated region
      $region41: #{decoder_block_forward.4} parent=31 // pred_check
        %p361 = pneg %p116
      $region42: #{decoder_block_forward.4} parent=31 // pred_check_branch
        %363 = sbr.rel (%p361) target = $region44
      $region43: #{decoder_block_forward.4} parent=31 // pred_region
        %s364 = sadd.s32 %s24, 1
        %s365 = smul.u32 %s364, 12
        %s366 = sadd.s32 %s365, 1
        %p367 = scmp.lt.s32.totalorder %s23, 1
        %s368 = scalar_select %p367, %s23, 1
        %p369 = scmp.lt.s32.totalorder %s366, 13
        %s370 = scalar_select %p369, %s366, 13
        %s371 = smul.addr %s370, 2
        %s372 = smul.addr %s368, 28
        %s373 = sadd.s32 %s371, %s372
        %s374 = smul.addr %s373, 4
        %s375 = scalar_lea.vmem %s2, %s374
        %s376 = sadd.s32 %s24, 1
        %s377 = smul.u32 %s376, 12
        %s378 = sadd.s32 %s377, 1
      $region44: #{decoder_block_forward.4} parent=31 // pred_fallthru
        _
    $region32: #{decoder_block_forward.4} parent=5 // pred_fallthru
      _
    %p379 = scmp.le.s32.totalorder 1, %s16
    %p380 = scmp.lt.s32.totalorder %s16, 3
    %p381 = pnand %p379, %p380
    %p382 = pneg %p381
    // Predicated region
    $region45: #{decoder_block_forward.4} parent=5 // pred_check
      _
    $region46: #{decoder_block_forward.4} parent=5 // pred_check_branch
      %384 = sbr.rel (%p381) target = $region48
    $region47: #{decoder_block_forward.4} parent=5 // pred_region
      %s385 = ssub.s32 %s16, 1
      %s386 = smul.u32 12, %s26
      %s387 = ssub.s32 14, %s386
      %p388 = scmp.lt.s32.totalorder %s387, 12
      %s389 = scalar_select %p388, %s387, 12
      %s390 = smul.u32 64, %s389
      %s391 = smul.u32 %s390, 2
      %p392 = scmp.lt.s32.totalorder %s25, 1
      %s393 = scalar_select %p392, %s25, 1
      %p394 = scmp.lt.s32.totalorder %s386, 13
      %s395 = scalar_select %p394, %s386, 13
      %s396 = smul.addr %s395, 2
      %s397 = smul.addr %s393, 28
      %s398 = sadd.s32 %s396, %s397
      %s399 = smul.addr %s398, 4
      %s400 = scalar_lea.vmem %s0, %s399
      %p401 = pneg %p56
      %p402 = pneg %p53
      %s403 = sadd.s32 %s26, 1
      %s404 = smul.u32 %s403, 12
      %p405 = scmp.lt.s32.totalorder %s25, 1
      %s406 = scalar_select %p405, %s25, 1
      %p407 = scmp.lt.s32.totalorder %s404, 13
      %s408 = scalar_select %p407, %s404, 13
      %s409 = smul.addr %s408, 2
      %s410 = smul.addr %s406, 28
      %s411 = sadd.s32 %s409, %s410
      %s412 = smul.addr %s411, 4
      %s413 = scalar_lea.vmem %s1, %s412
      %p414 = pneg %p88
      %p415 = pneg %p85
      %s416 = sadd.s32 %s26, 1
      %s417 = smul.u32 %s416, 12
      %s418 = sadd.s32 %s417, 1
      %p419 = scmp.lt.s32.totalorder %s25, 1
      %s420 = scalar_select %p419, %s25, 1
      %p421 = scmp.lt.s32.totalorder %s418, 13
      %s422 = scalar_select %p421, %s418, 13
      %s423 = smul.addr %s422, 2
      %s424 = smul.addr %s420, 28
      %s425 = sadd.s32 %s423, %s424
      %s426 = smul.addr %s425, 4
      %s427 = scalar_lea.vmem %s2, %s426
      %p428 = pneg %p122
      %p429 = pneg %p119
      %p430 = pneg %p143
      %p431 = pneg %p140
      %p432 = pneg %p164
      %p433 = pneg %p161
      %p434 = pneg %p185
      %p435 = pneg %p182
      %p436 = pneg %p206
      %p437 = pneg %p203
      %p438 = pneg %p234
      %p439 = pneg %p231
      %s440 = smul.u32 12, %s26
      %p441 = scmp.lt.s32.totalorder %s25, 1
      %s442 = scalar_select %p441, %s25, 1
      %p443 = scmp.lt.s32.totalorder %s440, 11
      %s444 = scalar_select %p443, %s440, 11
      %s445 = smul.addr %s444, 2
      %s446 = smul.addr %s442, 24
      %s447 = sadd.s32 %s445, %s446
      %s448 = smul.addr %s447, 4
      %s449 = scalar_lea.vmem %s7, %s448
      %p450 = pneg %p262
      %p451 = pneg %p259
      %p452 = scmp.lt.s32.totalorder %s25, 1
      %s453 = scalar_select %p452, %s25, 1
      %p454 = scmp.lt.s32.totalorder %s26, 0
      %s455 = scalar_select %p454, %s26, 0
      %s456 = sadd.s32 %s455, %s453
      %s457 = scalar_lea.vmem %s8, %s456
      %p458 = pneg %p290
      %p459 = pneg %p287
      %p460 = scmp.lt.s32.totalorder %s25, 1
      %s461 = scalar_select %p460, %s25, 1
      %p462 = scmp.lt.s32.totalorder %s26, 0
      %s463 = scalar_select %p462, %s26, 0
      %s464 = sadd.s32 %s463, %s461
      %s465 = scalar_lea.vmem %s9, %s464
      %s466 = smul.u32 12, %s26
      %s467 = ssub.s32 14, %s466
      %p468 = scmp.lt.s32.totalorder %s467, 12
      %s469 = scalar_select %p468, %s467, 12
      %s470 = smul.u32 64, %s469
      %s471 = smul.u32 %s470, 2
      %p472 = scmp.lt.s32.totalorder %s25, 1
      %s473 = scalar_select %p472, %s25, 1
      %p474 = scmp.lt.s32.totalorder %s466, 13
      %s475 = scalar_select %p474, %s466, 13
      %s476 = smul.addr %s475, 2
      %s477 = smul.addr %s473, 28
      %s478 = sadd.s32 %s476, %s477
      %s479 = smul.addr %s478, 4
      %s480 = scalar_lea.vmem %s0, %s479
      %s481 = smul.u32 12, %s26
      %s482 = ssub.s32 14, %s481
      %p483 = scmp.lt.s32.totalorder %s482, 12
      %s484 = scalar_select %p483, %s482, 12
      %s485 = smul.u32 64, %s484
      %s486 = smul.u32 %s485, 2
      %s487 = sadd.s32 %s26, 1
      %s488 = smul.u32 %s487, 12
      %p489 = scmp.lt.s32.totalorder %s25, 1
      %s490 = scalar_select %p489, %s25, 1
      %p491 = scmp.lt.s32.totalorder %s488, 13
      %s492 = scalar_select %p491, %s488, 13
      %s493 = smul.addr %s492, 2
      %s494 = smul.addr %s490, 28
      %s495 = sadd.s32 %s493, %s494
      %s496 = smul.addr %s495, 4
      %s497 = scalar_lea.vmem %s1, %s496
      %s498 = sadd.s32 %s26, 1
      %s499 = smul.u32 %s498, 12
      %s500 = sadd.s32 %s26, 1
      %s501 = smul.u32 %s500, 12
      %s502 = sadd.s32 %s501, 1
      %p503 = scmp.lt.s32.totalorder %s25, 1
      %s504 = scalar_select %p503, %s25, 1
      %p505 = scmp.lt.s32.totalorder %s502, 13
      %s506 = scalar_select %p505, %s502, 13
      %s507 = smul.addr %s506, 2
      %s508 = smul.addr %s504, 28
      %s509 = sadd.s32 %s507, %s508
      %s510 = smul.addr %s509, 4
      %s511 = scalar_lea.vmem %s2, %s510
      %s512 = sadd.s32 %s26, 1
      %s513 = smul.u32 %s512, 12
      %s514 = sadd.s32 %s513, 1
      %s515 = smul.u32 12, %s26
      %p516 = scmp.lt.s32.totalorder %s25, 1
      %s517 = scalar_select %p516, %s25, 1
      %p518 = scmp.lt.s32.totalorder %s515, 11
      %s519 = scalar_select %p518, %s515, 11
      %s520 = smul.addr %s519, 2
      %s521 = smul.addr %s517, 24
      %s522 = sadd.s32 %s520, %s521
      %s523 = smul.addr %s522, 4
      %s524 = scalar_lea.vmem %s7, %s523
      %s525 = smul.u32 12, %s26
      %p526 = scmp.lt.s32.totalorder %s25, 1
      %s527 = scalar_select %p526, %s25, 1
      %p528 = scmp.lt.s32.totalorder %s26, 0
      %s529 = scalar_select %p528, %s26, 0
      %s530 = sadd.s32 %s529, %s527
      %s531 = scalar_lea.vmem %s8, %s530
      %p532 = scmp.lt.s32.totalorder %s25, 1
      %s533 = scalar_select %p532, %s25, 1
      %p534 = scmp.lt.s32.totalorder %s26, 0
      %s535 = scalar_select %p534, %s26, 0
      %s536 = sadd.s32 %s535, %s533
      %s537 = scalar_lea.vmem %s9, %s536
      %v539 = vld [vmem:[%s3] sm:$0x1]
      %v540 = vld [vmem:[%s4] sm:$0x1]
      %v541 = vld [vmem:[%s480] sm:$0xf]
      %v542 = vld [vmem:[%s480 + $0x4] sm:$0xf]
      %v543 = vld [vmem:[%s480 + $0x8] sm:$0xf]
      %v544 = vld [vmem:[%s480 + $0xc] sm:$0xf]
      %v545 = vld [vmem:[%s480 + $0x10] sm:$0xf]
      %v546 = vld [vmem:[%s480 + $0x14] sm:$0xf]
      %v547 = vld [vmem:[%s480 + $0x18] sm:$0xf]
      %v548 = vld [vmem:[%s480 + $0x1c] sm:$0xf]
      %v549 = vld [vmem:[%s480 + $0x20] sm:$0xf]
      %v550 = vld [vmem:[%s480 + $0x24] sm:$0xf]
      %v551 = vld [vmem:[%s480 + $0x28] sm:$0xf]
      %v552 = vld [vmem:[%s480 + $0x2c] sm:$0xf]
      %v553 = vld [vmem:[%s480 + $0x30] sm:$0xf]
      %v554 = vld [vmem:[%s480 + $0x34] sm:$0xf]
      %v555 = vld [vmem:[%s480 + $0x38] sm:$0xf]
      %v556 = vld [vmem:[%s480 + $0x3c] sm:$0xf]
      %v557 = vld [vmem:[%s480 + $0x40] sm:$0xf]
      %v558 = vld [vmem:[%s480 + $0x44] sm:$0xf]
      %v559 = vld [vmem:[%s480 + $0x48] sm:$0xf]
      %v560 = vld [vmem:[%s480 + $0x4c] sm:$0xf]
      %v561 = vld [vmem:[%s480 + $0x50] sm:$0xf]
      %v562 = vld [vmem:[%s480 + $0x54] sm:$0xf]
      %v563 = vld [vmem:[%s480 + $0x58] sm:$0xf]
      %v564 = vld [vmem:[%s480 + $0x5c] sm:$0xf]
      %v565 = vld [vmem:[%s497] sm:$0xf]
      %v566 = vld [vmem:[%s497 + $0x4] sm:$0xf]
      %v567 = vld [vmem:[%s511] sm:$0xf]
      %v568 = vld [vmem:[%s511 + $0x4] sm:$0xf]
      %v593 = vunpack.c.l.b16 %v541
      %v594 = vunpack.c.l.b16 %v542
      %v595 = vunpack.c.l.b16 %v543
      %v596 = vunpack.c.l.b16 %v544
      %v597 = vunpack.c.l.b16 %v545
      %v598 = vunpack.c.l.b16 %v546
      %v599 = vunpack.c.l.b16 %v547
      %v600 = vunpack.c.l.b16 %v548
      %v601 = vunpack.c.l.b16 %v549
      %v602 = vunpack.c.l.b16 %v550
      %v603 = vunpack.c.l.b16 %v551
      %v604 = vunpack.c.l.b16 %v552
      %v605 = vunpack.c.l.b16 %v553
      %v606 = vunpack.c.l.b16 %v554
      %v607 = vunpack.c.l.b16 %v555
      %v608 = vunpack.c.l.b16 %v556
      %v609 = vunpack.c.l.b16 %v557
      %v610 = vunpack.c.l.b16 %v558
      %v611 = vunpack.c.l.b16 %v559
      %v612 = vunpack.c.l.b16 %v560
      %v613 = vunpack.c.l.b16 %v561
      %v614 = vunpack.c.l.b16 %v562
      %v615 = vunpack.c.l.b16 %v563
      %v616 = vunpack.c.l.b16 %v564
      %v617 = vpack.c.b16 %v594, %v593
      %v618 = vpack.c.b16 %v596, %v595
      %v619 = vpack.c.b16 %v598, %v597
      %v620 = vpack.c.b16 %v600, %v599
      %v621 = vpack.c.b16 %v602, %v601
      %v622 = vpack.c.b16 %v604, %v603
      %v623 = vpack.c.b16 %v606, %v605
      %v624 = vpack.c.b16 %v608, %v607
      %v625 = vpack.c.b16 %v610, %v609
      %v626 = vpack.c.b16 %v612, %v611
      %v627 = vpack.c.b16 %v614, %v613
      %v628 = vpack.c.b16 %v616, %v615
      %v643 = vunpack.c.l.b16 %v565
      %v644 = vunpack.c.l.b16 %v566
      %v645 = vpack.c.b16 %v644, %v643
      %v649 = vunpack.c.l.b16 %v567
      %v650 = vunpack.c.l.b16 %v568
      %v651 = vpack.c.b16 %v650, %v649
      %v653 = vunpack.c.l.bf16 %v617
      %v654 = vunpack.c.h.bf16 %v617
      %v655 = vunpack.c.l.bf16 %v618
      %v656 = vunpack.c.h.bf16 %v618
      %v657 = vunpack.c.l.bf16 %v619
      %v658 = vunpack.c.h.bf16 %v619
      %v659 = vunpack.c.l.bf16 %v620
      %v660 = vunpack.c.h.bf16 %v620
      %v661 = vunpack.c.l.bf16 %v621
      %v662 = vunpack.c.h.bf16 %v621
      %v663 = vunpack.c.l.bf16 %v622
      %v664 = vunpack.c.h.bf16 %v622
      %v665 = vunpack.c.l.bf16 %v623
      %v666 = vunpack.c.h.bf16 %v623
      %v667 = vunpack.c.l.bf16 %v624
      %v668 = vunpack.c.h.bf16 %v624
      %v669 = vunpack.c.l.bf16 %v625
      %v670 = vunpack.c.h.bf16 %v625
      %v671 = vunpack.c.l.bf16 %v626
      %v672 = vunpack.c.h.bf16 %v626
      %v673 = vunpack.c.l.bf16 %v627
      %v674 = vunpack.c.h.bf16 %v627
      %v675 = vunpack.c.l.bf16 %v628
      %v676 = vunpack.c.h.bf16 %v628
      %v677 = vunpack.c.l.bf16 %v645
      %v678 = vunpack.c.h.bf16 %v645
      %v679 = vunpack.c.l.bf16 %v651
      %v680 = vunpack.c.h.bf16 %v651
      %v681 = vunpack.c.l.bf16 0
      %v683 = vlaneseq
      %v684 = vshrl.u32 %v683, 7
      %v685 = vsub.s32 0, %v684
      %v686 = vrot.slane %v539, %v685
      %v688 = vmul.f32 %v653, %v686
      %v689 = vmul.f32 %v654, %v686
      %v690 = vmul.f32 %v655, %v686
      %v691 = vmul.f32 %v656, %v686
      %v692 = vmul.f32 %v657, %v686
      %v693 = vmul.f32 %v658, %v686
      %v694 = vmul.f32 %v659, %v686
      %v695 = vmul.f32 %v660, %v686
      %v696 = vmul.f32 %v661, %v686
      %v697 = vmul.f32 %v662, %v686
      %v698 = vmul.f32 %v663, %v686
      %v699 = vmul.f32 %v664, %v686
      %v700 = vmul.f32 %v665, %v686
      %v701 = vmul.f32 %v666, %v686
      %v702 = vmul.f32 %v667, %v686
      %v703 = vmul.f32 %v668, %v686
      %v704 = vmul.f32 %v669, %v686
      %v705 = vmul.f32 %v670, %v686
      %v706 = vmul.f32 %v671, %v686
      %v707 = vmul.f32 %v672, %v686
      %v708 = vmul.f32 %v673, %v686
      %v709 = vmul.f32 %v674, %v686
      %v710 = vmul.f32 %v675, %v686
      %v711 = vmul.f32 %v676, %v686
      %v712 = vmul.f32 %v677, %v686
      %v713 = vmul.f32 %v678, %v686
      %v714 = vmul.f32 %v679, %v686
      %v715 = vmul.f32 %v680, %v686
      %v716 = vmul.f32 %v681, %v686
      %v718 = vlaneseq
      %v719 = vshrl.u32 %v718, 7
      %v720 = vsub.s32 0, %v719
      %v721 = vrot.slane %v540, %v720
      %v723 = vadd.f32 %v688, %v721
      %v724 = vadd.f32 %v689, %v721
      %v725 = vadd.f32 %v690, %v721
      %v726 = vadd.f32 %v691, %v721
      %v727 = vadd.f32 %v692, %v721
      %v728 = vadd.f32 %v693, %v721
      %v729 = vadd.f32 %v694, %v721
      %v730 = vadd.f32 %v695, %v721
      %v731 = vadd.f32 %v696, %v721
      %v732 = vadd.f32 %v697, %v721
      %v733 = vadd.f32 %v698, %v721
      %v734 = vadd.f32 %v699, %v721
      %v735 = vadd.f32 %v700, %v721
      %v736 = vadd.f32 %v701, %v721
      %v737 = vadd.f32 %v702, %v721
      %v738 = vadd.f32 %v703, %v721
      %v739 = vadd.f32 %v704, %v721
      %v740 = vadd.f32 %v705, %v721
      %v741 = vadd.f32 %v706, %v721
      %v742 = vadd.f32 %v707, %v721
      %v743 = vadd.f32 %v708, %v721
      %v744 = vadd.f32 %v709, %v721
      %v745 = vadd.f32 %v710, %v721
      %v746 = vadd.f32 %v711, %v721
      %v747 = vadd.f32 %v712, %v721
      %v748 = vadd.f32 %v713, %v721
      %v749 = vadd.f32 %v714, %v721
      %v750 = vadd.f32 %v715, %v721
      %v751 = vadd.f32 %v716, %v721
      %v752 = vmax.f32 %v723, 0.0
      %v753 = vmax.f32 %v724, 0.0
      %v754 = vmax.f32 %v725, 0.0
      %v755 = vmax.f32 %v726, 0.0
      %v756 = vmax.f32 %v727, 0.0
      %v757 = vmax.f32 %v728, 0.0
      %v758 = vmax.f32 %v729, 0.0
      %v759 = vmax.f32 %v730, 0.0
      %v760 = vmax.f32 %v731, 0.0
      %v761 = vmax.f32 %v732, 0.0
      %v762 = vmax.f32 %v733, 0.0
      %v763 = vmax.f32 %v734, 0.0
      %v764 = vmax.f32 %v735, 0.0
      %v765 = vmax.f32 %v736, 0.0
      %v766 = vmax.f32 %v737, 0.0
      %v767 = vmax.f32 %v738, 0.0
      %v768 = vmax.f32 %v739, 0.0
      %v769 = vmax.f32 %v740, 0.0
      %v770 = vmax.f32 %v741, 0.0
      %v771 = vmax.f32 %v742, 0.0
      %v772 = vmax.f32 %v743, 0.0
      %v773 = vmax.f32 %v744, 0.0
      %v774 = vmax.f32 %v745, 0.0
      %v775 = vmax.f32 %v746, 0.0
      %v776 = vmax.f32 %v747, 0.0
      %v777 = vmax.f32 %v748, 0.0
      %v778 = vmax.f32 %v749, 0.0
      %v779 = vmax.f32 %v750, 0.0
      %v780 = vmax.f32 %v751, 0.0
      %v781 = vpack.c.bf16 %v753, %v752
      %v782 = vpack.c.bf16 %v755, %v754
      %v783 = vpack.c.bf16 %v757, %v756
      %v784 = vpack.c.bf16 %v759, %v758
      %v785 = vpack.c.bf16 %v761, %v760
      %v786 = vpack.c.bf16 %v763, %v762
      %v787 = vpack.c.bf16 %v765, %v764
      %v788 = vpack.c.bf16 %v767, %v766
      %v789 = vpack.c.bf16 %v769, %v768
      %v790 = vpack.c.bf16 %v771, %v770
      %v791 = vpack.c.bf16 %v773, %v772
      %v792 = vpack.c.bf16 %v775, %v774
      %v793 = vpack.c.bf16 %v777, %v776
      %v794 = vpack.c.bf16 %v779, %v778
      %v795 = vpack.c.bf16 %v780, %v780
      %v796 = vld [vmem:[%s5] sm:$0xf]
      %v797 = vld [vmem:[%s5 + $0x4] sm:$0xf]
      %v798 = vld [vmem:[%s5 + $0x8] sm:$0xf]
      %v799 = vld [vmem:[%s5 + $0xc] sm:$0xf]
      %v800 = vld [vmem:[%s5 + $0x10] sm:$0xf]
      %v801 = vld [vmem:[%s5 + $0x14] sm:$0xf]
      %v802 = vld [vmem:[%s5 + $0x18] sm:$0xf]
      %v803 = vld [vmem:[%s5 + $0x1c] sm:$0xf]
      %v804 = vld [vmem:[%s5 + $0x20] sm:$0xf]
      %v805 = vld [vmem:[%s5 + $0x24] sm:$0xf]
      %v806 = vld [vmem:[%s5 + $0x28] sm:$0xf]
      %v807 = vld [vmem:[%s5 + $0x2c] sm:$0xf]
      %v808 = vld [vmem:[%s5 + $0x30] sm:$0xf]
      %v809 = vld [vmem:[%s5 + $0x34] sm:$0xf]
      %v810 = vld [vmem:[%s5 + $0x38] sm:$0xf]
      %v811 = vld [vmem:[%s5 + $0x3c] sm:$0xf]
      %v828 = vunpack.c.l.b16 %v796
      %v829 = vunpack.c.l.b16 %v797
      %v830 = vunpack.c.l.b16 %v798
      %v831 = vunpack.c.l.b16 %v799
      %v832 = vunpack.c.l.b16 %v800
      %v833 = vunpack.c.l.b16 %v801
      %v834 = vunpack.c.l.b16 %v802
      %v835 = vunpack.c.l.b16 %v803
      %v836 = vunpack.c.l.b16 %v804
      %v837 = vunpack.c.l.b16 %v805
      %v838 = vunpack.c.l.b16 %v806
      %v839 = vunpack.c.l.b16 %v807
      %v840 = vunpack.c.l.b16 %v808
      %v841 = vunpack.c.l.b16 %v809
      %v842 = vunpack.c.l.b16 %v810
      %v843 = vunpack.c.l.b16 %v811
      %v844 = vpack.c.b16 %v829, %v828
      %v845 = vpack.c.b16 %v831, %v830
      %v846 = vpack.c.b16 %v833, %v832
      %v847 = vpack.c.b16 %v835, %v834
      %v848 = vpack.c.b16 %v837, %v836
      %v849 = vpack.c.b16 %v839, %v838
      %v850 = vpack.c.b16 %v841, %v840
      %v851 = vpack.c.b16 %v843, %v842
      %860 = vmatprep.subr.bf16.mxu0 0
      %861 = vmatpush1.bf16.msra.mxu0 %v844
      %862 = vmatprep.subr.bf16.mxu0 0
      %863 = vmatpush1.bf16.msra.mxu0 %v845
      %864 = vmatprep.subr.bf16.mxu0 0
      %865 = vmatpush1.bf16.msra.mxu0 %v846
      %866 = vmatprep.subr.bf16.mxu0 0
      %867 = vmatpush1.bf16.msra.mxu0 %v847
      %868 = vmatprep.subr.bf16.mxu0 0
      %869 = vmatpush1.bf16.msra.mxu0 %v848
      %870 = vmatprep.subr.bf16.mxu0 0
      %871 = vmatpush1.bf16.msra.mxu0 %v849
      %872 = vmatprep.subr.bf16.mxu0 0
      %873 = vmatpush1.bf16.msra.mxu0 %v850
      %874 = vmatprep.subr.bf16.mxu0 0
      %875 = vmatpush1.bf16.msra.mxu0 %v851
      %876 = vmatprep.subr.bf16.mxu0 0
      %877 = vmatpush1.bf16.msra.mxu0 0
      %878 = vmatprep.subr.bf16.mxu0 0
      %879 = vmatpush1.bf16.msra.mxu0 0
      %880 = vmatprep.subr.bf16.mxu0 0
      %881 = vmatpush1.bf16.msra.mxu0 0
      %882 = vmatprep.subr.bf16.mxu0 0
      %883 = vmatpush1.bf16.msra.mxu0 0
      %884 = vmatprep.subr.bf16.mxu0 0
      %885 = vmatpush1.bf16.msra.mxu0 0
      %886 = vmatprep.subr.bf16.mxu0 0
      %887 = vmatpush1.bf16.msra.mxu0 0
      %888 = vmatprep.subr.bf16.mxu0 0
      %889 = vmatpush1.bf16.msra.mxu0 0
      %890 = vmatprep.subr.bf16.mxu0 0
      %891 = vmatpush1.bf16.msra.mxu0 0
      %892 = vmatprep.mubr.bf16.mxu0 0
      %893 = vmatmul.mubr.bf16.gmra.mrb[0].mxu0 %v781
      %v894 = vpop.f32.mrb[0].mxu0
      %v895 = vadd.f32 0.0, %v894
      %v896 = vpop.f32.mrb[0].mxu0
      %v897 = vpop.f32.mrb[0].mxu0
      %v898 = vadd.f32 0.0, %v897
      %v899 = vpop.f32.mrb[0].mxu0
      %900 = vmatprep.mubr.bf16.mxu0 0
      %901 = vmatmul.mubr.bf16.gmra.mrb[0].mxu0 %v782
      %v902 = vpop.f32.mrb[0].mxu0
      %v903 = vadd.f32 0.0, %v902
      %v904 = vpop.f32.mrb[0].mxu0
      %v905 = vpop.f32.mrb[0].mxu0
      %v906 = vadd.f32 0.0, %v905
      %v907 = vpop.f32.mrb[0].mxu0
      %908 = vmatprep.mubr.bf16.mxu0 0
      %909 = vmatmul.mubr.bf16.gmra.mrb[0].mxu0 %v783
      %v910 = vpop.f32.mrb[0].mxu0
      %v911 = vadd.f32 0.0, %v910
      %v912 = vpop.f32.mrb[0].mxu0
      %v913 = vpop.f32.mrb[0].mxu0
      %v914 = vadd.f32 0.0, %v913
      %v915 = vpop.f32.mrb[0].mxu0
      %916 = vmatprep.mubr.bf16.mxu0 0
      %917 = vmatmul.mubr.bf16.gmra.mrb[0].mxu0 %v784
      %v918 = vpop.f32.mrb[0].mxu0
      %v919 = vadd.f32 0.0, %v918
      %v920 = vpop.f32.mrb[0].mxu0
      %v921 = vpop.f32.mrb[0].mxu0
      %v922 = vadd.f32 0.0, %v921
      %v923 = vpop.f32.mrb[0].mxu0
      %924 = vmatprep.mubr.bf16.mxu0 0
      %925 = vmatmul.mubr.bf16.gmra.mrb[0].mxu0 %v785
      %v926 = vpop.f32.mrb[0].mxu0
      %v927 = vadd.f32 0.0, %v926
      %v928 = vpop.f32.mrb[0].mxu0
      %v929 = vpop.f32.mrb[0].mxu0
      %v930 = vadd.f32 0.0, %v929
      %v931 = vpop.f32.mrb[0].mxu0
      %932 = vmatprep.mubr.bf16.mxu0 0
      %933 = vmatmul.mubr.bf16.gmra.mrb[0].mxu0 %v786
      %v934 = vpop.f32.mrb[0].mxu0
      %v935 = vadd.f32 0.0, %v934
      %v936 = vpop.f32.mrb[0].mxu0
      %v937 = vpop.f32.mrb[0].mxu0
      %v938 = vadd.f32 0.0, %v937
      %v939 = vpop.f32.mrb[0].mxu0
      %940 = vmatprep.mubr.bf16.mxu0 0
      %941 = vmatmul.mubr.bf16.gmra.mrb[0].mxu0 %v787
      %v942 = vpop.f32.mrb[0].mxu0
      %v943 = vadd.f32 0.0, %v942
      %v944 = vpop.f32.mrb[0].mxu0
      %v945 = vpop.f32.mrb[0].mxu0
      %v946 = vadd.f32 0.0, %v945
      %v947 = vpop.f32.mrb[0].mxu0
      %948 = vmatprep.mubr.bf16.mxu0 0
      %949 = vmatmul.mubr.bf16.gmra.mrb[0].mxu0 %v788
      %v950 = vpop.f32.mrb[0].mxu0
      %v951 = vadd.f32 0.0, %v950
      %v952 = vpop.f32.mrb[0].mxu0
      %v953 = vpop.f32.mrb[0].mxu0
      %v954 = vadd.f32 0.0, %v953
      %v955 = vpop.f32.mrb[0].mxu0
      %956 = vmatprep.mubr.bf16.mxu0 0
      %957 = vmatmul.mubr.bf16.gmra.mrb[0].mxu0 %v789
      %v958 = vpop.f32.mrb[0].mxu0
      %v959 = vadd.f32 0.0, %v958
      %v960 = vpop.f32.mrb[0].mxu0
      %v961 = vpop.f32.mrb[0].mxu0
      %v962 = vadd.f32 0.0, %v961
      %v963 = vpop.f32.mrb[0].mxu0
      %964 = vmatprep.mubr.bf16.mxu0 0
      %965 = vmatmul.mubr.bf16.gmra.mrb[0].mxu0 %v790
      %v966 = vpop.f32.mrb[0].mxu0
      %v967 = vadd.f32 0.0, %v966
      %v968 = vpop.f32.mrb[0].mxu0
      %v969 = vpop.f32.mrb[0].mxu0
      %v970 = vadd.f32 0.0, %v969
      %v971 = vpop.f32.mrb[0].mxu0
      %972 = vmatprep.mubr.bf16.mxu0 0
      %973 = vmatmul.mubr.bf16.gmra.mrb[0].mxu0 %v791
      %v974 = vpop.f32.mrb[0].mxu0
      %v975 = vadd.f32 0.0, %v974
      %v976 = vpop.f32.mrb[0].mxu0
      %v977 = vpop.f32.mrb[0].mxu0
      %v978 = vadd.f32 0.0, %v977
      %v979 = vpop.f32.mrb[0].mxu0
      %980 = vmatprep.mubr.bf16.mxu0 0
      %981 = vmatmul.mubr.bf16.gmra.mrb[0].mxu0 %v792
      %v982 = vpop.f32.mrb[0].mxu0
      %v983 = vadd.f32 0.0, %v982
      %v984 = vpop.f32.mrb[0].mxu0
      %v985 = vpop.f32.mrb[0].mxu0
      %v986 = vadd.f32 0.0, %v985
      %v987 = vpop.f32.mrb[0].mxu0
      %988 = vdwg.mxu0
      %989 = vst [vmem:[#allocation2] sm:$0xff] %v895
      %990 = vst [vmem:[#allocation2 + $0x8] sm:$0xff] %v898
      %991 = vst [vmem:[#allocation2 + $0x10] sm:$0xff] %v903
      %992 = vst [vmem:[#allocation2 + $0x18] sm:$0xff] %v906
      %993 = vst [vmem:[#allocation2 + $0x20] sm:$0xff] %v911
      %994 = vst [vmem:[#allocation2 + $0x28] sm:$0xff] %v914
      %995 = vst [vmem:[#allocation2 + $0x30] sm:$0xff] %v919
      %996 = vst [vmem:[#allocation2 + $0x38] sm:$0xff] %v922
      %997 = vst [vmem:[#allocation2 + $0x40] sm:$0xff] %v927
      %998 = vst [vmem:[#allocation2 + $0x48] sm:$0xff] %v930
      %999 = vst [vmem:[#allocation2 + $0x50] sm:$0xff] %v935
      %1000 = vst [vmem:[#allocation2 + $0x58] sm:$0xff] %v938
      %1001 = vst [vmem:[#allocation2 + $0x60] sm:$0xff] %v943
      %1002 = vst [vmem:[#allocation2 + $0x68] sm:$0xff] %v946
      %1003 = vst [vmem:[#allocation2 + $0x70] sm:$0xff] %v951
      %1004 = vst [vmem:[#allocation2 + $0x78] sm:$0xff] %v954
      %1005 = vst [vmem:[#allocation2 + $0x80] sm:$0xff] %v959
      %1006 = vst [vmem:[#allocation2 + $0x88] sm:$0xff] %v962
      %1007 = vst [vmem:[#allocation2 + $0x90] sm:$0xff] %v967
      %1008 = vst [vmem:[#allocation2 + $0x98] sm:$0xff] %v970
      %1009 = vst [vmem:[#allocation2 + $0xa0] sm:$0xff] %v975
      %1010 = vst [vmem:[#allocation2 + $0xa8] sm:$0xff] %v978
      %1011 = vst [vmem:[#allocation2 + $0xb0] sm:$0xff] %v983
      %1012 = vst [vmem:[#allocation2 + $0xb8] sm:$0xff] %v986
      %v1013 = vld [vmem:[#allocation2] sm:$0xff]
      %v1014 = vld [vmem:[#allocation2 + $0x8] sm:$0xff]
      %v1015 = vld [vmem:[#allocation2 + $0x10] sm:$0xff]
      %v1016 = vld [vmem:[#allocation2 + $0x18] sm:$0xff]
      %v1017 = vld [vmem:[#allocation2 + $0x20] sm:$0xff]
      %v1018 = vld [vmem:[#allocation2 + $0x28] sm:$0xff]
      %v1019 = vld [vmem:[#allocation2 + $0x30] sm:$0xff]
      %v1020 = vld [vmem:[#allocation2 + $0x38] sm:$0xff]
      %v1021 = vld [vmem:[#allocation2 + $0x40] sm:$0xff]
      %v1022 = vld [vmem:[#allocation2 + $0x48] sm:$0xff]
      %v1023 = vld [vmem:[#allocation2 + $0x50] sm:$0xff]
      %v1024 = vld [vmem:[#allocation2 + $0x58] sm:$0xff]
      %v1025 = vld [vmem:[#allocation2 + $0x60] sm:$0xff]
      %v1026 = vld [vmem:[#allocation2 + $0x68] sm:$0xff]
      %v1027 = vld [vmem:[#allocation2 + $0x70] sm:$0xff]
      %v1028 = vld [vmem:[#allocation2 + $0x78] sm:$0xff]
      %v1029 = vld [vmem:[#allocation2 + $0x80] sm:$0xff]
      %v1030 = vld [vmem:[#allocation2 + $0x88] sm:$0xff]
      %v1031 = vld [vmem:[#allocation2 + $0x90] sm:$0xff]
      %v1032 = vld [vmem:[#allocation2 + $0x98] sm:$0xff]
      %v1033 = vld [vmem:[#allocation2 + $0xa0] sm:$0xff]
      %v1034 = vld [vmem:[#allocation2 + $0xa8] sm:$0xff]
      %v1035 = vld [vmem:[#allocation2 + $0xb0] sm:$0xff]
      %v1036 = vld [vmem:[#allocation2 + $0xb8] sm:$0xff]
      %s1037 = scalar_lea.vmem %s5, 64
      %v1038 = vld [vmem:[%s1037] sm:$0xf]
      %v1039 = vld [vmem:[%s1037 + $0x4] sm:$0xf]
      %v1040 = vld [vmem:[%s1037 + $0x8] sm:$0xf]
      %v1041 = vld [vmem:[%s1037 + $0xc] sm:$0xf]
      %v1042 = vld [vmem:[%s1037 + $0x10] sm:$0xf]
      %v1043 = vld [vmem:[%s1037 + $0x14] sm:$0xf]
      %v1044 = vld [vmem:[%s1037 + $0x18] sm:$0xf]
      %v1045 = vld [vmem:[%s1037 + $0x1c] sm:$0xf]
      %v1046 = vld [vmem:[%s1037 + $0x20] sm:$0xf]
      %v1047 = vld [vmem:[%s1037 + $0x24] sm:$0xf]
      %v1048 = vld [vmem:[%s1037 + $0x28] sm:$0xf]
      %v1049 = vld [vmem:[%s1037 + $0x2c] sm:$0xf]
      %v1050 = vld [vmem:[%s1037 + $0x30] sm:$0xf]
      %v1051 = vld [vmem:[%s1037 + $0x34] sm:$0xf]
      %v1052 = vld [vmem:[%s1037 + $0x38] sm:$0xf]
      %v1053 = vld [vmem:[%s1037 + $0x3c] sm:$0xf]
      %vm1054 = vsmask.f32 7424
      %v1056 = vshrl.u32 %v781, 16
      %v1058 = vshll.u32 %v781, 16
      %v1060 = vrot.slane %v1058, 1
      %v1061 = vor.u32 %v1056, %v1060
      %v1063 = vshll.u32 %v782, 16
      %v1065 = vrot.slane %v1063, 1
      %v1066 = vsel %vm1054, %v1061, %v1065
      %v1067 = vshrl.u32 %v782, 16
      %v1069 = vor.u32 %v1067, %v1065
      %v1071 = vshll.u32 %v783, 16
      %v1073 = vrot.slane %v1071, 1
      %v1074 = vsel %vm1054, %v1069, %v1073
      %v1075 = vshrl.u32 %v783, 16
      %v1077 = vor.u32 %v1075, %v1073
      %v1079 = vshll.u32 %v784, 16
      %v1081 = vrot.slane %v1079, 1
      %v1082 = vsel %vm1054, %v1077, %v1081
      %v1083 = vshrl.u32 %v784, 16
      %v1085 = vor.u32 %v1083, %v1081
      %v1087 = vshll.u32 %v785, 16
      %v1089 = vrot.slane %v1087, 1
      %v1090 = vsel %vm1054, %v1085, %v1089
      %v1091 = vshrl.u32 %v785, 16
      %v1093 = vor.u32 %v1091, %v1089
      %v1095 = vshll.u32 %v786, 16
      %v1097 = vrot.slane %v1095, 1
      %v1098 = vsel %vm1054, %v1093, %v1097
      %v1099 = vshrl.u32 %v786, 16
      %v1101 = vor.u32 %v1099, %v1097
      %v1103 = vshll.u32 %v787, 16
      %v1105 = vrot.slane %v1103, 1
      %v1106 = vsel %vm1054, %v1101, %v1105
      %v1107 = vshrl.u32 %v787, 16
      %v1109 = vor.u32 %v1107, %v1105
      %v1111 = vshll.u32 %v788, 16
      %v1113 = vrot.slane %v1111, 1
      %v1114 = vsel %vm1054, %v1109, %v1113
      %v1115 = vshrl.u32 %v788, 16
      %v1117 = vor.u32 %v1115, %v1113
      %v1119 = vshll.u32 %v789, 16
      %v1121 = vrot.slane %v1119, 1
      %v1122 = vsel %vm1054, %v1117, %v1121
      %v1123 = vshrl.u32 %v789, 16
      %v1125 = vor.u32 %v1123, %v1121
      %v1127 = vshll.u32 %v790, 16
      %v1129 = vrot.slane %v1127, 1
      %v1130 = vsel %vm1054, %v1125, %v1129
      %v1131 = vshrl.u32 %v790, 16
      %v1133 = vor.u32 %v1131, %v1129
      %v1135 = vshll.u32 %v791, 16
      %v1137 = vrot.slane %v1135, 1
      %v1138 = vsel %vm1054, %v1133, %v1137
      %v1139 = vshrl.u32 %v791, 16
      %v1141 = vor.u32 %v1139, %v1137
      %v1143 = vshll.u32 %v792, 16
      %v1145 = vrot.slane %v1143, 1
      %v1146 = vsel %vm1054, %v1141, %v1145
      %v1147 = vshrl.u32 %v792, 16
      %v1149 = vor.u32 %v1147, %v1145
      %v1151 = vshll.u32 %v793, 16
      %v1153 = vrot.slane %v1151, 1
      %v1154 = vsel %vm1054, %v1149, %v1153
      %v1183 = vunpack.c.l.b16 %v1038
      %v1184 = vunpack.c.l.b16 %v1039
      %v1185 = vunpack.c.l.b16 %v1040
      %v1186 = vunpack.c.l.b16 %v1041
      %v1187 = vunpack.c.l.b16 %v1042
      %v1188 = vunpack.c.l.b16 %v1043
      %v1189 = vunpack.c.l.b16 %v1044
      %v1190 = vunpack.c.l.b16 %v1045
      %v1191 = vunpack.c.l.b16 %v1046
      %v1192 = vunpack.c.l.b16 %v1047
      %v1193 = vunpack.c.l.b16 %v1048
      %v1194 = vunpack.c.l.b16 %v1049
      %v1195 = vunpack.c.l.b16 %v1050
      %v1196 = vunpack.c.l.b16 %v1051
      %v1197 = vunpack.c.l.b16 %v1052
      %v1198 = vunpack.c.l.b16 %v1053
      %v1199 = vpack.c.b16 %v1184, %v1183
      %v1200 = vpack.c.b16 %v1186, %v1185
      %v1201 = vpack.c.b16 %v1188, %v1187
      %v1202 = vpack.c.b16 %v1190, %v1189
      %v1203 = vpack.c.b16 %v1192, %v1191
      %v1204 = vpack.c.b16 %v1194, %v1193
      %v1205 = vpack.c.b16 %v1196, %v1195
      %v1206 = vpack.c.b16 %v1198, %v1197
      %1215 = vmatprep.subr.bf16.mxu0 0
      %1216 = vmatpush1.bf16.msra.mxu0 %v1199
      %1217 = vmatprep.subr.bf16.mxu0 0
      %1218 = vmatpush1.bf16.msra.mxu0 %v1200
      %1219 = vmatprep.subr.bf16.mxu0 0
      %1220 = vmatpush1.bf16.msra.mxu0 %v1201
      %1221 = vmatprep.subr.bf16.mxu0 0
      %1222 = vmatpush1.bf16.msra.mxu0 %v1202
      %1223 = vmatprep.subr.bf16.mxu0 0
      %1224 = vmatpush1.bf16.msra.mxu0 %v1203
      %1225 = vmatprep.subr.bf16.mxu0 0
      %1226 = vmatpush1.bf16.msra.mxu0 %v1204
      %1227 = vmatprep.subr.bf16.mxu0 0
      %1228 = vmatpush1.bf16.msra.mxu0 %v1205
      %1229 = vmatprep.subr.bf16.mxu0 0
      %1230 = vmatpush1.bf16.msra.mxu0 %v1206
      %1231 = vmatprep.subr.bf16.mxu0 0
      %1232 = vmatpush1.bf16.msra.mxu0 0
      %1233 = vmatprep.subr.bf16.mxu0 0
      %1234 = vmatpush1.bf16.msra.mxu0 0
      %1235 = vmatprep.subr.bf16.mxu0 0
      %1236 = vmatpush1.bf16.msra.mxu0 0
      %1237 = vmatprep.subr.bf16.mxu0 0
      %1238 = vmatpush1.bf16.msra.mxu0 0
      %1239 = vmatprep.subr.bf16.mxu0 0
      %1240 = vmatpush1.bf16.msra.mxu0 0
      %1241 = vmatprep.subr.bf16.mxu0 0
      %1242 = vmatpush1.bf16.msra.mxu0 0
      %1243 = vmatprep.subr.bf16.mxu0 0
      %1244 = vmatpush1.bf16.msra.mxu0 0
      %1245 = vmatprep.subr.bf16.mxu0 0
      %1246 = vmatpush1.bf16.msra.mxu0 0
      %1247 = vmatprep.mubr.bf16.mxu0 0
      %1248 = vmatmul.mubr.bf16.gmra.mrb[0].mxu0 %v1066
      %v1249 = vpop.f32.mrb[0].mxu0
      %v1250 = vadd.f32 0.0, %v1249
      %v1251 = vpop.f32.mrb[0].mxu0
      %v1252 = vpop.f32.mrb[0].mxu0
      %v1253 = vadd.f32 0.0, %v1252
      %v1254 = vpop.f32.mrb[0].mxu0
      %1255 = vmatprep.mubr.bf16.mxu0 0
      %1256 = vmatmul.mubr.bf16.gmra.mrb[0].mxu0 %v1074
      %v1257 = vpop.f32.mrb[0].mxu0
      %v1258 = vadd.f32 0.0, %v1257
      %v1259 = vpop.f32.mrb[0].mxu0
      %v1260 = vpop.f32.mrb[0].mxu0
      %v1261 = vadd.f32 0.0, %v1260
      %v1262 = vpop.f32.mrb[0].mxu0
      %1263 = vmatprep.mubr.bf16.mxu0 0
      %1264 = vmatmul.mubr.bf16.gmra.mrb[0].mxu0 %v1082
      %v1265 = vpop.f32.mrb[0].mxu0
      %v1266 = vadd.f32 0.0, %v1265
      %v1267 = vpop.f32.mrb[0].mxu0
      %v1268 = vpop.f32.mrb[0].mxu0
      %v1269 = vadd.f32 0.0, %v1268
      %v1270 = vpop.f32.mrb[0].mxu0
      %1271 = vmatprep.mubr.bf16.mxu0 0
      %1272 = vmatmul.mubr.bf16.gmra.mrb[0].mxu0 %v1090
      %v1273 = vpop.f32.mrb[0].mxu0
      %v1274 = vadd.f32 0.0, %v1273
      %v1275 = vpop.f32.mrb[0].mxu0
      %v1276 = vpop.f32.mrb[0].mxu0
      %v1277 = vadd.f32 0.0, %v1276
      %v1278 = vpop.f32.mrb[0].mxu0
      %1279 = vmatprep.mubr.bf16.mxu0 0
      %1280 = vmatmul.mubr.bf16.gmra.mrb[0].mxu0 %v1098
      %v1281 = vpop.f32.mrb[0].mxu0
      %v1282 = vadd.f32 0.0, %v1281
      %v1283 = vpop.f32.mrb[0].mxu0
      %v1284 = vpop.f32.mrb[0].mxu0
      %v1285 = vadd.f32 0.0, %v1284
      %v1286 = vpop.f32.mrb[0].mxu0
      %1287 = vmatprep.mubr.bf16.mxu0 0
      %1288 = vmatmul.mubr.bf16.gmra.mrb[0].mxu0 %v1106
      %v1289 = vpop.f32.mrb[0].mxu0
      %v1290 = vadd.f32 0.0, %v1289
      %v1291 = vpop.f32.mrb[0].mxu0
      %v1292 = vpop.f32.mrb[0].mxu0
      %v1293 = vadd.f32 0.0, %v1292
      %v1294 = vpop.f32.mrb[0].mxu0
      %1295 = vmatprep.mubr.bf16.mxu0 0
      %1296 = vmatmul.mubr.bf16.gmra.mrb[0].mxu0 %v1114
      %v1297 = vpop.f32.mrb[0].mxu0
      %v1298 = vadd.f32 0.0, %v1297
      %v1299 = vpop.f32.mrb[0].mxu0
      %v1300 = vpop.f32.mrb[0].mxu0
      %v1301 = vadd.f32 0.0, %v1300
      %v1302 = vpop.f32.mrb[0].mxu0
      %1303 = vmatprep.mubr.bf16.mxu0 0
      %1304 = vmatmul.mubr.bf16.gmra.mrb[0].mxu0 %v1122
      %v1305 = vpop.f32.mrb[0].mxu0
      %v1306 = vadd.f32 0.0, %v1305
      %v1307 = vpop.f32.mrb[0].mxu0
      %v1308 = vpop.f32.mrb[0].mxu0
      %v1309 = vadd.f32 0.0, %v1308
      %v1310 = vpop.f32.mrb[0].mxu0
      %1311 = vmatprep.mubr.bf16.mxu0 0
      %1312 = vmatmul.mubr.bf16.gmra.mrb[0].mxu0 %v1130
      %v1313 = vpop.f32.mrb[0].mxu0
      %v1314 = vadd.f32 0.0, %v1313
      %v1315 = vpop.f32.mrb[0].mxu0
      %v1316 = vpop.f32.mrb[0].mxu0
      %v1317 = vadd.f32 0.0, %v1316
      %v1318 = vpop.f32.mrb[0].mxu0
      %1319 = vmatprep.mubr.bf16.mxu0 0
      %1320 = vmatmul.mubr.bf16.gmra.mrb[0].mxu0 %v1138
      %v1321 = vpop.f32.mrb[0].mxu0
      %v1322 = vadd.f32 0.0, %v1321
      %v1323 = vpop.f32.mrb[0].mxu0
      %v1324 = vpop.f32.mrb[0].mxu0
      %v1325 = vadd.f32 0.0, %v1324
      %v1326 = vpop.f32.mrb[0].mxu0
      %1327 = vmatprep.mubr.bf16.mxu0 0
      %1328 = vmatmul.mubr.bf16.gmra.mrb[0].mxu0 %v1146
      %v1329 = vpop.f32.mrb[0].mxu0
      %v1330 = vadd.f32 0.0, %v1329
      %v1331 = vpop.f32.mrb[0].mxu0
      %v1332 = vpop.f32.mrb[0].mxu0
      %v1333 = vadd.f32 0.0, %v1332
      %v1334 = vpop.f32.mrb[0].mxu0
      %1335 = vmatprep.mubr.bf16.mxu0 0
      %1336 = vmatmul.mubr.bf16.gmra.mrb[0].mxu0 %v1154
      %v1337 = vpop.f32.mrb[0].mxu0
      %v1338 = vadd.f32 0.0, %v1337
      %v1339 = vpop.f32.mrb[0].mxu0
      %v1340 = vpop.f32.mrb[0].mxu0
      %v1341 = vadd.f32 0.0, %v1340
      %v1342 = vpop.f32.mrb[0].mxu0
      %1343 = vdwg.mxu0
      %v1344 = vadd.f32 %v1013, %v1250
      %v1345 = vadd.f32 %v1014, %v1253
      %v1346 = vadd.f32 %v1015, %v1258
      %v1347 = vadd.f32 %v1016, %v1261
      %v1348 = vadd.f32 %v1017, %v1266
      %v1349 = vadd.f32 %v1018, %v1269
      %v1350 = vadd.f32 %v1019, %v1274
      %v1351 = vadd.f32 %v1020, %v1277
      %v1352 = vadd.f32 %v1021, %v1282
      %v1353 = vadd.f32 %v1022, %v1285
      %v1354 = vadd.f32 %v1023, %v1290
      %v1355 = vadd.f32 %v1024, %v1293
      %v1356 = vadd.f32 %v1025, %v1298
      %v1357 = vadd.f32 %v1026, %v1301
      %v1358 = vadd.f32 %v1027, %v1306
      %v1359 = vadd.f32 %v1028, %v1309
      %v1360 = vadd.f32 %v1029, %v1314
      %v1361 = vadd.f32 %v1030, %v1317
      %v1362 = vadd.f32 %v1031, %v1322
      %v1363 = vadd.f32 %v1032, %v1325
      %v1364 = vadd.f32 %v1033, %v1330
      %v1365 = vadd.f32 %v1034, %v1333
      %v1366 = vadd.f32 %v1035, %v1338
      %v1367 = vadd.f32 %v1036, %v1341
      %1368 = vst [vmem:[#allocation2] sm:$0xff] %v1344
      %1369 = vst [vmem:[#allocation2 + $0x8] sm:$0xff] %v1345
      %1370 = vst [vmem:[#allocation2 + $0x10] sm:$0xff] %v1346
      %1371 = vst [vmem:[#allocation2 + $0x18] sm:$0xff] %v1347
      %1372 = vst [vmem:[#allocation2 + $0x20] sm:$0xff] %v1348
      %1373 = vst [vmem:[#allocation2 + $0x28] sm:$0xff] %v1349
      %1374 = vst [vmem:[#allocation2 + $0x30] sm:$0xff] %v1350
      %1375 = vst [vmem:[#allocation2 + $0x38] sm:$0xff] %v1351
      %1376 = vst [vmem:[#allocation2 + $0x40] sm:$0xff] %v1352
      %1377 = vst [vmem:[#allocation2 + $0x48] sm:$0xff] %v1353
      %1378 = vst [vmem:[#allocation2 + $0x50] sm:$0xff] %v1354
      %1379 = vst [vmem:[#allocation2 + $0x58] sm:$0xff] %v1355
      %1380 = vst [vmem:[#allocation2 + $0x60] sm:$0xff] %v1356
      %1381 = vst [vmem:[#allocation2 + $0x68] sm:$0xff] %v1357
      %1382 = vst [vmem:[#allocation2 + $0x70] sm:$0xff] %v1358
      %1383 = vst [vmem:[#allocation2 + $0x78] sm:$0xff] %v1359
      %1384 = vst [vmem:[#allocation2 + $0x80] sm:$0xff] %v1360
      %1385 = vst [vmem:[#allocation2 + $0x88] sm:$0xff] %v1361
      %1386 = vst [vmem:[#allocation2 + $0x90] sm:$0xff] %v1362
      %1387 = vst [vmem:[#allocation2 + $0x98] sm:$0xff] %v1363
      %1388 = vst [vmem:[#allocation2 + $0xa0] sm:$0xff] %v1364
      %1389 = vst [vmem:[#allocation2 + $0xa8] sm:$0xff] %v1365
      %1390 = vst [vmem:[#allocation2 + $0xb0] sm:$0xff] %v1366
      %1391 = vst [vmem:[#allocation2 + $0xb8] sm:$0xff] %v1367
      %v1392 = vld [vmem:[#allocation2] sm:$0xff]
      %v1393 = vld [vmem:[#allocation2 + $0x8] sm:$0xff]
      %v1394 = vld [vmem:[#allocation2 + $0x10] sm:$0xff]
      %v1395 = vld [vmem:[#allocation2 + $0x18] sm:$0xff]
      %v1396 = vld [vmem:[#allocation2 + $0x20] sm:$0xff]
      %v1397 = vld [vmem:[#allocation2 + $0x28] sm:$0xff]
      %v1398 = vld [vmem:[#allocation2 + $0x30] sm:$0xff]
      %v1399 = vld [vmem:[#allocation2 + $0x38] sm:$0xff]
      %v1400 = vld [vmem:[#allocation2 + $0x40] sm:$0xff]
      %v1401 = vld [vmem:[#allocation2 + $0x48] sm:$0xff]
      %v1402 = vld [vmem:[#allocation2 + $0x50] sm:$0xff]
      %v1403 = vld [vmem:[#allocation2 + $0x58] sm:$0xff]
      %v1404 = vld [vmem:[#allocation2 + $0x60] sm:$0xff]
      %v1405 = vld [vmem:[#allocation2 + $0x68] sm:$0xff]
      %v1406 = vld [vmem:[#allocation2 + $0x70] sm:$0xff]
      %v1407 = vld [vmem:[#allocation2 + $0x78] sm:$0xff]
      %v1408 = vld [vmem:[#allocation2 + $0x80] sm:$0xff]
      %v1409 = vld [vmem:[#allocation2 + $0x88] sm:$0xff]
      %v1410 = vld [vmem:[#allocation2 + $0x90] sm:$0xff]
      %v1411 = vld [vmem:[#allocation2 + $0x98] sm:$0xff]
      %v1412 = vld [vmem:[#allocation2 + $0xa0] sm:$0xff]
      %v1413 = vld [vmem:[#allocation2 + $0xa8] sm:$0xff]
      %v1414 = vld [vmem:[#allocation2 + $0xb0] sm:$0xff]
      %v1415 = vld [vmem:[#allocation2 + $0xb8] sm:$0xff]
      %s1416 = scalar_lea.vmem %s5, 128
      %v1417 = vld [vmem:[%s1416] sm:$0xf]
      %v1418 = vld [vmem:[%s1416 + $0x4] sm:$0xf]
      %v1419 = vld [vmem:[%s1416 + $0x8] sm:$0xf]
      %v1420 = vld [vmem:[%s1416 + $0xc] sm:$0xf]
      %v1421 = vld [vmem:[%s1416 + $0x10] sm:$0xf]
      %v1422 = vld [vmem:[%s1416 + $0x14] sm:$0xf]
      %v1423 = vld [vmem:[%s1416 + $0x18] sm:$0xf]
      %v1424 = vld [vmem:[%s1416 + $0x1c] sm:$0xf]
      %v1425 = vld [vmem:[%s1416 + $0x20] sm:$0xf]
      %v1426 = vld [vmem:[%s1416 + $0x24] sm:$0xf]
      %v1427 = vld [vmem:[%s1416 + $0x28] sm:$0xf]
      %v1428 = vld [vmem:[%s1416 + $0x2c] sm:$0xf]
      %v1429 = vld [vmem:[%s1416 + $0x30] sm:$0xf]
      %v1430 = vld [vmem:[%s1416 + $0x34] sm:$0xf]
      %v1431 = vld [vmem:[%s1416 + $0x38] sm:$0xf]
      %v1432 = vld [vmem:[%s1416 + $0x3c] sm:$0xf]
      %vm1446 = vcmask 1046528
      %v1447 = vrot.slane %v781, 1
      %v1448 = vrot.slane %v782, 1
      %v1449 = vsel %vm1446, %v1447, %v1448
      %v1450 = vrot.slane %v783, 1
      %v1451 = vsel %vm1446, %v1448, %v1450
      %v1452 = vrot.slane %v784, 1
      %v1453 = vsel %vm1446, %v1450, %v1452
      %v1454 = vrot.slane %v785, 1
      %v1455 = vsel %vm1446, %v1452, %v1454
      %v1456 = vrot.slane %v786, 1
      %v1457 = vsel %vm1446, %v1454, %v1456
      %v1458 = vrot.slane %v787, 1
      %v1459 = vsel %vm1446, %v1456, %v1458
      %v1460 = vrot.slane %v788, 1
      %v1461 = vsel %vm1446, %v1458, %v1460
      %v1462 = vrot.slane %v789, 1
      %v1463 = vsel %vm1446, %v1460, %v1462
      %v1464 = vrot.slane %v790, 1
      %v1465 = vsel %vm1446, %v1462, %v1464
      %v1466 = vrot.slane %v791, 1
      %v1467 = vsel %vm1446, %v1464, %v1466
      %v1468 = vrot.slane %v792, 1
      %v1469 = vsel %vm1446, %v1466, %v1468
      %v1470 = vrot.slane %v793, 1
      %v1471 = vsel %vm1446, %v1468, %v1470
      %v1500 = vunpack.c.l.b16 %v1417
      %v1501 = vunpack.c.l.b16 %v1418
      %v1502 = vunpack.c.l.b16 %v1419
      %v1503 = vunpack.c.l.b16 %v1420
      %v1504 = vunpack.c.l.b16 %v1421
      %v1505 = vunpack.c.l.b16 %v1422
      %v1506 = vunpack.c.l.b16 %v1423
      %v1507 = vunpack.c.l.b16 %v1424
      %v1508 = vunpack.c.l.b16 %v1425
      %v1509 = vunpack.c.l.b16 %v1426
      %v1510 = vunpack.c.l.b16 %v1427
      %v1511 = vunpack.c.l.b16 %v1428
      %v1512 = vunpack.c.l.b16 %v1429
      %v1513 = vunpack.c.l.b16 %v1430
      %v1514 = vunpack.c.l.b16 %v1431
      %v1515 = vunpack.c.l.b16 %v1432
      %v1516 = vpack.c.b16 %v1501, %v1500
      %v1517 = vpack.c.b16 %v1503, %v1502
      %v1518 = vpack.c.b16 %v1505, %v1504
      %v1519 = vpack.c.b16 %v1507, %v1506
      %v1520 = vpack.c.b16 %v1509, %v1508
      %v1521 = vpack.c.b16 %v1511, %v1510
      %v1522 = vpack.c.b16 %v1513, %v1512
      %v1523 = vpack.c.b16 %v1515, %v1514
      %1532 = vmatprep.subr.bf16.mxu0 0
      %1533 = vmatpush1.bf16.msra.mxu0 %v1516
      %1534 = vmatprep.subr.bf16.mxu0 0
      %1535 = vmatpush1.bf16.msra.mxu0 %v1517
      %1536 = vmatprep.subr.bf16.mxu0 0
      %1537 = vmatpush1.bf16.msra.mxu0 %v1518
      %1538 = vmatprep.subr.bf16.mxu0 0
      %1539 = vmatpush1.bf16.msra.mxu0 %v1519
      %1540 = vmatprep.subr.bf16.mxu0 0
      %1541 = vmatpush1.bf16.msra.mxu0 %v1520
      %1542 = vmatprep.subr.bf16.mxu0 0
      %1543 = vmatpush1.bf16.msra.mxu0 %v1521
      %1544 = vmatprep.subr.bf16.mxu0 0
      %1545 = vmatpush1.bf16.msra.mxu0 %v1522
      %1546 = vmatprep.subr.bf16.mxu0 0
      %1547 = vmatpush1.bf16.msra.mxu0 %v1523
      %1548 = vmatprep.subr.bf16.mxu0 0
      %1549 = vmatpush1.bf16.msra.mxu0 0
      %1550 = vmatprep.subr.bf16.mxu0 0
      %1551 = vmatpush1.bf16.msra.mxu0 0
      %1552 = vmatprep.subr.bf16.mxu0 0
      %1553 = vmatpush1.bf16.msra.mxu0 0
      %1554 = vmatprep.subr.bf16.mxu0 0
      %1555 = vmatpush1.bf16.msra.mxu0 0
      %1556 = vmatprep.subr.bf16.mxu0 0
      %1557 = vmatpush1.bf16.msra.mxu0 0
      %1558 = vmatprep.subr.bf16.mxu0 0
      %1559 = vmatpush1.bf16.msra.mxu0 0
      %1560 = vmatprep.subr.bf16.mxu0 0
      %1561 = vmatpush1.bf16.msra.mxu0 0
      %1562 = vmatprep.subr.bf16.mxu0 0
      %1563 = vmatpush1.bf16.msra.mxu0 0
      %1564 = vmatprep.mubr.bf16.mxu0 0
      %1565 = vmatmul.mubr.bf16.gmra.mrb[0].mxu0 %v1449
      %v1566 = vpop.f32.mrb[0].mxu0
      %v1567 = vadd.f32 0.0, %v1566
      %v1568 = vpop.f32.mrb[0].mxu0
      %v1569 = vpop.f32.mrb[0].mxu0
      %v1570 = vadd.f32 0.0, %v1569
      %v1571 = vpop.f32.mrb[0].mxu0
      %1572 = vmatprep.mubr.bf16.mxu0 0
      %1573 = vmatmul.mubr.bf16.gmra.mrb[0].mxu0 %v1451
      %v1574 = vpop.f32.mrb[0].mxu0
      %v1575 = vadd.f32 0.0, %v1574
      %v1576 = vpop.f32.mrb[0].mxu0
      %v1577 = vpop.f32.mrb[0].mxu0
      %v1578 = vadd.f32 0.0, %v1577
      %v1579 = vpop.f32.mrb[0].mxu0
      %1580 = vmatprep.mubr.bf16.mxu0 0
      %1581 = vmatmul.mubr.bf16.gmra.mrb[0].mxu0 %v1453
      %v1582 = vpop.f32.mrb[0].mxu0
      %v1583 = vadd.f32 0.0, %v1582
      %v1584 = vpop.f32.mrb[0].mxu0
      %v1585 = vpop.f32.mrb[0].mxu0
      %v1586 = vadd.f32 0.0, %v1585
      %v1587 = vpop.f32.mrb[0].mxu0
      %1588 = vmatprep.mubr.bf16.mxu0 0
      %1589 = vmatmul.mubr.bf16.gmra.mrb[0].mxu0 %v1455
      %v1590 = vpop.f32.mrb[0].mxu0
      %v1591 = vadd.f32 0.0, %v1590
      %v1592 = vpop.f32.mrb[0].mxu0
      %v1593 = vpop.f32.mrb[0].mxu0
      %v1594 = vadd.f32 0.0, %v1593
      %v1595 = vpop.f32.mrb[0].mxu0
      %1596 = vmatprep.mubr.bf16.mxu0 0
      %1597 = vmatmul.mubr.bf16.gmra.mrb[0].mxu0 %v1457
      %v1598 = vpop.f32.mrb[0].mxu0
      %v1599 = vadd.f32 0.0, %v1598
      %v1600 = vpop.f32.mrb[0].mxu0
      %v1601 = vpop.f32.mrb[0].mxu0
      %v1602 = vadd.f32 0.0, %v1601
      %v1603 = vpop.f32.mrb[0].mxu0
      %1604 = vmatprep.mubr.bf16.mxu0 0
      %1605 = vmatmul.mubr.bf16.gmra.mrb[0].mxu0 %v1459
      %v1606 = vpop.f32.mrb[0].mxu0
      %v1607 = vadd.f32 0.0, %v1606
      %v1608 = vpop.f32.mrb[0].mxu0
      %v1609 = vpop.f32.mrb[0].mxu0
      %v1610 = vadd.f32 0.0, %v1609
      %v1611 = vpop.f32.mrb[0].mxu0
      %1612 = vmatprep.mubr.bf16.mxu0 0
      %1613 = vmatmul.mubr.bf16.gmra.mrb[0].mxu0 %v1461
      %v1614 = vpop.f32.mrb[0].mxu0
      %v1615 = vadd.f32 0.0, %v1614
      %v1616 = vpop.f32.mrb[0].mxu0
      %v1617 = vpop.f32.mrb[0].mxu0
      %v1618 = vadd.f32 0.0, %v1617
      %v1619 = vpop.f32.mrb[0].mxu0
      %1620 = vmatprep.mubr.bf16.mxu0 0
      %1621 = vmatmul.mubr.bf16.gmra.mrb[0].mxu0 %v1463
      %v1622 = vpop.f32.mrb[0].mxu0
      %v1623 = vadd.f32 0.0, %v1622
      %v1624 = vpop.f32.mrb[0].mxu0
      %v1625 = vpop.f32.mrb[0].mxu0
      %v1626 = vadd.f32 0.0, %v1625
      %v1627 = vpop.f32.mrb[0].mxu0
      %1628 = vmatprep.mubr.bf16.mxu0 0
      %1629 = vmatmul.mubr.bf16.gmra.mrb[0].mxu0 %v1465
      %v1630 = vpop.f32.mrb[0].mxu0
      %v1631 = vadd.f32 0.0, %v1630
      %v1632 = vpop.f32.mrb[0].mxu0
      %v1633 = vpop.f32.mrb[0].mxu0
      %v1634 = vadd.f32 0.0, %v1633
      %v1635 = vpop.f32.mrb[0].mxu0
      %1636 = vmatprep.mubr.bf16.mxu0 0
      %1637 = vmatmul.mubr.bf16.gmra.mrb[0].mxu0 %v1467
      %v1638 = vpop.f32.mrb[0].mxu0
      %v1639 = vadd.f32 0.0, %v1638
      %v1640 = vpop.f32.mrb[0].mxu0
      %v1641 = vpop.f32.mrb[0].mxu0
      %v1642 = vadd.f32 0.0, %v1641
      %v1643 = vpop.f32.mrb[0].mxu0
      %1644 = vmatprep.mubr.bf16.mxu0 0
      %1645 = vmatmul.mubr.bf16.gmra.mrb[0].mxu0 %v1469
      %v1646 = vpop.f32.mrb[0].mxu0
      %v1647 = vadd.f32 0.0, %v1646
      %v1648 = vpop.f32.mrb[0].mxu0
      %v1649 = vpop.f32.mrb[0].mxu0
      %v1650 = vadd.f32 0.0, %v1649
      %v1651 = vpop.f32.mrb[0].mxu0
      %1652 = vmatprep.mubr.bf16.mxu0 0
      %1653 = vmatmul.mubr.bf16.gmra.mrb[0].mxu0 %v1471
      %v1654 = vpop.f32.mrb[0].mxu0
      %v1655 = vadd.f32 0.0, %v1654
      %v1656 = vpop.f32.mrb[0].mxu0
      %v1657 = vpop.f32.mrb[0].mxu0
      %v1658 = vadd.f32 0.0, %v1657
      %v1659 = vpop.f32.mrb[0].mxu0
      %1660 = vdwg.mxu0
      %v1661 = vadd.f32 %v1392, %v1567
      %v1662 = vadd.f32 %v1393, %v1570
      %v1663 = vadd.f32 %v1394, %v1575
      %v1664 = vadd.f32 %v1395, %v1578
      %v1665 = vadd.f32 %v1396, %v1583
      %v1666 = vadd.f32 %v1397, %v1586
      %v1667 = vadd.f32 %v1398, %v1591
      %v1668 = vadd.f32 %v1399, %v1594
      %v1669 = vadd.f32 %v1400, %v1599
      %v1670 = vadd.f32 %v1401, %v1602
      %v1671 = vadd.f32 %v1402, %v1607
      %v1672 = vadd.f32 %v1403, %v1610
      %v1673 = vadd.f32 %v1404, %v1615
      %v1674 = vadd.f32 %v1405, %v1618
      %v1675 = vadd.f32 %v1406, %v1623
      %v1676 = vadd.f32 %v1407, %v1626
      %v1677 = vadd.f32 %v1408, %v1631
      %v1678 = vadd.f32 %v1409, %v1634
      %v1679 = vadd.f32 %v1410, %v1639
      %v1680 = vadd.f32 %v1411, %v1642
      %v1681 = vadd.f32 %v1412, %v1647
      %v1682 = vadd.f32 %v1413, %v1650
      %v1683 = vadd.f32 %v1414, %v1655
      %v1684 = vadd.f32 %v1415, %v1658
      %1685 = vst [vmem:[#allocation2] sm:$0xff] %v1661
      %1686 = vst [vmem:[#allocation2 + $0x8] sm:$0xff] %v1662
      %1687 = vst [vmem:[#allocation2 + $0x10] sm:$0xff] %v1663
      %1688 = vst [vmem:[#allocation2 + $0x18] sm:$0xff] %v1664
      %1689 = vst [vmem:[#allocation2 + $0x20] sm:$0xff] %v1665
      %1690 = vst [vmem:[#allocation2 + $0x28] sm:$0xff] %v1666
      %1691 = vst [vmem:[#allocation2 + $0x30] sm:$0xff] %v1667
      %1692 = vst [vmem:[#allocation2 + $0x38] sm:$0xff] %v1668
      %1693 = vst [vmem:[#allocation2 + $0x40] sm:$0xff] %v1669
      %1694 = vst [vmem:[#allocation2 + $0x48] sm:$0xff] %v1670
      %1695 = vst [vmem:[#allocation2 + $0x50] sm:$0xff] %v1671
      %1696 = vst [vmem:[#allocation2 + $0x58] sm:$0xff] %v1672
      %1697 = vst [vmem:[#allocation2 + $0x60] sm:$0xff] %v1673
      %1698 = vst [vmem:[#allocation2 + $0x68] sm:$0xff] %v1674
      %1699 = vst [vmem:[#allocation2 + $0x70] sm:$0xff] %v1675
      %1700 = vst [vmem:[#allocation2 + $0x78] sm:$0xff] %v1676
      %1701 = vst [vmem:[#allocation2 + $0x80] sm:$0xff] %v1677
      %1702 = vst [vmem:[#allocation2 + $0x88] sm:$0xff] %v1678
      %1703 = vst [vmem:[#allocation2 + $0x90] sm:$0xff] %v1679
      %1704 = vst [vmem:[#allocation2 + $0x98] sm:$0xff] %v1680
      %1705 = vst [vmem:[#allocation2 + $0xa0] sm:$0xff] %v1681
      %1706 = vst [vmem:[#allocation2 + $0xa8] sm:$0xff] %v1682
      %1707 = vst [vmem:[#allocation2 + $0xb0] sm:$0xff] %v1683
      %1708 = vst [vmem:[#allocation2 + $0xb8] sm:$0xff] %v1684
      %v1709 = vld [vmem:[#allocation2] sm:$0xff]
      %v1710 = vld [vmem:[#allocation2 + $0x8] sm:$0xff]
      %v1711 = vld [vmem:[#allocation2 + $0x10] sm:$0xff]
      %v1712 = vld [vmem:[#allocation2 + $0x18] sm:$0xff]
      %v1713 = vld [vmem:[#allocation2 + $0x20] sm:$0xff]
      %v1714 = vld [vmem:[#allocation2 + $0x28] sm:$0xff]
      %v1715 = vld [vmem:[#allocation2 + $0x30] sm:$0xff]
      %v1716 = vld [vmem:[#allocation2 + $0x38] sm:$0xff]
      %v1717 = vld [vmem:[#allocation2 + $0x40] sm:$0xff]
      %v1718 = vld [vmem:[#allocation2 + $0x48] sm:$0xff]
      %v1719 = vld [vmem:[#allocation2 + $0x50] sm:$0xff]
      %v1720 = vld [vmem:[#allocation2 + $0x58] sm:$0xff]
      %v1721 = vld [vmem:[#allocation2 + $0x60] sm:$0xff]
      %v1722 = vld [vmem:[#allocation2 + $0x68] sm:$0xff]
      %v1723 = vld [vmem:[#allocation2 + $0x70] sm:$0xff]
      %v1724 = vld [vmem:[#allocation2 + $0x78] sm:$0xff]
      %v1725 = vld [vmem:[#allocation2 + $0x80] sm:$0xff]
      %v1726 = vld [vmem:[#allocation2 + $0x88] sm:$0xff]
      %v1727 = vld [vmem:[#allocation2 + $0x90] sm:$0xff]
      %v1728 = vld [vmem:[#allocation2 + $0x98] sm:$0xff]
      %v1729 = vld [vmem:[#allocation2 + $0xa0] sm:$0xff]
      %v1730 = vld [vmem:[#allocation2 + $0xa8] sm:$0xff]
      %v1731 = vld [vmem:[#allocation2 + $0xb0] sm:$0xff]
      %v1732 = vld [vmem:[#allocation2 + $0xb8] sm:$0xff]
      %s1733 = scalar_lea.vmem %s5, 192
      %v1734 = vld [vmem:[%s1733] sm:$0xf]
      %v1735 = vld [vmem:[%s1733 + $0x4] sm:$0xf]
      %v1736 = vld [vmem:[%s1733 + $0x8] sm:$0xf]
      %v1737 = vld [vmem:[%s1733 + $0xc] sm:$0xf]
      %v1738 = vld [vmem:[%s1733 + $0x10] sm:$0xf]
      %v1739 = vld [vmem:[%s1733 + $0x14] sm:$0xf]
      %v1740 = vld [vmem:[%s1733 + $0x18] sm:$0xf]
      %v1741 = vld [vmem:[%s1733 + $0x1c] sm:$0xf]
      %v1742 = vld [vmem:[%s1733 + $0x20] sm:$0xf]
      %v1743 = vld [vmem:[%s1733 + $0x24] sm:$0xf]
      %v1744 = vld [vmem:[%s1733 + $0x28] sm:$0xf]
      %v1745 = vld [vmem:[%s1733 + $0x2c] sm:$0xf]
      %v1746 = vld [vmem:[%s1733 + $0x30] sm:$0xf]
      %v1747 = vld [vmem:[%s1733 + $0x34] sm:$0xf]
      %v1748 = vld [vmem:[%s1733 + $0x38] sm:$0xf]
      %v1749 = vld [vmem:[%s1733 + $0x3c] sm:$0xf]
      %v1766 = vunpack.c.l.b16 %v1734
      %v1767 = vunpack.c.l.b16 %v1735
      %v1768 = vunpack.c.l.b16 %v1736
      %v1769 = vunpack.c.l.b16 %v1737
      %v1770 = vunpack.c.l.b16 %v1738
      %v1771 = vunpack.c.l.b16 %v1739
      %v1772 = vunpack.c.l.b16 %v1740
      %v1773 = vunpack.c.l.b16 %v1741
      %v1774 = vunpack.c.l.b16 %v1742
      %v1775 = vunpack.c.l.b16 %v1743
      %v1776 = vunpack.c.l.b16 %v1744
      %v1777 = vunpack.c.l.b16 %v1745
      %v1778 = vunpack.c.l.b16 %v1746
      %v1779 = vunpack.c.l.b16 %v1747
      %v1780 = vunpack.c.l.b16 %v1748
      %v1781 = vunpack.c.l.b16 %v1749
      %v1782 = vpack.c.b16 %v1767, %v1766
      %v1783 = vpack.c.b16 %v1769, %v1768
      %v1784 = vpack.c.b16 %v1771, %v1770
      %v1785 = vpack.c.b16 %v1773, %v1772
      %v1786 = vpack.c.b16 %v1775, %v1774
      %v1787 = vpack.c.b16 %v1777, %v1776
      %v1788 = vpack.c.b16 %v1779, %v1778
      %v1789 = vpack.c.b16 %v1781, %v1780
      %1798 = vmatprep.subr.bf16.mxu0 0
      %1799 = vmatpush1.bf16.msra.mxu0 %v1782
      %1800 = vmatprep.subr.bf16.mxu0 0
      %1801 = vmatpush1.bf16.msra.mxu0 %v1783
      %1802 = vmatprep.subr.bf16.mxu0 0
      %1803 = vmatpush1.bf16.msra.mxu0 %v1784
      %1804 = vmatprep.subr.bf16.mxu0 0
      %1805 = vmatpush1.bf16.msra.mxu0 %v1785
      %1806 = vmatprep.subr.bf16.mxu0 0
      %1807 = vmatpush1.bf16.msra.mxu0 %v1786
      %1808 = vmatprep.subr.bf16.mxu0 0
      %1809 = vmatpush1.bf16.msra.mxu0 %v1787
      %1810 = vmatprep.subr.bf16.mxu0 0
      %1811 = vmatpush1.bf16.msra.mxu0 %v1788
      %1812 = vmatprep.subr.bf16.mxu0 0
      %1813 = vmatpush1.bf16.msra.mxu0 %v1789
      %1814 = vmatprep.subr.bf16.mxu0 0
      %1815 = vmatpush1.bf16.msra.mxu0 0
      %1816 = vmatprep.subr.bf16.mxu0 0
      %1817 = vmatpush1.bf16.msra.mxu0 0
      %1818 = vmatprep.subr.bf16.mxu0 0
      %1819 = vmatpush1.bf16.msra.mxu0 0
      %1820 = vmatprep.subr.bf16.mxu0 0
      %1821 = vmatpush1.bf16.msra.mxu0 0
      %1822 = vmatprep.subr.bf16.mxu0 0
      %1823 = vmatpush1.bf16.msra.mxu0 0
      %1824 = vmatprep.subr.bf16.mxu0 0
      %1825 = vmatpush1.bf16.msra.mxu0 0
      %1826 = vmatprep.subr.bf16.mxu0 0
      %1827 = vmatpush1.bf16.msra.mxu0 0
      %1828 = vmatprep.subr.bf16.mxu0 0
      %1829 = vmatpush1.bf16.msra.mxu0 0
      %1830 = vmatprep.mubr.bf16.mxu0 0
      %1831 = vmatmul.mubr.bf16.gmra.mrb[0].mxu0 %v782
      %v1832 = vpop.f32.mrb[0].mxu0
      %v1833 = vadd.f32 0.0, %v1832
      %v1834 = vpop.f32.mrb[0].mxu0
      %v1835 = vpop.f32.mrb[0].mxu0
      %v1836 = vadd.f32 0.0, %v1835
      %v1837 = vpop.f32.mrb[0].mxu0
      %1838 = vmatprep.mubr.bf16.mxu0 0
      %1839 = vmatmul.mubr.bf16.gmra.mrb[0].mxu0 %v783
      %v1840 = vpop.f32.mrb[0].mxu0
      %v1841 = vadd.f32 0.0, %v1840
      %v1842 = vpop.f32.mrb[0].mxu0
      %v1843 = vpop.f32.mrb[0].mxu0
      %v1844 = vadd.f32 0.0, %v1843
      %v1845 = vpop.f32.mrb[0].mxu0
      %1846 = vmatprep.mubr.bf16.mxu0 0
      %1847 = vmatmul.mubr.bf16.gmra.mrb[0].mxu0 %v784
      %v1848 = vpop.f32.mrb[0].mxu0
      %v1849 = vadd.f32 0.0, %v1848
      %v1850 = vpop.f32.mrb[0].mxu0
      %v1851 = vpop.f32.mrb[0].mxu0
      %v1852 = vadd.f32 0.0, %v1851
      %v1853 = vpop.f32.mrb[0].mxu0
      %1854 = vmatprep.mubr.bf16.mxu0 0
      %1855 = vmatmul.mubr.bf16.gmra.mrb[0].mxu0 %v785
      %v1856 = vpop.f32.mrb[0].mxu0
      %v1857 = vadd.f32 0.0, %v1856
      %v1858 = vpop.f32.mrb[0].mxu0
      %v1859 = vpop.f32.mrb[0].mxu0
      %v1860 = vadd.f32 0.0, %v1859
      %v1861 = vpop.f32.mrb[0].mxu0
      %1862 = vmatprep.mubr.bf16.mxu0 0
      %1863 = vmatmul.mubr.bf16.gmra.mrb[0].mxu0 %v786
      %v1864 = vpop.f32.mrb[0].mxu0
      %v1865 = vadd.f32 0.0, %v1864
      %v1866 = vpop.f32.mrb[0].mxu0
      %v1867 = vpop.f32.mrb[0].mxu0
      %v1868 = vadd.f32 0.0, %v1867
      %v1869 = vpop.f32.mrb[0].mxu0
      %1870 = vmatprep.mubr.bf16.mxu0 0
      %1871 = vmatmul.mubr.bf16.gmra.mrb[0].mxu0 %v787
      %v1872 = vpop.f32.mrb[0].mxu0
      %v1873 = vadd.f32 0.0, %v1872
      %v1874 = vpop.f32.mrb[0].mxu0
      %v1875 = vpop.f32.mrb[0].mxu0
      %v1876 = vadd.f32 0.0, %v1875
      %v1877 = vpop.f32.mrb[0].mxu0
      %1878 = vmatprep.mubr.bf16.mxu0 0
      %1879 = vmatmul.mubr.bf16.gmra.mrb[0].mxu0 %v788
      %v1880 = vpop.f32.mrb[0].mxu0
      %v1881 = vadd.f32 0.0, %v1880
      %v1882 = vpop.f32.mrb[0].mxu0
      %v1883 = vpop.f32.mrb[0].mxu0
      %v1884 = vadd.f32 0.0, %v1883
      %v1885 = vpop.f32.mrb[0].mxu0
      %1886 = vmatprep.mubr.bf16.mxu0 0
      %1887 = vmatmul.mubr.bf16.gmra.mrb[0].mxu0 %v789
      %v1888 = vpop.f32.mrb[0].mxu0
      %v1889 = vadd.f32 0.0, %v1888
      %v1890 = vpop.f32.mrb[0].mxu0
      %v1891 = vpop.f32.mrb[0].mxu0
      %v1892 = vadd.f32 0.0, %v1891
      %v1893 = vpop.f32.mrb[0].mxu0
      %1894 = vmatprep.mubr.bf16.mxu0 0
      %1895 = vmatmul.mubr.bf16.gmra.mrb[0].mxu0 %v790
      %v1896 = vpop.f32.mrb[0].mxu0
      %v1897 = vadd.f32 0.0, %v1896
      %v1898 = vpop.f32.mrb[0].mxu0
      %v1899 = vpop.f32.mrb[0].mxu0
      %v1900 = vadd.f32 0.0, %v1899
      %v1901 = vpop.f32.mrb[0].mxu0
      %1902 = vmatprep.mubr.bf16.mxu0 0
      %1903 = vmatmul.mubr.bf16.gmra.mrb[0].mxu0 %v791
      %v1904 = vpop.f32.mrb[0].mxu0
      %v1905 = vadd.f32 0.0, %v1904
      %v1906 = vpop.f32.mrb[0].mxu0
      %v1907 = vpop.f32.mrb[0].mxu0
      %v1908 = vadd.f32 0.0, %v1907
      %v1909 = vpop.f32.mrb[0].mxu0
      %1910 = vmatprep.mubr.bf16.mxu0 0
      %1911 = vmatmul.mubr.bf16.gmra.mrb[0].mxu0 %v792
      %v1912 = vpop.f32.mrb[0].mxu0
      %v1913 = vadd.f32 0.0, %v1912
      %v1914 = vpop.f32.mrb[0].mxu0
      %v1915 = vpop.f32.mrb[0].mxu0
      %v1916 = vadd.f32 0.0, %v1915
      %v1917 = vpop.f32.mrb[0].mxu0
      %1918 = vmatprep.mubr.bf16.mxu0 0
      %1919 = vmatmul.mubr.bf16.gmra.mrb[0].mxu0 %v793
      %v1920 = vpop.f32.mrb[0].mxu0
      %v1921 = vadd.f32 0.0, %v1920
      %v1922 = vpop.f32.mrb[0].mxu0
      %v1923 = vpop.f32.mrb[0].mxu0
      %v1924 = vadd.f32 0.0, %v1923
      %v1925 = vpop.f32.mrb[0].mxu0
      %1926 = vdwg.mxu0
      %v1927 = vadd.f32 %v1709, %v1833
      %v1928 = vadd.f32 %v1710, %v1836
      %v1929 = vadd.f32 %v1711, %v1841
      %v1930 = vadd.f32 %v1712, %v1844
      %v1931 = vadd.f32 %v1713, %v1849
      %v1932 = vadd.f32 %v1714, %v1852
      %v1933 = vadd.f32 %v1715, %v1857
      %v1934 = vadd.f32 %v1716, %v1860
      %v1935 = vadd.f32 %v1717, %v1865
      %v1936 = vadd.f32 %v1718, %v1868
      %v1937 = vadd.f32 %v1719, %v1873
      %v1938 = vadd.f32 %v1720, %v1876
      %v1939 = vadd.f32 %v1721, %v1881
      %v1940 = vadd.f32 %v1722, %v1884
      %v1941 = vadd.f32 %v1723, %v1889
      %v1942 = vadd.f32 %v1724, %v1892
      %v1943 = vadd.f32 %v1725, %v1897
      %v1944 = vadd.f32 %v1726, %v1900
      %v1945 = vadd.f32 %v1727, %v1905
      %v1946 = vadd.f32 %v1728, %v1908
      %v1947 = vadd.f32 %v1729, %v1913
      %v1948 = vadd.f32 %v1730, %v1916
      %v1949 = vadd.f32 %v1731, %v1921
      %v1950 = vadd.f32 %v1732, %v1924
      %1951 = vst [vmem:[#allocation2] sm:$0xff] %v1927
      %1952 = vst [vmem:[#allocation2 + $0x8] sm:$0xff] %v1928
      %1953 = vst [vmem:[#allocation2 + $0x10] sm:$0xff] %v1929
      %1954 = vst [vmem:[#allocation2 + $0x18] sm:$0xff] %v1930
      %1955 = vst [vmem:[#allocation2 + $0x20] sm:$0xff] %v1931
      %1956 = vst [vmem:[#allocation2 + $0x28] sm:$0xff] %v1932
      %1957 = vst [vmem:[#allocation2 + $0x30] sm:$0xff] %v1933
      %1958 = vst [vmem:[#allocation2 + $0x38] sm:$0xff] %v1934
      %1959 = vst [vmem:[#allocation2 + $0x40] sm:$0xff] %v1935
      %1960 = vst [vmem:[#allocation2 + $0x48] sm:$0xff] %v1936
      %1961 = vst [vmem:[#allocation2 + $0x50] sm:$0xff] %v1937
      %1962 = vst [vmem:[#allocation2 + $0x58] sm:$0xff] %v1938
      %1963 = vst [vmem:[#allocation2 + $0x60] sm:$0xff] %v1939
      %1964 = vst [vmem:[#allocation2 + $0x68] sm:$0xff] %v1940
      %1965 = vst [vmem:[#allocation2 + $0x70] sm:$0xff] %v1941
      %1966 = vst [vmem:[#allocation2 + $0x78] sm:$0xff] %v1942
      %1967 = vst [vmem:[#allocation2 + $0x80] sm:$0xff] %v1943
      %1968 = vst [vmem:[#allocation2 + $0x88] sm:$0xff] %v1944
      %1969 = vst [vmem:[#allocation2 + $0x90] sm:$0xff] %v1945
      %1970 = vst [vmem:[#allocation2 + $0x98] sm:$0xff] %v1946
      %1971 = vst [vmem:[#allocation2 + $0xa0] sm:$0xff] %v1947
      %1972 = vst [vmem:[#allocation2 + $0xa8] sm:$0xff] %v1948
      %1973 = vst [vmem:[#allocation2 + $0xb0] sm:$0xff] %v1949
      %1974 = vst [vmem:[#allocation2 + $0xb8] sm:$0xff] %v1950
      %v1975 = vld [vmem:[#allocation2] sm:$0xff]
      %v1976 = vld [vmem:[#allocation2 + $0x8] sm:$0xff]
      %v1977 = vld [vmem:[#allocation2 + $0x10] sm:$0xff]
      %v1978 = vld [vmem:[#allocation2 + $0x18] sm:$0xff]
      %v1979 = vld [vmem:[#allocation2 + $0x20] sm:$0xff]
      %v1980 = vld [vmem:[#allocation2 + $0x28] sm:$0xff]
      %v1981 = vld [vmem:[#allocation2 + $0x30] sm:$0xff]
      %v1982 = vld [vmem:[#allocation2 + $0x38] sm:$0xff]
      %v1983 = vld [vmem:[#allocation2 + $0x40] sm:$0xff]
      %v1984 = vld [vmem:[#allocation2 + $0x48] sm:$0xff]
      %v1985 = vld [vmem:[#allocation2 + $0x50] sm:$0xff]
      %v1986 = vld [vmem:[#allocation2 + $0x58] sm:$0xff]
      %v1987 = vld [vmem:[#allocation2 + $0x60] sm:$0xff]
      %v1988 = vld [vmem:[#allocation2 + $0x68] sm:$0xff]
      %v1989 = vld [vmem:[#allocation2 + $0x70] sm:$0xff]
      %v1990 = vld [vmem:[#allocation2 + $0x78] sm:$0xff]
      %v1991 = vld [vmem:[#allocation2 + $0x80] sm:$0xff]
      %v1992 = vld [vmem:[#allocation2 + $0x88] sm:$0xff]
      %v1993 = vld [vmem:[#allocation2 + $0x90] sm:$0xff]
      %v1994 = vld [vmem:[#allocation2 + $0x98] sm:$0xff]
      %v1995 = vld [vmem:[#allocation2 + $0xa0] sm:$0xff]
      %v1996 = vld [vmem:[#allocation2 + $0xa8] sm:$0xff]
      %v1997 = vld [vmem:[#allocation2 + $0xb0] sm:$0xff]
      %v1998 = vld [vmem:[#allocation2 + $0xb8] sm:$0xff]
      %s1999 = scalar_lea.vmem %s5, 256
      %v2000 = vld [vmem:[%s1999] sm:$0xf]
      %v2001 = vld [vmem:[%s1999 + $0x4] sm:$0xf]
      %v2002 = vld [vmem:[%s1999 + $0x8] sm:$0xf]
      %v2003 = vld [vmem:[%s1999 + $0xc] sm:$0xf]
      %v2004 = vld [vmem:[%s1999 + $0x10] sm:$0xf]
      %v2005 = vld [vmem:[%s1999 + $0x14] sm:$0xf]
      %v2006 = vld [vmem:[%s1999 + $0x18] sm:$0xf]
      %v2007 = vld [vmem:[%s1999 + $0x1c] sm:$0xf]
      %v2008 = vld [vmem:[%s1999 + $0x20] sm:$0xf]
      %v2009 = vld [vmem:[%s1999 + $0x24] sm:$0xf]
      %v2010 = vld [vmem:[%s1999 + $0x28] sm:$0xf]
      %v2011 = vld [vmem:[%s1999 + $0x2c] sm:$0xf]
      %v2012 = vld [vmem:[%s1999 + $0x30] sm:$0xf]
      %v2013 = vld [vmem:[%s1999 + $0x34] sm:$0xf]
      %v2014 = vld [vmem:[%s1999 + $0x38] sm:$0xf]
      %v2015 = vld [vmem:[%s1999 + $0x3c] sm:$0xf]
      %v2016 = vshrl.u32 %v793, 16
      %v2018 = vor.u32 %v2016, %v1153
      %v2020 = vshll.u32 %v794, 16
      %v2022 = vrot.slane %v2020, 1
      %v2023 = vsel %vm1054, %v2018, %v2022
      %v2041 = vunpack.c.l.b16 %v2000
      %v2042 = vunpack.c.l.b16 %v2001
      %v2043 = vunpack.c.l.b16 %v2002
      %v2044 = vunpack.c.l.b16 %v2003
      %v2045 = vunpack.c.l.b16 %v2004
      %v2046 = vunpack.c.l.b16 %v2005
      %v2047 = vunpack.c.l.b16 %v2006
      %v2048 = vunpack.c.l.b16 %v2007
      %v2049 = vunpack.c.l.b16 %v2008
      %v2050 = vunpack.c.l.b16 %v2009
      %v2051 = vunpack.c.l.b16 %v2010
      %v2052 = vunpack.c.l.b16 %v2011
      %v2053 = vunpack.c.l.b16 %v2012
      %v2054 = vunpack.c.l.b16 %v2013
      %v2055 = vunpack.c.l.b16 %v2014
      %v2056 = vunpack.c.l.b16 %v2015
      %v2057 = vpack.c.b16 %v2042, %v2041
      %v2058 = vpack.c.b16 %v2044, %v2043
      %v2059 = vpack.c.b16 %v2046, %v2045
      %v2060 = vpack.c.b16 %v2048, %v2047
      %v2061 = vpack.c.b16 %v2050, %v2049
      %v2062 = vpack.c.b16 %v2052, %v2051
      %v2063 = vpack.c.b16 %v2054, %v2053
      %v2064 = vpack.c.b16 %v2056, %v2055
      %2073 = vmatprep.subr.bf16.mxu0 0
      %2074 = vmatpush1.bf16.msra.mxu0 %v2057
      %2075 = vmatprep.subr.bf16.mxu0 0
      %2076 = vmatpush1.bf16.msra.mxu0 %v2058
      %2077 = vmatprep.subr.bf16.mxu0 0
      %2078 = vmatpush1.bf16.msra.mxu0 %v2059
      %2079 = vmatprep.subr.bf16.mxu0 0
      %2080 = vmatpush1.bf16.msra.mxu0 %v2060
      %2081 = vmatprep.subr.bf16.mxu0 0
      %2082 = vmatpush1.bf16.msra.mxu0 %v2061
      %2083 = vmatprep.subr.bf16.mxu0 0
      %2084 = vmatpush1.bf16.msra.mxu0 %v2062
      %2085 = vmatprep.subr.bf16.mxu0 0
      %2086 = vmatpush1.bf16.msra.mxu0 %v2063
      %2087 = vmatprep.subr.bf16.mxu0 0
      %2088 = vmatpush1.bf16.msra.mxu0 %v2064
      %2089 = vmatprep.subr.bf16.mxu0 0
      %2090 = vmatpush1.bf16.msra.mxu0 0
      %2091 = vmatprep.subr.bf16.mxu0 0
      %2092 = vmatpush1.bf16.msra.mxu0 0
      %2093 = vmatprep.subr.bf16.mxu0 0
      %2094 = vmatpush1.bf16.msra.mxu0 0
      %2095 = vmatprep.subr.bf16.mxu0 0
      %2096 = vmatpush1.bf16.msra.mxu0 0
      %2097 = vmatprep.subr.bf16.mxu0 0
      %2098 = vmatpush1.bf16.msra.mxu0 0
      %2099 = vmatprep.subr.bf16.mxu0 0
      %2100 = vmatpush1.bf16.msra.mxu0 0
      %2101 = vmatprep.subr.bf16.mxu0 0
      %2102 = vmatpush1.bf16.msra.mxu0 0
      %2103 = vmatprep.subr.bf16.mxu0 0
      %2104 = vmatpush1.bf16.msra.mxu0 0
      %2105 = vmatprep.mubr.bf16.mxu0 0
      %2106 = vmatmul.mubr.bf16.gmra.mrb[0].mxu0 %v1074
      %v2107 = vpop.f32.mrb[0].mxu0
      %v2108 = vadd.f32 0.0, %v2107
      %v2109 = vpop.f32.mrb[0].mxu0
      %v2110 = vpop.f32.mrb[0].mxu0
      %v2111 = vadd.f32 0.0, %v2110
      %v2112 = vpop.f32.mrb[0].mxu0
      %2113 = vmatprep.mubr.bf16.mxu0 0
      %2114 = vmatmul.mubr.bf16.gmra.mrb[0].mxu0 %v1082
      %v2115 = vpop.f32.mrb[0].mxu0
      %v2116 = vadd.f32 0.0, %v2115
      %v2117 = vpop.f32.mrb[0].mxu0
      %v2118 = vpop.f32.mrb[0].mxu0
      %v2119 = vadd.f32 0.0, %v2118
      %v2120 = vpop.f32.mrb[0].mxu0
      %2121 = vmatprep.mubr.bf16.mxu0 0
      %2122 = vmatmul.mubr.bf16.gmra.mrb[0].mxu0 %v1090
      %v2123 = vpop.f32.mrb[0].mxu0
      %v2124 = vadd.f32 0.0, %v2123
      %v2125 = vpop.f32.mrb[0].mxu0
      %v2126 = vpop.f32.mrb[0].mxu0
      %v2127 = vadd.f32 0.0, %v2126
      %v2128 = vpop.f32.mrb[0].mxu0
      %2129 = vmatprep.mubr.bf16.mxu0 0
      %2130 = vmatmul.mubr.bf16.gmra.mrb[0].mxu0 %v1098
      %v2131 = vpop.f32.mrb[0].mxu0
      %v2132 = vadd.f32 0.0, %v2131
      %v2133 = vpop.f32.mrb[0].mxu0
      %v2134 = vpop.f32.mrb[0].mxu0
      %v2135 = vadd.f32 0.0, %v2134
      %v2136 = vpop.f32.mrb[0].mxu0
      %2137 = vmatprep.mubr.bf16.mxu0 0
      %2138 = vmatmul.mubr.bf16.gmra.mrb[0].mxu0 %v1106
      %v2139 = vpop.f32.mrb[0].mxu0
      %v2140 = vadd.f32 0.0, %v2139
      %v2141 = vpop.f32.mrb[0].mxu0
      %v2142 = vpop.f32.mrb[0].mxu0
      %v2143 = vadd.f32 0.0, %v2142
      %v2144 = vpop.f32.mrb[0].mxu0
      %2145 = vmatprep.mubr.bf16.mxu0 0
      %2146 = vmatmul.mubr.bf16.gmra.mrb[0].mxu0 %v1114
      %v2147 = vpop.f32.mrb[0].mxu0
      %v2148 = vadd.f32 0.0, %v2147
      %v2149 = vpop.f32.mrb[0].mxu0
      %v2150 = vpop.f32.mrb[0].mxu0
      %v2151 = vadd.f32 0.0, %v2150
      %v2152 = vpop.f32.mrb[0].mxu0
      %2153 = vmatprep.mubr.bf16.mxu0 0
      %2154 = vmatmul.mubr.bf16.gmra.mrb[0].mxu0 %v1122
      %v2155 = vpop.f32.mrb[0].mxu0
      %v2156 = vadd.f32 0.0, %v2155
      %v2157 = vpop.f32.mrb[0].mxu0
      %v2158 = vpop.f32.mrb[0].mxu0
      %v2159 = vadd.f32 0.0, %v2158
      %v2160 = vpop.f32.mrb[0].mxu0
      %2161 = vmatprep.mubr.bf16.mxu0 0
      %2162 = vmatmul.mubr.bf16.gmra.mrb[0].mxu0 %v1130
      %v2163 = vpop.f32.mrb[0].mxu0
      %v2164 = vadd.f32 0.0, %v2163
      %v2165 = vpop.f32.mrb[0].mxu0
      %v2166 = vpop.f32.mrb[0].mxu0
      %v2167 = vadd.f32 0.0, %v2166
      %v2168 = vpop.f32.mrb[0].mxu0
      %2169 = vmatprep.mubr.bf16.mxu0 0
      %2170 = vmatmul.mubr.bf16.gmra.mrb[0].mxu0 %v1138
      %v2171 = vpop.f32.mrb[0].mxu0
      %v2172 = vadd.f32 0.0, %v2171
      %v2173 = vpop.f32.mrb[0].mxu0
      %v2174 = vpop.f32.mrb[0].mxu0
      %v2175 = vadd.f32 0.0, %v2174
      %v2176 = vpop.f32.mrb[0].mxu0
      %2177 = vmatprep.mubr.bf16.mxu0 0
      %2178 = vmatmul.mubr.bf16.gmra.mrb[0].mxu0 %v1146
      %v2179 = vpop.f32.mrb[0].mxu0
      %v2180 = vadd.f32 0.0, %v2179
      %v2181 = vpop.f32.mrb[0].mxu0
      %v2182 = vpop.f32.mrb[0].mxu0
      %v2183 = vadd.f32 0.0, %v2182
      %v2184 = vpop.f32.mrb[0].mxu0
      %2185 = vmatprep.mubr.bf16.mxu0 0
      %2186 = vmatmul.mubr.bf16.gmra.mrb[0].mxu0 %v1154
      %v2187 = vpop.f32.mrb[0].mxu0
      %v2188 = vadd.f32 0.0, %v2187
      %v2189 = vpop.f32.mrb[0].mxu0
      %v2190 = vpop.f32.mrb[0].mxu0
      %v2191 = vadd.f32 0.0, %v2190
      %v2192 = vpop.f32.mrb[0].mxu0
      %2193 = vmatprep.mubr.bf16.mxu0 0
      %2194 = vmatmul.mubr.bf16.gmra.mrb[0].mxu0 %v2023
      %v2195 = vpop.f32.mrb[0].mxu0
      %v2196 = vadd.f32 0.0, %v2195
      %v2197 = vpop.f32.mrb[0].mxu0
      %v2198 = vpop.f32.mrb[0].mxu0
      %v2199 = vadd.f32 0.0, %v2198
      %v2200 = vpop.f32.mrb[0].mxu0
      %2201 = vdwg.mxu0
      %v2202 = vadd.f32 %v1975, %v2108
      %v2203 = vadd.f32 %v1976, %v2111
      %v2204 = vadd.f32 %v1977, %v2116
      %v2205 = vadd.f32 %v1978, %v2119
      %v2206 = vadd.f32 %v1979, %v2124
      %v2207 = vadd.f32 %v1980, %v2127
      %v2208 = vadd.f32 %v1981, %v2132
      %v2209 = vadd.f32 %v1982, %v2135
      %v2210 = vadd.f32 %v1983, %v2140
      %v2211 = vadd.f32 %v1984, %v2143
      %v2212 = vadd.f32 %v1985, %v2148
      %v2213 = vadd.f32 %v1986, %v2151
      %v2214 = vadd.f32 %v1987, %v2156
      %v2215 = vadd.f32 %v1988, %v2159
      %v2216 = vadd.f32 %v1989, %v2164
      %v2217 = vadd.f32 %v1990, %v2167
      %v2218 = vadd.f32 %v1991, %v2172
      %v2219 = vadd.f32 %v1992, %v2175
      %v2220 = vadd.f32 %v1993, %v2180
      %v2221 = vadd.f32 %v1994, %v2183
      %v2222 = vadd.f32 %v1995, %v2188
      %v2223 = vadd.f32 %v1996, %v2191
      %v2224 = vadd.f32 %v1997, %v2196
      %v2225 = vadd.f32 %v1998, %v2199
      %2226 = vst [vmem:[#allocation2] sm:$0xff] %v2202
      %2227 = vst [vmem:[#allocation2 + $0x8] sm:$0xff] %v2203
      %2228 = vst [vmem:[#allocation2 + $0x10] sm:$0xff] %v2204
      %2229 = vst [vmem:[#allocation2 + $0x18] sm:$0xff] %v2205
      %2230 = vst [vmem:[#allocation2 + $0x20] sm:$0xff] %v2206
      %2231 = vst [vmem:[#allocation2 + $0x28] sm:$0xff] %v2207
      %2232 = vst [vmem:[#allocation2 + $0x30] sm:$0xff] %v2208
      %2233 = vst [vmem:[#allocation2 + $0x38] sm:$0xff] %v2209
      %2234 = vst [vmem:[#allocation2 + $0x40] sm:$0xff] %v2210
      %2235 = vst [vmem:[#allocation2 + $0x48] sm:$0xff] %v2211
      %2236 = vst [vmem:[#allocation2 + $0x50] sm:$0xff] %v2212
      %2237 = vst [vmem:[#allocation2 + $0x58] sm:$0xff] %v2213
      %2238 = vst [vmem:[#allocation2 + $0x60] sm:$0xff] %v2214
      %2239 = vst [vmem:[#allocation2 + $0x68] sm:$0xff] %v2215
      %2240 = vst [vmem:[#allocation2 + $0x70] sm:$0xff] %v2216
      %2241 = vst [vmem:[#allocation2 + $0x78] sm:$0xff] %v2217
      %2242 = vst [vmem:[#allocation2 + $0x80] sm:$0xff] %v2218
      %2243 = vst [vmem:[#allocation2 + $0x88] sm:$0xff] %v2219
      %2244 = vst [vmem:[#allocation2 + $0x90] sm:$0xff] %v2220
      %2245 = vst [vmem:[#allocation2 + $0x98] sm:$0xff] %v2221
      %2246 = vst [vmem:[#allocation2 + $0xa0] sm:$0xff] %v2222
      %2247 = vst [vmem:[#allocation2 + $0xa8] sm:$0xff] %v2223
      %2248 = vst [vmem:[#allocation2 + $0xb0] sm:$0xff] %v2224
      %2249 = vst [vmem:[#allocation2 + $0xb8] sm:$0xff] %v2225
      %v2250 = vld [vmem:[#allocation2] sm:$0xff]
      %v2251 = vld [vmem:[#allocation2 + $0x8] sm:$0xff]
      %v2252 = vld [vmem:[#allocation2 + $0x10] sm:$0xff]
      %v2253 = vld [vmem:[#allocation2 + $0x18] sm:$0xff]
      %v2254 = vld [vmem:[#allocation2 + $0x20] sm:$0xff]
      %v2255 = vld [vmem:[#allocation2 + $0x28] sm:$0xff]
      %v2256 = vld [vmem:[#allocation2 + $0x30] sm:$0xff]
      %v2257 = vld [vmem:[#allocation2 + $0x38] sm:$0xff]
      %v2258 = vld [vmem:[#allocation2 + $0x40] sm:$0xff]
      %v2259 = vld [vmem:[#allocation2 + $0x48] sm:$0xff]
      %v2260 = vld [vmem:[#allocation2 + $0x50] sm:$0xff]
      %v2261 = vld [vmem:[#allocation2 + $0x58] sm:$0xff]
      %v2262 = vld [vmem:[#allocation2 + $0x60] sm:$0xff]
      %v2263 = vld [vmem:[#allocation2 + $0x68] sm:$0xff]
      %v2264 = vld [vmem:[#allocation2 + $0x70] sm:$0xff]
      %v2265 = vld [vmem:[#allocation2 + $0x78] sm:$0xff]
      %v2266 = vld [vmem:[#allocation2 + $0x80] sm:$0xff]
      %v2267 = vld [vmem:[#allocation2 + $0x88] sm:$0xff]
      %v2268 = vld [vmem:[#allocation2 + $0x90] sm:$0xff]
      %v2269 = vld [vmem:[#allocation2 + $0x98] sm:$0xff]
      %v2270 = vld [vmem:[#allocation2 + $0xa0] sm:$0xff]
      %v2271 = vld [vmem:[#allocation2 + $0xa8] sm:$0xff]
      %v2272 = vld [vmem:[#allocation2 + $0xb0] sm:$0xff]
      %v2273 = vld [vmem:[#allocation2 + $0xb8] sm:$0xff]
      %s2274 = scalar_lea.vmem %s5, 320
      %v2275 = vld [vmem:[%s2274] sm:$0xf]
      %v2276 = vld [vmem:[%s2274 + $0x4] sm:$0xf]
      %v2277 = vld [vmem:[%s2274 + $0x8] sm:$0xf]
      %v2278 = vld [vmem:[%s2274 + $0xc] sm:$0xf]
      %v2279 = vld [vmem:[%s2274 + $0x10] sm:$0xf]
      %v2280 = vld [vmem:[%s2274 + $0x14] sm:$0xf]
      %v2281 = vld [vmem:[%s2274 + $0x18] sm:$0xf]
      %v2282 = vld [vmem:[%s2274 + $0x1c] sm:$0xf]
      %v2283 = vld [vmem:[%s2274 + $0x20] sm:$0xf]
      %v2284 = vld [vmem:[%s2274 + $0x24] sm:$0xf]
      %v2285 = vld [vmem:[%s2274 + $0x28] sm:$0xf]
      %v2286 = vld [vmem:[%s2274 + $0x2c] sm:$0xf]
      %v2287 = vld [vmem:[%s2274 + $0x30] sm:$0xf]
      %v2288 = vld [vmem:[%s2274 + $0x34] sm:$0xf]
      %v2289 = vld [vmem:[%s2274 + $0x38] sm:$0xf]
      %v2290 = vld [vmem:[%s2274 + $0x3c] sm:$0xf]
      %v2292 = vrot.slane %v794, 1
      %v2293 = vsel %vm1446, %v1470, %v2292
      %v2311 = vunpack.c.l.b16 %v2275
      %v2312 = vunpack.c.l.b16 %v2276
      %v2313 = vunpack.c.l.b16 %v2277
      %v2314 = vunpack.c.l.b16 %v2278
      %v2315 = vunpack.c.l.b16 %v2279
      %v2316 = vunpack.c.l.b16 %v2280
      %v2317 = vunpack.c.l.b16 %v2281
      %v2318 = vunpack.c.l.b16 %v2282
      %v2319 = vunpack.c.l.b16 %v2283
      %v2320 = vunpack.c.l.b16 %v2284
      %v2321 = vunpack.c.l.b16 %v2285
      %v2322 = vunpack.c.l.b16 %v2286
      %v2323 = vunpack.c.l.b16 %v2287
      %v2324 = vunpack.c.l.b16 %v2288
      %v2325 = vunpack.c.l.b16 %v2289
      %v2326 = vunpack.c.l.b16 %v2290
      %v2327 = vpack.c.b16 %v2312, %v2311
      %v2328 = vpack.c.b16 %v2314, %v2313
      %v2329 = vpack.c.b16 %v2316, %v2315
      %v2330 = vpack.c.b16 %v2318, %v2317
      %v2331 = vpack.c.b16 %v2320, %v2319
      %v2332 = vpack.c.b16 %v2322, %v2321
      %v2333 = vpack.c.b16 %v2324, %v2323
      %v2334 = vpack.c.b16 %v2326, %v2325
      %2343 = vmatprep.subr.bf16.mxu0 0
      %2344 = vmatpush1.bf16.msra.mxu0 %v2327
      %2345 = vmatprep.subr.bf16.mxu0 0
      %2346 = vmatpush1.bf16.msra.mxu0 %v2328
      %2347 = vmatprep.subr.bf16.mxu0 0
      %2348 = vmatpush1.bf16.msra.mxu0 %v2329
      %2349 = vmatprep.subr.bf16.mxu0 0
      %2350 = vmatpush1.bf16.msra.mxu0 %v2330
      %2351 = vmatprep.subr.bf16.mxu0 0
      %2352 = vmatpush1.bf16.msra.mxu0 %v2331
      %2353 = vmatprep.subr.bf16.mxu0 0
      %2354 = vmatpush1.bf16.msra.mxu0 %v2332
      %2355 = vmatprep.subr.bf16.mxu0 0
      %2356 = vmatpush1.bf16.msra.mxu0 %v2333
      %2357 = vmatprep.subr.bf16.mxu0 0
      %2358 = vmatpush1.bf16.msra.mxu0 %v2334
      %2359 = vmatprep.subr.bf16.mxu0 0
      %2360 = vmatpush1.bf16.msra.mxu0 0
      %2361 = vmatprep.subr.bf16.mxu0 0
      %2362 = vmatpush1.bf16.msra.mxu0 0
      %2363 = vmatprep.subr.bf16.mxu0 0
      %2364 = vmatpush1.bf16.msra.mxu0 0
      %2365 = vmatprep.subr.bf16.mxu0 0
      %2366 = vmatpush1.bf16.msra.mxu0 0
      %2367 = vmatprep.subr.bf16.mxu0 0
      %2368 = vmatpush1.bf16.msra.mxu0 0
      %2369 = vmatprep.subr.bf16.mxu0 0
      %2370 = vmatpush1.bf16.msra.mxu0 0
      %2371 = vmatprep.subr.bf16.mxu0 0
      %2372 = vmatpush1.bf16.msra.mxu0 0
      %2373 = vmatprep.subr.bf16.mxu0 0
      %2374 = vmatpush1.bf16.msra.mxu0 0
      %2375 = vmatprep.mubr.bf16.mxu0 0
      %2376 = vmatmul.mubr.bf16.gmra.mrb[0].mxu0 %v1451
      %v2377 = vpop.f32.mrb[0].mxu0
      %v2378 = vadd.f32 0.0, %v2377
      %v2379 = vpop.f32.mrb[0].mxu0
      %v2380 = vpop.f32.mrb[0].mxu0
      %v2381 = vadd.f32 0.0, %v2380
      %v2382 = vpop.f32.mrb[0].mxu0
      %2383 = vmatprep.mubr.bf16.mxu0 0
      %2384 = vmatmul.mubr.bf16.gmra.mrb[0].mxu0 %v1453
      %v2385 = vpop.f32.mrb[0].mxu0
      %v2386 = vadd.f32 0.0, %v2385
      %v2387 = vpop.f32.mrb[0].mxu0
      %v2388 = vpop.f32.mrb[0].mxu0
      %v2389 = vadd.f32 0.0, %v2388
      %v2390 = vpop.f32.mrb[0].mxu0
      %2391 = vmatprep.mubr.bf16.mxu0 0
      %2392 = vmatmul.mubr.bf16.gmra.mrb[0].mxu0 %v1455
      %v2393 = vpop.f32.mrb[0].mxu0
      %v2394 = vadd.f32 0.0, %v2393
      %v2395 = vpop.f32.mrb[0].mxu0
      %v2396 = vpop.f32.mrb[0].mxu0
      %v2397 = vadd.f32 0.0, %v2396
      %v2398 = vpop.f32.mrb[0].mxu0
      %2399 = vmatprep.mubr.bf16.mxu0 0
      %2400 = vmatmul.mubr.bf16.gmra.mrb[0].mxu0 %v1457
      %v2401 = vpop.f32.mrb[0].mxu0
      %v2402 = vadd.f32 0.0, %v2401
      %v2403 = vpop.f32.mrb[0].mxu0
      %v2404 = vpop.f32.mrb[0].mxu0
      %v2405 = vadd.f32 0.0, %v2404
      %v2406 = vpop.f32.mrb[0].mxu0
      %2407 = vmatprep.mubr.bf16.mxu0 0
      %2408 = vmatmul.mubr.bf16.gmra.mrb[0].mxu0 %v1459
      %v2409 = vpop.f32.mrb[0].mxu0
      %v2410 = vadd.f32 0.0, %v2409
      %v2411 = vpop.f32.mrb[0].mxu0
      %v2412 = vpop.f32.mrb[0].mxu0
      %v2413 = vadd.f32 0.0, %v2412
      %v2414 = vpop.f32.mrb[0].mxu0
      %2415 = vmatprep.mubr.bf16.mxu0 0
      %2416 = vmatmul.mubr.bf16.gmra.mrb[0].mxu0 %v1461
      %v2417 = vpop.f32.mrb[0].mxu0
      %v2418 = vadd.f32 0.0, %v2417
      %v2419 = vpop.f32.mrb[0].mxu0
      %v2420 = vpop.f32.mrb[0].mxu0
      %v2421 = vadd.f32 0.0, %v2420
      %v2422 = vpop.f32.mrb[0].mxu0
      %2423 = vmatprep.mubr.bf16.mxu0 0
      %2424 = vmatmul.mubr.bf16.gmra.mrb[0].mxu0 %v1463
      %v2425 = vpop.f32.mrb[0].mxu0
      %v2426 = vadd.f32 0.0, %v2425
      %v2427 = vpop.f32.mrb[0].mxu0
      %v2428 = vpop.f32.mrb[0].mxu0
      %v2429 = vadd.f32 0.0, %v2428
      %v2430 = vpop.f32.mrb[0].mxu0
      %2431 = vmatprep.mubr.bf16.mxu0 0
      %2432 = vmatmul.mubr.bf16.gmra.mrb[0].mxu0 %v1465
      %v2433 = vpop.f32.mrb[0].mxu0
      %v2434 = vadd.f32 0.0, %v2433
      %v2435 = vpop.f32.mrb[0].mxu0
      %v2436 = vpop.f32.mrb[0].mxu0
      %v2437 = vadd.f32 0.0, %v2436
      %v2438 = vpop.f32.mrb[0].mxu0
      %2439 = vmatprep.mubr.bf16.mxu0 0
      %2440 = vmatmul.mubr.bf16.gmra.mrb[0].mxu0 %v1467
      %v2441 = vpop.f32.mrb[0].mxu0
      %v2442 = vadd.f32 0.0, %v2441
      %v2443 = vpop.f32.mrb[0].mxu0
      %v2444 = vpop.f32.mrb[0].mxu0
      %v2445 = vadd.f32 0.0, %v2444
      %v2446 = vpop.f32.mrb[0].mxu0
      %2447 = vmatprep.mubr.bf16.mxu0 0
      %2448 = vmatmul.mubr.bf16.gmra.mrb[0].mxu0 %v1469
      %v2449 = vpop.f32.mrb[0].mxu0
      %v2450 = vadd.f32 0.0, %v2449
      %v2451 = vpop.f32.mrb[0].mxu0
      %v2452 = vpop.f32.mrb[0].mxu0
      %v2453 = vadd.f32 0.0, %v2452
      %v2454 = vpop.f32.mrb[0].mxu0
      %2455 = vmatprep.mubr.bf16.mxu0 0
      %2456 = vmatmul.mubr.bf16.gmra.mrb[0].mxu0 %v1471
      %v2457 = vpop.f32.mrb[0].mxu0
      %v2458 = vadd.f32 0.0, %v2457
      %v2459 = vpop.f32.mrb[0].mxu0
      %v2460 = vpop.f32.mrb[0].mxu0
      %v2461 = vadd.f32 0.0, %v2460
      %v2462 = vpop.f32.mrb[0].mxu0
      %2463 = vmatprep.mubr.bf16.mxu0 0
      %2464 = vmatmul.mubr.bf16.gmra.mrb[0].mxu0 %v2293
      %v2465 = vpop.f32.mrb[0].mxu0
      %v2466 = vadd.f32 0.0, %v2465
      %v2467 = vpop.f32.mrb[0].mxu0
      %v2468 = vpop.f32.mrb[0].mxu0
      %v2469 = vadd.f32 0.0, %v2468
      %v2470 = vpop.f32.mrb[0].mxu0
      %2471 = vdwg.mxu0
      %v2472 = vadd.f32 %v2250, %v2378
      %v2473 = vadd.f32 %v2251, %v2381
      %v2474 = vadd.f32 %v2252, %v2386
      %v2475 = vadd.f32 %v2253, %v2389
      %v2476 = vadd.f32 %v2254, %v2394
      %v2477 = vadd.f32 %v2255, %v2397
      %v2478 = vadd.f32 %v2256, %v2402
      %v2479 = vadd.f32 %v2257, %v2405
      %v2480 = vadd.f32 %v2258, %v2410
      %v2481 = vadd.f32 %v2259, %v2413
      %v2482 = vadd.f32 %v2260, %v2418
      %v2483 = vadd.f32 %v2261, %v2421
      %v2484 = vadd.f32 %v2262, %v2426
      %v2485 = vadd.f32 %v2263, %v2429
      %v2486 = vadd.f32 %v2264, %v2434
      %v2487 = vadd.f32 %v2265, %v2437
      %v2488 = vadd.f32 %v2266, %v2442
      %v2489 = vadd.f32 %v2267, %v2445
      %v2490 = vadd.f32 %v2268, %v2450
      %v2491 = vadd.f32 %v2269, %v2453
      %v2492 = vadd.f32 %v2270, %v2458
      %v2493 = vadd.f32 %v2271, %v2461
      %v2494 = vadd.f32 %v2272, %v2466
      %v2495 = vadd.f32 %v2273, %v2469
      %2496 = vst [vmem:[#allocation2] sm:$0xff] %v2472
      %2497 = vst [vmem:[#allocation2 + $0x8] sm:$0xff] %v2473
      %2498 = vst [vmem:[#allocation2 + $0x10] sm:$0xff] %v2474
      %2499 = vst [vmem:[#allocation2 + $0x18] sm:$0xff] %v2475
      %2500 = vst [vmem:[#allocation2 + $0x20] sm:$0xff] %v2476
      %2501 = vst [vmem:[#allocation2 + $0x28] sm:$0xff] %v2477
      %2502 = vst [vmem:[#allocation2 + $0x30] sm:$0xff] %v2478
      %2503 = vst [vmem:[#allocation2 + $0x38] sm:$0xff] %v2479
      %2504 = vst [vmem:[#allocation2 + $0x40] sm:$0xff] %v2480
      %2505 = vst [vmem:[#allocation2 + $0x48] sm:$0xff] %v2481
      %2506 = vst [vmem:[#allocation2 + $0x50] sm:$0xff] %v2482
      %2507 = vst [vmem:[#allocation2 + $0x58] sm:$0xff] %v2483
      %2508 = vst [vmem:[#allocation2 + $0x60] sm:$0xff] %v2484
      %2509 = vst [vmem:[#allocation2 + $0x68] sm:$0xff] %v2485
      %2510 = vst [vmem:[#allocation2 + $0x70] sm:$0xff] %v2486
      %2511 = vst [vmem:[#allocation2 + $0x78] sm:$0xff] %v2487
      %2512 = vst [vmem:[#allocation2 + $0x80] sm:$0xff] %v2488
      %2513 = vst [vmem:[#allocation2 + $0x88] sm:$0xff] %v2489
      %2514 = vst [vmem:[#allocation2 + $0x90] sm:$0xff] %v2490
      %2515 = vst [vmem:[#allocation2 + $0x98] sm:$0xff] %v2491
      %2516 = vst [vmem:[#allocation2 + $0xa0] sm:$0xff] %v2492
      %2517 = vst [vmem:[#allocation2 + $0xa8] sm:$0xff] %v2493
      %2518 = vst [vmem:[#allocation2 + $0xb0] sm:$0xff] %v2494
      %2519 = vst [vmem:[#allocation2 + $0xb8] sm:$0xff] %v2495
      %v2520 = vld [vmem:[#allocation2] sm:$0xff]
      %v2521 = vld [vmem:[#allocation2 + $0x8] sm:$0xff]
      %v2522 = vld [vmem:[#allocation2 + $0x10] sm:$0xff]
      %v2523 = vld [vmem:[#allocation2 + $0x18] sm:$0xff]
      %v2524 = vld [vmem:[#allocation2 + $0x20] sm:$0xff]
      %v2525 = vld [vmem:[#allocation2 + $0x28] sm:$0xff]
      %v2526 = vld [vmem:[#allocation2 + $0x30] sm:$0xff]
      %v2527 = vld [vmem:[#allocation2 + $0x38] sm:$0xff]
      %v2528 = vld [vmem:[#allocation2 + $0x40] sm:$0xff]
      %v2529 = vld [vmem:[#allocation2 + $0x48] sm:$0xff]
      %v2530 = vld [vmem:[#allocation2 + $0x50] sm:$0xff]
      %v2531 = vld [vmem:[#allocation2 + $0x58] sm:$0xff]
      %v2532 = vld [vmem:[#allocation2 + $0x60] sm:$0xff]
      %v2533 = vld [vmem:[#allocation2 + $0x68] sm:$0xff]
      %v2534 = vld [vmem:[#allocation2 + $0x70] sm:$0xff]
      %v2535 = vld [vmem:[#allocation2 + $0x78] sm:$0xff]
      %v2536 = vld [vmem:[#allocation2 + $0x80] sm:$0xff]
      %v2537 = vld [vmem:[#allocation2 + $0x88] sm:$0xff]
      %v2538 = vld [vmem:[#allocation2 + $0x90] sm:$0xff]
      %v2539 = vld [vmem:[#allocation2 + $0x98] sm:$0xff]
      %v2540 = vld [vmem:[#allocation2 + $0xa0] sm:$0xff]
      %v2541 = vld [vmem:[#allocation2 + $0xa8] sm:$0xff]
      %v2542 = vld [vmem:[#allocation2 + $0xb0] sm:$0xff]
      %v2543 = vld [vmem:[#allocation2 + $0xb8] sm:$0xff]
      %s2544 = scalar_lea.vmem %s5, 384
      %v2545 = vld [vmem:[%s2544] sm:$0xf]
      %v2546 = vld [vmem:[%s2544 + $0x4] sm:$0xf]
      %v2547 = vld [vmem:[%s2544 + $0x8] sm:$0xf]
      %v2548 = vld [vmem:[%s2544 + $0xc] sm:$0xf]
      %v2549 = vld [vmem:[%s2544 + $0x10] sm:$0xf]
      %v2550 = vld [vmem:[%s2544 + $0x14] sm:$0xf]
      %v2551 = vld [vmem:[%s2544 + $0x18] sm:$0xf]
      %v2552 = vld [vmem:[%s2544 + $0x1c] sm:$0xf]
      %v2553 = vld [vmem:[%s2544 + $0x20] sm:$0xf]
      %v2554 = vld [vmem:[%s2544 + $0x24] sm:$0xf]
      %v2555 = vld [vmem:[%s2544 + $0x28] sm:$0xf]
      %v2556 = vld [vmem:[%s2544 + $0x2c] sm:$0xf]
      %v2557 = vld [vmem:[%s2544 + $0x30] sm:$0xf]
      %v2558 = vld [vmem:[%s2544 + $0x34] sm:$0xf]
      %v2559 = vld [vmem:[%s2544 + $0x38] sm:$0xf]
      %v2560 = vld [vmem:[%s2544 + $0x3c] sm:$0xf]
      %v2577 = vunpack.c.l.b16 %v2545
      %v2578 = vunpack.c.l.b16 %v2546
      %v2579 = vunpack.c.l.b16 %v2547
      %v2580 = vunpack.c.l.b16 %v2548
      %v2581 = vunpack.c.l.b16 %v2549
      %v2582 = vunpack.c.l.b16 %v2550
      %v2583 = vunpack.c.l.b16 %v2551
      %v2584 = vunpack.c.l.b16 %v2552
      %v2585 = vunpack.c.l.b16 %v2553
      %v2586 = vunpack.c.l.b16 %v2554
      %v2587 = vunpack.c.l.b16 %v2555
      %v2588 = vunpack.c.l.b16 %v2556
      %v2589 = vunpack.c.l.b16 %v2557
      %v2590 = vunpack.c.l.b16 %v2558
      %v2591 = vunpack.c.l.b16 %v2559
      %v2592 = vunpack.c.l.b16 %v2560
      %v2593 = vpack.c.b16 %v2578, %v2577
      %v2594 = vpack.c.b16 %v2580, %v2579
      %v2595 = vpack.c.b16 %v2582, %v2581
      %v2596 = vpack.c.b16 %v2584, %v2583
      %v2597 = vpack.c.b16 %v2586, %v2585
      %v2598 = vpack.c.b16 %v2588, %v2587
      %v2599 = vpack.c.b16 %v2590, %v2589
      %v2600 = vpack.c.b16 %v2592, %v2591
      %2609 = vmatprep.subr.bf16.mxu0 0
      %2610 = vmatpush1.bf16.msra.mxu0 %v2593
      %2611 = vmatprep.subr.bf16.mxu0 0
      %2612 = vmatpush1.bf16.msra.mxu0 %v2594
      %2613 = vmatprep.subr.bf16.mxu0 0
      %2614 = vmatpush1.bf16.msra.mxu0 %v2595
      %2615 = vmatprep.subr.bf16.mxu0 0
      %2616 = vmatpush1.bf16.msra.mxu0 %v2596
      %2617 = vmatprep.subr.bf16.mxu0 0
      %2618 = vmatpush1.bf16.msra.mxu0 %v2597
      %2619 = vmatprep.subr.bf16.mxu0 0
      %2620 = vmatpush1.bf16.msra.mxu0 %v2598
      %2621 = vmatprep.subr.bf16.mxu0 0
      %2622 = vmatpush1.bf16.msra.mxu0 %v2599
      %2623 = vmatprep.subr.bf16.mxu0 0
      %2624 = vmatpush1.bf16.msra.mxu0 %v2600
      %2625 = vmatprep.subr.bf16.mxu0 0
      %2626 = vmatpush1.bf16.msra.mxu0 0
      %2627 = vmatprep.subr.bf16.mxu0 0
      %2628 = vmatpush1.bf16.msra.mxu0 0
      %2629 = vmatprep.subr.bf16.mxu0 0
      %2630 = vmatpush1.bf16.msra.mxu0 0
      %2631 = vmatprep.subr.bf16.mxu0 0
      %2632 = vmatpush1.bf16.msra.mxu0 0
      %2633 = vmatprep.subr.bf16.mxu0 0
      %2634 = vmatpush1.bf16.msra.mxu0 0
      %2635 = vmatprep.subr.bf16.mxu0 0
      %2636 = vmatpush1.bf16.msra.mxu0 0
      %2637 = vmatprep.subr.bf16.mxu0 0
      %2638 = vmatpush1.bf16.msra.mxu0 0
      %2639 = vmatprep.subr.bf16.mxu0 0
      %2640 = vmatpush1.bf16.msra.mxu0 0
      %2641 = vmatprep.mubr.bf16.mxu0 0
      %2642 = vmatmul.mubr.bf16.gmra.mrb[0].mxu0 %v783
      %v2643 = vpop.f32.mrb[0].mxu0
      %v2644 = vadd.f32 0.0, %v2643
      %v2645 = vpop.f32.mrb[0].mxu0
      %v2646 = vpop.f32.mrb[0].mxu0
      %v2647 = vadd.f32 0.0, %v2646
      %v2648 = vpop.f32.mrb[0].mxu0
      %2649 = vmatprep.mubr.bf16.mxu0 0
      %2650 = vmatmul.mubr.bf16.gmra.mrb[0].mxu0 %v784
      %v2651 = vpop.f32.mrb[0].mxu0
      %v2652 = vadd.f32 0.0, %v2651
      %v2653 = vpop.f32.mrb[0].mxu0
      %v2654 = vpop.f32.mrb[0].mxu0
      %v2655 = vadd.f32 0.0, %v2654
      %v2656 = vpop.f32.mrb[0].mxu0
      %2657 = vmatprep.mubr.bf16.mxu0 0
      %2658 = vmatmul.mubr.bf16.gmra.mrb[0].mxu0 %v785
      %v2659 = vpop.f32.mrb[0].mxu0
      %v2660 = vadd.f32 0.0, %v2659
      %v2661 = vpop.f32.mrb[0].mxu0
      %v2662 = vpop.f32.mrb[0].mxu0
      %v2663 = vadd.f32 0.0, %v2662
      %v2664 = vpop.f32.mrb[0].mxu0
      %2665 = vmatprep.mubr.bf16.mxu0 0
      %2666 = vmatmul.mubr.bf16.gmra.mrb[0].mxu0 %v786
      %v2667 = vpop.f32.mrb[0].mxu0
      %v2668 = vadd.f32 0.0, %v2667
      %v2669 = vpop.f32.mrb[0].mxu0
      %v2670 = vpop.f32.mrb[0].mxu0
      %v2671 = vadd.f32 0.0, %v2670
      %v2672 = vpop.f32.mrb[0].mxu0
      %2673 = vmatprep.mubr.bf16.mxu0 0
      %2674 = vmatmul.mubr.bf16.gmra.mrb[0].mxu0 %v787
      %v2675 = vpop.f32.mrb[0].mxu0
      %v2676 = vadd.f32 0.0, %v2675
      %v2677 = vpop.f32.mrb[0].mxu0
      %v2678 = vpop.f32.mrb[0].mxu0
      %v2679 = vadd.f32 0.0, %v2678
      %v2680 = vpop.f32.mrb[0].mxu0
      %2681 = vmatprep.mubr.bf16.mxu0 0
      %2682 = vmatmul.mubr.bf16.gmra.mrb[0].mxu0 %v788
      %v2683 = vpop.f32.mrb[0].mxu0
      %v2684 = vadd.f32 0.0, %v2683
      %v2685 = vpop.f32.mrb[0].mxu0
      %v2686 = vpop.f32.mrb[0].mxu0
      %v2687 = vadd.f32 0.0, %v2686
      %v2688 = vpop.f32.mrb[0].mxu0
      %2689 = vmatprep.mubr.bf16.mxu0 0
      %2690 = vmatmul.mubr.bf16.gmra.mrb[0].mxu0 %v789
      %v2691 = vpop.f32.mrb[0].mxu0
      %v2692 = vadd.f32 0.0, %v2691
      %v2693 = vpop.f32.mrb[0].mxu0
      %v2694 = vpop.f32.mrb[0].mxu0
      %v2695 = vadd.f32 0.0, %v2694
      %v2696 = vpop.f32.mrb[0].mxu0
      %2697 = vmatprep.mubr.bf16.mxu0 0
      %2698 = vmatmul.mubr.bf16.gmra.mrb[0].mxu0 %v790
      %v2699 = vpop.f32.mrb[0].mxu0
      %v2700 = vadd.f32 0.0, %v2699
      %v2701 = vpop.f32.mrb[0].mxu0
      %v2702 = vpop.f32.mrb[0].mxu0
      %v2703 = vadd.f32 0.0, %v2702
      %v2704 = vpop.f32.mrb[0].mxu0
      %2705 = vmatprep.mubr.bf16.mxu0 0
      %2706 = vmatmul.mubr.bf16.gmra.mrb[0].mxu0 %v791
      %v2707 = vpop.f32.mrb[0].mxu0
      %v2708 = vadd.f32 0.0, %v2707
      %v2709 = vpop.f32.mrb[0].mxu0
      %v2710 = vpop.f32.mrb[0].mxu0
      %v2711 = vadd.f32 0.0, %v2710
      %v2712 = vpop.f32.mrb[0].mxu0
      %2713 = vmatprep.mubr.bf16.mxu0 0
      %2714 = vmatmul.mubr.bf16.gmra.mrb[0].mxu0 %v792
      %v2715 = vpop.f32.mrb[0].mxu0
      %v2716 = vadd.f32 0.0, %v2715
      %v2717 = vpop.f32.mrb[0].mxu0
      %v2718 = vpop.f32.mrb[0].mxu0
      %v2719 = vadd.f32 0.0, %v2718
      %v2720 = vpop.f32.mrb[0].mxu0
      %2721 = vmatprep.mubr.bf16.mxu0 0
      %2722 = vmatmul.mubr.bf16.gmra.mrb[0].mxu0 %v793
      %v2723 = vpop.f32.mrb[0].mxu0
      %v2724 = vadd.f32 0.0, %v2723
      %v2725 = vpop.f32.mrb[0].mxu0
      %v2726 = vpop.f32.mrb[0].mxu0
      %v2727 = vadd.f32 0.0, %v2726
      %v2728 = vpop.f32.mrb[0].mxu0
      %2729 = vmatprep.mubr.bf16.mxu0 0
      %2730 = vmatmul.mubr.bf16.gmra.mrb[0].mxu0 %v794
      %v2731 = vpop.f32.mrb[0].mxu0
      %v2732 = vadd.f32 0.0, %v2731
      %v2733 = vpop.f32.mrb[0].mxu0
      %v2734 = vpop.f32.mrb[0].mxu0
      %v2735 = vadd.f32 0.0, %v2734
      %v2736 = vpop.f32.mrb[0].mxu0
      %2737 = vdwg.mxu0
      %v2738 = vadd.f32 %v2520, %v2644
      %v2739 = vadd.f32 %v2521, %v2647
      %v2740 = vadd.f32 %v2522, %v2652
      %v2741 = vadd.f32 %v2523, %v2655
      %v2742 = vadd.f32 %v2524, %v2660
      %v2743 = vadd.f32 %v2525, %v2663
      %v2744 = vadd.f32 %v2526, %v2668
      %v2745 = vadd.f32 %v2527, %v2671
      %v2746 = vadd.f32 %v2528, %v2676
      %v2747 = vadd.f32 %v2529, %v2679
      %v2748 = vadd.f32 %v2530, %v2684
      %v2749 = vadd.f32 %v2531, %v2687
      %v2750 = vadd.f32 %v2532, %v2692
      %v2751 = vadd.f32 %v2533, %v2695
      %v2752 = vadd.f32 %v2534, %v2700
      %v2753 = vadd.f32 %v2535, %v2703
      %v2754 = vadd.f32 %v2536, %v2708
      %v2755 = vadd.f32 %v2537, %v2711
      %v2756 = vadd.f32 %v2538, %v2716
      %v2757 = vadd.f32 %v2539, %v2719
      %v2758 = vadd.f32 %v2540, %v2724
      %v2759 = vadd.f32 %v2541, %v2727
      %v2760 = vadd.f32 %v2542, %v2732
      %v2761 = vadd.f32 %v2543, %v2735
      %2762 = vst [vmem:[#allocation2] sm:$0xff] %v2738
      %2763 = vst [vmem:[#allocation2 + $0x8] sm:$0xff] %v2739
      %2764 = vst [vmem:[#allocation2 + $0x10] sm:$0xff] %v2740
      %2765 = vst [vmem:[#allocation2 + $0x18] sm:$0xff] %v2741
      %2766 = vst [vmem:[#allocation2 + $0x20] sm:$0xff] %v2742
      %2767 = vst [vmem:[#allocation2 + $0x28] sm:$0xff] %v2743
      %2768 = vst [vmem:[#allocation2 + $0x30] sm:$0xff] %v2744
      %2769 = vst [vmem:[#allocation2 + $0x38] sm:$0xff] %v2745
      %2770 = vst [vmem:[#allocation2 + $0x40] sm:$0xff] %v2746
      %2771 = vst [vmem:[#allocation2 + $0x48] sm:$0xff] %v2747
      %2772 = vst [vmem:[#allocation2 + $0x50] sm:$0xff] %v2748
      %2773 = vst [vmem:[#allocation2 + $0x58] sm:$0xff] %v2749
      %2774 = vst [vmem:[#allocation2 + $0x60] sm:$0xff] %v2750
      %2775 = vst [vmem:[#allocation2 + $0x68] sm:$0xff] %v2751
      %2776 = vst [vmem:[#allocation2 + $0x70] sm:$0xff] %v2752
      %2777 = vst [vmem:[#allocation2 + $0x78] sm:$0xff] %v2753
      %2778 = vst [vmem:[#allocation2 + $0x80] sm:$0xff] %v2754
      %2779 = vst [vmem:[#allocation2 + $0x88] sm:$0xff] %v2755
      %2780 = vst [vmem:[#allocation2 + $0x90] sm:$0xff] %v2756
      %2781 = vst [vmem:[#allocation2 + $0x98] sm:$0xff] %v2757
      %2782 = vst [vmem:[#allocation2 + $0xa0] sm:$0xff] %v2758
      %2783 = vst [vmem:[#allocation2 + $0xa8] sm:$0xff] %v2759
      %2784 = vst [vmem:[#allocation2 + $0xb0] sm:$0xff] %v2760
      %2785 = vst [vmem:[#allocation2 + $0xb8] sm:$0xff] %v2761
      %v2786 = vld [vmem:[#allocation2] sm:$0xff]
      %v2787 = vld [vmem:[#allocation2 + $0x8] sm:$0xff]
      %v2788 = vld [vmem:[#allocation2 + $0x10] sm:$0xff]
      %v2789 = vld [vmem:[#allocation2 + $0x18] sm:$0xff]
      %v2790 = vld [vmem:[#allocation2 + $0x20] sm:$0xff]
      %v2791 = vld [vmem:[#allocation2 + $0x28] sm:$0xff]
      %v2792 = vld [vmem:[#allocation2 + $0x30] sm:$0xff]
      %v2793 = vld [vmem:[#allocation2 + $0x38] sm:$0xff]
      %v2794 = vld [vmem:[#allocation2 + $0x40] sm:$0xff]
      %v2795 = vld [vmem:[#allocation2 + $0x48] sm:$0xff]
      %v2796 = vld [vmem:[#allocation2 + $0x50] sm:$0xff]
      %v2797 = vld [vmem:[#allocation2 + $0x58] sm:$0xff]
      %v2798 = vld [vmem:[#allocation2 + $0x60] sm:$0xff]
      %v2799 = vld [vmem:[#allocation2 + $0x68] sm:$0xff]
      %v2800 = vld [vmem:[#allocation2 + $0x70] sm:$0xff]
      %v2801 = vld [vmem:[#allocation2 + $0x78] sm:$0xff]
      %v2802 = vld [vmem:[#allocation2 + $0x80] sm:$0xff]
      %v2803 = vld [vmem:[#allocation2 + $0x88] sm:$0xff]
      %v2804 = vld [vmem:[#allocation2 + $0x90] sm:$0xff]
      %v2805 = vld [vmem:[#allocation2 + $0x98] sm:$0xff]
      %v2806 = vld [vmem:[#allocation2 + $0xa0] sm:$0xff]
      %v2807 = vld [vmem:[#allocation2 + $0xa8] sm:$0xff]
      %v2808 = vld [vmem:[#allocation2 + $0xb0] sm:$0xff]
      %v2809 = vld [vmem:[#allocation2 + $0xb8] sm:$0xff]
      %s2810 = scalar_lea.vmem %s5, 448
      %v2811 = vld [vmem:[%s2810] sm:$0xf]
      %v2812 = vld [vmem:[%s2810 + $0x4] sm:$0xf]
      %v2813 = vld [vmem:[%s2810 + $0x8] sm:$0xf]
      %v2814 = vld [vmem:[%s2810 + $0xc] sm:$0xf]
      %v2815 = vld [vmem:[%s2810 + $0x10] sm:$0xf]
      %v2816 = vld [vmem:[%s2810 + $0x14] sm:$0xf]
      %v2817 = vld [vmem:[%s2810 + $0x18] sm:$0xf]
      %v2818 = vld [vmem:[%s2810 + $0x1c] sm:$0xf]
      %v2819 = vld [vmem:[%s2810 + $0x20] sm:$0xf]
      %v2820 = vld [vmem:[%s2810 + $0x24] sm:$0xf]
      %v2821 = vld [vmem:[%s2810 + $0x28] sm:$0xf]
      %v2822 = vld [vmem:[%s2810 + $0x2c] sm:$0xf]
      %v2823 = vld [vmem:[%s2810 + $0x30] sm:$0xf]
      %v2824 = vld [vmem:[%s2810 + $0x34] sm:$0xf]
      %v2825 = vld [vmem:[%s2810 + $0x38] sm:$0xf]
      %v2826 = vld [vmem:[%s2810 + $0x3c] sm:$0xf]
      %v2827 = vshrl.u32 %v794, 16
      %v2829 = vor.u32 %v2827, %v2022
      %v2831 = vshll.u32 %v795, 16
      %v2833 = vrot.slane %v2831, 1
      %v2834 = vsel %vm1054, %v2829, %v2833
      %v2852 = vunpack.c.l.b16 %v2811
      %v2853 = vunpack.c.l.b16 %v2812
      %v2854 = vunpack.c.l.b16 %v2813
      %v2855 = vunpack.c.l.b16 %v2814
      %v2856 = vunpack.c.l.b16 %v2815
      %v2857 = vunpack.c.l.b16 %v2816
      %v2858 = vunpack.c.l.b16 %v2817
      %v2859 = vunpack.c.l.b16 %v2818
      %v2860 = vunpack.c.l.b16 %v2819
      %v2861 = vunpack.c.l.b16 %v2820
      %v2862 = vunpack.c.l.b16 %v2821
      %v2863 = vunpack.c.l.b16 %v2822
      %v2864 = vunpack.c.l.b16 %v2823
      %v2865 = vunpack.c.l.b16 %v2824
      %v2866 = vunpack.c.l.b16 %v2825
      %v2867 = vunpack.c.l.b16 %v2826
      %v2868 = vpack.c.b16 %v2853, %v2852
      %v2869 = vpack.c.b16 %v2855, %v2854
      %v2870 = vpack.c.b16 %v2857, %v2856
      %v2871 = vpack.c.b16 %v2859, %v2858
      %v2872 = vpack.c.b16 %v2861, %v2860
      %v2873 = vpack.c.b16 %v2863, %v2862
      %v2874 = vpack.c.b16 %v2865, %v2864
      %v2875 = vpack.c.b16 %v2867, %v2866
      %2884 = vmatprep.subr.bf16.mxu0 0
      %2885 = vmatpush1.bf16.msra.mxu0 %v2868
      %2886 = vmatprep.subr.bf16.mxu0 0
      %2887 = vmatpush1.bf16.msra.mxu0 %v2869
      %2888 = vmatprep.subr.bf16.mxu0 0
      %2889 = vmatpush1.bf16.msra.mxu0 %v2870
      %2890 = vmatprep.subr.bf16.mxu0 0
      %2891 = vmatpush1.bf16.msra.mxu0 %v2871
      %2892 = vmatprep.subr.bf16.mxu0 0
      %2893 = vmatpush1.bf16.msra.mxu0 %v2872
      %2894 = vmatprep.subr.bf16.mxu0 0
      %2895 = vmatpush1.bf16.msra.mxu0 %v2873
      %2896 = vmatprep.subr.bf16.mxu0 0
      %2897 = vmatpush1.bf16.msra.mxu0 %v2874
      %2898 = vmatprep.subr.bf16.mxu0 0
      %2899 = vmatpush1.bf16.msra.mxu0 %v2875
      %2900 = vmatprep.subr.bf16.mxu0 0
      %2901 = vmatpush1.bf16.msra.mxu0 0
      %2902 = vmatprep.subr.bf16.mxu0 0
      %2903 = vmatpush1.bf16.msra.mxu0 0
      %2904 = vmatprep.subr.bf16.mxu0 0
      %2905 = vmatpush1.bf16.msra.mxu0 0
      %2906 = vmatprep.subr.bf16.mxu0 0
      %2907 = vmatpush1.bf16.msra.mxu0 0
      %2908 = vmatprep.subr.bf16.mxu0 0
      %2909 = vmatpush1.bf16.msra.mxu0 0
      %2910 = vmatprep.subr.bf16.mxu0 0
      %2911 = vmatpush1.bf16.msra.mxu0 0
      %2912 = vmatprep.subr.bf16.mxu0 0
      %2913 = vmatpush1.bf16.msra.mxu0 0
      %2914 = vmatprep.subr.bf16.mxu0 0
      %2915 = vmatpush1.bf16.msra.mxu0 0
      %2916 = vmatprep.mubr.bf16.mxu0 0
      %2917 = vmatmul.mubr.bf16.gmra.mrb[0].mxu0 %v1082
      %v2918 = vpop.f32.mrb[0].mxu0
      %v2919 = vadd.f32 0.0, %v2918
      %v2920 = vpop.f32.mrb[0].mxu0
      %v2921 = vpop.f32.mrb[0].mxu0
      %v2922 = vadd.f32 0.0, %v2921
      %v2923 = vpop.f32.mrb[0].mxu0
      %2924 = vmatprep.mubr.bf16.mxu0 0
      %2925 = vmatmul.mubr.bf16.gmra.mrb[0].mxu0 %v1090
      %v2926 = vpop.f32.mrb[0].mxu0
      %v2927 = vadd.f32 0.0, %v2926
      %v2928 = vpop.f32.mrb[0].mxu0
      %v2929 = vpop.f32.mrb[0].mxu0
      %v2930 = vadd.f32 0.0, %v2929
      %v2931 = vpop.f32.mrb[0].mxu0
      %2932 = vmatprep.mubr.bf16.mxu0 0
      %2933 = vmatmul.mubr.bf16.gmra.mrb[0].mxu0 %v1098
      %v2934 = vpop.f32.mrb[0].mxu0
      %v2935 = vadd.f32 0.0, %v2934
      %v2936 = vpop.f32.mrb[0].mxu0
      %v2937 = vpop.f32.mrb[0].mxu0
      %v2938 = vadd.f32 0.0, %v2937
      %v2939 = vpop.f32.mrb[0].mxu0
      %2940 = vmatprep.mubr.bf16.mxu0 0
      %2941 = vmatmul.mubr.bf16.gmra.mrb[0].mxu0 %v1106
      %v2942 = vpop.f32.mrb[0].mxu0
      %v2943 = vadd.f32 0.0, %v2942
      %v2944 = vpop.f32.mrb[0].mxu0
      %v2945 = vpop.f32.mrb[0].mxu0
      %v2946 = vadd.f32 0.0, %v2945
      %v2947 = vpop.f32.mrb[0].mxu0
      %2948 = vmatprep.mubr.bf16.mxu0 0
      %2949 = vmatmul.mubr.bf16.gmra.mrb[0].mxu0 %v1114
      %v2950 = vpop.f32.mrb[0].mxu0
      %v2951 = vadd.f32 0.0, %v2950
      %v2952 = vpop.f32.mrb[0].mxu0
      %v2953 = vpop.f32.mrb[0].mxu0
      %v2954 = vadd.f32 0.0, %v2953
      %v2955 = vpop.f32.mrb[0].mxu0
      %2956 = vmatprep.mubr.bf16.mxu0 0
      %2957 = vmatmul.mubr.bf16.gmra.mrb[0].mxu0 %v1122
      %v2958 = vpop.f32.mrb[0].mxu0
      %v2959 = vadd.f32 0.0, %v2958
      %v2960 = vpop.f32.mrb[0].mxu0
      %v2961 = vpop.f32.mrb[0].mxu0
      %v2962 = vadd.f32 0.0, %v2961
      %v2963 = vpop.f32.mrb[0].mxu0
      %2964 = vmatprep.mubr.bf16.mxu0 0
      %2965 = vmatmul.mubr.bf16.gmra.mrb[0].mxu0 %v1130
      %v2966 = vpop.f32.mrb[0].mxu0
      %v2967 = vadd.f32 0.0, %v2966
      %v2968 = vpop.f32.mrb[0].mxu0
      %v2969 = vpop.f32.mrb[0].mxu0
      %v2970 = vadd.f32 0.0, %v2969
      %v2971 = vpop.f32.mrb[0].mxu0
      %2972 = vmatprep.mubr.bf16.mxu0 0
      %2973 = vmatmul.mubr.bf16.gmra.mrb[0].mxu0 %v1138
      %v2974 = vpop.f32.mrb[0].mxu0
      %v2975 = vadd.f32 0.0, %v2974
      %v2976 = vpop.f32.mrb[0].mxu0
      %v2977 = vpop.f32.mrb[0].mxu0
      %v2978 = vadd.f32 0.0, %v2977
      %v2979 = vpop.f32.mrb[0].mxu0
      %2980 = vmatprep.mubr.bf16.mxu0 0
      %2981 = vmatmul.mubr.bf16.gmra.mrb[0].mxu0 %v1146
      %v2982 = vpop.f32.mrb[0].mxu0
      %v2983 = vadd.f32 0.0, %v2982
      %v2984 = vpop.f32.mrb[0].mxu0
      %v2985 = vpop.f32.mrb[0].mxu0
      %v2986 = vadd.f32 0.0, %v2985
      %v2987 = vpop.f32.mrb[0].mxu0
      %2988 = vmatprep.mubr.bf16.mxu0 0
      %2989 = vmatmul.mubr.bf16.gmra.mrb[0].mxu0 %v1154
      %v2990 = vpop.f32.mrb[0].mxu0
      %v2991 = vadd.f32 0.0, %v2990
      %v2992 = vpop.f32.mrb[0].mxu0
      %v2993 = vpop.f32.mrb[0].mxu0
      %v2994 = vadd.f32 0.0, %v2993
      %v2995 = vpop.f32.mrb[0].mxu0
      %2996 = vmatprep.mubr.bf16.mxu0 0
      %2997 = vmatmul.mubr.bf16.gmra.mrb[0].mxu0 %v2023
      %v2998 = vpop.f32.mrb[0].mxu0
      %v2999 = vadd.f32 0.0, %v2998
      %v3000 = vpop.f32.mrb[0].mxu0
      %v3001 = vpop.f32.mrb[0].mxu0
      %v3002 = vadd.f32 0.0, %v3001
      %v3003 = vpop.f32.mrb[0].mxu0
      %3004 = vmatprep.mubr.bf16.mxu0 0
      %3005 = vmatmul.mubr.bf16.gmra.mrb[0].mxu0 %v2834
      %v3006 = vpop.f32.mrb[0].mxu0
      %v3007 = vadd.f32 0.0, %v3006
      %v3008 = vpop.f32.mrb[0].mxu0
      %v3009 = vpop.f32.mrb[0].mxu0
      %v3010 = vadd.f32 0.0, %v3009
      %v3011 = vpop.f32.mrb[0].mxu0
      %3012 = vdwg.mxu0
      %v3013 = vadd.f32 %v2786, %v2919
      %v3014 = vadd.f32 %v2787, %v2922
      %v3015 = vadd.f32 %v2788, %v2927
      %v3016 = vadd.f32 %v2789, %v2930
      %v3017 = vadd.f32 %v2790, %v2935
      %v3018 = vadd.f32 %v2791, %v2938
      %v3019 = vadd.f32 %v2792, %v2943
      %v3020 = vadd.f32 %v2793, %v2946
      %v3021 = vadd.f32 %v2794, %v2951
      %v3022 = vadd.f32 %v2795, %v2954
      %v3023 = vadd.f32 %v2796, %v2959
      %v3024 = vadd.f32 %v2797, %v2962
      %v3025 = vadd.f32 %v2798, %v2967
      %v3026 = vadd.f32 %v2799, %v2970
      %v3027 = vadd.f32 %v2800, %v2975
      %v3028 = vadd.f32 %v2801, %v2978
      %v3029 = vadd.f32 %v2802, %v2983
      %v3030 = vadd.f32 %v2803, %v2986
      %v3031 = vadd.f32 %v2804, %v2991
      %v3032 = vadd.f32 %v2805, %v2994
      %v3033 = vadd.f32 %v2806, %v2999
      %v3034 = vadd.f32 %v2807, %v3002
      %v3035 = vadd.f32 %v2808, %v3007
      %v3036 = vadd.f32 %v2809, %v3010
      %3037 = vst [vmem:[#allocation2] sm:$0xff] %v3013
      %3038 = vst [vmem:[#allocation2 + $0x8] sm:$0xff] %v3014
      %3039 = vst [vmem:[#allocation2 + $0x10] sm:$0xff] %v3015
      %3040 = vst [vmem:[#allocation2 + $0x18] sm:$0xff] %v3016
      %3041 = vst [vmem:[#allocation2 + $0x20] sm:$0xff] %v3017
      %3042 = vst [vmem:[#allocation2 + $0x28] sm:$0xff] %v3018
      %3043 = vst [vmem:[#allocation2 + $0x30] sm:$0xff] %v3019
      %3044 = vst [vmem:[#allocation2 + $0x38] sm:$0xff] %v3020
      %3045 = vst [vmem:[#allocation2 + $0x40] sm:$0xff] %v3021
      %3046 = vst [vmem:[#allocation2 + $0x48] sm:$0xff] %v3022
      %3047 = vst [vmem:[#allocation2 + $0x50] sm:$0xff] %v3023
      %3048 = vst [vmem:[#allocation2 + $0x58] sm:$0xff] %v3024
      %3049 = vst [vmem:[#allocation2 + $0x60] sm:$0xff] %v3025
      %3050 = vst [vmem:[#allocation2 + $0x68] sm:$0xff] %v3026
      %3051 = vst [vmem:[#allocation2 + $0x70] sm:$0xff] %v3027
      %3052 = vst [vmem:[#allocation2 + $0x78] sm:$0xff] %v3028
      %3053 = vst [vmem:[#allocation2 + $0x80] sm:$0xff] %v3029
      %3054 = vst [vmem:[#allocation2 + $0x88] sm:$0xff] %v3030
      %3055 = vst [vmem:[#allocation2 + $0x90] sm:$0xff] %v3031
      %3056 = vst [vmem:[#allocation2 + $0x98] sm:$0xff] %v3032
      %3057 = vst [vmem:[#allocation2 + $0xa0] sm:$0xff] %v3033
      %3058 = vst [vmem:[#allocation2 + $0xa8] sm:$0xff] %v3034
      %3059 = vst [vmem:[#allocation2 + $0xb0] sm:$0xff] %v3035
      %3060 = vst [vmem:[#allocation2 + $0xb8] sm:$0xff] %v3036
      %v3061 = vld [vmem:[#allocation2] sm:$0xff]
      %v3062 = vld [vmem:[#allocation2 + $0x8] sm:$0xff]
      %v3063 = vld [vmem:[#allocation2 + $0x10] sm:$0xff]
      %v3064 = vld [vmem:[#allocation2 + $0x18] sm:$0xff]
      %v3065 = vld [vmem:[#allocation2 + $0x20] sm:$0xff]
      %v3066 = vld [vmem:[#allocation2 + $0x28] sm:$0xff]
      %v3067 = vld [vmem:[#allocation2 + $0x30] sm:$0xff]
      %v3068 = vld [vmem:[#allocation2 + $0x38] sm:$0xff]
      %v3069 = vld [vmem:[#allocation2 + $0x40] sm:$0xff]
      %v3070 = vld [vmem:[#allocation2 + $0x48] sm:$0xff]
      %v3071 = vld [vmem:[#allocation2 + $0x50] sm:$0xff]
      %v3072 = vld [vmem:[#allocation2 + $0x58] sm:$0xff]
      %v3073 = vld [vmem:[#allocation2 + $0x60] sm:$0xff]
      %v3074 = vld [vmem:[#allocation2 + $0x68] sm:$0xff]
      %v3075 = vld [vmem:[#allocation2 + $0x70] sm:$0xff]
      %v3076 = vld [vmem:[#allocation2 + $0x78] sm:$0xff]
      %v3077 = vld [vmem:[#allocation2 + $0x80] sm:$0xff]
      %v3078 = vld [vmem:[#allocation2 + $0x88] sm:$0xff]
      %v3079 = vld [vmem:[#allocation2 + $0x90] sm:$0xff]
      %v3080 = vld [vmem:[#allocation2 + $0x98] sm:$0xff]
      %v3081 = vld [vmem:[#allocation2 + $0xa0] sm:$0xff]
      %v3082 = vld [vmem:[#allocation2 + $0xa8] sm:$0xff]
      %v3083 = vld [vmem:[#allocation2 + $0xb0] sm:$0xff]
      %v3084 = vld [vmem:[#allocation2 + $0xb8] sm:$0xff]
      %s3085 = scalar_lea.vmem %s5, 512
      %v3086 = vld [vmem:[%s3085] sm:$0xf]
      %v3087 = vld [vmem:[%s3085 + $0x4] sm:$0xf]
      %v3088 = vld [vmem:[%s3085 + $0x8] sm:$0xf]
      %v3089 = vld [vmem:[%s3085 + $0xc] sm:$0xf]
      %v3090 = vld [vmem:[%s3085 + $0x10] sm:$0xf]
      %v3091 = vld [vmem:[%s3085 + $0x14] sm:$0xf]
      %v3092 = vld [vmem:[%s3085 + $0x18] sm:$0xf]
      %v3093 = vld [vmem:[%s3085 + $0x1c] sm:$0xf]
      %v3094 = vld [vmem:[%s3085 + $0x20] sm:$0xf]
      %v3095 = vld [vmem:[%s3085 + $0x24] sm:$0xf]
      %v3096 = vld [vmem:[%s3085 + $0x28] sm:$0xf]
      %v3097 = vld [vmem:[%s3085 + $0x2c] sm:$0xf]
      %v3098 = vld [vmem:[%s3085 + $0x30] sm:$0xf]
      %v3099 = vld [vmem:[%s3085 + $0x34] sm:$0xf]
      %v3100 = vld [vmem:[%s3085 + $0x38] sm:$0xf]
      %v3101 = vld [vmem:[%s3085 + $0x3c] sm:$0xf]
      %v3103 = vrot.slane %v795, 1
      %v3104 = vsel %vm1446, %v2292, %v3103
      %v3122 = vunpack.c.l.b16 %v3086
      %v3123 = vunpack.c.l.b16 %v3087
      %v3124 = vunpack.c.l.b16 %v3088
      %v3125 = vunpack.c.l.b16 %v3089
      %v3126 = vunpack.c.l.b16 %v3090
      %v3127 = vunpack.c.l.b16 %v3091
      %v3128 = vunpack.c.l.b16 %v3092
      %v3129 = vunpack.c.l.b16 %v3093
      %v3130 = vunpack.c.l.b16 %v3094
      %v3131 = vunpack.c.l.b16 %v3095
      %v3132 = vunpack.c.l.b16 %v3096
      %v3133 = vunpack.c.l.b16 %v3097
      %v3134 = vunpack.c.l.b16 %v3098
      %v3135 = vunpack.c.l.b16 %v3099
      %v3136 = vunpack.c.l.b16 %v3100
      %v3137 = vunpack.c.l.b16 %v3101
      %v3138 = vpack.c.b16 %v3123, %v3122
      %v3139 = vpack.c.b16 %v3125, %v3124
      %v3140 = vpack.c.b16 %v3127, %v3126
      %v3141 = vpack.c.b16 %v3129, %v3128
      %v3142 = vpack.c.b16 %v3131, %v3130
      %v3143 = vpack.c.b16 %v3133, %v3132
      %v3144 = vpack.c.b16 %v3135, %v3134
      %v3145 = vpack.c.b16 %v3137, %v3136
      %3154 = vmatprep.subr.bf16.mxu0 0
      %3155 = vmatpush1.bf16.msra.mxu0 %v3138
      %3156 = vmatprep.subr.bf16.mxu0 0
      %3157 = vmatpush1.bf16.msra.mxu0 %v3139
      %3158 = vmatprep.subr.bf16.mxu0 0
      %3159 = vmatpush1.bf16.msra.mxu0 %v3140
      %3160 = vmatprep.subr.bf16.mxu0 0
      %3161 = vmatpush1.bf16.msra.mxu0 %v3141
      %3162 = vmatprep.subr.bf16.mxu0 0
      %3163 = vmatpush1.bf16.msra.mxu0 %v3142
      %3164 = vmatprep.subr.bf16.mxu0 0
      %3165 = vmatpush1.bf16.msra.mxu0 %v3143
      %3166 = vmatprep.subr.bf16.mxu0 0
      %3167 = vmatpush1.bf16.msra.mxu0 %v3144
      %3168 = vmatprep.subr.bf16.mxu0 0
      %3169 = vmatpush1.bf16.msra.mxu0 %v3145
      %3170 = vmatprep.subr.bf16.mxu0 0
      %3171 = vmatpush1.bf16.msra.mxu0 0
      %3172 = vmatprep.subr.bf16.mxu0 0
      %3173 = vmatpush1.bf16.msra.mxu0 0
      %3174 = vmatprep.subr.bf16.mxu0 0
      %3175 = vmatpush1.bf16.msra.mxu0 0
      %3176 = vmatprep.subr.bf16.mxu0 0
      %3177 = vmatpush1.bf16.msra.mxu0 0
      %3178 = vmatprep.subr.bf16.mxu0 0
      %3179 = vmatpush1.bf16.msra.mxu0 0
      %3180 = vmatprep.subr.bf16.mxu0 0
      %3181 = vmatpush1.bf16.msra.mxu0 0
      %3182 = vmatprep.subr.bf16.mxu0 0
      %3183 = vmatpush1.bf16.msra.mxu0 0
      %3184 = vmatprep.subr.bf16.mxu0 0
      %3185 = vmatpush1.bf16.msra.mxu0 0
      %3186 = vmatprep.mubr.bf16.mxu0 0
      %3187 = vmatmul.mubr.bf16.gmra.mrb[0].mxu0 %v1453
      %v3188 = vpop.f32.mrb[0].mxu0
      %v3189 = vadd.f32 0.0, %v3188
      %v3190 = vpop.f32.mrb[0].mxu0
      %v3191 = vpop.f32.mrb[0].mxu0
      %v3192 = vadd.f32 0.0, %v3191
      %v3193 = vpop.f32.mrb[0].mxu0
      %3194 = vmatprep.mubr.bf16.mxu0 0
      %3195 = vmatmul.mubr.bf16.gmra.mrb[0].mxu0 %v1455
      %v3196 = vpop.f32.mrb[0].mxu0
      %v3197 = vadd.f32 0.0, %v3196
      %v3198 = vpop.f32.mrb[0].mxu0
      %v3199 = vpop.f32.mrb[0].mxu0
      %v3200 = vadd.f32 0.0, %v3199
      %v3201 = vpop.f32.mrb[0].mxu0
      %3202 = vmatprep.mubr.bf16.mxu0 0
      %3203 = vmatmul.mubr.bf16.gmra.mrb[0].mxu0 %v1457
      %v3204 = vpop.f32.mrb[0].mxu0
      %v3205 = vadd.f32 0.0, %v3204
      %v3206 = vpop.f32.mrb[0].mxu0
      %v3207 = vpop.f32.mrb[0].mxu0
      %v3208 = vadd.f32 0.0, %v3207
      %v3209 = vpop.f32.mrb[0].mxu0
      %3210 = vmatprep.mubr.bf16.mxu0 0
      %3211 = vmatmul.mubr.bf16.gmra.mrb[0].mxu0 %v1459
      %v3212 = vpop.f32.mrb[0].mxu0
      %v3213 = vadd.f32 0.0, %v3212
      %v3214 = vpop.f32.mrb[0].mxu0
      %v3215 = vpop.f32.mrb[0].mxu0
      %v3216 = vadd.f32 0.0, %v3215
      %v3217 = vpop.f32.mrb[0].mxu0
      %3218 = vmatprep.mubr.bf16.mxu0 0
      %3219 = vmatmul.mubr.bf16.gmra.mrb[0].mxu0 %v1461
      %v3220 = vpop.f32.mrb[0].mxu0
      %v3221 = vadd.f32 0.0, %v3220
      %v3222 = vpop.f32.mrb[0].mxu0
      %v3223 = vpop.f32.mrb[0].mxu0
      %v3224 = vadd.f32 0.0, %v3223
      %v3225 = vpop.f32.mrb[0].mxu0
      %3226 = vmatprep.mubr.bf16.mxu0 0
      %3227 = vmatmul.mubr.bf16.gmra.mrb[0].mxu0 %v1463
      %v3228 = vpop.f32.mrb[0].mxu0
      %v3229 = vadd.f32 0.0, %v3228
      %v3230 = vpop.f32.mrb[0].mxu0
      %v3231 = vpop.f32.mrb[0].mxu0
      %v3232 = vadd.f32 0.0, %v3231
      %v3233 = vpop.f32.mrb[0].mxu0
      %3234 = vmatprep.mubr.bf16.mxu0 0
      %3235 = vmatmul.mubr.bf16.gmra.mrb[0].mxu0 %v1465
      %v3236 = vpop.f32.mrb[0].mxu0
      %v3237 = vadd.f32 0.0, %v3236
      %v3238 = vpop.f32.mrb[0].mxu0
      %v3239 = vpop.f32.mrb[0].mxu0
      %v3240 = vadd.f32 0.0, %v3239
      %v3241 = vpop.f32.mrb[0].mxu0
      %3242 = vmatprep.mubr.bf16.mxu0 0
      %3243 = vmatmul.mubr.bf16.gmra.mrb[0].mxu0 %v1467
      %v3244 = vpop.f32.mrb[0].mxu0
      %v3245 = vadd.f32 0.0, %v3244
      %v3246 = vpop.f32.mrb[0].mxu0
      %v3247 = vpop.f32.mrb[0].mxu0
      %v3248 = vadd.f32 0.0, %v3247
      %v3249 = vpop.f32.mrb[0].mxu0
      %3250 = vmatprep.mubr.bf16.mxu0 0
      %3251 = vmatmul.mubr.bf16.gmra.mrb[0].mxu0 %v1469
      %v3252 = vpop.f32.mrb[0].mxu0
      %v3253 = vadd.f32 0.0, %v3252
      %v3254 = vpop.f32.mrb[0].mxu0
      %v3255 = vpop.f32.mrb[0].mxu0
      %v3256 = vadd.f32 0.0, %v3255
      %v3257 = vpop.f32.mrb[0].mxu0
      %3258 = vmatprep.mubr.bf16.mxu0 0
      %3259 = vmatmul.mubr.bf16.gmra.mrb[0].mxu0 %v1471
      %v3260 = vpop.f32.mrb[0].mxu0
      %v3261 = vadd.f32 0.0, %v3260
      %v3262 = vpop.f32.mrb[0].mxu0
      %v3263 = vpop.f32.mrb[0].mxu0
      %v3264 = vadd.f32 0.0, %v3263
      %v3265 = vpop.f32.mrb[0].mxu0
      %3266 = vmatprep.mubr.bf16.mxu0 0
      %3267 = vmatmul.mubr.bf16.gmra.mrb[0].mxu0 %v2293
      %v3268 = vpop.f32.mrb[0].mxu0
      %v3269 = vadd.f32 0.0, %v3268
      %v3270 = vpop.f32.mrb[0].mxu0
      %v3271 = vpop.f32.mrb[0].mxu0
      %v3272 = vadd.f32 0.0, %v3271
      %v3273 = vpop.f32.mrb[0].mxu0
      %3274 = vmatprep.mubr.bf16.mxu0 0
      %3275 = vmatmul.mubr.bf16.gmra.mrb[0].mxu0 %v3104
      %v3276 = vpop.f32.mrb[0].mxu0
      %v3277 = vadd.f32 0.0, %v3276
      %v3278 = vpop.f32.mrb[0].mxu0
      %v3279 = vpop.f32.mrb[0].mxu0
      %v3280 = vadd.f32 0.0, %v3279
      %v3281 = vpop.f32.mrb[0].mxu0
      %3282 = vdwg.mxu0
      %v3283 = vadd.f32 %v3061, %v3189
      %v3284 = vadd.f32 %v3062, %v3192
      %v3285 = vadd.f32 %v3063, %v3197
      %v3286 = vadd.f32 %v3064, %v3200
      %v3287 = vadd.f32 %v3065, %v3205
      %v3288 = vadd.f32 %v3066, %v3208
      %v3289 = vadd.f32 %v3067, %v3213
      %v3290 = vadd.f32 %v3068, %v3216
      %v3291 = vadd.f32 %v3069, %v3221
      %v3292 = vadd.f32 %v3070, %v3224
      %v3293 = vadd.f32 %v3071, %v3229
      %v3294 = vadd.f32 %v3072, %v3232
      %v3295 = vadd.f32 %v3073, %v3237
      %v3296 = vadd.f32 %v3074, %v3240
      %v3297 = vadd.f32 %v3075, %v3245
      %v3298 = vadd.f32 %v3076, %v3248
      %v3299 = vadd.f32 %v3077, %v3253
      %v3300 = vadd.f32 %v3078, %v3256
      %v3301 = vadd.f32 %v3079, %v3261
      %v3302 = vadd.f32 %v3080, %v3264
      %v3303 = vadd.f32 %v3081, %v3269
      %v3304 = vadd.f32 %v3082, %v3272
      %v3305 = vadd.f32 %v3083, %v3277
      %v3306 = vadd.f32 %v3084, %v3280
      %3307 = vst [vmem:[#allocation2] sm:$0xff] %v3283
      %3308 = vst [vmem:[#allocation2 + $0x8] sm:$0xff] %v3284
      %3309 = vst [vmem:[#allocation2 + $0x10] sm:$0xff] %v3285
      %3310 = vst [vmem:[#allocation2 + $0x18] sm:$0xff] %v3286
      %3311 = vst [vmem:[#allocation2 + $0x20] sm:$0xff] %v3287
      %3312 = vst [vmem:[#allocation2 + $0x28] sm:$0xff] %v3288
      %3313 = vst [vmem:[#allocation2 + $0x30] sm:$0xff] %v3289
      %3314 = vst [vmem:[#allocation2 + $0x38] sm:$0xff] %v3290
      %3315 = vst [vmem:[#allocation2 + $0x40] sm:$0xff] %v3291
      %3316 = vst [vmem:[#allocation2 + $0x48] sm:$0xff] %v3292
      %3317 = vst [vmem:[#allocation2 + $0x50] sm:$0xff] %v3293
      %3318 = vst [vmem:[#allocation2 + $0x58] sm:$0xff] %v3294
      %3319 = vst [vmem:[#allocation2 + $0x60] sm:$0xff] %v3295
      %3320 = vst [vmem:[#allocation2 + $0x68] sm:$0xff] %v3296
      %3321 = vst [vmem:[#allocation2 + $0x70] sm:$0xff] %v3297
      %3322 = vst [vmem:[#allocation2 + $0x78] sm:$0xff] %v3298
      %3323 = vst [vmem:[#allocation2 + $0x80] sm:$0xff] %v3299
      %3324 = vst [vmem:[#allocation2 + $0x88] sm:$0xff] %v3300
      %3325 = vst [vmem:[#allocation2 + $0x90] sm:$0xff] %v3301
      %3326 = vst [vmem:[#allocation2 + $0x98] sm:$0xff] %v3302
      %3327 = vst [vmem:[#allocation2 + $0xa0] sm:$0xff] %v3303
      %3328 = vst [vmem:[#allocation2 + $0xa8] sm:$0xff] %v3304
      %3329 = vst [vmem:[#allocation2 + $0xb0] sm:$0xff] %v3305
      %3330 = vst [vmem:[#allocation2 + $0xb8] sm:$0xff] %v3306
      %v3331 = vld [vmem:[#allocation2] sm:$0xff]
      %v3332 = vld [vmem:[#allocation2 + $0x8] sm:$0xff]
      %v3333 = vld [vmem:[#allocation2 + $0x10] sm:$0xff]
      %v3334 = vld [vmem:[#allocation2 + $0x18] sm:$0xff]
      %v3335 = vld [vmem:[#allocation2 + $0x20] sm:$0xff]
      %v3336 = vld [vmem:[#allocation2 + $0x28] sm:$0xff]
      %v3337 = vld [vmem:[#allocation2 + $0x30] sm:$0xff]
      %v3338 = vld [vmem:[#allocation2 + $0x38] sm:$0xff]
      %v3339 = vld [vmem:[#allocation2 + $0x40] sm:$0xff]
      %v3340 = vld [vmem:[#allocation2 + $0x48] sm:$0xff]
      %v3341 = vld [vmem:[#allocation2 + $0x50] sm:$0xff]
      %v3342 = vld [vmem:[#allocation2 + $0x58] sm:$0xff]
      %v3343 = vld [vmem:[#allocation2 + $0x60] sm:$0xff]
      %v3344 = vld [vmem:[#allocation2 + $0x68] sm:$0xff]
      %v3345 = vld [vmem:[#allocation2 + $0x70] sm:$0xff]
      %v3346 = vld [vmem:[#allocation2 + $0x78] sm:$0xff]
      %v3347 = vld [vmem:[#allocation2 + $0x80] sm:$0xff]
      %v3348 = vld [vmem:[#allocation2 + $0x88] sm:$0xff]
      %v3349 = vld [vmem:[#allocation2 + $0x90] sm:$0xff]
      %v3350 = vld [vmem:[#allocation2 + $0x98] sm:$0xff]
      %v3351 = vld [vmem:[#allocation2 + $0xa0] sm:$0xff]
      %v3352 = vld [vmem:[#allocation2 + $0xa8] sm:$0xff]
      %v3353 = vld [vmem:[#allocation2 + $0xb0] sm:$0xff]
      %v3354 = vld [vmem:[#allocation2 + $0xb8] sm:$0xff]
      %v3355 = vld [vmem:[%s6] sm:$0x1]
      %v3357 = vlaneseq
      %v3358 = vshrl.u32 %v3357, 7
      %v3359 = vsub.s32 0, %v3358
      %v3360 = vrot.slane %v3355, %v3359
      %v3362 = vadd.f32 %v3331, %v3360
      %v3363 = vadd.f32 %v3332, %v3360
      %v3364 = vadd.f32 %v3333, %v3360
      %v3365 = vadd.f32 %v3334, %v3360
      %v3366 = vadd.f32 %v3335, %v3360
      %v3367 = vadd.f32 %v3336, %v3360
      %v3368 = vadd.f32 %v3337, %v3360
      %v3369 = vadd.f32 %v3338, %v3360
      %v3370 = vadd.f32 %v3339, %v3360
      %v3371 = vadd.f32 %v3340, %v3360
      %v3372 = vadd.f32 %v3341, %v3360
      %v3373 = vadd.f32 %v3342, %v3360
      %v3374 = vadd.f32 %v3343, %v3360
      %v3375 = vadd.f32 %v3344, %v3360
      %v3376 = vadd.f32 %v3345, %v3360
      %v3377 = vadd.f32 %v3346, %v3360
      %v3378 = vadd.f32 %v3347, %v3360
      %v3379 = vadd.f32 %v3348, %v3360
      %v3380 = vadd.f32 %v3349, %v3360
      %v3381 = vadd.f32 %v3350, %v3360
      %v3382 = vadd.f32 %v3351, %v3360
      %v3383 = vadd.f32 %v3352, %v3360
      %v3384 = vadd.f32 %v3353, %v3360
      %v3385 = vadd.f32 %v3354, %v3360
      %v3386 = vpack.c.bf16 %v3363, %v3362
      %v3387 = vpack.c.bf16 %v3365, %v3364
      %v3388 = vpack.c.bf16 %v3367, %v3366
      %v3389 = vpack.c.bf16 %v3369, %v3368
      %v3390 = vpack.c.bf16 %v3371, %v3370
      %v3391 = vpack.c.bf16 %v3373, %v3372
      %v3392 = vpack.c.bf16 %v3375, %v3374
      %v3393 = vpack.c.bf16 %v3377, %v3376
      %v3394 = vpack.c.bf16 %v3379, %v3378
      %v3395 = vpack.c.bf16 %v3381, %v3380
      %v3396 = vpack.c.bf16 %v3383, %v3382
      %v3397 = vpack.c.bf16 %v3385, %v3384
      %v3410 = vunpack.c.l.b16 %v3386
      %v3411 = vunpack.c.h.b16 %v3386
      %v3412 = vunpack.c.l.b16 %v3387
      %v3413 = vunpack.c.h.b16 %v3387
      %v3414 = vunpack.c.l.b16 %v3388
      %v3415 = vunpack.c.h.b16 %v3388
      %v3416 = vunpack.c.l.b16 %v3389
      %v3417 = vunpack.c.h.b16 %v3389
      %v3418 = vunpack.c.l.b16 %v3390
      %v3419 = vunpack.c.h.b16 %v3390
      %v3420 = vunpack.c.l.b16 %v3391
      %v3421 = vunpack.c.h.b16 %v3391
      %v3422 = vunpack.c.l.b16 %v3392
      %v3423 = vunpack.c.h.b16 %v3392
      %v3424 = vunpack.c.l.b16 %v3393
      %v3425 = vunpack.c.h.b16 %v3393
      %v3426 = vunpack.c.l.b16 %v3394
      %v3427 = vunpack.c.h.b16 %v3394
      %v3428 = vunpack.c.l.b16 %v3395
      %v3429 = vunpack.c.h.b16 %v3395
      %v3430 = vunpack.c.l.b16 %v3396
      %v3431 = vunpack.c.h.b16 %v3396
      %v3432 = vunpack.c.l.b16 %v3397
      %v3433 = vunpack.c.h.b16 %v3397
      %v3434 = vpack.c.b16 %v3410, %v3410
      %v3435 = vpack.c.b16 %v3411, %v3411
      %v3436 = vpack.c.b16 %v3412, %v3412
      %v3437 = vpack.c.b16 %v3413, %v3413
      %v3438 = vpack.c.b16 %v3414, %v3414
      %v3439 = vpack.c.b16 %v3415, %v3415
      %v3440 = vpack.c.b16 %v3416, %v3416
      %v3441 = vpack.c.b16 %v3417, %v3417
      %v3442 = vpack.c.b16 %v3418, %v3418
      %v3443 = vpack.c.b16 %v3419, %v3419
      %v3444 = vpack.c.b16 %v3420, %v3420
      %v3445 = vpack.c.b16 %v3421, %v3421
      %v3446 = vpack.c.b16 %v3422, %v3422
      %v3447 = vpack.c.b16 %v3423, %v3423
      %v3448 = vpack.c.b16 %v3424, %v3424
      %v3449 = vpack.c.b16 %v3425, %v3425
      %v3450 = vpack.c.b16 %v3426, %v3426
      %v3451 = vpack.c.b16 %v3427, %v3427
      %v3452 = vpack.c.b16 %v3428, %v3428
      %v3453 = vpack.c.b16 %v3429, %v3429
      %v3454 = vpack.c.b16 %v3430, %v3430
      %v3455 = vpack.c.b16 %v3431, %v3431
      %v3456 = vpack.c.b16 %v3432, %v3432
      %v3457 = vpack.c.b16 %v3433, %v3433
      %3482 = vst [vmem:[%s524] sm:$0xf] %v3434
      %3483 = vst [vmem:[%s524 + $0x4] sm:$0xf] %v3435
      %3484 = vst [vmem:[%s524 + $0x8] sm:$0xf] %v3436
      %3485 = vst [vmem:[%s524 + $0xc] sm:$0xf] %v3437
      %3486 = vst [vmem:[%s524 + $0x10] sm:$0xf] %v3438
      %3487 = vst [vmem:[%s524 + $0x14] sm:$0xf] %v3439
      %3488 = vst [vmem:[%s524 + $0x18] sm:$0xf] %v3440
      %3489 = vst [vmem:[%s524 + $0x1c] sm:$0xf] %v3441
      %3490 = vst [vmem:[%s524 + $0x20] sm:$0xf] %v3442
      %3491 = vst [vmem:[%s524 + $0x24] sm:$0xf] %v3443
      %3492 = vst [vmem:[%s524 + $0x28] sm:$0xf] %v3444
      %3493 = vst [vmem:[%s524 + $0x2c] sm:$0xf] %v3445
      %3494 = vst [vmem:[%s524 + $0x30] sm:$0xf] %v3446
      %3495 = vst [vmem:[%s524 + $0x34] sm:$0xf] %v3447
      %3496 = vst [vmem:[%s524 + $0x38] sm:$0xf] %v3448
      %3497 = vst [vmem:[%s524 + $0x3c] sm:$0xf] %v3449
      %3498 = vst [vmem:[%s524 + $0x40] sm:$0xf] %v3450
      %3499 = vst [vmem:[%s524 + $0x44] sm:$0xf] %v3451
      %3500 = vst [vmem:[%s524 + $0x48] sm:$0xf] %v3452
      %3501 = vst [vmem:[%s524 + $0x4c] sm:$0xf] %v3453
      %3502 = vst [vmem:[%s524 + $0x50] sm:$0xf] %v3454
      %3503 = vst [vmem:[%s524 + $0x54] sm:$0xf] %v3455
      %3504 = vst [vmem:[%s524 + $0x58] sm:$0xf] %v3456
      %3505 = vst [vmem:[%s524 + $0x5c] sm:$0xf] %v3457
      %vm3506 = vcmask 1043456
      %v3507 = vsel %vm3506, %v3363, 0.0
      %v3508 = vadd.f32 %v3362, %v3507
      %v3509 = vadd.f32 %v3508, %v3364
      %v3510 = vsel %vm3506, %v3365, 0.0
      %v3511 = vadd.f32 %v3509, %v3510
      %v3512 = vadd.f32 %v3511, %v3366
      %v3513 = vsel %vm3506, %v3367, 0.0
      %v3514 = vadd.f32 %v3512, %v3513
      %v3515 = vadd.f32 %v3514, %v3368
      %v3516 = vsel %vm3506, %v3369, 0.0
      %v3517 = vadd.f32 %v3515, %v3516
      %v3518 = vadd.f32 %v3517, %v3370
      %v3519 = vsel %vm3506, %v3371, 0.0
      %v3520 = vadd.f32 %v3518, %v3519
      %v3521 = vadd.f32 %v3520, %v3372
      %v3522 = vsel %vm3506, %v3373, 0.0
      %v3523 = vadd.f32 %v3521, %v3522
      %v3524 = vadd.f32 %v3523, %v3374
      %v3525 = vsel %vm3506, %v3375, 0.0
      %v3526 = vadd.f32 %v3524, %v3525
      %v3527 = vadd.f32 %v3526, %v3376
      %v3528 = vsel %vm3506, %v3377, 0.0
      %v3529 = vadd.f32 %v3527, %v3528
      %v3530 = vadd.f32 %v3529, %v3378
      %v3531 = vsel %vm3506, %v3379, 0.0
      %v3532 = vadd.f32 %v3530, %v3531
      %v3533 = vadd.f32 %v3532, %v3380
      %v3534 = vsel %vm3506, %v3381, 0.0
      %v3535 = vadd.f32 %v3533, %v3534
      %v3536 = vadd.f32 %v3535, %v3382
      %v3537 = vsel %vm3506, %v3383, 0.0
      %v3538 = vadd.f32 %v3536, %v3537
      %v3539 = vadd.f32 %v3538, %v3384
      %v3540 = vsel %vm3506, %v3385, 0.0
      %v3541 = vadd.f32 %v3539, %v3540
      %v3542 = vrot.slane %v3541, 4
      %v3543 = vadd.f32 %v3541, %v3542
      %v3544 = vrot.slane %v3543, 2
      %v3545 = vadd.f32 %v3543, %v3544
      %v3546 = vrot.slane %v3545, 1
      %v3547 = vadd.f32 %v3545, %v3546
      %3548 = vst [vmem:[%s531] sm:$0x1] %v3547
      %v3549 = vmul.f32 %v3362, %v3362
      %v3550 = vmul.f32 %v3363, %v3363
      %v3551 = vmul.f32 %v3364, %v3364
      %v3552 = vmul.f32 %v3365, %v3365
      %v3553 = vmul.f32 %v3366, %v3366
      %v3554 = vmul.f32 %v3367, %v3367
      %v3555 = vmul.f32 %v3368, %v3368
      %v3556 = vmul.f32 %v3369, %v3369
      %v3557 = vmul.f32 %v3370, %v3370
      %v3558 = vmul.f32 %v3371, %v3371
      %v3559 = vmul.f32 %v3372, %v3372
      %v3560 = vmul.f32 %v3373, %v3373
      %v3561 = vmul.f32 %v3374, %v3374
      %v3562 = vmul.f32 %v3375, %v3375
      %v3563 = vmul.f32 %v3376, %v3376
      %v3564 = vmul.f32 %v3377, %v3377
      %v3565 = vmul.f32 %v3378, %v3378
      %v3566 = vmul.f32 %v3379, %v3379
      %v3567 = vmul.f32 %v3380, %v3380
      %v3568 = vmul.f32 %v3381, %v3381
      %v3569 = vmul.f32 %v3382, %v3382
      %v3570 = vmul.f32 %v3383, %v3383
      %v3571 = vmul.f32 %v3384, %v3384
      %v3572 = vmul.f32 %v3385, %v3385
      %v3573 = vsel %vm3506, %v3550, 0.0
      %v3574 = vadd.f32 %v3549, %v3573
      %v3575 = vadd.f32 %v3574, %v3551
      %v3576 = vsel %vm3506, %v3552, 0.0
      %v3577 = vadd.f32 %v3575, %v3576
      %v3578 = vadd.f32 %v3577, %v3553
      %v3579 = vsel %vm3506, %v3554, 0.0
      %v3580 = vadd.f32 %v3578, %v3579
      %v3581 = vadd.f32 %v3580, %v3555
      %v3582 = vsel %vm3506, %v3556, 0.0
      %v3583 = vadd.f32 %v3581, %v3582
      %v3584 = vadd.f32 %v3583, %v3557
      %v3585 = vsel %vm3506, %v3558, 0.0
      %v3586 = vadd.f32 %v3584, %v3585
      %v3587 = vadd.f32 %v3586, %v3559
      %v3588 = vsel %vm3506, %v3560, 0.0
      %v3589 = vadd.f32 %v3587, %v3588
      %v3590 = vadd.f32 %v3589, %v3561
      %v3591 = vsel %vm3506, %v3562, 0.0
      %v3592 = vadd.f32 %v3590, %v3591
      %v3593 = vadd.f32 %v3592, %v3563
      %v3594 = vsel %vm3506, %v3564, 0.0
      %v3595 = vadd.f32 %v3593, %v3594
      %v3596 = vadd.f32 %v3595, %v3565
      %v3597 = vsel %vm3506, %v3566, 0.0
      %v3598 = vadd.f32 %v3596, %v3597
      %v3599 = vadd.f32 %v3598, %v3567
      %v3600 = vsel %vm3506, %v3568, 0.0
      %v3601 = vadd.f32 %v3599, %v3600
      %v3602 = vadd.f32 %v3601, %v3569
      %v3603 = vsel %vm3506, %v3570, 0.0
      %v3604 = vadd.f32 %v3602, %v3603
      %v3605 = vadd.f32 %v3604, %v3571
      %v3606 = vsel %vm3506, %v3572, 0.0
      %v3607 = vadd.f32 %v3605, %v3606
      %v3608 = vrot.slane %v3607, 4
      %v3609 = vadd.f32 %v3607, %v3608
      %v3610 = vrot.slane %v3609, 2
      %v3611 = vadd.f32 %v3609, %v3610
      %v3612 = vrot.slane %v3611, 1
      %v3613 = vadd.f32 %v3611, %v3612
      %3614 = vst [vmem:[%s537] sm:$0x1] %v3613
      %s3615 = smul.u32 12, %s26
      %p3616 = scmp.lt.s32.totalorder %s25, 1
      %s3617 = scalar_select %p3616, %s25, 1
      %p3618 = scmp.lt.s32.totalorder %s3615, 11
      %s3619 = scalar_select %p3618, %s3615, 11
      %s3620 = smul.addr %s3619, 2
      %s3621 = smul.addr %s3617, 24
      %s3622 = sadd.s32 %s3620, %s3621
      %s3623 = smul.addr %s3622, 4
      %s3624 = scalar_lea.vmem %s7, %s3623
      %p3625 = scmp.lt.s32.totalorder %s25, 1
      %s3626 = scalar_select %p3625, %s25, 1
      %p3627 = scmp.lt.s32.totalorder %s26, 0
      %s3628 = scalar_select %p3627, %s26, 0
      %s3629 = sadd.s32 %s3628, %s3626
      %s3630 = scalar_lea.vmem %s8, %s3629
      %p3631 = scmp.lt.s32.totalorder %s25, 1
      %s3632 = scalar_select %p3631, %s25, 1
      %p3633 = scmp.lt.s32.totalorder %s26, 0
      %s3634 = scalar_select %p3633, %s26, 0
      %s3635 = sadd.s32 %s3634, %s3632
      %s3636 = scalar_lea.vmem %s9, %s3635
      // Predicated region
      $region49: #{decoder_block_forward.4} parent=47 // pred_check
        %p3637 = pneg %p231
      $region50: #{decoder_block_forward.4} parent=47 // pred_check_branch
        %3639 = sbr.rel (%p3637) target = $region52
      $region51: #{decoder_block_forward.4} parent=47 // pred_region
        %s3640 = smul.u32 12, %s26
      $region52: #{decoder_block_forward.4} parent=47 // pred_fallthru
        _
      // Predicated region
      $region53: #{decoder_block_forward.4} parent=47 // pred_check
        %p3641 = pneg %p259
      $region54: #{decoder_block_forward.4} parent=47 // pred_check_branch
        %3643 = sbr.rel (%p3641) target = $region56
      $region55: #{decoder_block_forward.4} parent=47 // pred_region
        _
      $region56: #{decoder_block_forward.4} parent=47 // pred_fallthru
        _
      // Predicated region
      $region57: #{decoder_block_forward.4} parent=47 // pred_check
        %p3644 = pneg %p287
      $region58: #{decoder_block_forward.4} parent=47 // pred_check_branch
        %3646 = sbr.rel (%p3644) target = $region60
      $region59: #{decoder_block_forward.4} parent=47 // pred_region
        _
      $region60: #{decoder_block_forward.4} parent=47 // pred_fallthru
        _
    $region48: #{decoder_block_forward.4} parent=5 // pred_fallthru
      _
    %p3647 = scmp.le.s32.totalorder 2, %s16
    // Predicated region
    $region61: #{decoder_block_forward.4} parent=5 // pred_check
      %p3648 = pneg %p3647
    $region62: #{decoder_block_forward.4} parent=5 // pred_check_branch
      %3650 = sbr.rel (%p3648) target = $region64
    $region63: #{decoder_block_forward.4} parent=5 // pred_region
      %s3651 = ssub.s32 %s16, 2
      // Predicated region
      $region65: #{decoder_block_forward.4} parent=63 // pred_check
        %p3652 = pneg %p237
      $region66: #{decoder_block_forward.4} parent=63 // pred_check_branch
        %3654 = sbr.rel (%p3652) target = $region68
      $region67: #{decoder_block_forward.4} parent=63 // pred_region
        %s3655 = smul.u32 12, %s28
        %p3656 = scmp.lt.s32.totalorder %s27, 1
        %s3657 = scalar_select %p3656, %s27, 1
        %p3658 = scmp.lt.s32.totalorder %s3655, 11
        %s3659 = scalar_select %p3658, %s3655, 11
        %s3660 = smul.addr %s3659, 2
        %s3661 = smul.addr %s3657, 24
        %s3662 = sadd.s32 %s3660, %s3661
        %s3663 = smul.addr %s3662, 4
        %s3664 = scalar_lea.vmem %s7, %s3663
      $region68: #{decoder_block_forward.4} parent=63 // pred_fallthru
        _
      // Predicated region
      $region69: #{decoder_block_forward.4} parent=63 // pred_check
        %p3665 = pneg %p265
      $region70: #{decoder_block_forward.4} parent=63 // pred_check_branch
        %3667 = sbr.rel (%p3665) target = $region72
      $region71: #{decoder_block_forward.4} parent=63 // pred_region
        %p3668 = scmp.lt.s32.totalorder %s27, 1
        %s3669 = scalar_select %p3668, %s27, 1
        %p3670 = scmp.lt.s32.totalorder %s28, 0
        %s3671 = scalar_select %p3670, %s28, 0
        %s3672 = sadd.s32 %s3671, %s3669
        %s3673 = scalar_lea.vmem %s8, %s3672
      $region72: #{decoder_block_forward.4} parent=63 // pred_fallthru
        _
      // Predicated region
      $region73: #{decoder_block_forward.4} parent=63 // pred_check
        %p3674 = pneg %p293
      $region74: #{decoder_block_forward.4} parent=63 // pred_check_branch
        %3676 = sbr.rel (%p3674) target = $region76
      $region75: #{decoder_block_forward.4} parent=63 // pred_region
        %p3677 = scmp.lt.s32.totalorder %s27, 1
        %s3678 = scalar_select %p3677, %s27, 1
        %p3679 = scmp.lt.s32.totalorder %s28, 0
        %s3680 = scalar_select %p3679, %s28, 0
        %s3681 = sadd.s32 %s3680, %s3678
        %s3682 = scalar_lea.vmem %s9, %s3681
      $region76: #{decoder_block_forward.4} parent=63 // pred_fallthru
        _
    $region64: #{decoder_block_forward.4} parent=5 // pred_fallthru
      _
  $region6: #{decoder_block_forward.4} parent=0 // loop_footer
    %s20 = sadd.s32 1, %s16
  $region7: #{decoder_block_forward.4} parent=0 // loop_footer_branch
    %15 = sbr.rel target = $region3
  $region8: #{decoder_block_forward.4} parent=0 // loop_exit
    _

// kernel: decoder_block_forward.3
$region0: #{decoder_block_forward.3}
  #allocation0 [shape = 'u32[]', space=smem, size = 0x4, offset = 0x4, fixed_abs, tag = 'smem constant byte address 0x4 - core index']
  #allocation1 [shape = 'u32[144,128]{1,0:T(1,128)}', space=vmem, size = 0x12000, scoped, tag = 'internal scratch']
  #allocation2 [shape = 'f32[224,128]{1,0:T(8,128)}', space=vmem, size = 0x1c000, scoped, tag = 'scratch operand']
  %s0 = inlined_call_operand.vmem [shape: bf16[2,16,16,128], index: 0, kind: input, shape index: {}, may-alias: {0,1,2}]
  %s1 = inlined_call_operand.vmem [shape: bf16[2,16,16,128], index: 1, kind: input, shape index: {}, may-alias: {0,1,2}]
  %s2 = inlined_call_operand.vmem [shape: bf16[2,16,16,128], index: 2, kind: input, shape index: {}, may-alias: {0,1,2}]
  %s3 = inlined_call_operand.vmem [shape: bf16[9,128,128], index: 3, kind: input, shape index: {}]
  %s4 = inlined_call_operand.vmem [shape: f32[1,128], index: 4, kind: input, shape index: {}]
  %s5 = inlined_call_operand.vmem [shape: bf16[2,14,16,128], index: 5, kind: output, shape index: {0}]
  %s6 = inlined_call_operand.vmem [shape: f32[2,1,1,128], index: 6, kind: output, shape index: {1}]
  %s7 = inlined_call_operand.vmem [shape: f32[2,1,1,128], index: 7, kind: output, shape index: {2}]
  %8 = xla_tuple %s5, %s6, %s7
  %s9 = sld [smem:[#allocation0]]
  $region69: #{decoder_block_forward.3} parent=0
    _
  %s11 = ssub.s32 1, %s9
  %s12 = scalar_select 0, %s11, %s9
  loop: start=0, step=1, limit=4
  $region2: #{decoder_block_forward.3} parent=0 // loop_pre_header
    _
  $region3: #{decoder_block_forward.3} parent=0 // loop_header
    %s14 = sphi 0, %s18
    %p15 = scmp.ge.s32.totalorder %s14, 4
    %s21 = sphi 0, %s33
    %s22 = sphi 0, %s29
    %s23 = sphi 0, %s21
    %s24 = sphi 0, %s22
    %s25 = sphi 0, %s23
    %s26 = sphi 0, %s24
    %s38 = sphi 0, %s40
    %s41 = sphi 0, %s38
    %s42 = sphi 0, %s41
    %s58 = sphi 0, %s42
    %s70 = sphi 0, %s72
    %s73 = sphi 0, %s70
    %s74 = sphi 0, %s73
    %s90 = sphi 0, %s74
    %s104 = sphi 0, %s106
    %s107 = sphi 0, %s104
    %s108 = sphi 0, %s107
    %s124 = sphi 0, %s108
    %s128 = sphi 0, %s128
    %s130 = sphi 0, %s128
    %s131 = sphi 0, %s130
    %s145 = sphi 0, %s131
    %s149 = sphi 0, %s149
    %s151 = sphi 0, %s149
    %s152 = sphi 0, %s151
    %s166 = sphi 0, %s152
    %s174 = sphi 0, %s176
    %s177 = sphi 0, %s174
    %s178 = sphi 0, %s177
    %s194 = sphi 0, %s178
    %s202 = sphi 0, %s204
    %s205 = sphi 0, %s202
    %s206 = sphi 0, %s205
    %s222 = sphi 0, %s206
    %s230 = sphi 0, %s232
    %s233 = sphi 0, %s230
    %s234 = sphi 0, %s233
    %s250 = sphi 0, %s234
  $region4: #{decoder_block_forward.3} parent=0 // loop_header_branch
    %17 = sbr.rel (%p15) target = $region8
  $region5: #{decoder_block_forward.3} parent=0 // loop_body
    %s19 = ssub.s32 %s14, 1
    %s20 = ssub.s32 %s14, 2
    %s27 = sadd.s32 1, %s22
    %p28 = scmp.ge.s32.totalorder %s27, 1
    %s29 = scalar_select %p28, 0, %s27
    %s30 = sadd.s32 1, %s21
    %s31 = scalar_select %p28, %s30, %s21
    %p32 = scmp.ge.s32.totalorder %s31, 2
    %s33 = scalar_select %p32, 0, %s31
    %s34 = ssub.s32 %s21, %s33
    %s35 = ssub.s32 %s22, %s29
    %s36 = sor.u32 %s34, %s35
    %p37 = scmp.eq.s32.totalorder %s36, 0
    %s39 = sadd.s32 %s38, 1
    %s40 = scalar_select %p37, %s38, %s39
    %p43 = pneg %p37
    %p44 = scmp.eq.s32.totalorder %s14, 1
    %p45 = por %p43, %p44
    %p46 = scmp.ne.s32.totalorder %s38, %s41
    %p47 = scmp.eq.s32.totalorder %s14, 0
    %p48 = por %p46, %p47
    %p49 = scmp.ne.s32.totalorder %s38, %s41
    %p50 = scmp.eq.s32.totalorder %s19, 1
    %p51 = por %p49, %p50
    %p52 = scmp.ne.s32.totalorder %s41, %s42
    %p53 = scmp.eq.s32.totalorder %s19, 0
    %p54 = por %p52, %p53
    %p55 = scmp.ne.s32.totalorder %s41, %s42
    %p56 = scmp.eq.s32.totalorder %s20, 1
    %p57 = por %p55, %p56
    %p59 = scmp.ne.s32.totalorder %s42, %s58
    %p60 = scmp.eq.s32.totalorder %s20, 0
    %p61 = por %p59, %p60
    %s62 = sadd.s32 %s22, 1
    %s63 = smul.u32 %s62, 14
    %s64 = sadd.s32 %s29, 1
    %s65 = smul.u32 %s64, 14
    %s66 = ssub.s32 %s21, %s33
    %s67 = ssub.s32 %s63, %s65
    %s68 = sor.u32 %s66, %s67
    %p69 = scmp.eq.s32.totalorder %s68, 0
    %s71 = sadd.s32 %s70, 1
    %s72 = scalar_select %p69, %s70, %s71
    %p75 = pneg %p69
    %p76 = scmp.eq.s32.totalorder %s14, 1
    %p77 = por %p75, %p76
    %p78 = scmp.ne.s32.totalorder %s70, %s73
    %p79 = scmp.eq.s32.totalorder %s14, 0
    %p80 = por %p78, %p79
    %p81 = scmp.ne.s32.totalorder %s70, %s73
    %p82 = scmp.eq.s32.totalorder %s19, 1
    %p83 = por %p81, %p82
    %p84 = scmp.ne.s32.totalorder %s73, %s74
    %p85 = scmp.eq.s32.totalorder %s19, 0
    %p86 = por %p84, %p85
    %p87 = scmp.ne.s32.totalorder %s73, %s74
    %p88 = scmp.eq.s32.totalorder %s20, 1
    %p89 = por %p87, %p88
    %p91 = scmp.ne.s32.totalorder %s74, %s90
    %p92 = scmp.eq.s32.totalorder %s20, 0
    %p93 = por %p91, %p92
    %s94 = sadd.s32 %s22, 1
    %s95 = smul.u32 %s94, 14
    %s96 = sadd.s32 %s95, 1
    %s97 = sadd.s32 %s29, 1
    %s98 = smul.u32 %s97, 14
    %s99 = sadd.s32 %s98, 1
    %s100 = ssub.s32 %s21, %s33
    %s101 = ssub.s32 %s96, %s99
    %s102 = sor.u32 %s100, %s101
    %p103 = scmp.eq.s32.totalorder %s102, 0
    %s105 = sadd.s32 %s104, 1
    %s106 = scalar_select %p103, %s104, %s105
    %p109 = pneg %p103
    %p110 = scmp.eq.s32.totalorder %s14, 1
    %p111 = por %p109, %p110
    %p112 = scmp.ne.s32.totalorder %s104, %s107
    %p113 = scmp.eq.s32.totalorder %s14, 0
    %p114 = por %p112, %p113
    %p115 = scmp.ne.s32.totalorder %s104, %s107
    %p116 = scmp.eq.s32.totalorder %s19, 1
    %p117 = por %p115, %p116
    %p118 = scmp.ne.s32.totalorder %s107, %s108
    %p119 = scmp.eq.s32.totalorder %s19, 0
    %p120 = por %p118, %p119
    %p121 = scmp.ne.s32.totalorder %s107, %s108
    %p122 = scmp.eq.s32.totalorder %s20, 1
    %p123 = por %p121, %p122
    %p125 = scmp.ne.s32.totalorder %s108, %s124
    %p126 = scmp.eq.s32.totalorder %s20, 0
    %p127 = por %p125, %p126
    %s129 = sadd.s32 %s128, 1
    %p132 = scmp.eq.s32.totalorder %s14, 1
    %p133 = scmp.ne.s32.totalorder %s128, %s130
    %p134 = scmp.eq.s32.totalorder %s14, 0
    %p135 = por %p133, %p134
    %p136 = scmp.ne.s32.totalorder %s128, %s130
    %p137 = scmp.eq.s32.totalorder %s19, 1
    %p138 = por %p136, %p137
    %p139 = scmp.ne.s32.totalorder %s130, %s131
    %p140 = scmp.eq.s32.totalorder %s19, 0
    %p141 = por %p139, %p140
    %p142 = scmp.ne.s32.totalorder %s130, %s131
    %p143 = scmp.eq.s32.totalorder %s20, 1
    %p144 = por %p142, %p143
    %p146 = scmp.ne.s32.totalorder %s131, %s145
    %p147 = scmp.eq.s32.totalorder %s20, 0
    %p148 = por %p146, %p147
    %s150 = sadd.s32 %s149, 1
    %p153 = scmp.eq.s32.totalorder %s14, 1
    %p154 = scmp.ne.s32.totalorder %s149, %s151
    %p155 = scmp.eq.s32.totalorder %s14, 0
    %p156 = por %p154, %p155
    %p157 = scmp.ne.s32.totalorder %s149, %s151
    %p158 = scmp.eq.s32.totalorder %s19, 1
    %p159 = por %p157, %p158
    %p160 = scmp.ne.s32.totalorder %s151, %s152
    %p161 = scmp.eq.s32.totalorder %s19, 0
    %p162 = por %p160, %p161
    %p163 = scmp.ne.s32.totalorder %s151, %s152
    %p164 = scmp.eq.s32.totalorder %s20, 1
    %p165 = por %p163, %p164
    %p167 = scmp.ne.s32.totalorder %s152, %s166
    %p168 = scmp.eq.s32.totalorder %s20, 0
    %p169 = por %p167, %p168
    %s170 = ssub.s32 %s21, %s33
    %s171 = ssub.s32 %s22, %s29
    %s172 = sor.u32 %s170, %s171
    %p173 = scmp.eq.s32.totalorder %s172, 0
    %s175 = sadd.s32 %s174, 1
    %s176 = scalar_select %p173, %s174, %s175
    %p179 = pneg %p173
    %p180 = scmp.eq.s32.totalorder %s14, 1
    %p181 = por %p179, %p180
    %p182 = scmp.ne.s32.totalorder %s174, %s177
    %p183 = scmp.eq.s32.totalorder %s14, 0
    %p184 = por %p182, %p183
    %p185 = scmp.ne.s32.totalorder %s174, %s177
    %p186 = scmp.eq.s32.totalorder %s19, 1
    %p187 = por %p185, %p186
    %p188 = scmp.ne.s32.totalorder %s177, %s178
    %p189 = scmp.eq.s32.totalorder %s19, 0
    %p190 = por %p188, %p189
    %p191 = scmp.ne.s32.totalorder %s177, %s178
    %p192 = scmp.eq.s32.totalorder %s20, 1
    %p193 = por %p191, %p192
    %p195 = scmp.ne.s32.totalorder %s178, %s194
    %p196 = scmp.eq.s32.totalorder %s20, 0
    %p197 = por %p195, %p196
    %s198 = ssub.s32 %s21, %s33
    %s199 = ssub.s32 %s22, %s29
    %s200 = sor.u32 %s198, %s199
    %p201 = scmp.eq.s32.totalorder %s200, 0
    %s203 = sadd.s32 %s202, 1
    %s204 = scalar_select %p201, %s202, %s203
    %p207 = pneg %p201
    %p208 = scmp.eq.s32.totalorder %s14, 1
    %p209 = por %p207, %p208
    %p210 = scmp.ne.s32.totalorder %s202, %s205
    %p211 = scmp.eq.s32.totalorder %s14, 0
    %p212 = por %p210, %p211
    %p213 = scmp.ne.s32.totalorder %s202, %s205
    %p214 = scmp.eq.s32.totalorder %s19, 1
    %p215 = por %p213, %p214
    %p216 = scmp.ne.s32.totalorder %s205, %s206
    %p217 = scmp.eq.s32.totalorder %s19, 0
    %p218 = por %p216, %p217
    %p219 = scmp.ne.s32.totalorder %s205, %s206
    %p220 = scmp.eq.s32.totalorder %s20, 1
    %p221 = por %p219, %p220
    %p223 = scmp.ne.s32.totalorder %s206, %s222
    %p224 = scmp.eq.s32.totalorder %s20, 0
    %p225 = por %p223, %p224
    %s226 = ssub.s32 %s21, %s33
    %s227 = ssub.s32 %s22, %s29
    %s228 = sor.u32 %s226, %s227
    %p229 = scmp.eq.s32.totalorder %s228, 0
    %s231 = sadd.s32 %s230, 1
    %s232 = scalar_select %p229, %s230, %s231
    %p235 = pneg %p229
    %p236 = scmp.eq.s32.totalorder %s14, 1
    %p237 = por %p235, %p236
    %p238 = scmp.ne.s32.totalorder %s230, %s233
    %p239 = scmp.eq.s32.totalorder %s14, 0
    %p240 = por %p238, %p239
    %p241 = scmp.ne.s32.totalorder %s230, %s233
    %p242 = scmp.eq.s32.totalorder %s19, 1
    %p243 = por %p241, %p242
    %p244 = scmp.ne.s32.totalorder %s233, %s234
    %p245 = scmp.eq.s32.totalorder %s19, 0
    %p246 = por %p244, %p245
    %p247 = scmp.ne.s32.totalorder %s233, %s234
    %p248 = scmp.eq.s32.totalorder %s20, 1
    %p249 = por %p247, %p248
    %p251 = scmp.ne.s32.totalorder %s234, %s250
    %p252 = scmp.eq.s32.totalorder %s20, 0
    %p253 = por %p251, %p252
    %p254 = scmp.le.s32.totalorder 1, %s14
    %p255 = scmp.lt.s32.totalorder %s14, 3
    %p256 = pnand %p254, %p255
    %p257 = pneg %p256
    // Predicated region
    $region9: #{decoder_block_forward.3} parent=5 // pred_check
      _
    $region10: #{decoder_block_forward.3} parent=5 // pred_check_branch
      %259 = sbr.rel (%p256) target = $region12
    $region11: #{decoder_block_forward.3} parent=5 // pred_region
      %s260 = ssub.s32 %s14, 1
      // Predicated region
      $region13: #{decoder_block_forward.3} parent=11 // pred_check
        %p261 = pneg %p141
      $region14: #{decoder_block_forward.3} parent=11 // pred_check_branch
        %263 = sbr.rel (%p261) target = $region16
      $region15: #{decoder_block_forward.3} parent=11 // pred_region
        _
      $region16: #{decoder_block_forward.3} parent=11 // pred_fallthru
        _
      // Predicated region
      $region17: #{decoder_block_forward.3} parent=11 // pred_check
        %p264 = pneg %p162
      $region18: #{decoder_block_forward.3} parent=11 // pred_check_branch
        %266 = sbr.rel (%p264) target = $region20
      $region19: #{decoder_block_forward.3} parent=11 // pred_region
        _
      $region20: #{decoder_block_forward.3} parent=11 // pred_fallthru
        _
    $region12: #{decoder_block_forward.3} parent=5 // pred_fallthru
      _
    %p267 = scmp.lt.s32.totalorder %s14, 2
    // Predicated region
    $region21: #{decoder_block_forward.3} parent=5 // pred_check
      %p268 = pneg %p267
    $region22: #{decoder_block_forward.3} parent=5 // pred_check_branch
      %270 = sbr.rel (%p268) target = $region24
    $region23: #{decoder_block_forward.3} parent=5 // pred_region
      // Predicated region
      $region25: #{decoder_block_forward.3} parent=23 // pred_check
        %p271 = pneg %p48
      $region26: #{decoder_block_forward.3} parent=23 // pred_check_branch
        %273 = sbr.rel (%p271) target = $region28
      $region27: #{decoder_block_forward.3} parent=23 // pred_region
        %s274 = smul.u32 14, %s22
        %s275 = ssub.s32 16, %s274
        %p276 = scmp.lt.s32.totalorder %s275, 14
        %s277 = scalar_select %p276, %s275, 14
        %s278 = smul.u32 64, %s277
        %s279 = smul.u32 %s278, 2
        %p280 = scmp.lt.s32.totalorder %s21, 1
        %s281 = scalar_select %p280, %s21, 1
        %p282 = scmp.lt.s32.totalorder %s274, 15
        %s283 = scalar_select %p282, %s274, 15
        %s284 = smul.addr %s283, 2
        %s285 = smul.addr %s281, 32
        %s286 = sadd.s32 %s284, %s285
        %s287 = smul.addr %s286, 4
        %s288 = scalar_lea.vmem %s0, %s287
        %s289 = smul.u32 14, %s22
        %s290 = ssub.s32 16, %s289
        %p291 = scmp.lt.s32.totalorder %s290, 14
        %s292 = scalar_select %p291, %s290, 14
        %s293 = smul.u32 64, %s292
        %s294 = smul.u32 %s293, 2
      $region28: #{decoder_block_forward.3} parent=23 // pred_fallthru
        _
      // Predicated region
      $region29: #{decoder_block_forward.3} parent=23 // pred_check
        %p295 = pneg %p80
      $region30: #{decoder_block_forward.3} parent=23 // pred_check_branch
        %297 = sbr.rel (%p295) target = $region32
      $region31: #{decoder_block_forward.3} parent=23 // pred_region
        %s298 = sadd.s32 %s22, 1
        %s299 = smul.u32 %s298, 14
        %p300 = scmp.lt.s32.totalorder %s21, 1
        %s301 = scalar_select %p300, %s21, 1
        %p302 = scmp.lt.s32.totalorder %s299, 15
        %s303 = scalar_select %p302, %s299, 15
        %s304 = smul.addr %s303, 2
        %s305 = smul.addr %s301, 32
        %s306 = sadd.s32 %s304, %s305
        %s307 = smul.addr %s306, 4
        %s308 = scalar_lea.vmem %s1, %s307
        %s309 = sadd.s32 %s22, 1
        %s310 = smul.u32 %s309, 14
      $region32: #{decoder_block_forward.3} parent=23 // pred_fallthru
        _
      // Predicated region
      $region33: #{decoder_block_forward.3} parent=23 // pred_check
        %p311 = pneg %p114
      $region34: #{decoder_block_forward.3} parent=23 // pred_check_branch
        %313 = sbr.rel (%p311) target = $region36
      $region35: #{decoder_block_forward.3} parent=23 // pred_region
        %s314 = sadd.s32 %s22, 1
        %s315 = smul.u32 %s314, 14
        %s316 = sadd.s32 %s315, 1
        %p317 = scmp.lt.s32.totalorder %s21, 1
        %s318 = scalar_select %p317, %s21, 1
        %p319 = scmp.lt.s32.totalorder %s316, 15
        %s320 = scalar_select %p319, %s316, 15
        %s321 = smul.addr %s320, 2
        %s322 = smul.addr %s318, 32
        %s323 = sadd.s32 %s321, %s322
        %s324 = smul.addr %s323, 4
        %s325 = scalar_lea.vmem %s2, %s324
        %s326 = sadd.s32 %s22, 1
        %s327 = smul.u32 %s326, 14
        %s328 = sadd.s32 %s327, 1
      $region36: #{decoder_block_forward.3} parent=23 // pred_fallthru
        _
    $region24: #{decoder_block_forward.3} parent=5 // pred_fallthru
      _
    %p329 = scmp.le.s32.totalorder 1, %s14
    %p330 = scmp.lt.s32.totalorder %s14, 3
    %p331 = pnand %p329, %p330
    %p332 = pneg %p331
    // Predicated region
    $region37: #{decoder_block_forward.3} parent=5 // pred_check
      _
    $region38: #{decoder_block_forward.3} parent=5 // pred_check_branch
      %334 = sbr.rel (%p331) target = $region40
    $region39: #{decoder_block_forward.3} parent=5 // pred_region
      %s335 = ssub.s32 %s14, 1
      %s336 = smul.u32 14, %s24
      %s337 = ssub.s32 16, %s336
      %p338 = scmp.lt.s32.totalorder %s337, 14
      %s339 = scalar_select %p338, %s337, 14
      %s340 = smul.u32 64, %s339
      %s341 = smul.u32 %s340, 2
      %p342 = scmp.lt.s32.totalorder %s23, 1
      %s343 = scalar_select %p342, %s23, 1
      %p344 = scmp.lt.s32.totalorder %s336, 15
      %s345 = scalar_select %p344, %s336, 15
      %s346 = smul.addr %s345, 2
      %s347 = smul.addr %s343, 32
      %s348 = sadd.s32 %s346, %s347
      %s349 = smul.addr %s348, 4
      %s350 = scalar_lea.vmem %s0, %s349
      %p351 = pneg %p54
      %p352 = pneg %p51
      %s353 = sadd.s32 %s24, 1
      %s354 = smul.u32 %s353, 14
      %p355 = scmp.lt.s32.totalorder %s23, 1
      %s356 = scalar_select %p355, %s23, 1
      %p357 = scmp.lt.s32.totalorder %s354, 15
      %s358 = scalar_select %p357, %s354, 15
      %s359 = smul.addr %s358, 2
      %s360 = smul.addr %s356, 32
      %s361 = sadd.s32 %s359, %s360
      %s362 = smul.addr %s361, 4
      %s363 = scalar_lea.vmem %s1, %s362
      %p364 = pneg %p86
      %p365 = pneg %p83
      %s366 = sadd.s32 %s24, 1
      %s367 = smul.u32 %s366, 14
      %s368 = sadd.s32 %s367, 1
      %p369 = scmp.lt.s32.totalorder %s23, 1
      %s370 = scalar_select %p369, %s23, 1
      %p371 = scmp.lt.s32.totalorder %s368, 15
      %s372 = scalar_select %p371, %s368, 15
      %s373 = smul.addr %s372, 2
      %s374 = smul.addr %s370, 32
      %s375 = sadd.s32 %s373, %s374
      %s376 = smul.addr %s375, 4
      %s377 = scalar_lea.vmem %s2, %s376
      %p378 = pneg %p120
      %p379 = pneg %p117
      %p380 = pneg %p141
      %p381 = pneg %p138
      %p382 = pneg %p162
      %p383 = pneg %p159
      %p384 = pneg %p190
      %p385 = pneg %p187
      %s386 = smul.u32 14, %s24
      %p387 = scmp.lt.s32.totalorder %s23, 1
      %s388 = scalar_select %p387, %s23, 1
      %p389 = scmp.lt.s32.totalorder %s386, 13
      %s390 = scalar_select %p389, %s386, 13
      %s391 = smul.addr %s390, 2
      %s392 = smul.addr %s388, 28
      %s393 = sadd.s32 %s391, %s392
      %s394 = smul.addr %s393, 4
      %s395 = scalar_lea.vmem %s5, %s394
      %p396 = pneg %p218
      %p397 = pneg %p215
      %p398 = scmp.lt.s32.totalorder %s23, 1
      %s399 = scalar_select %p398, %s23, 1
      %p400 = scmp.lt.s32.totalorder %s24, 0
      %s401 = scalar_select %p400, %s24, 0
      %s402 = sadd.s32 %s401, %s399
      %s403 = scalar_lea.vmem %s6, %s402
      %p404 = pneg %p246
      %p405 = pneg %p243
      %p406 = scmp.lt.s32.totalorder %s23, 1
      %s407 = scalar_select %p406, %s23, 1
      %p408 = scmp.lt.s32.totalorder %s24, 0
      %s409 = scalar_select %p408, %s24, 0
      %s410 = sadd.s32 %s409, %s407
      %s411 = scalar_lea.vmem %s7, %s410
      %s412 = smul.u32 14, %s24
      %s413 = ssub.s32 16, %s412
      %p414 = scmp.lt.s32.totalorder %s413, 14
      %s415 = scalar_select %p414, %s413, 14
      %s416 = smul.u32 64, %s415
      %s417 = smul.u32 %s416, 2
      %p418 = scmp.lt.s32.totalorder %s23, 1
      %s419 = scalar_select %p418, %s23, 1
      %p420 = scmp.lt.s32.totalorder %s412, 15
      %s421 = scalar_select %p420, %s412, 15
      %s422 = smul.addr %s421, 2
      %s423 = smul.addr %s419, 32
      %s424 = sadd.s32 %s422, %s423
      %s425 = smul.addr %s424, 4
      %s426 = scalar_lea.vmem %s0, %s425
      %s427 = smul.u32 14, %s24
      %s428 = ssub.s32 16, %s427
      %p429 = scmp.lt.s32.totalorder %s428, 14
      %s430 = scalar_select %p429, %s428, 14
      %s431 = smul.u32 64, %s430
      %s432 = smul.u32 %s431, 2
      %s433 = sadd.s32 %s24, 1
      %s434 = smul.u32 %s433, 14
      %p435 = scmp.lt.s32.totalorder %s23, 1
      %s436 = scalar_select %p435, %s23, 1
      %p437 = scmp.lt.s32.totalorder %s434, 15
      %s438 = scalar_select %p437, %s434, 15
      %s439 = smul.addr %s438, 2
      %s440 = smul.addr %s436, 32
      %s441 = sadd.s32 %s439, %s440
      %s442 = smul.addr %s441, 4
      %s443 = scalar_lea.vmem %s1, %s442
      %s444 = sadd.s32 %s24, 1
      %s445 = smul.u32 %s444, 14
      %s446 = sadd.s32 %s24, 1
      %s447 = smul.u32 %s446, 14
      %s448 = sadd.s32 %s447, 1
      %p449 = scmp.lt.s32.totalorder %s23, 1
      %s450 = scalar_select %p449, %s23, 1
      %p451 = scmp.lt.s32.totalorder %s448, 15
      %s452 = scalar_select %p451, %s448, 15
      %s453 = smul.addr %s452, 2
      %s454 = smul.addr %s450, 32
      %s455 = sadd.s32 %s453, %s454
      %s456 = smul.addr %s455, 4
      %s457 = scalar_lea.vmem %s2, %s456
      %s458 = sadd.s32 %s24, 1
      %s459 = smul.u32 %s458, 14
      %s460 = sadd.s32 %s459, 1
      %s461 = smul.u32 14, %s24
      %p462 = scmp.lt.s32.totalorder %s23, 1
      %s463 = scalar_select %p462, %s23, 1
      %p464 = scmp.lt.s32.totalorder %s461, 13
      %s465 = scalar_select %p464, %s461, 13
      %s466 = smul.addr %s465, 2
      %s467 = smul.addr %s463, 28
      %s468 = sadd.s32 %s466, %s467
      %s469 = smul.addr %s468, 4
      %s470 = scalar_lea.vmem %s5, %s469
      %s471 = smul.u32 14, %s24
      %p472 = scmp.lt.s32.totalorder %s23, 1
      %s473 = scalar_select %p472, %s23, 1
      %p474 = scmp.lt.s32.totalorder %s24, 0
      %s475 = scalar_select %p474, %s24, 0
      %s476 = sadd.s32 %s475, %s473
      %s477 = scalar_lea.vmem %s6, %s476
      %p478 = scmp.lt.s32.totalorder %s23, 1
      %s479 = scalar_select %p478, %s23, 1
      %p480 = scmp.lt.s32.totalorder %s24, 0
      %s481 = scalar_select %p480, %s24, 0
      %s482 = sadd.s32 %s481, %s479
      %s483 = scalar_lea.vmem %s7, %s482
      %v485 = vld [vmem:[%s426] sm:$0xf]
      %v486 = vld [vmem:[%s426 + $0x4] sm:$0xf]
      %v487 = vld [vmem:[%s426 + $0x8] sm:$0xf]
      %v488 = vld [vmem:[%s426 + $0xc] sm:$0xf]
      %v489 = vld [vmem:[%s426 + $0x10] sm:$0xf]
      %v490 = vld [vmem:[%s426 + $0x14] sm:$0xf]
      %v491 = vld [vmem:[%s426 + $0x18] sm:$0xf]
      %v492 = vld [vmem:[%s426 + $0x1c] sm:$0xf]
      %v493 = vld [vmem:[%s426 + $0x20] sm:$0xf]
      %v494 = vld [vmem:[%s426 + $0x24] sm:$0xf]
      %v495 = vld [vmem:[%s426 + $0x28] sm:$0xf]
      %v496 = vld [vmem:[%s426 + $0x2c] sm:$0xf]
      %v497 = vld [vmem:[%s426 + $0x30] sm:$0xf]
      %v498 = vld [vmem:[%s426 + $0x34] sm:$0xf]
      %v499 = vld [vmem:[%s426 + $0x38] sm:$0xf]
      %v500 = vld [vmem:[%s426 + $0x3c] sm:$0xf]
      %v501 = vld [vmem:[%s426 + $0x40] sm:$0xf]
      %v502 = vld [vmem:[%s426 + $0x44] sm:$0xf]
      %v503 = vld [vmem:[%s426 + $0x48] sm:$0xf]
      %v504 = vld [vmem:[%s426 + $0x4c] sm:$0xf]
      %v505 = vld [vmem:[%s426 + $0x50] sm:$0xf]
      %v506 = vld [vmem:[%s426 + $0x54] sm:$0xf]
      %v507 = vld [vmem:[%s426 + $0x58] sm:$0xf]
      %v508 = vld [vmem:[%s426 + $0x5c] sm:$0xf]
      %v509 = vld [vmem:[%s426 + $0x60] sm:$0xf]
      %v510 = vld [vmem:[%s426 + $0x64] sm:$0xf]
      %v511 = vld [vmem:[%s426 + $0x68] sm:$0xf]
      %v512 = vld [vmem:[%s426 + $0x6c] sm:$0xf]
      %v513 = vld [vmem:[%s443] sm:$0xf]
      %v514 = vld [vmem:[%s443 + $0x4] sm:$0xf]
      %v515 = vld [vmem:[%s457] sm:$0xf]
      %v516 = vld [vmem:[%s457 + $0x4] sm:$0xf]
      %v545 = vunpack.c.l.b16 %v485
      %v546 = vunpack.c.l.b16 %v486
      %v547 = vunpack.c.l.b16 %v487
      %v548 = vunpack.c.l.b16 %v488
      %v549 = vunpack.c.l.b16 %v489
      %v550 = vunpack.c.l.b16 %v490
      %v551 = vunpack.c.l.b16 %v491
      %v552 = vunpack.c.l.b16 %v492
      %v553 = vunpack.c.l.b16 %v493
      %v554 = vunpack.c.l.b16 %v494
      %v555 = vunpack.c.l.b16 %v495
      %v556 = vunpack.c.l.b16 %v496
      %v557 = vunpack.c.l.b16 %v497
      %v558 = vunpack.c.l.b16 %v498
      %v559 = vunpack.c.l.b16 %v499
      %v560 = vunpack.c.l.b16 %v500
      %v561 = vunpack.c.l.b16 %v501
      %v562 = vunpack.c.l.b16 %v502
      %v563 = vunpack.c.l.b16 %v503
      %v564 = vunpack.c.l.b16 %v504
      %v565 = vunpack.c.l.b16 %v505
      %v566 = vunpack.c.l.b16 %v506
      %v567 = vunpack.c.l.b16 %v507
      %v568 = vunpack.c.l.b16 %v508
      %v569 = vunpack.c.l.b16 %v509
      %v570 = vunpack.c.l.b16 %v510
      %v571 = vunpack.c.l.b16 %v511
      %v572 = vunpack.c.l.b16 %v512
      %v573 = vpack.c.b16 %v546, %v545
      %v574 = vpack.c.b16 %v548, %v547
      %v575 = vpack.c.b16 %v550, %v549
      %v576 = vpack.c.b16 %v552, %v551
      %v577 = vpack.c.b16 %v554, %v553
      %v578 = vpack.c.b16 %v556, %v555
      %v579 = vpack.c.b16 %v558, %v557
      %v580 = vpack.c.b16 %v560, %v559
      %v581 = vpack.c.b16 %v562, %v561
      %v582 = vpack.c.b16 %v564, %v563
      %v583 = vpack.c.b16 %v566, %v565
      %v584 = vpack.c.b16 %v568, %v567
      %v585 = vpack.c.b16 %v570, %v569
      %v586 = vpack.c.b16 %v572, %v571
      %v603 = vunpack.c.l.b16 %v513
      %v604 = vunpack.c.l.b16 %v514
      %v605 = vpack.c.b16 %v604, %v603
      %v609 = vunpack.c.l.b16 %v515
      %v610 = vunpack.c.l.b16 %v516
      %v611 = vpack.c.b16 %v610, %v609
      %v613 = vld [vmem:[%s3] sm:$0xf]
      %v614 = vld [vmem:[%s3 + $0x4] sm:$0xf]
      %v615 = vld [vmem:[%s3 + $0x8] sm:$0xf]
      %v616 = vld [vmem:[%s3 + $0xc] sm:$0xf]
      %v617 = vld [vmem:[%s3 + $0x10] sm:$0xf]
      %v618 = vld [vmem:[%s3 + $0x14] sm:$0xf]
      %v619 = vld [vmem:[%s3 + $0x18] sm:$0xf]
      %v620 = vld [vmem:[%s3 + $0x1c] sm:$0xf]
      %v621 = vld [vmem:[%s3 + $0x20] sm:$0xf]
      %v622 = vld [vmem:[%s3 + $0x24] sm:$0xf]
      %v623 = vld [vmem:[%s3 + $0x28] sm:$0xf]
      %v624 = vld [vmem:[%s3 + $0x2c] sm:$0xf]
      %v625 = vld [vmem:[%s3 + $0x30] sm:$0xf]
      %v626 = vld [vmem:[%s3 + $0x34] sm:$0xf]
      %v627 = vld [vmem:[%s3 + $0x38] sm:$0xf]
      %v628 = vld [vmem:[%s3 + $0x3c] sm:$0xf]
      %v645 = vunpack.c.l.b16 %v613
      %v646 = vunpack.c.l.b16 %v614
      %v647 = vunpack.c.l.b16 %v615
      %v648 = vunpack.c.l.b16 %v616
      %v649 = vunpack.c.l.b16 %v617
      %v650 = vunpack.c.l.b16 %v618
      %v651 = vunpack.c.l.b16 %v619
      %v652 = vunpack.c.l.b16 %v620
      %v653 = vunpack.c.l.b16 %v621
      %v654 = vunpack.c.l.b16 %v622
      %v655 = vunpack.c.l.b16 %v623
      %v656 = vunpack.c.l.b16 %v624
      %v657 = vunpack.c.l.b16 %v625
      %v658 = vunpack.c.l.b16 %v626
      %v659 = vunpack.c.l.b16 %v627
      %v660 = vunpack.c.l.b16 %v628
      %v661 = vpack.c.b16 %v646, %v645
      %v662 = vpack.c.b16 %v648, %v647
      %v663 = vpack.c.b16 %v650, %v649
      %v664 = vpack.c.b16 %v652, %v651
      %v665 = vpack.c.b16 %v654, %v653
      %v666 = vpack.c.b16 %v656, %v655
      %v667 = vpack.c.b16 %v658, %v657
      %v668 = vpack.c.b16 %v660, %v659
      %677 = vmatprep.subr.bf16.mxu0 0
      %678 = vmatpush1.bf16.msra.mxu0 %v661
      %679 = vmatprep.subr.bf16.mxu0 0
      %680 = vmatpush1.bf16.msra.mxu0 %v662
      %681 = vmatprep.subr.bf16.mxu0 0
      %682 = vmatpush1.bf16.msra.mxu0 %v663
      %683 = vmatprep.subr.bf16.mxu0 0
      %684 = vmatpush1.bf16.msra.mxu0 %v664
      %685 = vmatprep.subr.bf16.mxu0 0
      %686 = vmatpush1.bf16.msra.mxu0 %v665
      %687 = vmatprep.subr.bf16.mxu0 0
      %688 = vmatpush1.bf16.msra.mxu0 %v666
      %689 = vmatprep.subr.bf16.mxu0 0
      %690 = vmatpush1.bf16.msra.mxu0 %v667
      %691 = vmatprep.subr.bf16.mxu0 0
      %692 = vmatpush1.bf16.msra.mxu0 %v668
      %693 = vmatprep.subr.bf16.mxu0 0
      %694 = vmatpush1.bf16.msra.mxu0 0
      %695 = vmatprep.subr.bf16.mxu0 0
      %696 = vmatpush1.bf16.msra.mxu0 0
      %697 = vmatprep.subr.bf16.mxu0 0
      %698 = vmatpush1.bf16.msra.mxu0 0
      %699 = vmatprep.subr.bf16.mxu0 0
      %700 = vmatpush1.bf16.msra.mxu0 0
      %701 = vmatprep.subr.bf16.mxu0 0
      %702 = vmatpush1.bf16.msra.mxu0 0
      %703 = vmatprep.subr.bf16.mxu0 0
      %704 = vmatpush1.bf16.msra.mxu0 0
      %705 = vmatprep.subr.bf16.mxu0 0
      %706 = vmatpush1.bf16.msra.mxu0 0
      %707 = vmatprep.subr.bf16.mxu0 0
      %708 = vmatpush1.bf16.msra.mxu0 0
      %709 = vmatprep.mubr.bf16.mxu0 0
      %710 = vmatmul.mubr.bf16.gmra.mrb[0].mxu0 %v573
      %v711 = vpop.f32.mrb[0].mxu0
      %v712 = vadd.f32 0.0, %v711
      %v713 = vpop.f32.mrb[0].mxu0
      %v714 = vpop.f32.mrb[0].mxu0
      %v715 = vadd.f32 0.0, %v714
      %v716 = vpop.f32.mrb[0].mxu0
      %717 = vmatprep.mubr.bf16.mxu0 0
      %718 = vmatmul.mubr.bf16.gmra.mrb[0].mxu0 %v574
      %v719 = vpop.f32.mrb[0].mxu0
      %v720 = vadd.f32 0.0, %v719
      %v721 = vpop.f32.mrb[0].mxu0
      %v722 = vpop.f32.mrb[0].mxu0
      %v723 = vadd.f32 0.0, %v722
      %v724 = vpop.f32.mrb[0].mxu0
      %725 = vmatprep.mubr.bf16.mxu0 0
      %726 = vmatmul.mubr.bf16.gmra.mrb[0].mxu0 %v575
      %v727 = vpop.f32.mrb[0].mxu0
      %v728 = vadd.f32 0.0, %v727
      %v729 = vpop.f32.mrb[0].mxu0
      %v730 = vpop.f32.mrb[0].mxu0
      %v731 = vadd.f32 0.0, %v730
      %v732 = vpop.f32.mrb[0].mxu0
      %733 = vmatprep.mubr.bf16.mxu0 0
      %734 = vmatmul.mubr.bf16.gmra.mrb[0].mxu0 %v576
      %v735 = vpop.f32.mrb[0].mxu0
      %v736 = vadd.f32 0.0, %v735
      %v737 = vpop.f32.mrb[0].mxu0
      %v738 = vpop.f32.mrb[0].mxu0
      %v739 = vadd.f32 0.0, %v738
      %v740 = vpop.f32.mrb[0].mxu0
      %741 = vmatprep.mubr.bf16.mxu0 0
      %742 = vmatmul.mubr.bf16.gmra.mrb[0].mxu0 %v577
      %v743 = vpop.f32.mrb[0].mxu0
      %v744 = vadd.f32 0.0, %v743
      %v745 = vpop.f32.mrb[0].mxu0
      %v746 = vpop.f32.mrb[0].mxu0
      %v747 = vadd.f32 0.0, %v746
      %v748 = vpop.f32.mrb[0].mxu0
      %749 = vmatprep.mubr.bf16.mxu0 0
      %750 = vmatmul.mubr.bf16.gmra.mrb[0].mxu0 %v578
      %v751 = vpop.f32.mrb[0].mxu0
      %v752 = vadd.f32 0.0, %v751
      %v753 = vpop.f32.mrb[0].mxu0
      %v754 = vpop.f32.mrb[0].mxu0
      %v755 = vadd.f32 0.0, %v754
      %v756 = vpop.f32.mrb[0].mxu0
      %757 = vmatprep.mubr.bf16.mxu0 0
      %758 = vmatmul.mubr.bf16.gmra.mrb[0].mxu0 %v579
      %v759 = vpop.f32.mrb[0].mxu0
      %v760 = vadd.f32 0.0, %v759
      %v761 = vpop.f32.mrb[0].mxu0
      %v762 = vpop.f32.mrb[0].mxu0
      %v763 = vadd.f32 0.0, %v762
      %v764 = vpop.f32.mrb[0].mxu0
      %765 = vmatprep.mubr.bf16.mxu0 0
      %766 = vmatmul.mubr.bf16.gmra.mrb[0].mxu0 %v580
      %v767 = vpop.f32.mrb[0].mxu0
      %v768 = vadd.f32 0.0, %v767
      %v769 = vpop.f32.mrb[0].mxu0
      %v770 = vpop.f32.mrb[0].mxu0
      %v771 = vadd.f32 0.0, %v770
      %v772 = vpop.f32.mrb[0].mxu0
      %773 = vmatprep.mubr.bf16.mxu0 0
      %774 = vmatmul.mubr.bf16.gmra.mrb[0].mxu0 %v581
      %v775 = vpop.f32.mrb[0].mxu0
      %v776 = vadd.f32 0.0, %v775
      %v777 = vpop.f32.mrb[0].mxu0
      %v778 = vpop.f32.mrb[0].mxu0
      %v779 = vadd.f32 0.0, %v778
      %v780 = vpop.f32.mrb[0].mxu0
      %781 = vmatprep.mubr.bf16.mxu0 0
      %782 = vmatmul.mubr.bf16.gmra.mrb[0].mxu0 %v582
      %v783 = vpop.f32.mrb[0].mxu0
      %v784 = vadd.f32 0.0, %v783
      %v785 = vpop.f32.mrb[0].mxu0
      %v786 = vpop.f32.mrb[0].mxu0
      %v787 = vadd.f32 0.0, %v786
      %v788 = vpop.f32.mrb[0].mxu0
      %789 = vmatprep.mubr.bf16.mxu0 0
      %790 = vmatmul.mubr.bf16.gmra.mrb[0].mxu0 %v583
      %v791 = vpop.f32.mrb[0].mxu0
      %v792 = vadd.f32 0.0, %v791
      %v793 = vpop.f32.mrb[0].mxu0
      %v794 = vpop.f32.mrb[0].mxu0
      %v795 = vadd.f32 0.0, %v794
      %v796 = vpop.f32.mrb[0].mxu0
      %797 = vmatprep.mubr.bf16.mxu0 0
      %798 = vmatmul.mubr.bf16.gmra.mrb[0].mxu0 %v584
      %v799 = vpop.f32.mrb[0].mxu0
      %v800 = vadd.f32 0.0, %v799
      %v801 = vpop.f32.mrb[0].mxu0
      %v802 = vpop.f32.mrb[0].mxu0
      %v803 = vadd.f32 0.0, %v802
      %v804 = vpop.f32.mrb[0].mxu0
      %805 = vmatprep.mubr.bf16.mxu0 0
      %806 = vmatmul.mubr.bf16.gmra.mrb[0].mxu0 %v585
      %v807 = vpop.f32.mrb[0].mxu0
      %v808 = vadd.f32 0.0, %v807
      %v809 = vpop.f32.mrb[0].mxu0
      %v810 = vpop.f32.mrb[0].mxu0
      %v811 = vadd.f32 0.0, %v810
      %v812 = vpop.f32.mrb[0].mxu0
      %813 = vmatprep.mubr.bf16.mxu0 0
      %814 = vmatmul.mubr.bf16.gmra.mrb[0].mxu0 %v586
      %v815 = vpop.f32.mrb[0].mxu0
      %v816 = vadd.f32 0.0, %v815
      %v817 = vpop.f32.mrb[0].mxu0
      %v818 = vpop.f32.mrb[0].mxu0
      %v819 = vadd.f32 0.0, %v818
      %v820 = vpop.f32.mrb[0].mxu0
      %821 = vdwg.mxu0
      %822 = vst [vmem:[#allocation2] sm:$0xff] %v712
      %823 = vst [vmem:[#allocation2 + $0x8] sm:$0xff] %v715
      %824 = vst [vmem:[#allocation2 + $0x10] sm:$0xff] %v720
      %825 = vst [vmem:[#allocation2 + $0x18] sm:$0xff] %v723
      %826 = vst [vmem:[#allocation2 + $0x20] sm:$0xff] %v728
      %827 = vst [vmem:[#allocation2 + $0x28] sm:$0xff] %v731
      %828 = vst [vmem:[#allocation2 + $0x30] sm:$0xff] %v736
      %829 = vst [vmem:[#allocation2 + $0x38] sm:$0xff] %v739
      %830 = vst [vmem:[#allocation2 + $0x40] sm:$0xff] %v744
      %831 = vst [vmem:[#allocation2 + $0x48] sm:$0xff] %v747
      %832 = vst [vmem:[#allocation2 + $0x50] sm:$0xff] %v752
      %833 = vst [vmem:[#allocation2 + $0x58] sm:$0xff] %v755
      %834 = vst [vmem:[#allocation2 + $0x60] sm:$0xff] %v760
      %835 = vst [vmem:[#allocation2 + $0x68] sm:$0xff] %v763
      %836 = vst [vmem:[#allocation2 + $0x70] sm:$0xff] %v768
      %837 = vst [vmem:[#allocation2 + $0x78] sm:$0xff] %v771
      %838 = vst [vmem:[#allocation2 + $0x80] sm:$0xff] %v776
      %839 = vst [vmem:[#allocation2 + $0x88] sm:$0xff] %v779
      %840 = vst [vmem:[#allocation2 + $0x90] sm:$0xff] %v784
      %841 = vst [vmem:[#allocation2 + $0x98] sm:$0xff] %v787
      %842 = vst [vmem:[#allocation2 + $0xa0] sm:$0xff] %v792
      %843 = vst [vmem:[#allocation2 + $0xa8] sm:$0xff] %v795
      %844 = vst [vmem:[#allocation2 + $0xb0] sm:$0xff] %v800
      %845 = vst [vmem:[#allocation2 + $0xb8] sm:$0xff] %v803
      %846 = vst [vmem:[#allocation2 + $0xc0] sm:$0xff] %v808
      %847 = vst [vmem:[#allocation2 + $0xc8] sm:$0xff] %v811
      %848 = vst [vmem:[#allocation2 + $0xd0] sm:$0xff] %v816
      %849 = vst [vmem:[#allocation2 + $0xd8] sm:$0xff] %v819
      %v850 = vld [vmem:[#allocation2] sm:$0xff]
      %v851 = vld [vmem:[#allocation2 + $0x8] sm:$0xff]
      %v852 = vld [vmem:[#allocation2 + $0x10] sm:$0xff]
      %v853 = vld [vmem:[#allocation2 + $0x18] sm:$0xff]
      %v854 = vld [vmem:[#allocation2 + $0x20] sm:$0xff]
      %v855 = vld [vmem:[#allocation2 + $0x28] sm:$0xff]
      %v856 = vld [vmem:[#allocation2 + $0x30] sm:$0xff]
      %v857 = vld [vmem:[#allocation2 + $0x38] sm:$0xff]
      %v858 = vld [vmem:[#allocation2 + $0x40] sm:$0xff]
      %v859 = vld [vmem:[#allocation2 + $0x48] sm:$0xff]
      %v860 = vld [vmem:[#allocation2 + $0x50] sm:$0xff]
      %v861 = vld [vmem:[#allocation2 + $0x58] sm:$0xff]
      %v862 = vld [vmem:[#allocation2 + $0x60] sm:$0xff]
      %v863 = vld [vmem:[#allocation2 + $0x68] sm:$0xff]
      %v864 = vld [vmem:[#allocation2 + $0x70] sm:$0xff]
      %v865 = vld [vmem:[#allocation2 + $0x78] sm:$0xff]
      %v866 = vld [vmem:[#allocation2 + $0x80] sm:$0xff]
      %v867 = vld [vmem:[#allocation2 + $0x88] sm:$0xff]
      %v868 = vld [vmem:[#allocation2 + $0x90] sm:$0xff]
      %v869 = vld [vmem:[#allocation2 + $0x98] sm:$0xff]
      %v870 = vld [vmem:[#allocation2 + $0xa0] sm:$0xff]
      %v871 = vld [vmem:[#allocation2 + $0xa8] sm:$0xff]
      %v872 = vld [vmem:[#allocation2 + $0xb0] sm:$0xff]
      %v873 = vld [vmem:[#allocation2 + $0xb8] sm:$0xff]
      %v874 = vld [vmem:[#allocation2 + $0xc0] sm:$0xff]
      %v875 = vld [vmem:[#allocation2 + $0xc8] sm:$0xff]
      %v876 = vld [vmem:[#allocation2 + $0xd0] sm:$0xff]
      %v877 = vld [vmem:[#allocation2 + $0xd8] sm:$0xff]
      %s878 = scalar_lea.vmem %s3, 64
      %v879 = vld [vmem:[%s878] sm:$0xf]
      %v880 = vld [vmem:[%s878 + $0x4] sm:$0xf]
      %v881 = vld [vmem:[%s878 + $0x8] sm:$0xf]
      %v882 = vld [vmem:[%s878 + $0xc] sm:$0xf]
      %v883 = vld [vmem:[%s878 + $0x10] sm:$0xf]
      %v884 = vld [vmem:[%s878 + $0x14] sm:$0xf]
      %v885 = vld [vmem:[%s878 + $0x18] sm:$0xf]
      %v886 = vld [vmem:[%s878 + $0x1c] sm:$0xf]
      %v887 = vld [vmem:[%s878 + $0x20] sm:$0xf]
      %v888 = vld [vmem:[%s878 + $0x24] sm:$0xf]
      %v889 = vld [vmem:[%s878 + $0x28] sm:$0xf]
      %v890 = vld [vmem:[%s878 + $0x2c] sm:$0xf]
      %v891 = vld [vmem:[%s878 + $0x30] sm:$0xf]
      %v892 = vld [vmem:[%s878 + $0x34] sm:$0xf]
      %v893 = vld [vmem:[%s878 + $0x38] sm:$0xf]
      %v894 = vld [vmem:[%s878 + $0x3c] sm:$0xf]
      %vm895 = vsmask.f32 7424
      %v897 = vshrl.u32 %v573, 16
      %v899 = vshll.u32 %v573, 16
      %v901 = vrot.slane %v899, 1
      %v902 = vor.u32 %v897, %v901
      %v904 = vshll.u32 %v574, 16
      %v906 = vrot.slane %v904, 1
      %v907 = vsel %vm895, %v902, %v906
      %v908 = vshrl.u32 %v574, 16
      %v910 = vor.u32 %v908, %v906
      %v912 = vshll.u32 %v575, 16
      %v914 = vrot.slane %v912, 1
      %v915 = vsel %vm895, %v910, %v914
      %v916 = vshrl.u32 %v575, 16
      %v918 = vor.u32 %v916, %v914
      %v920 = vshll.u32 %v576, 16
      %v922 = vrot.slane %v920, 1
      %v923 = vsel %vm895, %v918, %v922
      %v924 = vshrl.u32 %v576, 16
      %v926 = vor.u32 %v924, %v922
      %v928 = vshll.u32 %v577, 16
      %v930 = vrot.slane %v928, 1
      %v931 = vsel %vm895, %v926, %v930
      %v932 = vshrl.u32 %v577, 16
      %v934 = vor.u32 %v932, %v930
      %v936 = vshll.u32 %v578, 16
      %v938 = vrot.slane %v936, 1
      %v939 = vsel %vm895, %v934, %v938
      %v940 = vshrl.u32 %v578, 16
      %v942 = vor.u32 %v940, %v938
      %v944 = vshll.u32 %v579, 16
      %v946 = vrot.slane %v944, 1
      %v947 = vsel %vm895, %v942, %v946
      %v948 = vshrl.u32 %v579, 16
      %v950 = vor.u32 %v948, %v946
      %v952 = vshll.u32 %v580, 16
      %v954 = vrot.slane %v952, 1
      %v955 = vsel %vm895, %v950, %v954
      %v956 = vshrl.u32 %v580, 16
      %v958 = vor.u32 %v956, %v954
      %v960 = vshll.u32 %v581, 16
      %v962 = vrot.slane %v960, 1
      %v963 = vsel %vm895, %v958, %v962
      %v964 = vshrl.u32 %v581, 16
      %v966 = vor.u32 %v964, %v962
      %v968 = vshll.u32 %v582, 16
      %v970 = vrot.slane %v968, 1
      %v971 = vsel %vm895, %v966, %v970
      %v972 = vshrl.u32 %v582, 16
      %v974 = vor.u32 %v972, %v970
      %v976 = vshll.u32 %v583, 16
      %v978 = vrot.slane %v976, 1
      %v979 = vsel %vm895, %v974, %v978
      %v980 = vshrl.u32 %v583, 16
      %v982 = vor.u32 %v980, %v978
      %v984 = vshll.u32 %v584, 16
      %v986 = vrot.slane %v984, 1
      %v987 = vsel %vm895, %v982, %v986
      %v988 = vshrl.u32 %v584, 16
      %v990 = vor.u32 %v988, %v986
      %v992 = vshll.u32 %v585, 16
      %v994 = vrot.slane %v992, 1
      %v995 = vsel %vm895, %v990, %v994
      %v996 = vshrl.u32 %v585, 16
      %v998 = vor.u32 %v996, %v994
      %v1000 = vshll.u32 %v586, 16
      %v1002 = vrot.slane %v1000, 1
      %v1003 = vsel %vm895, %v998, %v1002
      %v1004 = vshrl.u32 %v586, 16
      %v1006 = vor.u32 %v1004, %v1002
      %v1008 = vshll.u32 %v605, 16
      %v1010 = vrot.slane %v1008, 1
      %v1011 = vsel %vm895, %v1006, %v1010
      %v1042 = vunpack.c.l.b16 %v879
      %v1043 = vunpack.c.l.b16 %v880
      %v1044 = vunpack.c.l.b16 %v881
      %v1045 = vunpack.c.l.b16 %v882
      %v1046 = vunpack.c.l.b16 %v883
      %v1047 = vunpack.c.l.b16 %v884
      %v1048 = vunpack.c.l.b16 %v885
      %v1049 = vunpack.c.l.b16 %v886
      %v1050 = vunpack.c.l.b16 %v887
      %v1051 = vunpack.c.l.b16 %v888
      %v1052 = vunpack.c.l.b16 %v889
      %v1053 = vunpack.c.l.b16 %v890
      %v1054 = vunpack.c.l.b16 %v891
      %v1055 = vunpack.c.l.b16 %v892
      %v1056 = vunpack.c.l.b16 %v893
      %v1057 = vunpack.c.l.b16 %v894
      %v1058 = vpack.c.b16 %v1043, %v1042
      %v1059 = vpack.c.b16 %v1045, %v1044
      %v1060 = vpack.c.b16 %v1047, %v1046
      %v1061 = vpack.c.b16 %v1049, %v1048
      %v1062 = vpack.c.b16 %v1051, %v1050
      %v1063 = vpack.c.b16 %v1053, %v1052
      %v1064 = vpack.c.b16 %v1055, %v1054
      %v1065 = vpack.c.b16 %v1057, %v1056
      %1074 = vmatprep.subr.bf16.mxu0 0
      %1075 = vmatpush1.bf16.msra.mxu0 %v1058
      %1076 = vmatprep.subr.bf16.mxu0 0
      %1077 = vmatpush1.bf16.msra.mxu0 %v1059
      %1078 = vmatprep.subr.bf16.mxu0 0
      %1079 = vmatpush1.bf16.msra.mxu0 %v1060
      %1080 = vmatprep.subr.bf16.mxu0 0
      %1081 = vmatpush1.bf16.msra.mxu0 %v1061
      %1082 = vmatprep.subr.bf16.mxu0 0
      %1083 = vmatpush1.bf16.msra.mxu0 %v1062
      %1084 = vmatprep.subr.bf16.mxu0 0
      %1085 = vmatpush1.bf16.msra.mxu0 %v1063
      %1086 = vmatprep.subr.bf16.mxu0 0
      %1087 = vmatpush1.bf16.msra.mxu0 %v1064
      %1088 = vmatprep.subr.bf16.mxu0 0
      %1089 = vmatpush1.bf16.msra.mxu0 %v1065
      %1090 = vmatprep.subr.bf16.mxu0 0
      %1091 = vmatpush1.bf16.msra.mxu0 0
      %1092 = vmatprep.subr.bf16.mxu0 0
      %1093 = vmatpush1.bf16.msra.mxu0 0
      %1094 = vmatprep.subr.bf16.mxu0 0
      %1095 = vmatpush1.bf16.msra.mxu0 0
      %1096 = vmatprep.subr.bf16.mxu0 0
      %1097 = vmatpush1.bf16.msra.mxu0 0
      %1098 = vmatprep.subr.bf16.mxu0 0
      %1099 = vmatpush1.bf16.msra.mxu0 0
      %1100 = vmatprep.subr.bf16.mxu0 0
      %1101 = vmatpush1.bf16.msra.mxu0 0
      %1102 = vmatprep.subr.bf16.mxu0 0
      %1103 = vmatpush1.bf16.msra.mxu0 0
      %1104 = vmatprep.subr.bf16.mxu0 0
      %1105 = vmatpush1.bf16.msra.mxu0 0
      %1106 = vmatprep.mubr.bf16.mxu0 0
      %1107 = vmatmul.mubr.bf16.gmra.mrb[0].mxu0 %v907
      %v1108 = vpop.f32.mrb[0].mxu0
      %v1109 = vadd.f32 0.0, %v1108
      %v1110 = vpop.f32.mrb[0].mxu0
      %v1111 = vpop.f32.mrb[0].mxu0
      %v1112 = vadd.f32 0.0, %v1111
      %v1113 = vpop.f32.mrb[0].mxu0
      %1114 = vmatprep.mubr.bf16.mxu0 0
      %1115 = vmatmul.mubr.bf16.gmra.mrb[0].mxu0 %v915
      %v1116 = vpop.f32.mrb[0].mxu0
      %v1117 = vadd.f32 0.0, %v1116
      %v1118 = vpop.f32.mrb[0].mxu0
      %v1119 = vpop.f32.mrb[0].mxu0
      %v1120 = vadd.f32 0.0, %v1119
      %v1121 = vpop.f32.mrb[0].mxu0
      %1122 = vmatprep.mubr.bf16.mxu0 0
      %1123 = vmatmul.mubr.bf16.gmra.mrb[0].mxu0 %v923
      %v1124 = vpop.f32.mrb[0].mxu0
      %v1125 = vadd.f32 0.0, %v1124
      %v1126 = vpop.f32.mrb[0].mxu0
      %v1127 = vpop.f32.mrb[0].mxu0
      %v1128 = vadd.f32 0.0, %v1127
      %v1129 = vpop.f32.mrb[0].mxu0
      %1130 = vmatprep.mubr.bf16.mxu0 0
      %1131 = vmatmul.mubr.bf16.gmra.mrb[0].mxu0 %v931
      %v1132 = vpop.f32.mrb[0].mxu0
      %v1133 = vadd.f32 0.0, %v1132
      %v1134 = vpop.f32.mrb[0].mxu0
      %v1135 = vpop.f32.mrb[0].mxu0
      %v1136 = vadd.f32 0.0, %v1135
      %v1137 = vpop.f32.mrb[0].mxu0
      %1138 = vmatprep.mubr.bf16.mxu0 0
      %1139 = vmatmul.mubr.bf16.gmra.mrb[0].mxu0 %v939
      %v1140 = vpop.f32.mrb[0].mxu0
      %v1141 = vadd.f32 0.0, %v1140
      %v1142 = vpop.f32.mrb[0].mxu0
      %v1143 = vpop.f32.mrb[0].mxu0
      %v1144 = vadd.f32 0.0, %v1143
      %v1145 = vpop.f32.mrb[0].mxu0
      %1146 = vmatprep.mubr.bf16.mxu0 0
      %1147 = vmatmul.mubr.bf16.gmra.mrb[0].mxu0 %v947
      %v1148 = vpop.f32.mrb[0].mxu0
      %v1149 = vadd.f32 0.0, %v1148
      %v1150 = vpop.f32.mrb[0].mxu0
      %v1151 = vpop.f32.mrb[0].mxu0
      %v1152 = vadd.f32 0.0, %v1151
      %v1153 = vpop.f32.mrb[0].mxu0
      %1154 = vmatprep.mubr.bf16.mxu0 0
      %1155 = vmatmul.mubr.bf16.gmra.mrb[0].mxu0 %v955
      %v1156 = vpop.f32.mrb[0].mxu0
      %v1157 = vadd.f32 0.0, %v1156
      %v1158 = vpop.f32.mrb[0].mxu0
      %v1159 = vpop.f32.mrb[0].mxu0
      %v1160 = vadd.f32 0.0, %v1159
      %v1161 = vpop.f32.mrb[0].mxu0
      %1162 = vmatprep.mubr.bf16.mxu0 0
      %1163 = vmatmul.mubr.bf16.gmra.mrb[0].mxu0 %v963
      %v1164 = vpop.f32.mrb[0].mxu0
      %v1165 = vadd.f32 0.0, %v1164
      %v1166 = vpop.f32.mrb[0].mxu0
      %v1167 = vpop.f32.mrb[0].mxu0
      %v1168 = vadd.f32 0.0, %v1167
      %v1169 = vpop.f32.mrb[0].mxu0
      %1170 = vmatprep.mubr.bf16.mxu0 0
      %1171 = vmatmul.mubr.bf16.gmra.mrb[0].mxu0 %v971
      %v1172 = vpop.f32.mrb[0].mxu0
      %v1173 = vadd.f32 0.0, %v1172
      %v1174 = vpop.f32.mrb[0].mxu0
      %v1175 = vpop.f32.mrb[0].mxu0
      %v1176 = vadd.f32 0.0, %v1175
      %v1177 = vpop.f32.mrb[0].mxu0
      %1178 = vmatprep.mubr.bf16.mxu0 0
      %1179 = vmatmul.mubr.bf16.gmra.mrb[0].mxu0 %v979
      %v1180 = vpop.f32.mrb[0].mxu0
      %v1181 = vadd.f32 0.0, %v1180
      %v1182 = vpop.f32.mrb[0].mxu0
      %v1183 = vpop.f32.mrb[0].mxu0
      %v1184 = vadd.f32 0.0, %v1183
      %v1185 = vpop.f32.mrb[0].mxu0
      %1186 = vmatprep.mubr.bf16.mxu0 0
      %1187 = vmatmul.mubr.bf16.gmra.mrb[0].mxu0 %v987
      %v1188 = vpop.f32.mrb[0].mxu0
      %v1189 = vadd.f32 0.0, %v1188
      %v1190 = vpop.f32.mrb[0].mxu0
      %v1191 = vpop.f32.mrb[0].mxu0
      %v1192 = vadd.f32 0.0, %v1191
      %v1193 = vpop.f32.mrb[0].mxu0
      %1194 = vmatprep.mubr.bf16.mxu0 0
      %1195 = vmatmul.mubr.bf16.gmra.mrb[0].mxu0 %v995
      %v1196 = vpop.f32.mrb[0].mxu0
      %v1197 = vadd.f32 0.0, %v1196
      %v1198 = vpop.f32.mrb[0].mxu0
      %v1199 = vpop.f32.mrb[0].mxu0
      %v1200 = vadd.f32 0.0, %v1199
      %v1201 = vpop.f32.mrb[0].mxu0
      %1202 = vmatprep.mubr.bf16.mxu0 0
      %1203 = vmatmul.mubr.bf16.gmra.mrb[0].mxu0 %v1003
      %v1204 = vpop.f32.mrb[0].mxu0
      %v1205 = vadd.f32 0.0, %v1204
      %v1206 = vpop.f32.mrb[0].mxu0
      %v1207 = vpop.f32.mrb[0].mxu0
      %v1208 = vadd.f32 0.0, %v1207
      %v1209 = vpop.f32.mrb[0].mxu0
      %1210 = vmatprep.mubr.bf16.mxu0 0
      %1211 = vmatmul.mubr.bf16.gmra.mrb[0].mxu0 %v1011
      %v1212 = vpop.f32.mrb[0].mxu0
      %v1213 = vadd.f32 0.0, %v1212
      %v1214 = vpop.f32.mrb[0].mxu0
      %v1215 = vpop.f32.mrb[0].mxu0
      %v1216 = vadd.f32 0.0, %v1215
      %v1217 = vpop.f32.mrb[0].mxu0
      %1218 = vdwg.mxu0
      %v1219 = vadd.f32 %v850, %v1109
      %v1220 = vadd.f32 %v851, %v1112
      %v1221 = vadd.f32 %v852, %v1117
      %v1222 = vadd.f32 %v853, %v1120
      %v1223 = vadd.f32 %v854, %v1125
      %v1224 = vadd.f32 %v855, %v1128
      %v1225 = vadd.f32 %v856, %v1133
      %v1226 = vadd.f32 %v857, %v1136
      %v1227 = vadd.f32 %v858, %v1141
      %v1228 = vadd.f32 %v859, %v1144
      %v1229 = vadd.f32 %v860, %v1149
      %v1230 = vadd.f32 %v861, %v1152
      %v1231 = vadd.f32 %v862, %v1157
      %v1232 = vadd.f32 %v863, %v1160
      %v1233 = vadd.f32 %v864, %v1165
      %v1234 = vadd.f32 %v865, %v1168
      %v1235 = vadd.f32 %v866, %v1173
      %v1236 = vadd.f32 %v867, %v1176
      %v1237 = vadd.f32 %v868, %v1181
      %v1238 = vadd.f32 %v869, %v1184
      %v1239 = vadd.f32 %v870, %v1189
      %v1240 = vadd.f32 %v871, %v1192
      %v1241 = vadd.f32 %v872, %v1197
      %v1242 = vadd.f32 %v873, %v1200
      %v1243 = vadd.f32 %v874, %v1205
      %v1244 = vadd.f32 %v875, %v1208
      %v1245 = vadd.f32 %v876, %v1213
      %v1246 = vadd.f32 %v877, %v1216
      %1247 = vst [vmem:[#allocation2] sm:$0xff] %v1219
      %1248 = vst [vmem:[#allocation2 + $0x8] sm:$0xff] %v1220
      %1249 = vst [vmem:[#allocation2 + $0x10] sm:$0xff] %v1221
      %1250 = vst [vmem:[#allocation2 + $0x18] sm:$0xff] %v1222
      %1251 = vst [vmem:[#allocation2 + $0x20] sm:$0xff] %v1223
      %1252 = vst [vmem:[#allocation2 + $0x28] sm:$0xff] %v1224
      %1253 = vst [vmem:[#allocation2 + $0x30] sm:$0xff] %v1225
      %1254 = vst [vmem:[#allocation2 + $0x38] sm:$0xff] %v1226
      %1255 = vst [vmem:[#allocation2 + $0x40] sm:$0xff] %v1227
      %1256 = vst [vmem:[#allocation2 + $0x48] sm:$0xff] %v1228
      %1257 = vst [vmem:[#allocation2 + $0x50] sm:$0xff] %v1229
      %1258 = vst [vmem:[#allocation2 + $0x58] sm:$0xff] %v1230
      %1259 = vst [vmem:[#allocation2 + $0x60] sm:$0xff] %v1231
      %1260 = vst [vmem:[#allocation2 + $0x68] sm:$0xff] %v1232
      %1261 = vst [vmem:[#allocation2 + $0x70] sm:$0xff] %v1233
      %1262 = vst [vmem:[#allocation2 + $0x78] sm:$0xff] %v1234
      %1263 = vst [vmem:[#allocation2 + $0x80] sm:$0xff] %v1235
      %1264 = vst [vmem:[#allocation2 + $0x88] sm:$0xff] %v1236
      %1265 = vst [vmem:[#allocation2 + $0x90] sm:$0xff] %v1237
      %1266 = vst [vmem:[#allocation2 + $0x98] sm:$0xff] %v1238
      %1267 = vst [vmem:[#allocation2 + $0xa0] sm:$0xff] %v1239
      %1268 = vst [vmem:[#allocation2 + $0xa8] sm:$0xff] %v1240
      %1269 = vst [vmem:[#allocation2 + $0xb0] sm:$0xff] %v1241
      %1270 = vst [vmem:[#allocation2 + $0xb8] sm:$0xff] %v1242
      %1271 = vst [vmem:[#allocation2 + $0xc0] sm:$0xff] %v1243
      %1272 = vst [vmem:[#allocation2 + $0xc8] sm:$0xff] %v1244
      %1273 = vst [vmem:[#allocation2 + $0xd0] sm:$0xff] %v1245
      %1274 = vst [vmem:[#allocation2 + $0xd8] sm:$0xff] %v1246
      %v1275 = vld [vmem:[#allocation2] sm:$0xff]
      %v1276 = vld [vmem:[#allocation2 + $0x8] sm:$0xff]
      %v1277 = vld [vmem:[#allocation2 + $0x10] sm:$0xff]
      %v1278 = vld [vmem:[#allocation2 + $0x18] sm:$0xff]
      %v1279 = vld [vmem:[#allocation2 + $0x20] sm:$0xff]
      %v1280 = vld [vmem:[#allocation2 + $0x28] sm:$0xff]
      %v1281 = vld [vmem:[#allocation2 + $0x30] sm:$0xff]
      %v1282 = vld [vmem:[#allocation2 + $0x38] sm:$0xff]
      %v1283 = vld [vmem:[#allocation2 + $0x40] sm:$0xff]
      %v1284 = vld [vmem:[#allocation2 + $0x48] sm:$0xff]
      %v1285 = vld [vmem:[#allocation2 + $0x50] sm:$0xff]
      %v1286 = vld [vmem:[#allocation2 + $0x58] sm:$0xff]
      %v1287 = vld [vmem:[#allocation2 + $0x60] sm:$0xff]
      %v1288 = vld [vmem:[#allocation2 + $0x68] sm:$0xff]
      %v1289 = vld [vmem:[#allocation2 + $0x70] sm:$0xff]
      %v1290 = vld [vmem:[#allocation2 + $0x78] sm:$0xff]
      %v1291 = vld [vmem:[#allocation2 + $0x80] sm:$0xff]
      %v1292 = vld [vmem:[#allocation2 + $0x88] sm:$0xff]
      %v1293 = vld [vmem:[#allocation2 + $0x90] sm:$0xff]
      %v1294 = vld [vmem:[#allocation2 + $0x98] sm:$0xff]
      %v1295 = vld [vmem:[#allocation2 + $0xa0] sm:$0xff]
      %v1296 = vld [vmem:[#allocation2 + $0xa8] sm:$0xff]
      %v1297 = vld [vmem:[#allocation2 + $0xb0] sm:$0xff]
      %v1298 = vld [vmem:[#allocation2 + $0xb8] sm:$0xff]
      %v1299 = vld [vmem:[#allocation2 + $0xc0] sm:$0xff]
      %v1300 = vld [vmem:[#allocation2 + $0xc8] sm:$0xff]
      %v1301 = vld [vmem:[#allocation2 + $0xd0] sm:$0xff]
      %v1302 = vld [vmem:[#allocation2 + $0xd8] sm:$0xff]
      %s1303 = scalar_lea.vmem %s3, 128
      %v1304 = vld [vmem:[%s1303] sm:$0xf]
      %v1305 = vld [vmem:[%s1303 + $0x4] sm:$0xf]
      %v1306 = vld [vmem:[%s1303 + $0x8] sm:$0xf]
      %v1307 = vld [vmem:[%s1303 + $0xc] sm:$0xf]
      %v1308 = vld [vmem:[%s1303 + $0x10] sm:$0xf]
      %v1309 = vld [vmem:[%s1303 + $0x14] sm:$0xf]
      %v1310 = vld [vmem:[%s1303 + $0x18] sm:$0xf]
      %v1311 = vld [vmem:[%s1303 + $0x1c] sm:$0xf]
      %v1312 = vld [vmem:[%s1303 + $0x20] sm:$0xf]
      %v1313 = vld [vmem:[%s1303 + $0x24] sm:$0xf]
      %v1314 = vld [vmem:[%s1303 + $0x28] sm:$0xf]
      %v1315 = vld [vmem:[%s1303 + $0x2c] sm:$0xf]
      %v1316 = vld [vmem:[%s1303 + $0x30] sm:$0xf]
      %v1317 = vld [vmem:[%s1303 + $0x34] sm:$0xf]
      %v1318 = vld [vmem:[%s1303 + $0x38] sm:$0xf]
      %v1319 = vld [vmem:[%s1303 + $0x3c] sm:$0xf]
      %vm1320 = vcmask 1046528
      %v1321 = vrot.slane %v573, 1
      %v1322 = vrot.slane %v574, 1
      %v1323 = vsel %vm1320, %v1321, %v1322
      %v1324 = vrot.slane %v575, 1
      %v1325 = vsel %vm1320, %v1322, %v1324
      %v1326 = vrot.slane %v576, 1
      %v1327 = vsel %vm1320, %v1324, %v1326
      %v1328 = vrot.slane %v577, 1
      %v1329 = vsel %vm1320, %v1326, %v1328
      %v1330 = vrot.slane %v578, 1
      %v1331 = vsel %vm1320, %v1328, %v1330
      %v1332 = vrot.slane %v579, 1
      %v1333 = vsel %vm1320, %v1330, %v1332
      %v1334 = vrot.slane %v580, 1
      %v1335 = vsel %vm1320, %v1332, %v1334
      %v1336 = vrot.slane %v581, 1
      %v1337 = vsel %vm1320, %v1334, %v1336
      %v1338 = vrot.slane %v582, 1
      %v1339 = vsel %vm1320, %v1336, %v1338
      %v1340 = vrot.slane %v583, 1
      %v1341 = vsel %vm1320, %v1338, %v1340
      %v1342 = vrot.slane %v584, 1
      %v1343 = vsel %vm1320, %v1340, %v1342
      %v1344 = vrot.slane %v585, 1
      %v1345 = vsel %vm1320, %v1342, %v1344
      %v1346 = vrot.slane %v586, 1
      %v1347 = vsel %vm1320, %v1344, %v1346
      %v1348 = vrot.slane %v605, 1
      %v1349 = vsel %vm1320, %v1346, %v1348
      %v1380 = vunpack.c.l.b16 %v1304
      %v1381 = vunpack.c.l.b16 %v1305
      %v1382 = vunpack.c.l.b16 %v1306
      %v1383 = vunpack.c.l.b16 %v1307
      %v1384 = vunpack.c.l.b16 %v1308
      %v1385 = vunpack.c.l.b16 %v1309
      %v1386 = vunpack.c.l.b16 %v1310
      %v1387 = vunpack.c.l.b16 %v1311
      %v1388 = vunpack.c.l.b16 %v1312
      %v1389 = vunpack.c.l.b16 %v1313
      %v1390 = vunpack.c.l.b16 %v1314
      %v1391 = vunpack.c.l.b16 %v1315
      %v1392 = vunpack.c.l.b16 %v1316
      %v1393 = vunpack.c.l.b16 %v1317
      %v1394 = vunpack.c.l.b16 %v1318
      %v1395 = vunpack.c.l.b16 %v1319
      %v1396 = vpack.c.b16 %v1381, %v1380
      %v1397 = vpack.c.b16 %v1383, %v1382
      %v1398 = vpack.c.b16 %v1385, %v1384
      %v1399 = vpack.c.b16 %v1387, %v1386
      %v1400 = vpack.c.b16 %v1389, %v1388
      %v1401 = vpack.c.b16 %v1391, %v1390
      %v1402 = vpack.c.b16 %v1393, %v1392
      %v1403 = vpack.c.b16 %v1395, %v1394
      %1412 = vmatprep.subr.bf16.mxu0 0
      %1413 = vmatpush1.bf16.msra.mxu0 %v1396
      %1414 = vmatprep.subr.bf16.mxu0 0
      %1415 = vmatpush1.bf16.msra.mxu0 %v1397
      %1416 = vmatprep.subr.bf16.mxu0 0
      %1417 = vmatpush1.bf16.msra.mxu0 %v1398
      %1418 = vmatprep.subr.bf16.mxu0 0
      %1419 = vmatpush1.bf16.msra.mxu0 %v1399
      %1420 = vmatprep.subr.bf16.mxu0 0
      %1421 = vmatpush1.bf16.msra.mxu0 %v1400
      %1422 = vmatprep.subr.bf16.mxu0 0
      %1423 = vmatpush1.bf16.msra.mxu0 %v1401
      %1424 = vmatprep.subr.bf16.mxu0 0
      %1425 = vmatpush1.bf16.msra.mxu0 %v1402
      %1426 = vmatprep.subr.bf16.mxu0 0
      %1427 = vmatpush1.bf16.msra.mxu0 %v1403
      %1428 = vmatprep.subr.bf16.mxu0 0
      %1429 = vmatpush1.bf16.msra.mxu0 0
      %1430 = vmatprep.subr.bf16.mxu0 0
      %1431 = vmatpush1.bf16.msra.mxu0 0
      %1432 = vmatprep.subr.bf16.mxu0 0
      %1433 = vmatpush1.bf16.msra.mxu0 0
      %1434 = vmatprep.subr.bf16.mxu0 0
      %1435 = vmatpush1.bf16.msra.mxu0 0
      %1436 = vmatprep.subr.bf16.mxu0 0
      %1437 = vmatpush1.bf16.msra.mxu0 0
      %1438 = vmatprep.subr.bf16.mxu0 0
      %1439 = vmatpush1.bf16.msra.mxu0 0
      %1440 = vmatprep.subr.bf16.mxu0 0
      %1441 = vmatpush1.bf16.msra.mxu0 0
      %1442 = vmatprep.subr.bf16.mxu0 0
      %1443 = vmatpush1.bf16.msra.mxu0 0
      %1444 = vmatprep.mubr.bf16.mxu0 0
      %1445 = vmatmul.mubr.bf16.gmra.mrb[0].mxu0 %v1323
      %v1446 = vpop.f32.mrb[0].mxu0
      %v1447 = vadd.f32 0.0, %v1446
      %v1448 = vpop.f32.mrb[0].mxu0
      %v1449 = vpop.f32.mrb[0].mxu0
      %v1450 = vadd.f32 0.0, %v1449
      %v1451 = vpop.f32.mrb[0].mxu0
      %1452 = vmatprep.mubr.bf16.mxu0 0
      %1453 = vmatmul.mubr.bf16.gmra.mrb[0].mxu0 %v1325
      %v1454 = vpop.f32.mrb[0].mxu0
      %v1455 = vadd.f32 0.0, %v1454
      %v1456 = vpop.f32.mrb[0].mxu0
      %v1457 = vpop.f32.mrb[0].mxu0
      %v1458 = vadd.f32 0.0, %v1457
      %v1459 = vpop.f32.mrb[0].mxu0
      %1460 = vmatprep.mubr.bf16.mxu0 0
      %1461 = vmatmul.mubr.bf16.gmra.mrb[0].mxu0 %v1327
      %v1462 = vpop.f32.mrb[0].mxu0
      %v1463 = vadd.f32 0.0, %v1462
      %v1464 = vpop.f32.mrb[0].mxu0
      %v1465 = vpop.f32.mrb[0].mxu0
      %v1466 = vadd.f32 0.0, %v1465
      %v1467 = vpop.f32.mrb[0].mxu0
      %1468 = vmatprep.mubr.bf16.mxu0 0
      %1469 = vmatmul.mubr.bf16.gmra.mrb[0].mxu0 %v1329
      %v1470 = vpop.f32.mrb[0].mxu0
      %v1471 = vadd.f32 0.0, %v1470
      %v1472 = vpop.f32.mrb[0].mxu0
      %v1473 = vpop.f32.mrb[0].mxu0
      %v1474 = vadd.f32 0.0, %v1473
      %v1475 = vpop.f32.mrb[0].mxu0
      %1476 = vmatprep.mubr.bf16.mxu0 0
      %1477 = vmatmul.mubr.bf16.gmra.mrb[0].mxu0 %v1331
      %v1478 = vpop.f32.mrb[0].mxu0
      %v1479 = vadd.f32 0.0, %v1478
      %v1480 = vpop.f32.mrb[0].mxu0
      %v1481 = vpop.f32.mrb[0].mxu0
      %v1482 = vadd.f32 0.0, %v1481
      %v1483 = vpop.f32.mrb[0].mxu0
      %1484 = vmatprep.mubr.bf16.mxu0 0
      %1485 = vmatmul.mubr.bf16.gmra.mrb[0].mxu0 %v1333
      %v1486 = vpop.f32.mrb[0].mxu0
      %v1487 = vadd.f32 0.0, %v1486
      %v1488 = vpop.f32.mrb[0].mxu0
      %v1489 = vpop.f32.mrb[0].mxu0
      %v1490 = vadd.f32 0.0, %v1489
      %v1491 = vpop.f32.mrb[0].mxu0
      %1492 = vmatprep.mubr.bf16.mxu0 0
      %1493 = vmatmul.mubr.bf16.gmra.mrb[0].mxu0 %v1335
      %v1494 = vpop.f32.mrb[0].mxu0
      %v1495 = vadd.f32 0.0, %v1494
      %v1496 = vpop.f32.mrb[0].mxu0
      %v1497 = vpop.f32.mrb[0].mxu0
      %v1498 = vadd.f32 0.0, %v1497
      %v1499 = vpop.f32.mrb[0].mxu0
      %1500 = vmatprep.mubr.bf16.mxu0 0
      %1501 = vmatmul.mubr.bf16.gmra.mrb[0].mxu0 %v1337
      %v1502 = vpop.f32.mrb[0].mxu0
      %v1503 = vadd.f32 0.0, %v1502
      %v1504 = vpop.f32.mrb[0].mxu0
      %v1505 = vpop.f32.mrb[0].mxu0
      %v1506 = vadd.f32 0.0, %v1505
      %v1507 = vpop.f32.mrb[0].mxu0
      %1508 = vmatprep.mubr.bf16.mxu0 0
      %1509 = vmatmul.mubr.bf16.gmra.mrb[0].mxu0 %v1339
      %v1510 = vpop.f32.mrb[0].mxu0
      %v1511 = vadd.f32 0.0, %v1510
      %v1512 = vpop.f32.mrb[0].mxu0
      %v1513 = vpop.f32.mrb[0].mxu0
      %v1514 = vadd.f32 0.0, %v1513
      %v1515 = vpop.f32.mrb[0].mxu0
      %1516 = vmatprep.mubr.bf16.mxu0 0
      %1517 = vmatmul.mubr.bf16.gmra.mrb[0].mxu0 %v1341
      %v1518 = vpop.f32.mrb[0].mxu0
      %v1519 = vadd.f32 0.0, %v1518
      %v1520 = vpop.f32.mrb[0].mxu0
      %v1521 = vpop.f32.mrb[0].mxu0
      %v1522 = vadd.f32 0.0, %v1521
      %v1523 = vpop.f32.mrb[0].mxu0
      %1524 = vmatprep.mubr.bf16.mxu0 0
      %1525 = vmatmul.mubr.bf16.gmra.mrb[0].mxu0 %v1343
      %v1526 = vpop.f32.mrb[0].mxu0
      %v1527 = vadd.f32 0.0, %v1526
      %v1528 = vpop.f32.mrb[0].mxu0
      %v1529 = vpop.f32.mrb[0].mxu0
      %v1530 = vadd.f32 0.0, %v1529
      %v1531 = vpop.f32.mrb[0].mxu0
      %1532 = vmatprep.mubr.bf16.mxu0 0
      %1533 = vmatmul.mubr.bf16.gmra.mrb[0].mxu0 %v1345
      %v1534 = vpop.f32.mrb[0].mxu0
      %v1535 = vadd.f32 0.0, %v1534
      %v1536 = vpop.f32.mrb[0].mxu0
      %v1537 = vpop.f32.mrb[0].mxu0
      %v1538 = vadd.f32 0.0, %v1537
      %v1539 = vpop.f32.mrb[0].mxu0
      %1540 = vmatprep.mubr.bf16.mxu0 0
      %1541 = vmatmul.mubr.bf16.gmra.mrb[0].mxu0 %v1347
      %v1542 = vpop.f32.mrb[0].mxu0
      %v1543 = vadd.f32 0.0, %v1542
      %v1544 = vpop.f32.mrb[0].mxu0
      %v1545 = vpop.f32.mrb[0].mxu0
      %v1546 = vadd.f32 0.0, %v1545
      %v1547 = vpop.f32.mrb[0].mxu0
      %1548 = vmatprep.mubr.bf16.mxu0 0
      %1549 = vmatmul.mubr.bf16.gmra.mrb[0].mxu0 %v1349
      %v1550 = vpop.f32.mrb[0].mxu0
      %v1551 = vadd.f32 0.0, %v1550
      %v1552 = vpop.f32.mrb[0].mxu0
      %v1553 = vpop.f32.mrb[0].mxu0
      %v1554 = vadd.f32 0.0, %v1553
      %v1555 = vpop.f32.mrb[0].mxu0
      %1556 = vdwg.mxu0
      %v1557 = vadd.f32 %v1275, %v1447
      %v1558 = vadd.f32 %v1276, %v1450
      %v1559 = vadd.f32 %v1277, %v1455
      %v1560 = vadd.f32 %v1278, %v1458
      %v1561 = vadd.f32 %v1279, %v1463
      %v1562 = vadd.f32 %v1280, %v1466
      %v1563 = vadd.f32 %v1281, %v1471
      %v1564 = vadd.f32 %v1282, %v1474
      %v1565 = vadd.f32 %v1283, %v1479
      %v1566 = vadd.f32 %v1284, %v1482
      %v1567 = vadd.f32 %v1285, %v1487
      %v1568 = vadd.f32 %v1286, %v1490
      %v1569 = vadd.f32 %v1287, %v1495
      %v1570 = vadd.f32 %v1288, %v1498
      %v1571 = vadd.f32 %v1289, %v1503
      %v1572 = vadd.f32 %v1290, %v1506
      %v1573 = vadd.f32 %v1291, %v1511
      %v1574 = vadd.f32 %v1292, %v1514
      %v1575 = vadd.f32 %v1293, %v1519
      %v1576 = vadd.f32 %v1294, %v1522
      %v1577 = vadd.f32 %v1295, %v1527
      %v1578 = vadd.f32 %v1296, %v1530
      %v1579 = vadd.f32 %v1297, %v1535
      %v1580 = vadd.f32 %v1298, %v1538
      %v1581 = vadd.f32 %v1299, %v1543
      %v1582 = vadd.f32 %v1300, %v1546
      %v1583 = vadd.f32 %v1301, %v1551
      %v1584 = vadd.f32 %v1302, %v1554
      %1585 = vst [vmem:[#allocation2] sm:$0xff] %v1557
      %1586 = vst [vmem:[#allocation2 + $0x8] sm:$0xff] %v1558
      %1587 = vst [vmem:[#allocation2 + $0x10] sm:$0xff] %v1559
      %1588 = vst [vmem:[#allocation2 + $0x18] sm:$0xff] %v1560
      %1589 = vst [vmem:[#allocation2 + $0x20] sm:$0xff] %v1561
      %1590 = vst [vmem:[#allocation2 + $0x28] sm:$0xff] %v1562
      %1591 = vst [vmem:[#allocation2 + $0x30] sm:$0xff] %v1563
      %1592 = vst [vmem:[#allocation2 + $0x38] sm:$0xff] %v1564
      %1593 = vst [vmem:[#allocation2 + $0x40] sm:$0xff] %v1565
      %1594 = vst [vmem:[#allocation2 + $0x48] sm:$0xff] %v1566
      %1595 = vst [vmem:[#allocation2 + $0x50] sm:$0xff] %v1567
      %1596 = vst [vmem:[#allocation2 + $0x58] sm:$0xff] %v1568
      %1597 = vst [vmem:[#allocation2 + $0x60] sm:$0xff] %v1569
      %1598 = vst [vmem:[#allocation2 + $0x68] sm:$0xff] %v1570
      %1599 = vst [vmem:[#allocation2 + $0x70] sm:$0xff] %v1571
      %1600 = vst [vmem:[#allocation2 + $0x78] sm:$0xff] %v1572
      %1601 = vst [vmem:[#allocation2 + $0x80] sm:$0xff] %v1573
      %1602 = vst [vmem:[#allocation2 + $0x88] sm:$0xff] %v1574
      %1603 = vst [vmem:[#allocation2 + $0x90] sm:$0xff] %v1575
      %1604 = vst [vmem:[#allocation2 + $0x98] sm:$0xff] %v1576
      %1605 = vst [vmem:[#allocation2 + $0xa0] sm:$0xff] %v1577
      %1606 = vst [vmem:[#allocation2 + $0xa8] sm:$0xff] %v1578
      %1607 = vst [vmem:[#allocation2 + $0xb0] sm:$0xff] %v1579
      %1608 = vst [vmem:[#allocation2 + $0xb8] sm:$0xff] %v1580
      %1609 = vst [vmem:[#allocation2 + $0xc0] sm:$0xff] %v1581
      %1610 = vst [vmem:[#allocation2 + $0xc8] sm:$0xff] %v1582
      %1611 = vst [vmem:[#allocation2 + $0xd0] sm:$0xff] %v1583
      %1612 = vst [vmem:[#allocation2 + $0xd8] sm:$0xff] %v1584
      %v1613 = vld [vmem:[#allocation2] sm:$0xff]
      %v1614 = vld [vmem:[#allocation2 + $0x8] sm:$0xff]
      %v1615 = vld [vmem:[#allocation2 + $0x10] sm:$0xff]
      %v1616 = vld [vmem:[#allocation2 + $0x18] sm:$0xff]
      %v1617 = vld [vmem:[#allocation2 + $0x20] sm:$0xff]
      %v1618 = vld [vmem:[#allocation2 + $0x28] sm:$0xff]
      %v1619 = vld [vmem:[#allocation2 + $0x30] sm:$0xff]
      %v1620 = vld [vmem:[#allocation2 + $0x38] sm:$0xff]
      %v1621 = vld [vmem:[#allocation2 + $0x40] sm:$0xff]
      %v1622 = vld [vmem:[#allocation2 + $0x48] sm:$0xff]
      %v1623 = vld [vmem:[#allocation2 + $0x50] sm:$0xff]
      %v1624 = vld [vmem:[#allocation2 + $0x58] sm:$0xff]
      %v1625 = vld [vmem:[#allocation2 + $0x60] sm:$0xff]
      %v1626 = vld [vmem:[#allocation2 + $0x68] sm:$0xff]
      %v1627 = vld [vmem:[#allocation2 + $0x70] sm:$0xff]
      %v1628 = vld [vmem:[#allocation2 + $0x78] sm:$0xff]
      %v1629 = vld [vmem:[#allocation2 + $0x80] sm:$0xff]
      %v1630 = vld [vmem:[#allocation2 + $0x88] sm:$0xff]
      %v1631 = vld [vmem:[#allocation2 + $0x90] sm:$0xff]
      %v1632 = vld [vmem:[#allocation2 + $0x98] sm:$0xff]
      %v1633 = vld [vmem:[#allocation2 + $0xa0] sm:$0xff]
      %v1634 = vld [vmem:[#allocation2 + $0xa8] sm:$0xff]
      %v1635 = vld [vmem:[#allocation2 + $0xb0] sm:$0xff]
      %v1636 = vld [vmem:[#allocation2 + $0xb8] sm:$0xff]
      %v1637 = vld [vmem:[#allocation2 + $0xc0] sm:$0xff]
      %v1638 = vld [vmem:[#allocation2 + $0xc8] sm:$0xff]
      %v1639 = vld [vmem:[#allocation2 + $0xd0] sm:$0xff]
      %v1640 = vld [vmem:[#allocation2 + $0xd8] sm:$0xff]
      %s1641 = scalar_lea.vmem %s3, 192
      %v1642 = vld [vmem:[%s1641] sm:$0xf]
      %v1643 = vld [vmem:[%s1641 + $0x4] sm:$0xf]
      %v1644 = vld [vmem:[%s1641 + $0x8] sm:$0xf]
      %v1645 = vld [vmem:[%s1641 + $0xc] sm:$0xf]
      %v1646 = vld [vmem:[%s1641 + $0x10] sm:$0xf]
      %v1647 = vld [vmem:[%s1641 + $0x14] sm:$0xf]
      %v1648 = vld [vmem:[%s1641 + $0x18] sm:$0xf]
      %v1649 = vld [vmem:[%s1641 + $0x1c] sm:$0xf]
      %v1650 = vld [vmem:[%s1641 + $0x20] sm:$0xf]
      %v1651 = vld [vmem:[%s1641 + $0x24] sm:$0xf]
      %v1652 = vld [vmem:[%s1641 + $0x28] sm:$0xf]
      %v1653 = vld [vmem:[%s1641 + $0x2c] sm:$0xf]
      %v1654 = vld [vmem:[%s1641 + $0x30] sm:$0xf]
      %v1655 = vld [vmem:[%s1641 + $0x34] sm:$0xf]
      %v1656 = vld [vmem:[%s1641 + $0x38] sm:$0xf]
      %v1657 = vld [vmem:[%s1641 + $0x3c] sm:$0xf]
      %v1674 = vunpack.c.l.b16 %v1642
      %v1675 = vunpack.c.l.b16 %v1643
      %v1676 = vunpack.c.l.b16 %v1644
      %v1677 = vunpack.c.l.b16 %v1645
      %v1678 = vunpack.c.l.b16 %v1646
      %v1679 = vunpack.c.l.b16 %v1647
      %v1680 = vunpack.c.l.b16 %v1648
      %v1681 = vunpack.c.l.b16 %v1649
      %v1682 = vunpack.c.l.b16 %v1650
      %v1683 = vunpack.c.l.b16 %v1651
      %v1684 = vunpack.c.l.b16 %v1652
      %v1685 = vunpack.c.l.b16 %v1653
      %v1686 = vunpack.c.l.b16 %v1654
      %v1687 = vunpack.c.l.b16 %v1655
      %v1688 = vunpack.c.l.b16 %v1656
      %v1689 = vunpack.c.l.b16 %v1657
      %v1690 = vpack.c.b16 %v1675, %v1674
      %v1691 = vpack.c.b16 %v1677, %v1676
      %v1692 = vpack.c.b16 %v1679, %v1678
      %v1693 = vpack.c.b16 %v1681, %v1680
      %v1694 = vpack.c.b16 %v1683, %v1682
      %v1695 = vpack.c.b16 %v1685, %v1684
      %v1696 = vpack.c.b16 %v1687, %v1686
      %v1697 = vpack.c.b16 %v1689, %v1688
      %1706 = vmatprep.subr.bf16.mxu0 0
      %1707 = vmatpush1.bf16.msra.mxu0 %v1690
      %1708 = vmatprep.subr.bf16.mxu0 0
      %1709 = vmatpush1.bf16.msra.mxu0 %v1691
      %1710 = vmatprep.subr.bf16.mxu0 0
      %1711 = vmatpush1.bf16.msra.mxu0 %v1692
      %1712 = vmatprep.subr.bf16.mxu0 0
      %1713 = vmatpush1.bf16.msra.mxu0 %v1693
      %1714 = vmatprep.subr.bf16.mxu0 0
      %1715 = vmatpush1.bf16.msra.mxu0 %v1694
      %1716 = vmatprep.subr.bf16.mxu0 0
      %1717 = vmatpush1.bf16.msra.mxu0 %v1695
      %1718 = vmatprep.subr.bf16.mxu0 0
      %1719 = vmatpush1.bf16.msra.mxu0 %v1696
      %1720 = vmatprep.subr.bf16.mxu0 0
      %1721 = vmatpush1.bf16.msra.mxu0 %v1697
      %1722 = vmatprep.subr.bf16.mxu0 0
      %1723 = vmatpush1.bf16.msra.mxu0 0
      %1724 = vmatprep.subr.bf16.mxu0 0
      %1725 = vmatpush1.bf16.msra.mxu0 0
      %1726 = vmatprep.subr.bf16.mxu0 0
      %1727 = vmatpush1.bf16.msra.mxu0 0
      %1728 = vmatprep.subr.bf16.mxu0 0
      %1729 = vmatpush1.bf16.msra.mxu0 0
      %1730 = vmatprep.subr.bf16.mxu0 0
      %1731 = vmatpush1.bf16.msra.mxu0 0
      %1732 = vmatprep.subr.bf16.mxu0 0
      %1733 = vmatpush1.bf16.msra.mxu0 0
      %1734 = vmatprep.subr.bf16.mxu0 0
      %1735 = vmatpush1.bf16.msra.mxu0 0
      %1736 = vmatprep.subr.bf16.mxu0 0
      %1737 = vmatpush1.bf16.msra.mxu0 0
      %1738 = vmatprep.mubr.bf16.mxu0 0
      %1739 = vmatmul.mubr.bf16.gmra.mrb[0].mxu0 %v574
      %v1740 = vpop.f32.mrb[0].mxu0
      %v1741 = vadd.f32 0.0, %v1740
      %v1742 = vpop.f32.mrb[0].mxu0
      %v1743 = vpop.f32.mrb[0].mxu0
      %v1744 = vadd.f32 0.0, %v1743
      %v1745 = vpop.f32.mrb[0].mxu0
      %1746 = vmatprep.mubr.bf16.mxu0 0
      %1747 = vmatmul.mubr.bf16.gmra.mrb[0].mxu0 %v575
      %v1748 = vpop.f32.mrb[0].mxu0
      %v1749 = vadd.f32 0.0, %v1748
      %v1750 = vpop.f32.mrb[0].mxu0
      %v1751 = vpop.f32.mrb[0].mxu0
      %v1752 = vadd.f32 0.0, %v1751
      %v1753 = vpop.f32.mrb[0].mxu0
      %1754 = vmatprep.mubr.bf16.mxu0 0
      %1755 = vmatmul.mubr.bf16.gmra.mrb[0].mxu0 %v576
      %v1756 = vpop.f32.mrb[0].mxu0
      %v1757 = vadd.f32 0.0, %v1756
      %v1758 = vpop.f32.mrb[0].mxu0
      %v1759 = vpop.f32.mrb[0].mxu0
      %v1760 = vadd.f32 0.0, %v1759
      %v1761 = vpop.f32.mrb[0].mxu0
      %1762 = vmatprep.mubr.bf16.mxu0 0
      %1763 = vmatmul.mubr.bf16.gmra.mrb[0].mxu0 %v577
      %v1764 = vpop.f32.mrb[0].mxu0
      %v1765 = vadd.f32 0.0, %v1764
      %v1766 = vpop.f32.mrb[0].mxu0
      %v1767 = vpop.f32.mrb[0].mxu0
      %v1768 = vadd.f32 0.0, %v1767
      %v1769 = vpop.f32.mrb[0].mxu0
      %1770 = vmatprep.mubr.bf16.mxu0 0
      %1771 = vmatmul.mubr.bf16.gmra.mrb[0].mxu0 %v578
      %v1772 = vpop.f32.mrb[0].mxu0
      %v1773 = vadd.f32 0.0, %v1772
      %v1774 = vpop.f32.mrb[0].mxu0
      %v1775 = vpop.f32.mrb[0].mxu0
      %v1776 = vadd.f32 0.0, %v1775
      %v1777 = vpop.f32.mrb[0].mxu0
      %1778 = vmatprep.mubr.bf16.mxu0 0
      %1779 = vmatmul.mubr.bf16.gmra.mrb[0].mxu0 %v579
      %v1780 = vpop.f32.mrb[0].mxu0
      %v1781 = vadd.f32 0.0, %v1780
      %v1782 = vpop.f32.mrb[0].mxu0
      %v1783 = vpop.f32.mrb[0].mxu0
      %v1784 = vadd.f32 0.0, %v1783
      %v1785 = vpop.f32.mrb[0].mxu0
      %1786 = vmatprep.mubr.bf16.mxu0 0
      %1787 = vmatmul.mubr.bf16.gmra.mrb[0].mxu0 %v580
      %v1788 = vpop.f32.mrb[0].mxu0
      %v1789 = vadd.f32 0.0, %v1788
      %v1790 = vpop.f32.mrb[0].mxu0
      %v1791 = vpop.f32.mrb[0].mxu0
      %v1792 = vadd.f32 0.0, %v1791
      %v1793 = vpop.f32.mrb[0].mxu0
      %1794 = vmatprep.mubr.bf16.mxu0 0
      %1795 = vmatmul.mubr.bf16.gmra.mrb[0].mxu0 %v581
      %v1796 = vpop.f32.mrb[0].mxu0
      %v1797 = vadd.f32 0.0, %v1796
      %v1798 = vpop.f32.mrb[0].mxu0
      %v1799 = vpop.f32.mrb[0].mxu0
      %v1800 = vadd.f32 0.0, %v1799
      %v1801 = vpop.f32.mrb[0].mxu0
      %1802 = vmatprep.mubr.bf16.mxu0 0
      %1803 = vmatmul.mubr.bf16.gmra.mrb[0].mxu0 %v582
      %v1804 = vpop.f32.mrb[0].mxu0
      %v1805 = vadd.f32 0.0, %v1804
      %v1806 = vpop.f32.mrb[0].mxu0
      %v1807 = vpop.f32.mrb[0].mxu0
      %v1808 = vadd.f32 0.0, %v1807
      %v1809 = vpop.f32.mrb[0].mxu0
      %1810 = vmatprep.mubr.bf16.mxu0 0
      %1811 = vmatmul.mubr.bf16.gmra.mrb[0].mxu0 %v583
      %v1812 = vpop.f32.mrb[0].mxu0
      %v1813 = vadd.f32 0.0, %v1812
      %v1814 = vpop.f32.mrb[0].mxu0
      %v1815 = vpop.f32.mrb[0].mxu0
      %v1816 = vadd.f32 0.0, %v1815
      %v1817 = vpop.f32.mrb[0].mxu0
      %1818 = vmatprep.mubr.bf16.mxu0 0
      %1819 = vmatmul.mubr.bf16.gmra.mrb[0].mxu0 %v584
      %v1820 = vpop.f32.mrb[0].mxu0
      %v1821 = vadd.f32 0.0, %v1820
      %v1822 = vpop.f32.mrb[0].mxu0
      %v1823 = vpop.f32.mrb[0].mxu0
      %v1824 = vadd.f32 0.0, %v1823
      %v1825 = vpop.f32.mrb[0].mxu0
      %1826 = vmatprep.mubr.bf16.mxu0 0
      %1827 = vmatmul.mubr.bf16.gmra.mrb[0].mxu0 %v585
      %v1828 = vpop.f32.mrb[0].mxu0
      %v1829 = vadd.f32 0.0, %v1828
      %v1830 = vpop.f32.mrb[0].mxu0
      %v1831 = vpop.f32.mrb[0].mxu0
      %v1832 = vadd.f32 0.0, %v1831
      %v1833 = vpop.f32.mrb[0].mxu0
      %1834 = vmatprep.mubr.bf16.mxu0 0
      %1835 = vmatmul.mubr.bf16.gmra.mrb[0].mxu0 %v586
      %v1836 = vpop.f32.mrb[0].mxu0
      %v1837 = vadd.f32 0.0, %v1836
      %v1838 = vpop.f32.mrb[0].mxu0
      %v1839 = vpop.f32.mrb[0].mxu0
      %v1840 = vadd.f32 0.0, %v1839
      %v1841 = vpop.f32.mrb[0].mxu0
      %1842 = vmatprep.mubr.bf16.mxu0 0
      %1843 = vmatmul.mubr.bf16.gmra.mrb[0].mxu0 %v605
      %v1844 = vpop.f32.mrb[0].mxu0
      %v1845 = vadd.f32 0.0, %v1844
      %v1846 = vpop.f32.mrb[0].mxu0
      %v1847 = vpop.f32.mrb[0].mxu0
      %v1848 = vadd.f32 0.0, %v1847
      %v1849 = vpop.f32.mrb[0].mxu0
      %1850 = vdwg.mxu0
      %v1851 = vadd.f32 %v1613, %v1741
      %v1852 = vadd.f32 %v1614, %v1744
      %v1853 = vadd.f32 %v1615, %v1749
      %v1854 = vadd.f32 %v1616, %v1752
      %v1855 = vadd.f32 %v1617, %v1757
      %v1856 = vadd.f32 %v1618, %v1760
      %v1857 = vadd.f32 %v1619, %v1765
      %v1858 = vadd.f32 %v1620, %v1768
      %v1859 = vadd.f32 %v1621, %v1773
      %v1860 = vadd.f32 %v1622, %v1776
      %v1861 = vadd.f32 %v1623, %v1781
      %v1862 = vadd.f32 %v1624, %v1784
      %v1863 = vadd.f32 %v1625, %v1789
      %v1864 = vadd.f32 %v1626, %v1792
      %v1865 = vadd.f32 %v1627, %v1797
      %v1866 = vadd.f32 %v1628, %v1800
      %v1867 = vadd.f32 %v1629, %v1805
      %v1868 = vadd.f32 %v1630, %v1808
      %v1869 = vadd.f32 %v1631, %v1813
      %v1870 = vadd.f32 %v1632, %v1816
      %v1871 = vadd.f32 %v1633, %v1821
      %v1872 = vadd.f32 %v1634, %v1824
      %v1873 = vadd.f32 %v1635, %v1829
      %v1874 = vadd.f32 %v1636, %v1832
      %v1875 = vadd.f32 %v1637, %v1837
      %v1876 = vadd.f32 %v1638, %v1840
      %v1877 = vadd.f32 %v1639, %v1845
      %v1878 = vadd.f32 %v1640, %v1848
      %1879 = vst [vmem:[#allocation2] sm:$0xff] %v1851
      %1880 = vst [vmem:[#allocation2 + $0x8] sm:$0xff] %v1852
      %1881 = vst [vmem:[#allocation2 + $0x10] sm:$0xff] %v1853
      %1882 = vst [vmem:[#allocation2 + $0x18] sm:$0xff] %v1854
      %1883 = vst [vmem:[#allocation2 + $0x20] sm:$0xff] %v1855
      %1884 = vst [vmem:[#allocation2 + $0x28] sm:$0xff] %v1856
      %1885 = vst [vmem:[#allocation2 + $0x30] sm:$0xff] %v1857
      %1886 = vst [vmem:[#allocation2 + $0x38] sm:$0xff] %v1858
      %1887 = vst [vmem:[#allocation2 + $0x40] sm:$0xff] %v1859
      %1888 = vst [vmem:[#allocation2 + $0x48] sm:$0xff] %v1860
      %1889 = vst [vmem:[#allocation2 + $0x50] sm:$0xff] %v1861
      %1890 = vst [vmem:[#allocation2 + $0x58] sm:$0xff] %v1862
      %1891 = vst [vmem:[#allocation2 + $0x60] sm:$0xff] %v1863
      %1892 = vst [vmem:[#allocation2 + $0x68] sm:$0xff] %v1864
      %1893 = vst [vmem:[#allocation2 + $0x70] sm:$0xff] %v1865
      %1894 = vst [vmem:[#allocation2 + $0x78] sm:$0xff] %v1866
      %1895 = vst [vmem:[#allocation2 + $0x80] sm:$0xff] %v1867
      %1896 = vst [vmem:[#allocation2 + $0x88] sm:$0xff] %v1868
      %1897 = vst [vmem:[#allocation2 + $0x90] sm:$0xff] %v1869
      %1898 = vst [vmem:[#allocation2 + $0x98] sm:$0xff] %v1870
      %1899 = vst [vmem:[#allocation2 + $0xa0] sm:$0xff] %v1871
      %1900 = vst [vmem:[#allocation2 + $0xa8] sm:$0xff] %v1872
      %1901 = vst [vmem:[#allocation2 + $0xb0] sm:$0xff] %v1873
      %1902 = vst [vmem:[#allocation2 + $0xb8] sm:$0xff] %v1874
      %1903 = vst [vmem:[#allocation2 + $0xc0] sm:$0xff] %v1875
      %1904 = vst [vmem:[#allocation2 + $0xc8] sm:$0xff] %v1876
      %1905 = vst [vmem:[#allocation2 + $0xd0] sm:$0xff] %v1877
      %1906 = vst [vmem:[#allocation2 + $0xd8] sm:$0xff] %v1878
      %v1907 = vld [vmem:[#allocation2] sm:$0xff]
      %v1908 = vld [vmem:[#allocation2 + $0x8] sm:$0xff]
      %v1909 = vld [vmem:[#allocation2 + $0x10] sm:$0xff]
      %v1910 = vld [vmem:[#allocation2 + $0x18] sm:$0xff]
      %v1911 = vld [vmem:[#allocation2 + $0x20] sm:$0xff]
      %v1912 = vld [vmem:[#allocation2 + $0x28] sm:$0xff]
      %v1913 = vld [vmem:[#allocation2 + $0x30] sm:$0xff]
      %v1914 = vld [vmem:[#allocation2 + $0x38] sm:$0xff]
      %v1915 = vld [vmem:[#allocation2 + $0x40] sm:$0xff]
      %v1916 = vld [vmem:[#allocation2 + $0x48] sm:$0xff]
      %v1917 = vld [vmem:[#allocation2 + $0x50] sm:$0xff]
      %v1918 = vld [vmem:[#allocation2 + $0x58] sm:$0xff]
      %v1919 = vld [vmem:[#allocation2 + $0x60] sm:$0xff]
      %v1920 = vld [vmem:[#allocation2 + $0x68] sm:$0xff]
      %v1921 = vld [vmem:[#allocation2 + $0x70] sm:$0xff]
      %v1922 = vld [vmem:[#allocation2 + $0x78] sm:$0xff]
      %v1923 = vld [vmem:[#allocation2 + $0x80] sm:$0xff]
      %v1924 = vld [vmem:[#allocation2 + $0x88] sm:$0xff]
      %v1925 = vld [vmem:[#allocation2 + $0x90] sm:$0xff]
      %v1926 = vld [vmem:[#allocation2 + $0x98] sm:$0xff]
      %v1927 = vld [vmem:[#allocation2 + $0xa0] sm:$0xff]
      %v1928 = vld [vmem:[#allocation2 + $0xa8] sm:$0xff]
      %v1929 = vld [vmem:[#allocation2 + $0xb0] sm:$0xff]
      %v1930 = vld [vmem:[#allocation2 + $0xb8] sm:$0xff]
      %v1931 = vld [vmem:[#allocation2 + $0xc0] sm:$0xff]
      %v1932 = vld [vmem:[#allocation2 + $0xc8] sm:$0xff]
      %v1933 = vld [vmem:[#allocation2 + $0xd0] sm:$0xff]
      %v1934 = vld [vmem:[#allocation2 + $0xd8] sm:$0xff]
      %s1935 = scalar_lea.vmem %s3, 256
      %v1936 = vld [vmem:[%s1935] sm:$0xf]
      %v1937 = vld [vmem:[%s1935 + $0x4] sm:$0xf]
      %v1938 = vld [vmem:[%s1935 + $0x8] sm:$0xf]
      %v1939 = vld [vmem:[%s1935 + $0xc] sm:$0xf]
      %v1940 = vld [vmem:[%s1935 + $0x10] sm:$0xf]
      %v1941 = vld [vmem:[%s1935 + $0x14] sm:$0xf]
      %v1942 = vld [vmem:[%s1935 + $0x18] sm:$0xf]
      %v1943 = vld [vmem:[%s1935 + $0x1c] sm:$0xf]
      %v1944 = vld [vmem:[%s1935 + $0x20] sm:$0xf]
      %v1945 = vld [vmem:[%s1935 + $0x24] sm:$0xf]
      %v1946 = vld [vmem:[%s1935 + $0x28] sm:$0xf]
      %v1947 = vld [vmem:[%s1935 + $0x2c] sm:$0xf]
      %v1948 = vld [vmem:[%s1935 + $0x30] sm:$0xf]
      %v1949 = vld [vmem:[%s1935 + $0x34] sm:$0xf]
      %v1950 = vld [vmem:[%s1935 + $0x38] sm:$0xf]
      %v1951 = vld [vmem:[%s1935 + $0x3c] sm:$0xf]
      %v1952 = vshrl.u32 %v605, 16
      %v1954 = vor.u32 %v1952, %v1010
      %v1956 = vshll.u32 %v611, 16
      %v1958 = vrot.slane %v1956, 1
      %v1959 = vsel %vm895, %v1954, %v1958
      %v1977 = vunpack.c.l.b16 %v1936
      %v1978 = vunpack.c.l.b16 %v1937
      %v1979 = vunpack.c.l.b16 %v1938
      %v1980 = vunpack.c.l.b16 %v1939
      %v1981 = vunpack.c.l.b16 %v1940
      %v1982 = vunpack.c.l.b16 %v1941
      %v1983 = vunpack.c.l.b16 %v1942
      %v1984 = vunpack.c.l.b16 %v1943
      %v1985 = vunpack.c.l.b16 %v1944
      %v1986 = vunpack.c.l.b16 %v1945
      %v1987 = vunpack.c.l.b16 %v1946
      %v1988 = vunpack.c.l.b16 %v1947
      %v1989 = vunpack.c.l.b16 %v1948
      %v1990 = vunpack.c.l.b16 %v1949
      %v1991 = vunpack.c.l.b16 %v1950
      %v1992 = vunpack.c.l.b16 %v1951
      %v1993 = vpack.c.b16 %v1978, %v1977
      %v1994 = vpack.c.b16 %v1980, %v1979
      %v1995 = vpack.c.b16 %v1982, %v1981
      %v1996 = vpack.c.b16 %v1984, %v1983
      %v1997 = vpack.c.b16 %v1986, %v1985
      %v1998 = vpack.c.b16 %v1988, %v1987
      %v1999 = vpack.c.b16 %v1990, %v1989
      %v2000 = vpack.c.b16 %v1992, %v1991
      %2009 = vmatprep.subr.bf16.mxu0 0
      %2010 = vmatpush1.bf16.msra.mxu0 %v1993
      %2011 = vmatprep.subr.bf16.mxu0 0
      %2012 = vmatpush1.bf16.msra.mxu0 %v1994
      %2013 = vmatprep.subr.bf16.mxu0 0
      %2014 = vmatpush1.bf16.msra.mxu0 %v1995
      %2015 = vmatprep.subr.bf16.mxu0 0
      %2016 = vmatpush1.bf16.msra.mxu0 %v1996
      %2017 = vmatprep.subr.bf16.mxu0 0
      %2018 = vmatpush1.bf16.msra.mxu0 %v1997
      %2019 = vmatprep.subr.bf16.mxu0 0
      %2020 = vmatpush1.bf16.msra.mxu0 %v1998
      %2021 = vmatprep.subr.bf16.mxu0 0
      %2022 = vmatpush1.bf16.msra.mxu0 %v1999
      %2023 = vmatprep.subr.bf16.mxu0 0
      %2024 = vmatpush1.bf16.msra.mxu0 %v2000
      %2025 = vmatprep.subr.bf16.mxu0 0
      %2026 = vmatpush1.bf16.msra.mxu0 0
      %2027 = vmatprep.subr.bf16.mxu0 0
      %2028 = vmatpush1.bf16.msra.mxu0 0
      %2029 = vmatprep.subr.bf16.mxu0 0
      %2030 = vmatpush1.bf16.msra.mxu0 0
      %2031 = vmatprep.subr.bf16.mxu0 0
      %2032 = vmatpush1.bf16.msra.mxu0 0
      %2033 = vmatprep.subr.bf16.mxu0 0
      %2034 = vmatpush1.bf16.msra.mxu0 0
      %2035 = vmatprep.subr.bf16.mxu0 0
      %2036 = vmatpush1.bf16.msra.mxu0 0
      %2037 = vmatprep.subr.bf16.mxu0 0
      %2038 = vmatpush1.bf16.msra.mxu0 0
      %2039 = vmatprep.subr.bf16.mxu0 0
      %2040 = vmatpush1.bf16.msra.mxu0 0
      %2041 = vmatprep.mubr.bf16.mxu0 0
      %2042 = vmatmul.mubr.bf16.gmra.mrb[0].mxu0 %v915
      %v2043 = vpop.f32.mrb[0].mxu0
      %v2044 = vadd.f32 0.0, %v2043
      %v2045 = vpop.f32.mrb[0].mxu0
      %v2046 = vpop.f32.mrb[0].mxu0
      %v2047 = vadd.f32 0.0, %v2046
      %v2048 = vpop.f32.mrb[0].mxu0
      %2049 = vmatprep.mubr.bf16.mxu0 0
      %2050 = vmatmul.mubr.bf16.gmra.mrb[0].mxu0 %v923
      %v2051 = vpop.f32.mrb[0].mxu0
      %v2052 = vadd.f32 0.0, %v2051
      %v2053 = vpop.f32.mrb[0].mxu0
      %v2054 = vpop.f32.mrb[0].mxu0
      %v2055 = vadd.f32 0.0, %v2054
      %v2056 = vpop.f32.mrb[0].mxu0
      %2057 = vmatprep.mubr.bf16.mxu0 0
      %2058 = vmatmul.mubr.bf16.gmra.mrb[0].mxu0 %v931
      %v2059 = vpop.f32.mrb[0].mxu0
      %v2060 = vadd.f32 0.0, %v2059
      %v2061 = vpop.f32.mrb[0].mxu0
      %v2062 = vpop.f32.mrb[0].mxu0
      %v2063 = vadd.f32 0.0, %v2062
      %v2064 = vpop.f32.mrb[0].mxu0
      %2065 = vmatprep.mubr.bf16.mxu0 0
      %2066 = vmatmul.mubr.bf16.gmra.mrb[0].mxu0 %v939
      %v2067 = vpop.f32.mrb[0].mxu0
      %v2068 = vadd.f32 0.0, %v2067
      %v2069 = vpop.f32.mrb[0].mxu0
      %v2070 = vpop.f32.mrb[0].mxu0
      %v2071 = vadd.f32 0.0, %v2070
      %v2072 = vpop.f32.mrb[0].mxu0
      %2073 = vmatprep.mubr.bf16.mxu0 0
      %2074 = vmatmul.mubr.bf16.gmra.mrb[0].mxu0 %v947
      %v2075 = vpop.f32.mrb[0].mxu0
      %v2076 = vadd.f32 0.0, %v2075
      %v2077 = vpop.f32.mrb[0].mxu0
      %v2078 = vpop.f32.mrb[0].mxu0
      %v2079 = vadd.f32 0.0, %v2078
      %v2080 = vpop.f32.mrb[0].mxu0
      %2081 = vmatprep.mubr.bf16.mxu0 0
      %2082 = vmatmul.mubr.bf16.gmra.mrb[0].mxu0 %v955
      %v2083 = vpop.f32.mrb[0].mxu0
      %v2084 = vadd.f32 0.0, %v2083
      %v2085 = vpop.f32.mrb[0].mxu0
      %v2086 = vpop.f32.mrb[0].mxu0
      %v2087 = vadd.f32 0.0, %v2086
      %v2088 = vpop.f32.mrb[0].mxu0
      %2089 = vmatprep.mubr.bf16.mxu0 0
      %2090 = vmatmul.mubr.bf16.gmra.mrb[0].mxu0 %v963
      %v2091 = vpop.f32.mrb[0].mxu0
      %v2092 = vadd.f32 0.0, %v2091
      %v2093 = vpop.f32.mrb[0].mxu0
      %v2094 = vpop.f32.mrb[0].mxu0
      %v2095 = vadd.f32 0.0, %v2094
      %v2096 = vpop.f32.mrb[0].mxu0
      %2097 = vmatprep.mubr.bf16.mxu0 0
      %2098 = vmatmul.mubr.bf16.gmra.mrb[0].mxu0 %v971
      %v2099 = vpop.f32.mrb[0].mxu0
      %v2100 = vadd.f32 0.0, %v2099
      %v2101 = vpop.f32.mrb[0].mxu0
      %v2102 = vpop.f32.mrb[0].mxu0
      %v2103 = vadd.f32 0.0, %v2102
      %v2104 = vpop.f32.mrb[0].mxu0
      %2105 = vmatprep.mubr.bf16.mxu0 0
      %2106 = vmatmul.mubr.bf16.gmra.mrb[0].mxu0 %v979
      %v2107 = vpop.f32.mrb[0].mxu0
      %v2108 = vadd.f32 0.0, %v2107
      %v2109 = vpop.f32.mrb[0].mxu0
      %v2110 = vpop.f32.mrb[0].mxu0
      %v2111 = vadd.f32 0.0, %v2110
      %v2112 = vpop.f32.mrb[0].mxu0
      %2113 = vmatprep.mubr.bf16.mxu0 0
      %2114 = vmatmul.mubr.bf16.gmra.mrb[0].mxu0 %v987
      %v2115 = vpop.f32.mrb[0].mxu0
      %v2116 = vadd.f32 0.0, %v2115
      %v2117 = vpop.f32.mrb[0].mxu0
      %v2118 = vpop.f32.mrb[0].mxu0
      %v2119 = vadd.f32 0.0, %v2118
      %v2120 = vpop.f32.mrb[0].mxu0
      %2121 = vmatprep.mubr.bf16.mxu0 0
      %2122 = vmatmul.mubr.bf16.gmra.mrb[0].mxu0 %v995
      %v2123 = vpop.f32.mrb[0].mxu0
      %v2124 = vadd.f32 0.0, %v2123
      %v2125 = vpop.f32.mrb[0].mxu0
      %v2126 = vpop.f32.mrb[0].mxu0
      %v2127 = vadd.f32 0.0, %v2126
      %v2128 = vpop.f32.mrb[0].mxu0
      %2129 = vmatprep.mubr.bf16.mxu0 0
      %2130 = vmatmul.mubr.bf16.gmra.mrb[0].mxu0 %v1003
      %v2131 = vpop.f32.mrb[0].mxu0
      %v2132 = vadd.f32 0.0, %v2131
      %v2133 = vpop.f32.mrb[0].mxu0
      %v2134 = vpop.f32.mrb[0].mxu0
      %v2135 = vadd.f32 0.0, %v2134
      %v2136 = vpop.f32.mrb[0].mxu0
      %2137 = vmatprep.mubr.bf16.mxu0 0
      %2138 = vmatmul.mubr.bf16.gmra.mrb[0].mxu0 %v1011
      %v2139 = vpop.f32.mrb[0].mxu0
      %v2140 = vadd.f32 0.0, %v2139
      %v2141 = vpop.f32.mrb[0].mxu0
      %v2142 = vpop.f32.mrb[0].mxu0
      %v2143 = vadd.f32 0.0, %v2142
      %v2144 = vpop.f32.mrb[0].mxu0
      %2145 = vmatprep.mubr.bf16.mxu0 0
      %2146 = vmatmul.mubr.bf16.gmra.mrb[0].mxu0 %v1959
      %v2147 = vpop.f32.mrb[0].mxu0
      %v2148 = vadd.f32 0.0, %v2147
      %v2149 = vpop.f32.mrb[0].mxu0
      %v2150 = vpop.f32.mrb[0].mxu0
      %v2151 = vadd.f32 0.0, %v2150
      %v2152 = vpop.f32.mrb[0].mxu0
      %2153 = vdwg.mxu0
      %v2154 = vadd.f32 %v1907, %v2044
      %v2155 = vadd.f32 %v1908, %v2047
      %v2156 = vadd.f32 %v1909, %v2052
      %v2157 = vadd.f32 %v1910, %v2055
      %v2158 = vadd.f32 %v1911, %v2060
      %v2159 = vadd.f32 %v1912, %v2063
      %v2160 = vadd.f32 %v1913, %v2068
      %v2161 = vadd.f32 %v1914, %v2071
      %v2162 = vadd.f32 %v1915, %v2076
      %v2163 = vadd.f32 %v1916, %v2079
      %v2164 = vadd.f32 %v1917, %v2084
      %v2165 = vadd.f32 %v1918, %v2087
      %v2166 = vadd.f32 %v1919, %v2092
      %v2167 = vadd.f32 %v1920, %v2095
      %v2168 = vadd.f32 %v1921, %v2100
      %v2169 = vadd.f32 %v1922, %v2103
      %v2170 = vadd.f32 %v1923, %v2108
      %v2171 = vadd.f32 %v1924, %v2111
      %v2172 = vadd.f32 %v1925, %v2116
      %v2173 = vadd.f32 %v1926, %v2119
      %v2174 = vadd.f32 %v1927, %v2124
      %v2175 = vadd.f32 %v1928, %v2127
      %v2176 = vadd.f32 %v1929, %v2132
      %v2177 = vadd.f32 %v1930, %v2135
      %v2178 = vadd.f32 %v1931, %v2140
      %v2179 = vadd.f32 %v1932, %v2143
      %v2180 = vadd.f32 %v1933, %v2148
      %v2181 = vadd.f32 %v1934, %v2151
      %2182 = vst [vmem:[#allocation2] sm:$0xff] %v2154
      %2183 = vst [vmem:[#allocation2 + $0x8] sm:$0xff] %v2155
      %2184 = vst [vmem:[#allocation2 + $0x10] sm:$0xff] %v2156
      %2185 = vst [vmem:[#allocation2 + $0x18] sm:$0xff] %v2157
      %2186 = vst [vmem:[#allocation2 + $0x20] sm:$0xff] %v2158
      %2187 = vst [vmem:[#allocation2 + $0x28] sm:$0xff] %v2159
      %2188 = vst [vmem:[#allocation2 + $0x30] sm:$0xff] %v2160
      %2189 = vst [vmem:[#allocation2 + $0x38] sm:$0xff] %v2161
      %2190 = vst [vmem:[#allocation2 + $0x40] sm:$0xff] %v2162
      %2191 = vst [vmem:[#allocation2 + $0x48] sm:$0xff] %v2163
      %2192 = vst [vmem:[#allocation2 + $0x50] sm:$0xff] %v2164
      %2193 = vst [vmem:[#allocation2 + $0x58] sm:$0xff] %v2165
      %2194 = vst [vmem:[#allocation2 + $0x60] sm:$0xff] %v2166
      %2195 = vst [vmem:[#allocation2 + $0x68] sm:$0xff] %v2167
      %2196 = vst [vmem:[#allocation2 + $0x70] sm:$0xff] %v2168
      %2197 = vst [vmem:[#allocation2 + $0x78] sm:$0xff] %v2169
      %2198 = vst [vmem:[#allocation2 + $0x80] sm:$0xff] %v2170
      %2199 = vst [vmem:[#allocation2 + $0x88] sm:$0xff] %v2171
      %2200 = vst [vmem:[#allocation2 + $0x90] sm:$0xff] %v2172
      %2201 = vst [vmem:[#allocation2 + $0x98] sm:$0xff] %v2173
      %2202 = vst [vmem:[#allocation2 + $0xa0] sm:$0xff] %v2174
      %2203 = vst [vmem:[#allocation2 + $0xa8] sm:$0xff] %v2175
      %2204 = vst [vmem:[#allocation2 + $0xb0] sm:$0xff] %v2176
      %2205 = vst [vmem:[#allocation2 + $0xb8] sm:$0xff] %v2177
      %2206 = vst [vmem:[#allocation2 + $0xc0] sm:$0xff] %v2178
      %2207 = vst [vmem:[#allocation2 + $0xc8] sm:$0xff] %v2179
      %2208 = vst [vmem:[#allocation2 + $0xd0] sm:$0xff] %v2180
      %2209 = vst [vmem:[#allocation2 + $0xd8] sm:$0xff] %v2181
      %v2210 = vld [vmem:[#allocation2] sm:$0xff]
      %v2211 = vld [vmem:[#allocation2 + $0x8] sm:$0xff]
      %v2212 = vld [vmem:[#allocation2 + $0x10] sm:$0xff]
      %v2213 = vld [vmem:[#allocation2 + $0x18] sm:$0xff]
      %v2214 = vld [vmem:[#allocation2 + $0x20] sm:$0xff]
      %v2215 = vld [vmem:[#allocation2 + $0x28] sm:$0xff]
      %v2216 = vld [vmem:[#allocation2 + $0x30] sm:$0xff]
      %v2217 = vld [vmem:[#allocation2 + $0x38] sm:$0xff]
      %v2218 = vld [vmem:[#allocation2 + $0x40] sm:$0xff]
      %v2219 = vld [vmem:[#allocation2 + $0x48] sm:$0xff]
      %v2220 = vld [vmem:[#allocation2 + $0x50] sm:$0xff]
      %v2221 = vld [vmem:[#allocation2 + $0x58] sm:$0xff]
      %v2222 = vld [vmem:[#allocation2 + $0x60] sm:$0xff]
      %v2223 = vld [vmem:[#allocation2 + $0x68] sm:$0xff]
      %v2224 = vld [vmem:[#allocation2 + $0x70] sm:$0xff]
      %v2225 = vld [vmem:[#allocation2 + $0x78] sm:$0xff]
      %v2226 = vld [vmem:[#allocation2 + $0x80] sm:$0xff]
      %v2227 = vld [vmem:[#allocation2 + $0x88] sm:$0xff]
      %v2228 = vld [vmem:[#allocation2 + $0x90] sm:$0xff]
      %v2229 = vld [vmem:[#allocation2 + $0x98] sm:$0xff]
      %v2230 = vld [vmem:[#allocation2 + $0xa0] sm:$0xff]
      %v2231 = vld [vmem:[#allocation2 + $0xa8] sm:$0xff]
      %v2232 = vld [vmem:[#allocation2 + $0xb0] sm:$0xff]
      %v2233 = vld [vmem:[#allocation2 + $0xb8] sm:$0xff]
      %v2234 = vld [vmem:[#allocation2 + $0xc0] sm:$0xff]
      %v2235 = vld [vmem:[#allocation2 + $0xc8] sm:$0xff]
      %v2236 = vld [vmem:[#allocation2 + $0xd0] sm:$0xff]
      %v2237 = vld [vmem:[#allocation2 + $0xd8] sm:$0xff]
      %s2238 = scalar_lea.vmem %s3, 320
      %v2239 = vld [vmem:[%s2238] sm:$0xf]
      %v2240 = vld [vmem:[%s2238 + $0x4] sm:$0xf]
      %v2241 = vld [vmem:[%s2238 + $0x8] sm:$0xf]
      %v2242 = vld [vmem:[%s2238 + $0xc] sm:$0xf]
      %v2243 = vld [vmem:[%s2238 + $0x10] sm:$0xf]
      %v2244 = vld [vmem:[%s2238 + $0x14] sm:$0xf]
      %v2245 = vld [vmem:[%s2238 + $0x18] sm:$0xf]
      %v2246 = vld [vmem:[%s2238 + $0x1c] sm:$0xf]
      %v2247 = vld [vmem:[%s2238 + $0x20] sm:$0xf]
      %v2248 = vld [vmem:[%s2238 + $0x24] sm:$0xf]
      %v2249 = vld [vmem:[%s2238 + $0x28] sm:$0xf]
      %v2250 = vld [vmem:[%s2238 + $0x2c] sm:$0xf]
      %v2251 = vld [vmem:[%s2238 + $0x30] sm:$0xf]
      %v2252 = vld [vmem:[%s2238 + $0x34] sm:$0xf]
      %v2253 = vld [vmem:[%s2238 + $0x38] sm:$0xf]
      %v2254 = vld [vmem:[%s2238 + $0x3c] sm:$0xf]
      %v2255 = vrot.slane %v611, 1
      %v2256 = vsel %vm1320, %v1348, %v2255
      %v2274 = vunpack.c.l.b16 %v2239
      %v2275 = vunpack.c.l.b16 %v2240
      %v2276 = vunpack.c.l.b16 %v2241
      %v2277 = vunpack.c.l.b16 %v2242
      %v2278 = vunpack.c.l.b16 %v2243
      %v2279 = vunpack.c.l.b16 %v2244
      %v2280 = vunpack.c.l.b16 %v2245
      %v2281 = vunpack.c.l.b16 %v2246
      %v2282 = vunpack.c.l.b16 %v2247
      %v2283 = vunpack.c.l.b16 %v2248
      %v2284 = vunpack.c.l.b16 %v2249
      %v2285 = vunpack.c.l.b16 %v2250
      %v2286 = vunpack.c.l.b16 %v2251
      %v2287 = vunpack.c.l.b16 %v2252
      %v2288 = vunpack.c.l.b16 %v2253
      %v2289 = vunpack.c.l.b16 %v2254
      %v2290 = vpack.c.b16 %v2275, %v2274
      %v2291 = vpack.c.b16 %v2277, %v2276
      %v2292 = vpack.c.b16 %v2279, %v2278
      %v2293 = vpack.c.b16 %v2281, %v2280
      %v2294 = vpack.c.b16 %v2283, %v2282
      %v2295 = vpack.c.b16 %v2285, %v2284
      %v2296 = vpack.c.b16 %v2287, %v2286
      %v2297 = vpack.c.b16 %v2289, %v2288
      %2306 = vmatprep.subr.bf16.mxu0 0
      %2307 = vmatpush1.bf16.msra.mxu0 %v2290
      %2308 = vmatprep.subr.bf16.mxu0 0
      %2309 = vmatpush1.bf16.msra.mxu0 %v2291
      %2310 = vmatprep.subr.bf16.mxu0 0
      %2311 = vmatpush1.bf16.msra.mxu0 %v2292
      %2312 = vmatprep.subr.bf16.mxu0 0
      %2313 = vmatpush1.bf16.msra.mxu0 %v2293
      %2314 = vmatprep.subr.bf16.mxu0 0
      %2315 = vmatpush1.bf16.msra.mxu0 %v2294
      %2316 = vmatprep.subr.bf16.mxu0 0
      %2317 = vmatpush1.bf16.msra.mxu0 %v2295
      %2318 = vmatprep.subr.bf16.mxu0 0
      %2319 = vmatpush1.bf16.msra.mxu0 %v2296
      %2320 = vmatprep.subr.bf16.mxu0 0
      %2321 = vmatpush1.bf16.msra.mxu0 %v2297
      %2322 = vmatprep.subr.bf16.mxu0 0
      %2323 = vmatpush1.bf16.msra.mxu0 0
      %2324 = vmatprep.subr.bf16.mxu0 0
      %2325 = vmatpush1.bf16.msra.mxu0 0
      %2326 = vmatprep.subr.bf16.mxu0 0
      %2327 = vmatpush1.bf16.msra.mxu0 0
      %2328 = vmatprep.subr.bf16.mxu0 0
      %2329 = vmatpush1.bf16.msra.mxu0 0
      %2330 = vmatprep.subr.bf16.mxu0 0
      %2331 = vmatpush1.bf16.msra.mxu0 0
      %2332 = vmatprep.subr.bf16.mxu0 0
      %2333 = vmatpush1.bf16.msra.mxu0 0
      %2334 = vmatprep.subr.bf16.mxu0 0
      %2335 = vmatpush1.bf16.msra.mxu0 0
      %2336 = vmatprep.subr.bf16.mxu0 0
      %2337 = vmatpush1.bf16.msra.mxu0 0
      %2338 = vmatprep.mubr.bf16.mxu0 0
      %2339 = vmatmul.mubr.bf16.gmra.mrb[0].mxu0 %v1325
      %v2340 = vpop.f32.mrb[0].mxu0
      %v2341 = vadd.f32 0.0, %v2340
      %v2342 = vpop.f32.mrb[0].mxu0
      %v2343 = vpop.f32.mrb[0].mxu0
      %v2344 = vadd.f32 0.0, %v2343
      %v2345 = vpop.f32.mrb[0].mxu0
      %2346 = vmatprep.mubr.bf16.mxu0 0
      %2347 = vmatmul.mubr.bf16.gmra.mrb[0].mxu0 %v1327
      %v2348 = vpop.f32.mrb[0].mxu0
      %v2349 = vadd.f32 0.0, %v2348
      %v2350 = vpop.f32.mrb[0].mxu0
      %v2351 = vpop.f32.mrb[0].mxu0
      %v2352 = vadd.f32 0.0, %v2351
      %v2353 = vpop.f32.mrb[0].mxu0
      %2354 = vmatprep.mubr.bf16.mxu0 0
      %2355 = vmatmul.mubr.bf16.gmra.mrb[0].mxu0 %v1329
      %v2356 = vpop.f32.mrb[0].mxu0
      %v2357 = vadd.f32 0.0, %v2356
      %v2358 = vpop.f32.mrb[0].mxu0
      %v2359 = vpop.f32.mrb[0].mxu0
      %v2360 = vadd.f32 0.0, %v2359
      %v2361 = vpop.f32.mrb[0].mxu0
      %2362 = vmatprep.mubr.bf16.mxu0 0
      %2363 = vmatmul.mubr.bf16.gmra.mrb[0].mxu0 %v1331
      %v2364 = vpop.f32.mrb[0].mxu0
      %v2365 = vadd.f32 0.0, %v2364
      %v2366 = vpop.f32.mrb[0].mxu0
      %v2367 = vpop.f32.mrb[0].mxu0
      %v2368 = vadd.f32 0.0, %v2367
      %v2369 = vpop.f32.mrb[0].mxu0
      %2370 = vmatprep.mubr.bf16.mxu0 0
      %2371 = vmatmul.mubr.bf16.gmra.mrb[0].mxu0 %v1333
      %v2372 = vpop.f32.mrb[0].mxu0
      %v2373 = vadd.f32 0.0, %v2372
      %v2374 = vpop.f32.mrb[0].mxu0
      %v2375 = vpop.f32.mrb[0].mxu0
      %v2376 = vadd.f32 0.0, %v2375
      %v2377 = vpop.f32.mrb[0].mxu0
      %2378 = vmatprep.mubr.bf16.mxu0 0
      %2379 = vmatmul.mubr.bf16.gmra.mrb[0].mxu0 %v1335
      %v2380 = vpop.f32.mrb[0].mxu0
      %v2381 = vadd.f32 0.0, %v2380
      %v2382 = vpop.f32.mrb[0].mxu0
      %v2383 = vpop.f32.mrb[0].mxu0
      %v2384 = vadd.f32 0.0, %v2383
      %v2385 = vpop.f32.mrb[0].mxu0
      %2386 = vmatprep.mubr.bf16.mxu0 0
      %2387 = vmatmul.mubr.bf16.gmra.mrb[0].mxu0 %v1337
      %v2388 = vpop.f32.mrb[0].mxu0
      %v2389 = vadd.f32 0.0, %v2388
      %v2390 = vpop.f32.mrb[0].mxu0
      %v2391 = vpop.f32.mrb[0].mxu0
      %v2392 = vadd.f32 0.0, %v2391
      %v2393 = vpop.f32.mrb[0].mxu0
      %2394 = vmatprep.mubr.bf16.mxu0 0
      %2395 = vmatmul.mubr.bf16.gmra.mrb[0].mxu0 %v1339
      %v2396 = vpop.f32.mrb[0].mxu0
      %v2397 = vadd.f32 0.0, %v2396
      %v2398 = vpop.f32.mrb[0].mxu0
      %v2399 = vpop.f32.mrb[0].mxu0
      %v2400 = vadd.f32 0.0, %v2399
      %v2401 = vpop.f32.mrb[0].mxu0
      %2402 = vmatprep.mubr.bf16.mxu0 0
      %2403 = vmatmul.mubr.bf16.gmra.mrb[0].mxu0 %v1341
      %v2404 = vpop.f32.mrb[0].mxu0
      %v2405 = vadd.f32 0.0, %v2404
      %v2406 = vpop.f32.mrb[0].mxu0
      %v2407 = vpop.f32.mrb[0].mxu0
      %v2408 = vadd.f32 0.0, %v2407
      %v2409 = vpop.f32.mrb[0].mxu0
      %2410 = vmatprep.mubr.bf16.mxu0 0
      %2411 = vmatmul.mubr.bf16.gmra.mrb[0].mxu0 %v1343
      %v2412 = vpop.f32.mrb[0].mxu0
      %v2413 = vadd.f32 0.0, %v2412
      %v2414 = vpop.f32.mrb[0].mxu0
      %v2415 = vpop.f32.mrb[0].mxu0
      %v2416 = vadd.f32 0.0, %v2415
      %v2417 = vpop.f32.mrb[0].mxu0
      %2418 = vmatprep.mubr.bf16.mxu0 0
      %2419 = vmatmul.mubr.bf16.gmra.mrb[0].mxu0 %v1345
      %v2420 = vpop.f32.mrb[0].mxu0
      %v2421 = vadd.f32 0.0, %v2420
      %v2422 = vpop.f32.mrb[0].mxu0
      %v2423 = vpop.f32.mrb[0].mxu0
      %v2424 = vadd.f32 0.0, %v2423
      %v2425 = vpop.f32.mrb[0].mxu0
      %2426 = vmatprep.mubr.bf16.mxu0 0
      %2427 = vmatmul.mubr.bf16.gmra.mrb[0].mxu0 %v1347
      %v2428 = vpop.f32.mrb[0].mxu0
      %v2429 = vadd.f32 0.0, %v2428
      %v2430 = vpop.f32.mrb[0].mxu0
      %v2431 = vpop.f32.mrb[0].mxu0
      %v2432 = vadd.f32 0.0, %v2431
      %v2433 = vpop.f32.mrb[0].mxu0
      %2434 = vmatprep.mubr.bf16.mxu0 0
      %2435 = vmatmul.mubr.bf16.gmra.mrb[0].mxu0 %v1349
      %v2436 = vpop.f32.mrb[0].mxu0
      %v2437 = vadd.f32 0.0, %v2436
      %v2438 = vpop.f32.mrb[0].mxu0
      %v2439 = vpop.f32.mrb[0].mxu0
      %v2440 = vadd.f32 0.0, %v2439
      %v2441 = vpop.f32.mrb[0].mxu0
      %2442 = vmatprep.mubr.bf16.mxu0 0
      %2443 = vmatmul.mubr.bf16.gmra.mrb[0].mxu0 %v2256
      %v2444 = vpop.f32.mrb[0].mxu0
      %v2445 = vadd.f32 0.0, %v2444
      %v2446 = vpop.f32.mrb[0].mxu0
      %v2447 = vpop.f32.mrb[0].mxu0
      %v2448 = vadd.f32 0.0, %v2447
      %v2449 = vpop.f32.mrb[0].mxu0
      %2450 = vdwg.mxu0
      %v2451 = vadd.f32 %v2210, %v2341
      %v2452 = vadd.f32 %v2211, %v2344
      %v2453 = vadd.f32 %v2212, %v2349
      %v2454 = vadd.f32 %v2213, %v2352
      %v2455 = vadd.f32 %v2214, %v2357
      %v2456 = vadd.f32 %v2215, %v2360
      %v2457 = vadd.f32 %v2216, %v2365
      %v2458 = vadd.f32 %v2217, %v2368
      %v2459 = vadd.f32 %v2218, %v2373
      %v2460 = vadd.f32 %v2219, %v2376
      %v2461 = vadd.f32 %v2220, %v2381
      %v2462 = vadd.f32 %v2221, %v2384
      %v2463 = vadd.f32 %v2222, %v2389
      %v2464 = vadd.f32 %v2223, %v2392
      %v2465 = vadd.f32 %v2224, %v2397
      %v2466 = vadd.f32 %v2225, %v2400
      %v2467 = vadd.f32 %v2226, %v2405
      %v2468 = vadd.f32 %v2227, %v2408
      %v2469 = vadd.f32 %v2228, %v2413
      %v2470 = vadd.f32 %v2229, %v2416
      %v2471 = vadd.f32 %v2230, %v2421
      %v2472 = vadd.f32 %v2231, %v2424
      %v2473 = vadd.f32 %v2232, %v2429
      %v2474 = vadd.f32 %v2233, %v2432
      %v2475 = vadd.f32 %v2234, %v2437
      %v2476 = vadd.f32 %v2235, %v2440
      %v2477 = vadd.f32 %v2236, %v2445
      %v2478 = vadd.f32 %v2237, %v2448
      %2479 = vst [vmem:[#allocation2] sm:$0xff] %v2451
      %2480 = vst [vmem:[#allocation2 + $0x8] sm:$0xff] %v2452
      %2481 = vst [vmem:[#allocation2 + $0x10] sm:$0xff] %v2453
      %2482 = vst [vmem:[#allocation2 + $0x18] sm:$0xff] %v2454
      %2483 = vst [vmem:[#allocation2 + $0x20] sm:$0xff] %v2455
      %2484 = vst [vmem:[#allocation2 + $0x28] sm:$0xff] %v2456
      %2485 = vst [vmem:[#allocation2 + $0x30] sm:$0xff] %v2457
      %2486 = vst [vmem:[#allocation2 + $0x38] sm:$0xff] %v2458
      %2487 = vst [vmem:[#allocation2 + $0x40] sm:$0xff] %v2459
      %2488 = vst [vmem:[#allocation2 + $0x48] sm:$0xff] %v2460
      %2489 = vst [vmem:[#allocation2 + $0x50] sm:$0xff] %v2461
      %2490 = vst [vmem:[#allocation2 + $0x58] sm:$0xff] %v2462
      %2491 = vst [vmem:[#allocation2 + $0x60] sm:$0xff] %v2463
      %2492 = vst [vmem:[#allocation2 + $0x68] sm:$0xff] %v2464
      %2493 = vst [vmem:[#allocation2 + $0x70] sm:$0xff] %v2465
      %2494 = vst [vmem:[#allocation2 + $0x78] sm:$0xff] %v2466
      %2495 = vst [vmem:[#allocation2 + $0x80] sm:$0xff] %v2467
      %2496 = vst [vmem:[#allocation2 + $0x88] sm:$0xff] %v2468
      %2497 = vst [vmem:[#allocation2 + $0x90] sm:$0xff] %v2469
      %2498 = vst [vmem:[#allocation2 + $0x98] sm:$0xff] %v2470
      %2499 = vst [vmem:[#allocation2 + $0xa0] sm:$0xff] %v2471
      %2500 = vst [vmem:[#allocation2 + $0xa8] sm:$0xff] %v2472
      %2501 = vst [vmem:[#allocation2 + $0xb0] sm:$0xff] %v2473
      %2502 = vst [vmem:[#allocation2 + $0xb8] sm:$0xff] %v2474
      %2503 = vst [vmem:[#allocation2 + $0xc0] sm:$0xff] %v2475
      %2504 = vst [vmem:[#allocation2 + $0xc8] sm:$0xff] %v2476
      %2505 = vst [vmem:[#allocation2 + $0xd0] sm:$0xff] %v2477
      %2506 = vst [vmem:[#allocation2 + $0xd8] sm:$0xff] %v2478
      %v2507 = vld [vmem:[#allocation2] sm:$0xff]
      %v2508 = vld [vmem:[#allocation2 + $0x8] sm:$0xff]
      %v2509 = vld [vmem:[#allocation2 + $0x10] sm:$0xff]
      %v2510 = vld [vmem:[#allocation2 + $0x18] sm:$0xff]
      %v2511 = vld [vmem:[#allocation2 + $0x20] sm:$0xff]
      %v2512 = vld [vmem:[#allocation2 + $0x28] sm:$0xff]
      %v2513 = vld [vmem:[#allocation2 + $0x30] sm:$0xff]
      %v2514 = vld [vmem:[#allocation2 + $0x38] sm:$0xff]
      %v2515 = vld [vmem:[#allocation2 + $0x40] sm:$0xff]
      %v2516 = vld [vmem:[#allocation2 + $0x48] sm:$0xff]
      %v2517 = vld [vmem:[#allocation2 + $0x50] sm:$0xff]
      %v2518 = vld [vmem:[#allocation2 + $0x58] sm:$0xff]
      %v2519 = vld [vmem:[#allocation2 + $0x60] sm:$0xff]
      %v2520 = vld [vmem:[#allocation2 + $0x68] sm:$0xff]
      %v2521 = vld [vmem:[#allocation2 + $0x70] sm:$0xff]
      %v2522 = vld [vmem:[#allocation2 + $0x78] sm:$0xff]
      %v2523 = vld [vmem:[#allocation2 + $0x80] sm:$0xff]
      %v2524 = vld [vmem:[#allocation2 + $0x88] sm:$0xff]
      %v2525 = vld [vmem:[#allocation2 + $0x90] sm:$0xff]
      %v2526 = vld [vmem:[#allocation2 + $0x98] sm:$0xff]
      %v2527 = vld [vmem:[#allocation2 + $0xa0] sm:$0xff]
      %v2528 = vld [vmem:[#allocation2 + $0xa8] sm:$0xff]
      %v2529 = vld [vmem:[#allocation2 + $0xb0] sm:$0xff]
      %v2530 = vld [vmem:[#allocation2 + $0xb8] sm:$0xff]
      %v2531 = vld [vmem:[#allocation2 + $0xc0] sm:$0xff]
      %v2532 = vld [vmem:[#allocation2 + $0xc8] sm:$0xff]
      %v2533 = vld [vmem:[#allocation2 + $0xd0] sm:$0xff]
      %v2534 = vld [vmem:[#allocation2 + $0xd8] sm:$0xff]
      %s2535 = scalar_lea.vmem %s3, 384
      %v2536 = vld [vmem:[%s2535] sm:$0xf]
      %v2537 = vld [vmem:[%s2535 + $0x4] sm:$0xf]
      %v2538 = vld [vmem:[%s2535 + $0x8] sm:$0xf]
      %v2539 = vld [vmem:[%s2535 + $0xc] sm:$0xf]
      %v2540 = vld [vmem:[%s2535 + $0x10] sm:$0xf]
      %v2541 = vld [vmem:[%s2535 + $0x14] sm:$0xf]
      %v2542 = vld [vmem:[%s2535 + $0x18] sm:$0xf]
      %v2543 = vld [vmem:[%s2535 + $0x1c] sm:$0xf]
      %v2544 = vld [vmem:[%s2535 + $0x20] sm:$0xf]
      %v2545 = vld [vmem:[%s2535 + $0x24] sm:$0xf]
      %v2546 = vld [vmem:[%s2535 + $0x28] sm:$0xf]
      %v2547 = vld [vmem:[%s2535 + $0x2c] sm:$0xf]
      %v2548 = vld [vmem:[%s2535 + $0x30] sm:$0xf]
      %v2549 = vld [vmem:[%s2535 + $0x34] sm:$0xf]
      %v2550 = vld [vmem:[%s2535 + $0x38] sm:$0xf]
      %v2551 = vld [vmem:[%s2535 + $0x3c] sm:$0xf]
      %v2568 = vunpack.c.l.b16 %v2536
      %v2569 = vunpack.c.l.b16 %v2537
      %v2570 = vunpack.c.l.b16 %v2538
      %v2571 = vunpack.c.l.b16 %v2539
      %v2572 = vunpack.c.l.b16 %v2540
      %v2573 = vunpack.c.l.b16 %v2541
      %v2574 = vunpack.c.l.b16 %v2542
      %v2575 = vunpack.c.l.b16 %v2543
      %v2576 = vunpack.c.l.b16 %v2544
      %v2577 = vunpack.c.l.b16 %v2545
      %v2578 = vunpack.c.l.b16 %v2546
      %v2579 = vunpack.c.l.b16 %v2547
      %v2580 = vunpack.c.l.b16 %v2548
      %v2581 = vunpack.c.l.b16 %v2549
      %v2582 = vunpack.c.l.b16 %v2550
      %v2583 = vunpack.c.l.b16 %v2551
      %v2584 = vpack.c.b16 %v2569, %v2568
      %v2585 = vpack.c.b16 %v2571, %v2570
      %v2586 = vpack.c.b16 %v2573, %v2572
      %v2587 = vpack.c.b16 %v2575, %v2574
      %v2588 = vpack.c.b16 %v2577, %v2576
      %v2589 = vpack.c.b16 %v2579, %v2578
      %v2590 = vpack.c.b16 %v2581, %v2580
      %v2591 = vpack.c.b16 %v2583, %v2582
      %2600 = vmatprep.subr.bf16.mxu0 0
      %2601 = vmatpush1.bf16.msra.mxu0 %v2584
      %2602 = vmatprep.subr.bf16.mxu0 0
      %2603 = vmatpush1.bf16.msra.mxu0 %v2585
      %2604 = vmatprep.subr.bf16.mxu0 0
      %2605 = vmatpush1.bf16.msra.mxu0 %v2586
      %2606 = vmatprep.subr.bf16.mxu0 0
      %2607 = vmatpush1.bf16.msra.mxu0 %v2587
      %2608 = vmatprep.subr.bf16.mxu0 0
      %2609 = vmatpush1.bf16.msra.mxu0 %v2588
      %2610 = vmatprep.subr.bf16.mxu0 0
      %2611 = vmatpush1.bf16.msra.mxu0 %v2589
      %2612 = vmatprep.subr.bf16.mxu0 0
      %2613 = vmatpush1.bf16.msra.mxu0 %v2590
      %2614 = vmatprep.subr.bf16.mxu0 0
      %2615 = vmatpush1.bf16.msra.mxu0 %v2591
      %2616 = vmatprep.subr.bf16.mxu0 0
      %2617 = vmatpush1.bf16.msra.mxu0 0
      %2618 = vmatprep.subr.bf16.mxu0 0
      %2619 = vmatpush1.bf16.msra.mxu0 0
      %2620 = vmatprep.subr.bf16.mxu0 0
      %2621 = vmatpush1.bf16.msra.mxu0 0
      %2622 = vmatprep.subr.bf16.mxu0 0
      %2623 = vmatpush1.bf16.msra.mxu0 0
      %2624 = vmatprep.subr.bf16.mxu0 0
      %2625 = vmatpush1.bf16.msra.mxu0 0
      %2626 = vmatprep.subr.bf16.mxu0 0
      %2627 = vmatpush1.bf16.msra.mxu0 0
      %2628 = vmatprep.subr.bf16.mxu0 0
      %2629 = vmatpush1.bf16.msra.mxu0 0
      %2630 = vmatprep.subr.bf16.mxu0 0
      %2631 = vmatpush1.bf16.msra.mxu0 0
      %2632 = vmatprep.mubr.bf16.mxu0 0
      %2633 = vmatmul.mubr.bf16.gmra.mrb[0].mxu0 %v575
      %v2634 = vpop.f32.mrb[0].mxu0
      %v2635 = vadd.f32 0.0, %v2634
      %v2636 = vpop.f32.mrb[0].mxu0
      %v2637 = vpop.f32.mrb[0].mxu0
      %v2638 = vadd.f32 0.0, %v2637
      %v2639 = vpop.f32.mrb[0].mxu0
      %2640 = vmatprep.mubr.bf16.mxu0 0
      %2641 = vmatmul.mubr.bf16.gmra.mrb[0].mxu0 %v576
      %v2642 = vpop.f32.mrb[0].mxu0
      %v2643 = vadd.f32 0.0, %v2642
      %v2644 = vpop.f32.mrb[0].mxu0
      %v2645 = vpop.f32.mrb[0].mxu0
      %v2646 = vadd.f32 0.0, %v2645
      %v2647 = vpop.f32.mrb[0].mxu0
      %2648 = vmatprep.mubr.bf16.mxu0 0
      %2649 = vmatmul.mubr.bf16.gmra.mrb[0].mxu0 %v577
      %v2650 = vpop.f32.mrb[0].mxu0
      %v2651 = vadd.f32 0.0, %v2650
      %v2652 = vpop.f32.mrb[0].mxu0
      %v2653 = vpop.f32.mrb[0].mxu0
      %v2654 = vadd.f32 0.0, %v2653
      %v2655 = vpop.f32.mrb[0].mxu0
      %2656 = vmatprep.mubr.bf16.mxu0 0
      %2657 = vmatmul.mubr.bf16.gmra.mrb[0].mxu0 %v578
      %v2658 = vpop.f32.mrb[0].mxu0
      %v2659 = vadd.f32 0.0, %v2658
      %v2660 = vpop.f32.mrb[0].mxu0
      %v2661 = vpop.f32.mrb[0].mxu0
      %v2662 = vadd.f32 0.0, %v2661
      %v2663 = vpop.f32.mrb[0].mxu0
      %2664 = vmatprep.mubr.bf16.mxu0 0
      %2665 = vmatmul.mubr.bf16.gmra.mrb[0].mxu0 %v579
      %v2666 = vpop.f32.mrb[0].mxu0
      %v2667 = vadd.f32 0.0, %v2666
      %v2668 = vpop.f32.mrb[0].mxu0
      %v2669 = vpop.f32.mrb[0].mxu0
      %v2670 = vadd.f32 0.0, %v2669
      %v2671 = vpop.f32.mrb[0].mxu0
      %2672 = vmatprep.mubr.bf16.mxu0 0
      %2673 = vmatmul.mubr.bf16.gmra.mrb[0].mxu0 %v580
      %v2674 = vpop.f32.mrb[0].mxu0
      %v2675 = vadd.f32 0.0, %v2674
      %v2676 = vpop.f32.mrb[0].mxu0
      %v2677 = vpop.f32.mrb[0].mxu0
      %v2678 = vadd.f32 0.0, %v2677
      %v2679 = vpop.f32.mrb[0].mxu0
      %2680 = vmatprep.mubr.bf16.mxu0 0
      %2681 = vmatmul.mubr.bf16.gmra.mrb[0].mxu0 %v581
      %v2682 = vpop.f32.mrb[0].mxu0
      %v2683 = vadd.f32 0.0, %v2682
      %v2684 = vpop.f32.mrb[0].mxu0
      %v2685 = vpop.f32.mrb[0].mxu0
      %v2686 = vadd.f32 0.0, %v2685
      %v2687 = vpop.f32.mrb[0].mxu0
      %2688 = vmatprep.mubr.bf16.mxu0 0
      %2689 = vmatmul.mubr.bf16.gmra.mrb[0].mxu0 %v582
      %v2690 = vpop.f32.mrb[0].mxu0
      %v2691 = vadd.f32 0.0, %v2690
      %v2692 = vpop.f32.mrb[0].mxu0
      %v2693 = vpop.f32.mrb[0].mxu0
      %v2694 = vadd.f32 0.0, %v2693
      %v2695 = vpop.f32.mrb[0].mxu0
      %2696 = vmatprep.mubr.bf16.mxu0 0
      %2697 = vmatmul.mubr.bf16.gmra.mrb[0].mxu0 %v583
      %v2698 = vpop.f32.mrb[0].mxu0
      %v2699 = vadd.f32 0.0, %v2698
      %v2700 = vpop.f32.mrb[0].mxu0
      %v2701 = vpop.f32.mrb[0].mxu0
      %v2702 = vadd.f32 0.0, %v2701
      %v2703 = vpop.f32.mrb[0].mxu0
      %2704 = vmatprep.mubr.bf16.mxu0 0
      %2705 = vmatmul.mubr.bf16.gmra.mrb[0].mxu0 %v584
      %v2706 = vpop.f32.mrb[0].mxu0
      %v2707 = vadd.f32 0.0, %v2706
      %v2708 = vpop.f32.mrb[0].mxu0
      %v2709 = vpop.f32.mrb[0].mxu0
      %v2710 = vadd.f32 0.0, %v2709
      %v2711 = vpop.f32.mrb[0].mxu0
      %2712 = vmatprep.mubr.bf16.mxu0 0
      %2713 = vmatmul.mubr.bf16.gmra.mrb[0].mxu0 %v585
      %v2714 = vpop.f32.mrb[0].mxu0
      %v2715 = vadd.f32 0.0, %v2714
      %v2716 = vpop.f32.mrb[0].mxu0
      %v2717 = vpop.f32.mrb[0].mxu0
      %v2718 = vadd.f32 0.0, %v2717
      %v2719 = vpop.f32.mrb[0].mxu0
      %2720 = vmatprep.mubr.bf16.mxu0 0
      %2721 = vmatmul.mubr.bf16.gmra.mrb[0].mxu0 %v586
      %v2722 = vpop.f32.mrb[0].mxu0
      %v2723 = vadd.f32 0.0, %v2722
      %v2724 = vpop.f32.mrb[0].mxu0
      %v2725 = vpop.f32.mrb[0].mxu0
      %v2726 = vadd.f32 0.0, %v2725
      %v2727 = vpop.f32.mrb[0].mxu0
      %2728 = vmatprep.mubr.bf16.mxu0 0
      %2729 = vmatmul.mubr.bf16.gmra.mrb[0].mxu0 %v605
      %v2730 = vpop.f32.mrb[0].mxu0
      %v2731 = vadd.f32 0.0, %v2730
      %v2732 = vpop.f32.mrb[0].mxu0
      %v2733 = vpop.f32.mrb[0].mxu0
      %v2734 = vadd.f32 0.0, %v2733
      %v2735 = vpop.f32.mrb[0].mxu0
      %2736 = vmatprep.mubr.bf16.mxu0 0
      %2737 = vmatmul.mubr.bf16.gmra.mrb[0].mxu0 %v611
      %v2738 = vpop.f32.mrb[0].mxu0
      %v2739 = vadd.f32 0.0, %v2738
      %v2740 = vpop.f32.mrb[0].mxu0
      %v2741 = vpop.f32.mrb[0].mxu0
      %v2742 = vadd.f32 0.0, %v2741
      %v2743 = vpop.f32.mrb[0].mxu0
      %2744 = vdwg.mxu0
      %v2745 = vadd.f32 %v2507, %v2635
      %v2746 = vadd.f32 %v2508, %v2638
      %v2747 = vadd.f32 %v2509, %v2643
      %v2748 = vadd.f32 %v2510, %v2646
      %v2749 = vadd.f32 %v2511, %v2651
      %v2750 = vadd.f32 %v2512, %v2654
      %v2751 = vadd.f32 %v2513, %v2659
      %v2752 = vadd.f32 %v2514, %v2662
      %v2753 = vadd.f32 %v2515, %v2667
      %v2754 = vadd.f32 %v2516, %v2670
      %v2755 = vadd.f32 %v2517, %v2675
      %v2756 = vadd.f32 %v2518, %v2678
      %v2757 = vadd.f32 %v2519, %v2683
      %v2758 = vadd.f32 %v2520, %v2686
      %v2759 = vadd.f32 %v2521, %v2691
      %v2760 = vadd.f32 %v2522, %v2694
      %v2761 = vadd.f32 %v2523, %v2699
      %v2762 = vadd.f32 %v2524, %v2702
      %v2763 = vadd.f32 %v2525, %v2707
      %v2764 = vadd.f32 %v2526, %v2710
      %v2765 = vadd.f32 %v2527, %v2715
      %v2766 = vadd.f32 %v2528, %v2718
      %v2767 = vadd.f32 %v2529, %v2723
      %v2768 = vadd.f32 %v2530, %v2726
      %v2769 = vadd.f32 %v2531, %v2731
      %v2770 = vadd.f32 %v2532, %v2734
      %v2771 = vadd.f32 %v2533, %v2739
      %v2772 = vadd.f32 %v2534, %v2742
      %2773 = vst [vmem:[#allocation2] sm:$0xff] %v2745
      %2774 = vst [vmem:[#allocation2 + $0x8] sm:$0xff] %v2746
      %2775 = vst [vmem:[#allocation2 + $0x10] sm:$0xff] %v2747
      %2776 = vst [vmem:[#allocation2 + $0x18] sm:$0xff] %v2748
      %2777 = vst [vmem:[#allocation2 + $0x20] sm:$0xff] %v2749
      %2778 = vst [vmem:[#allocation2 + $0x28] sm:$0xff] %v2750
      %2779 = vst [vmem:[#allocation2 + $0x30] sm:$0xff] %v2751
      %2780 = vst [vmem:[#allocation2 + $0x38] sm:$0xff] %v2752
      %2781 = vst [vmem:[#allocation2 + $0x40] sm:$0xff] %v2753
      %2782 = vst [vmem:[#allocation2 + $0x48] sm:$0xff] %v2754
      %2783 = vst [vmem:[#allocation2 + $0x50] sm:$0xff] %v2755
      %2784 = vst [vmem:[#allocation2 + $0x58] sm:$0xff] %v2756
      %2785 = vst [vmem:[#allocation2 + $0x60] sm:$0xff] %v2757
      %2786 = vst [vmem:[#allocation2 + $0x68] sm:$0xff] %v2758
      %2787 = vst [vmem:[#allocation2 + $0x70] sm:$0xff] %v2759
      %2788 = vst [vmem:[#allocation2 + $0x78] sm:$0xff] %v2760
      %2789 = vst [vmem:[#allocation2 + $0x80] sm:$0xff] %v2761
      %2790 = vst [vmem:[#allocation2 + $0x88] sm:$0xff] %v2762
      %2791 = vst [vmem:[#allocation2 + $0x90] sm:$0xff] %v2763
      %2792 = vst [vmem:[#allocation2 + $0x98] sm:$0xff] %v2764
      %2793 = vst [vmem:[#allocation2 + $0xa0] sm:$0xff] %v2765
      %2794 = vst [vmem:[#allocation2 + $0xa8] sm:$0xff] %v2766
      %2795 = vst [vmem:[#allocation2 + $0xb0] sm:$0xff] %v2767
      %2796 = vst [vmem:[#allocation2 + $0xb8] sm:$0xff] %v2768
      %2797 = vst [vmem:[#allocation2 + $0xc0] sm:$0xff] %v2769
      %2798 = vst [vmem:[#allocation2 + $0xc8] sm:$0xff] %v2770
      %2799 = vst [vmem:[#allocation2 + $0xd0] sm:$0xff] %v2771
      %2800 = vst [vmem:[#allocation2 + $0xd8] sm:$0xff] %v2772
      %v2801 = vld [vmem:[#allocation2] sm:$0xff]
      %v2802 = vld [vmem:[#allocation2 + $0x8] sm:$0xff]
      %v2803 = vld [vmem:[#allocation2 + $0x10] sm:$0xff]
      %v2804 = vld [vmem:[#allocation2 + $0x18] sm:$0xff]
      %v2805 = vld [vmem:[#allocation2 + $0x20] sm:$0xff]
      %v2806 = vld [vmem:[#allocation2 + $0x28] sm:$0xff]
      %v2807 = vld [vmem:[#allocation2 + $0x30] sm:$0xff]
      %v2808 = vld [vmem:[#allocation2 + $0x38] sm:$0xff]
      %v2809 = vld [vmem:[#allocation2 + $0x40] sm:$0xff]
      %v2810 = vld [vmem:[#allocation2 + $0x48] sm:$0xff]
      %v2811 = vld [vmem:[#allocation2 + $0x50] sm:$0xff]
      %v2812 = vld [vmem:[#allocation2 + $0x58] sm:$0xff]
      %v2813 = vld [vmem:[#allocation2 + $0x60] sm:$0xff]
      %v2814 = vld [vmem:[#allocation2 + $0x68] sm:$0xff]
      %v2815 = vld [vmem:[#allocation2 + $0x70] sm:$0xff]
      %v2816 = vld [vmem:[#allocation2 + $0x78] sm:$0xff]
      %v2817 = vld [vmem:[#allocation2 + $0x80] sm:$0xff]
      %v2818 = vld [vmem:[#allocation2 + $0x88] sm:$0xff]
      %v2819 = vld [vmem:[#allocation2 + $0x90] sm:$0xff]
      %v2820 = vld [vmem:[#allocation2 + $0x98] sm:$0xff]
      %v2821 = vld [vmem:[#allocation2 + $0xa0] sm:$0xff]
      %v2822 = vld [vmem:[#allocation2 + $0xa8] sm:$0xff]
      %v2823 = vld [vmem:[#allocation2 + $0xb0] sm:$0xff]
      %v2824 = vld [vmem:[#allocation2 + $0xb8] sm:$0xff]
      %v2825 = vld [vmem:[#allocation2 + $0xc0] sm:$0xff]
      %v2826 = vld [vmem:[#allocation2 + $0xc8] sm:$0xff]
      %v2827 = vld [vmem:[#allocation2 + $0xd0] sm:$0xff]
      %v2828 = vld [vmem:[#allocation2 + $0xd8] sm:$0xff]
      %s2829 = scalar_lea.vmem %s3, 448
      %v2830 = vld [vmem:[%s2829] sm:$0xf]
      %v2831 = vld [vmem:[%s2829 + $0x4] sm:$0xf]
      %v2832 = vld [vmem:[%s2829 + $0x8] sm:$0xf]
      %v2833 = vld [vmem:[%s2829 + $0xc] sm:$0xf]
      %v2834 = vld [vmem:[%s2829 + $0x10] sm:$0xf]
      %v2835 = vld [vmem:[%s2829 + $0x14] sm:$0xf]
      %v2836 = vld [vmem:[%s2829 + $0x18] sm:$0xf]
      %v2837 = vld [vmem:[%s2829 + $0x1c] sm:$0xf]
      %v2838 = vld [vmem:[%s2829 + $0x20] sm:$0xf]
      %v2839 = vld [vmem:[%s2829 + $0x24] sm:$0xf]
      %v2840 = vld [vmem:[%s2829 + $0x28] sm:$0xf]
      %v2841 = vld [vmem:[%s2829 + $0x2c] sm:$0xf]
      %v2842 = vld [vmem:[%s2829 + $0x30] sm:$0xf]
      %v2843 = vld [vmem:[%s2829 + $0x34] sm:$0xf]
      %v2844 = vld [vmem:[%s2829 + $0x38] sm:$0xf]
      %v2845 = vld [vmem:[%s2829 + $0x3c] sm:$0xf]
      %v2846 = vshrl.u32 %v611, 16
      %v2848 = vor.u32 %v2846, %v1958
      %v2850 = vshll.u32 0, 16
      %v2852 = vrot.slane %v2850, 1
      %v2853 = vsel %vm895, %v2848, %v2852
      %v2871 = vunpack.c.l.b16 %v2830
      %v2872 = vunpack.c.l.b16 %v2831
      %v2873 = vunpack.c.l.b16 %v2832
      %v2874 = vunpack.c.l.b16 %v2833
      %v2875 = vunpack.c.l.b16 %v2834
      %v2876 = vunpack.c.l.b16 %v2835
      %v2877 = vunpack.c.l.b16 %v2836
      %v2878 = vunpack.c.l.b16 %v2837
      %v2879 = vunpack.c.l.b16 %v2838
      %v2880 = vunpack.c.l.b16 %v2839
      %v2881 = vunpack.c.l.b16 %v2840
      %v2882 = vunpack.c.l.b16 %v2841
      %v2883 = vunpack.c.l.b16 %v2842
      %v2884 = vunpack.c.l.b16 %v2843
      %v2885 = vunpack.c.l.b16 %v2844
      %v2886 = vunpack.c.l.b16 %v2845
      %v2887 = vpack.c.b16 %v2872, %v2871
      %v2888 = vpack.c.b16 %v2874, %v2873
      %v2889 = vpack.c.b16 %v2876, %v2875
      %v2890 = vpack.c.b16 %v2878, %v2877
      %v2891 = vpack.c.b16 %v2880, %v2879
      %v2892 = vpack.c.b16 %v2882, %v2881
      %v2893 = vpack.c.b16 %v2884, %v2883
      %v2894 = vpack.c.b16 %v2886, %v2885
      %2903 = vmatprep.subr.bf16.mxu0 0
      %2904 = vmatpush1.bf16.msra.mxu0 %v2887
      %2905 = vmatprep.subr.bf16.mxu0 0
      %2906 = vmatpush1.bf16.msra.mxu0 %v2888
      %2907 = vmatprep.subr.bf16.mxu0 0
      %2908 = vmatpush1.bf16.msra.mxu0 %v2889
      %2909 = vmatprep.subr.bf16.mxu0 0
      %2910 = vmatpush1.bf16.msra.mxu0 %v2890
      %2911 = vmatprep.subr.bf16.mxu0 0
      %2912 = vmatpush1.bf16.msra.mxu0 %v2891
      %2913 = vmatprep.subr.bf16.mxu0 0
      %2914 = vmatpush1.bf16.msra.mxu0 %v2892
      %2915 = vmatprep.subr.bf16.mxu0 0
      %2916 = vmatpush1.bf16.msra.mxu0 %v2893
      %2917 = vmatprep.subr.bf16.mxu0 0
      %2918 = vmatpush1.bf16.msra.mxu0 %v2894
      %2919 = vmatprep.subr.bf16.mxu0 0
      %2920 = vmatpush1.bf16.msra.mxu0 0
      %2921 = vmatprep.subr.bf16.mxu0 0
      %2922 = vmatpush1.bf16.msra.mxu0 0
      %2923 = vmatprep.subr.bf16.mxu0 0
      %2924 = vmatpush1.bf16.msra.mxu0 0
      %2925 = vmatprep.subr.bf16.mxu0 0
      %2926 = vmatpush1.bf16.msra.mxu0 0
      %2927 = vmatprep.subr.bf16.mxu0 0
      %2928 = vmatpush1.bf16.msra.mxu0 0
      %2929 = vmatprep.subr.bf16.mxu0 0
      %2930 = vmatpush1.bf16.msra.mxu0 0
      %2931 = vmatprep.subr.bf16.mxu0 0
      %2932 = vmatpush1.bf16.msra.mxu0 0
      %2933 = vmatprep.subr.bf16.mxu0 0
      %2934 = vmatpush1.bf16.msra.mxu0 0
      %2935 = vmatprep.mubr.bf16.mxu0 0
      %2936 = vmatmul.mubr.bf16.gmra.mrb[0].mxu0 %v923
      %v2937 = vpop.f32.mrb[0].mxu0
      %v2938 = vadd.f32 0.0, %v2937
      %v2939 = vpop.f32.mrb[0].mxu0
      %v2940 = vpop.f32.mrb[0].mxu0
      %v2941 = vadd.f32 0.0, %v2940
      %v2942 = vpop.f32.mrb[0].mxu0
      %2943 = vmatprep.mubr.bf16.mxu0 0
      %2944 = vmatmul.mubr.bf16.gmra.mrb[0].mxu0 %v931
      %v2945 = vpop.f32.mrb[0].mxu0
      %v2946 = vadd.f32 0.0, %v2945
      %v2947 = vpop.f32.mrb[0].mxu0
      %v2948 = vpop.f32.mrb[0].mxu0
      %v2949 = vadd.f32 0.0, %v2948
      %v2950 = vpop.f32.mrb[0].mxu0
      %2951 = vmatprep.mubr.bf16.mxu0 0
      %2952 = vmatmul.mubr.bf16.gmra.mrb[0].mxu0 %v939
      %v2953 = vpop.f32.mrb[0].mxu0
      %v2954 = vadd.f32 0.0, %v2953
      %v2955 = vpop.f32.mrb[0].mxu0
      %v2956 = vpop.f32.mrb[0].mxu0
      %v2957 = vadd.f32 0.0, %v2956
      %v2958 = vpop.f32.mrb[0].mxu0
      %2959 = vmatprep.mubr.bf16.mxu0 0
      %2960 = vmatmul.mubr.bf16.gmra.mrb[0].mxu0 %v947
      %v2961 = vpop.f32.mrb[0].mxu0
      %v2962 = vadd.f32 0.0, %v2961
      %v2963 = vpop.f32.mrb[0].mxu0
      %v2964 = vpop.f32.mrb[0].mxu0
      %v2965 = vadd.f32 0.0, %v2964
      %v2966 = vpop.f32.mrb[0].mxu0
      %2967 = vmatprep.mubr.bf16.mxu0 0
      %2968 = vmatmul.mubr.bf16.gmra.mrb[0].mxu0 %v955
      %v2969 = vpop.f32.mrb[0].mxu0
      %v2970 = vadd.f32 0.0, %v2969
      %v2971 = vpop.f32.mrb[0].mxu0
      %v2972 = vpop.f32.mrb[0].mxu0
      %v2973 = vadd.f32 0.0, %v2972
      %v2974 = vpop.f32.mrb[0].mxu0
      %2975 = vmatprep.mubr.bf16.mxu0 0
      %2976 = vmatmul.mubr.bf16.gmra.mrb[0].mxu0 %v963
      %v2977 = vpop.f32.mrb[0].mxu0
      %v2978 = vadd.f32 0.0, %v2977
      %v2979 = vpop.f32.mrb[0].mxu0
      %v2980 = vpop.f32.mrb[0].mxu0
      %v2981 = vadd.f32 0.0, %v2980
      %v2982 = vpop.f32.mrb[0].mxu0
      %2983 = vmatprep.mubr.bf16.mxu0 0
      %2984 = vmatmul.mubr.bf16.gmra.mrb[0].mxu0 %v971
      %v2985 = vpop.f32.mrb[0].mxu0
      %v2986 = vadd.f32 0.0, %v2985
      %v2987 = vpop.f32.mrb[0].mxu0
      %v2988 = vpop.f32.mrb[0].mxu0
      %v2989 = vadd.f32 0.0, %v2988
      %v2990 = vpop.f32.mrb[0].mxu0
      %2991 = vmatprep.mubr.bf16.mxu0 0
      %2992 = vmatmul.mubr.bf16.gmra.mrb[0].mxu0 %v979
      %v2993 = vpop.f32.mrb[0].mxu0
      %v2994 = vadd.f32 0.0, %v2993
      %v2995 = vpop.f32.mrb[0].mxu0
      %v2996 = vpop.f32.mrb[0].mxu0
      %v2997 = vadd.f32 0.0, %v2996
      %v2998 = vpop.f32.mrb[0].mxu0
      %2999 = vmatprep.mubr.bf16.mxu0 0
      %3000 = vmatmul.mubr.bf16.gmra.mrb[0].mxu0 %v987
      %v3001 = vpop.f32.mrb[0].mxu0
      %v3002 = vadd.f32 0.0, %v3001
      %v3003 = vpop.f32.mrb[0].mxu0
      %v3004 = vpop.f32.mrb[0].mxu0
      %v3005 = vadd.f32 0.0, %v3004
      %v3006 = vpop.f32.mrb[0].mxu0
      %3007 = vmatprep.mubr.bf16.mxu0 0
      %3008 = vmatmul.mubr.bf16.gmra.mrb[0].mxu0 %v995
      %v3009 = vpop.f32.mrb[0].mxu0
      %v3010 = vadd.f32 0.0, %v3009
      %v3011 = vpop.f32.mrb[0].mxu0
      %v3012 = vpop.f32.mrb[0].mxu0
      %v3013 = vadd.f32 0.0, %v3012
      %v3014 = vpop.f32.mrb[0].mxu0
      %3015 = vmatprep.mubr.bf16.mxu0 0
      %3016 = vmatmul.mubr.bf16.gmra.mrb[0].mxu0 %v1003
      %v3017 = vpop.f32.mrb[0].mxu0
      %v3018 = vadd.f32 0.0, %v3017
      %v3019 = vpop.f32.mrb[0].mxu0
      %v3020 = vpop.f32.mrb[0].mxu0
      %v3021 = vadd.f32 0.0, %v3020
      %v3022 = vpop.f32.mrb[0].mxu0
      %3023 = vmatprep.mubr.bf16.mxu0 0
      %3024 = vmatmul.mubr.bf16.gmra.mrb[0].mxu0 %v1011
      %v3025 = vpop.f32.mrb[0].mxu0
      %v3026 = vadd.f32 0.0, %v3025
      %v3027 = vpop.f32.mrb[0].mxu0
      %v3028 = vpop.f32.mrb[0].mxu0
      %v3029 = vadd.f32 0.0, %v3028
      %v3030 = vpop.f32.mrb[0].mxu0
      %3031 = vmatprep.mubr.bf16.mxu0 0
      %3032 = vmatmul.mubr.bf16.gmra.mrb[0].mxu0 %v1959
      %v3033 = vpop.f32.mrb[0].mxu0
      %v3034 = vadd.f32 0.0, %v3033
      %v3035 = vpop.f32.mrb[0].mxu0
      %v3036 = vpop.f32.mrb[0].mxu0
      %v3037 = vadd.f32 0.0, %v3036
      %v3038 = vpop.f32.mrb[0].mxu0
      %3039 = vmatprep.mubr.bf16.mxu0 0
      %3040 = vmatmul.mubr.bf16.gmra.mrb[0].mxu0 %v2853
      %v3041 = vpop.f32.mrb[0].mxu0
      %v3042 = vadd.f32 0.0, %v3041
      %v3043 = vpop.f32.mrb[0].mxu0
      %v3044 = vpop.f32.mrb[0].mxu0
      %v3045 = vadd.f32 0.0, %v3044
      %v3046 = vpop.f32.mrb[0].mxu0
      %3047 = vdwg.mxu0
      %v3048 = vadd.f32 %v2801, %v2938
      %v3049 = vadd.f32 %v2802, %v2941
      %v3050 = vadd.f32 %v2803, %v2946
      %v3051 = vadd.f32 %v2804, %v2949
      %v3052 = vadd.f32 %v2805, %v2954
      %v3053 = vadd.f32 %v2806, %v2957
      %v3054 = vadd.f32 %v2807, %v2962
      %v3055 = vadd.f32 %v2808, %v2965
      %v3056 = vadd.f32 %v2809, %v2970
      %v3057 = vadd.f32 %v2810, %v2973
      %v3058 = vadd.f32 %v2811, %v2978
      %v3059 = vadd.f32 %v2812, %v2981
      %v3060 = vadd.f32 %v2813, %v2986
      %v3061 = vadd.f32 %v2814, %v2989
      %v3062 = vadd.f32 %v2815, %v2994
      %v3063 = vadd.f32 %v2816, %v2997
      %v3064 = vadd.f32 %v2817, %v3002
      %v3065 = vadd.f32 %v2818, %v3005
      %v3066 = vadd.f32 %v2819, %v3010
      %v3067 = vadd.f32 %v2820, %v3013
      %v3068 = vadd.f32 %v2821, %v3018
      %v3069 = vadd.f32 %v2822, %v3021
      %v3070 = vadd.f32 %v2823, %v3026
      %v3071 = vadd.f32 %v2824, %v3029
      %v3072 = vadd.f32 %v2825, %v3034
      %v3073 = vadd.f32 %v2826, %v3037
      %v3074 = vadd.f32 %v2827, %v3042
      %v3075 = vadd.f32 %v2828, %v3045
      %3076 = vst [vmem:[#allocation2] sm:$0xff] %v3048
      %3077 = vst [vmem:[#allocation2 + $0x8] sm:$0xff] %v3049
      %3078 = vst [vmem:[#allocation2 + $0x10] sm:$0xff] %v3050
      %3079 = vst [vmem:[#allocation2 + $0x18] sm:$0xff] %v3051
      %3080 = vst [vmem:[#allocation2 + $0x20] sm:$0xff] %v3052
      %3081 = vst [vmem:[#allocation2 + $0x28] sm:$0xff] %v3053
      %3082 = vst [vmem:[#allocation2 + $0x30] sm:$0xff] %v3054
      %3083 = vst [vmem:[#allocation2 + $0x38] sm:$0xff] %v3055
      %3084 = vst [vmem:[#allocation2 + $0x40] sm:$0xff] %v3056
      %3085 = vst [vmem:[#allocation2 + $0x48] sm:$0xff] %v3057
      %3086 = vst [vmem:[#allocation2 + $0x50] sm:$0xff] %v3058
      %3087 = vst [vmem:[#allocation2 + $0x58] sm:$0xff] %v3059
      %3088 = vst [vmem:[#allocation2 + $0x60] sm:$0xff] %v3060
      %3089 = vst [vmem:[#allocation2 + $0x68] sm:$0xff] %v3061
      %3090 = vst [vmem:[#allocation2 + $0x70] sm:$0xff] %v3062
      %3091 = vst [vmem:[#allocation2 + $0x78] sm:$0xff] %v3063
      %3092 = vst [vmem:[#allocation2 + $0x80] sm:$0xff] %v3064
      %3093 = vst [vmem:[#allocation2 + $0x88] sm:$0xff] %v3065
      %3094 = vst [vmem:[#allocation2 + $0x90] sm:$0xff] %v3066
      %3095 = vst [vmem:[#allocation2 + $0x98] sm:$0xff] %v3067
      %3096 = vst [vmem:[#allocation2 + $0xa0] sm:$0xff] %v3068
      %3097 = vst [vmem:[#allocation2 + $0xa8] sm:$0xff] %v3069
      %3098 = vst [vmem:[#allocation2 + $0xb0] sm:$0xff] %v3070
      %3099 = vst [vmem:[#allocation2 + $0xb8] sm:$0xff] %v3071
      %3100 = vst [vmem:[#allocation2 + $0xc0] sm:$0xff] %v3072
      %3101 = vst [vmem:[#allocation2 + $0xc8] sm:$0xff] %v3073
      %3102 = vst [vmem:[#allocation2 + $0xd0] sm:$0xff] %v3074
      %3103 = vst [vmem:[#allocation2 + $0xd8] sm:$0xff] %v3075
      %v3104 = vld [vmem:[#allocation2] sm:$0xff]
      %v3105 = vld [vmem:[#allocation2 + $0x8] sm:$0xff]
      %v3106 = vld [vmem:[#allocation2 + $0x10] sm:$0xff]
      %v3107 = vld [vmem:[#allocation2 + $0x18] sm:$0xff]
      %v3108 = vld [vmem:[#allocation2 + $0x20] sm:$0xff]
      %v3109 = vld [vmem:[#allocation2 + $0x28] sm:$0xff]
      %v3110 = vld [vmem:[#allocation2 + $0x30] sm:$0xff]
      %v3111 = vld [vmem:[#allocation2 + $0x38] sm:$0xff]
      %v3112 = vld [vmem:[#allocation2 + $0x40] sm:$0xff]
      %v3113 = vld [vmem:[#allocation2 + $0x48] sm:$0xff]
      %v3114 = vld [vmem:[#allocation2 + $0x50] sm:$0xff]
      %v3115 = vld [vmem:[#allocation2 + $0x58] sm:$0xff]
      %v3116 = vld [vmem:[#allocation2 + $0x60] sm:$0xff]
      %v3117 = vld [vmem:[#allocation2 + $0x68] sm:$0xff]
      %v3118 = vld [vmem:[#allocation2 + $0x70] sm:$0xff]
      %v3119 = vld [vmem:[#allocation2 + $0x78] sm:$0xff]
      %v3120 = vld [vmem:[#allocation2 + $0x80] sm:$0xff]
      %v3121 = vld [vmem:[#allocation2 + $0x88] sm:$0xff]
      %v3122 = vld [vmem:[#allocation2 + $0x90] sm:$0xff]
      %v3123 = vld [vmem:[#allocation2 + $0x98] sm:$0xff]
      %v3124 = vld [vmem:[#allocation2 + $0xa0] sm:$0xff]
      %v3125 = vld [vmem:[#allocation2 + $0xa8] sm:$0xff]
      %v3126 = vld [vmem:[#allocation2 + $0xb0] sm:$0xff]
      %v3127 = vld [vmem:[#allocation2 + $0xb8] sm:$0xff]
      %v3128 = vld [vmem:[#allocation2 + $0xc0] sm:$0xff]
      %v3129 = vld [vmem:[#allocation2 + $0xc8] sm:$0xff]
      %v3130 = vld [vmem:[#allocation2 + $0xd0] sm:$0xff]
      %v3131 = vld [vmem:[#allocation2 + $0xd8] sm:$0xff]
      %s3132 = scalar_lea.vmem %s3, 512
      %v3133 = vld [vmem:[%s3132] sm:$0xf]
      %v3134 = vld [vmem:[%s3132 + $0x4] sm:$0xf]
      %v3135 = vld [vmem:[%s3132 + $0x8] sm:$0xf]
      %v3136 = vld [vmem:[%s3132 + $0xc] sm:$0xf]
      %v3137 = vld [vmem:[%s3132 + $0x10] sm:$0xf]
      %v3138 = vld [vmem:[%s3132 + $0x14] sm:$0xf]
      %v3139 = vld [vmem:[%s3132 + $0x18] sm:$0xf]
      %v3140 = vld [vmem:[%s3132 + $0x1c] sm:$0xf]
      %v3141 = vld [vmem:[%s3132 + $0x20] sm:$0xf]
      %v3142 = vld [vmem:[%s3132 + $0x24] sm:$0xf]
      %v3143 = vld [vmem:[%s3132 + $0x28] sm:$0xf]
      %v3144 = vld [vmem:[%s3132 + $0x2c] sm:$0xf]
      %v3145 = vld [vmem:[%s3132 + $0x30] sm:$0xf]
      %v3146 = vld [vmem:[%s3132 + $0x34] sm:$0xf]
      %v3147 = vld [vmem:[%s3132 + $0x38] sm:$0xf]
      %v3148 = vld [vmem:[%s3132 + $0x3c] sm:$0xf]
      %v3150 = vrot.slane 0, 1
      %v3151 = vsel %vm1320, %v2255, %v3150
      %v3169 = vunpack.c.l.b16 %v3133
      %v3170 = vunpack.c.l.b16 %v3134
      %v3171 = vunpack.c.l.b16 %v3135
      %v3172 = vunpack.c.l.b16 %v3136
      %v3173 = vunpack.c.l.b16 %v3137
      %v3174 = vunpack.c.l.b16 %v3138
      %v3175 = vunpack.c.l.b16 %v3139
      %v3176 = vunpack.c.l.b16 %v3140
      %v3177 = vunpack.c.l.b16 %v3141
      %v3178 = vunpack.c.l.b16 %v3142
      %v3179 = vunpack.c.l.b16 %v3143
      %v3180 = vunpack.c.l.b16 %v3144
      %v3181 = vunpack.c.l.b16 %v3145
      %v3182 = vunpack.c.l.b16 %v3146
      %v3183 = vunpack.c.l.b16 %v3147
      %v3184 = vunpack.c.l.b16 %v3148
      %v3185 = vpack.c.b16 %v3170, %v3169
      %v3186 = vpack.c.b16 %v3172, %v3171
      %v3187 = vpack.c.b16 %v3174, %v3173
      %v3188 = vpack.c.b16 %v3176, %v3175
      %v3189 = vpack.c.b16 %v3178, %v3177
      %v3190 = vpack.c.b16 %v3180, %v3179
      %v3191 = vpack.c.b16 %v3182, %v3181
      %v3192 = vpack.c.b16 %v3184, %v3183
      %3201 = vmatprep.subr.bf16.mxu0 0
      %3202 = vmatpush1.bf16.msra.mxu0 %v3185
      %3203 = vmatprep.subr.bf16.mxu0 0
      %3204 = vmatpush1.bf16.msra.mxu0 %v3186
      %3205 = vmatprep.subr.bf16.mxu0 0
      %3206 = vmatpush1.bf16.msra.mxu0 %v3187
      %3207 = vmatprep.subr.bf16.mxu0 0
      %3208 = vmatpush1.bf16.msra.mxu0 %v3188
      %3209 = vmatprep.subr.bf16.mxu0 0
      %3210 = vmatpush1.bf16.msra.mxu0 %v3189
      %3211 = vmatprep.subr.bf16.mxu0 0
      %3212 = vmatpush1.bf16.msra.mxu0 %v3190
      %3213 = vmatprep.subr.bf16.mxu0 0
      %3214 = vmatpush1.bf16.msra.mxu0 %v3191
      %3215 = vmatprep.subr.bf16.mxu0 0
      %3216 = vmatpush1.bf16.msra.mxu0 %v3192
      %3217 = vmatprep.subr.bf16.mxu0 0
      %3218 = vmatpush1.bf16.msra.mxu0 0
      %3219 = vmatprep.subr.bf16.mxu0 0
      %3220 = vmatpush1.bf16.msra.mxu0 0
      %3221 = vmatprep.subr.bf16.mxu0 0
      %3222 = vmatpush1.bf16.msra.mxu0 0
      %3223 = vmatprep.subr.bf16.mxu0 0
      %3224 = vmatpush1.bf16.msra.mxu0 0
      %3225 = vmatprep.subr.bf16.mxu0 0
      %3226 = vmatpush1.bf16.msra.mxu0 0
      %3227 = vmatprep.subr.bf16.mxu0 0
      %3228 = vmatpush1.bf16.msra.mxu0 0
      %3229 = vmatprep.subr.bf16.mxu0 0
      %3230 = vmatpush1.bf16.msra.mxu0 0
      %3231 = vmatprep.subr.bf16.mxu0 0
      %3232 = vmatpush1.bf16.msra.mxu0 0
      %3233 = vmatprep.mubr.bf16.mxu0 0
      %3234 = vmatmul.mubr.bf16.gmra.mrb[0].mxu0 %v1327
      %v3235 = vpop.f32.mrb[0].mxu0
      %v3236 = vadd.f32 0.0, %v3235
      %v3237 = vpop.f32.mrb[0].mxu0
      %v3238 = vpop.f32.mrb[0].mxu0
      %v3239 = vadd.f32 0.0, %v3238
      %v3240 = vpop.f32.mrb[0].mxu0
      %3241 = vmatprep.mubr.bf16.mxu0 0
      %3242 = vmatmul.mubr.bf16.gmra.mrb[0].mxu0 %v1329
      %v3243 = vpop.f32.mrb[0].mxu0
      %v3244 = vadd.f32 0.0, %v3243
      %v3245 = vpop.f32.mrb[0].mxu0
      %v3246 = vpop.f32.mrb[0].mxu0
      %v3247 = vadd.f32 0.0, %v3246
      %v3248 = vpop.f32.mrb[0].mxu0
      %3249 = vmatprep.mubr.bf16.mxu0 0
      %3250 = vmatmul.mubr.bf16.gmra.mrb[0].mxu0 %v1331
      %v3251 = vpop.f32.mrb[0].mxu0
      %v3252 = vadd.f32 0.0, %v3251
      %v3253 = vpop.f32.mrb[0].mxu0
      %v3254 = vpop.f32.mrb[0].mxu0
      %v3255 = vadd.f32 0.0, %v3254
      %v3256 = vpop.f32.mrb[0].mxu0
      %3257 = vmatprep.mubr.bf16.mxu0 0
      %3258 = vmatmul.mubr.bf16.gmra.mrb[0].mxu0 %v1333
      %v3259 = vpop.f32.mrb[0].mxu0
      %v3260 = vadd.f32 0.0, %v3259
      %v3261 = vpop.f32.mrb[0].mxu0
      %v3262 = vpop.f32.mrb[0].mxu0
      %v3263 = vadd.f32 0.0, %v3262
      %v3264 = vpop.f32.mrb[0].mxu0
      %3265 = vmatprep.mubr.bf16.mxu0 0
      %3266 = vmatmul.mubr.bf16.gmra.mrb[0].mxu0 %v1335
      %v3267 = vpop.f32.mrb[0].mxu0
      %v3268 = vadd.f32 0.0, %v3267
      %v3269 = vpop.f32.mrb[0].mxu0
      %v3270 = vpop.f32.mrb[0].mxu0
      %v3271 = vadd.f32 0.0, %v3270
      %v3272 = vpop.f32.mrb[0].mxu0
      %3273 = vmatprep.mubr.bf16.mxu0 0
      %3274 = vmatmul.mubr.bf16.gmra.mrb[0].mxu0 %v1337
      %v3275 = vpop.f32.mrb[0].mxu0
      %v3276 = vadd.f32 0.0, %v3275
      %v3277 = vpop.f32.mrb[0].mxu0
      %v3278 = vpop.f32.mrb[0].mxu0
      %v3279 = vadd.f32 0.0, %v3278
      %v3280 = vpop.f32.mrb[0].mxu0
      %3281 = vmatprep.mubr.bf16.mxu0 0
      %3282 = vmatmul.mubr.bf16.gmra.mrb[0].mxu0 %v1339
      %v3283 = vpop.f32.mrb[0].mxu0
      %v3284 = vadd.f32 0.0, %v3283
      %v3285 = vpop.f32.mrb[0].mxu0
      %v3286 = vpop.f32.mrb[0].mxu0
      %v3287 = vadd.f32 0.0, %v3286
      %v3288 = vpop.f32.mrb[0].mxu0
      %3289 = vmatprep.mubr.bf16.mxu0 0
      %3290 = vmatmul.mubr.bf16.gmra.mrb[0].mxu0 %v1341
      %v3291 = vpop.f32.mrb[0].mxu0
      %v3292 = vadd.f32 0.0, %v3291
      %v3293 = vpop.f32.mrb[0].mxu0
      %v3294 = vpop.f32.mrb[0].mxu0
      %v3295 = vadd.f32 0.0, %v3294
      %v3296 = vpop.f32.mrb[0].mxu0
      %3297 = vmatprep.mubr.bf16.mxu0 0
      %3298 = vmatmul.mubr.bf16.gmra.mrb[0].mxu0 %v1343
      %v3299 = vpop.f32.mrb[0].mxu0
      %v3300 = vadd.f32 0.0, %v3299
      %v3301 = vpop.f32.mrb[0].mxu0
      %v3302 = vpop.f32.mrb[0].mxu0
      %v3303 = vadd.f32 0.0, %v3302
      %v3304 = vpop.f32.mrb[0].mxu0
      %3305 = vmatprep.mubr.bf16.mxu0 0
      %3306 = vmatmul.mubr.bf16.gmra.mrb[0].mxu0 %v1345
      %v3307 = vpop.f32.mrb[0].mxu0
      %v3308 = vadd.f32 0.0, %v3307
      %v3309 = vpop.f32.mrb[0].mxu0
      %v3310 = vpop.f32.mrb[0].mxu0
      %v3311 = vadd.f32 0.0, %v3310
      %v3312 = vpop.f32.mrb[0].mxu0
      %3313 = vmatprep.mubr.bf16.mxu0 0
      %3314 = vmatmul.mubr.bf16.gmra.mrb[0].mxu0 %v1347
      %v3315 = vpop.f32.mrb[0].mxu0
      %v3316 = vadd.f32 0.0, %v3315
      %v3317 = vpop.f32.mrb[0].mxu0
      %v3318 = vpop.f32.mrb[0].mxu0
      %v3319 = vadd.f32 0.0, %v3318
      %v3320 = vpop.f32.mrb[0].mxu0
      %3321 = vmatprep.mubr.bf16.mxu0 0
      %3322 = vmatmul.mubr.bf16.gmra.mrb[0].mxu0 %v1349
      %v3323 = vpop.f32.mrb[0].mxu0
      %v3324 = vadd.f32 0.0, %v3323
      %v3325 = vpop.f32.mrb[0].mxu0
      %v3326 = vpop.f32.mrb[0].mxu0
      %v3327 = vadd.f32 0.0, %v3326
      %v3328 = vpop.f32.mrb[0].mxu0
      %3329 = vmatprep.mubr.bf16.mxu0 0
      %3330 = vmatmul.mubr.bf16.gmra.mrb[0].mxu0 %v2256
      %v3331 = vpop.f32.mrb[0].mxu0
      %v3332 = vadd.f32 0.0, %v3331
      %v3333 = vpop.f32.mrb[0].mxu0
      %v3334 = vpop.f32.mrb[0].mxu0
      %v3335 = vadd.f32 0.0, %v3334
      %v3336 = vpop.f32.mrb[0].mxu0
      %3337 = vmatprep.mubr.bf16.mxu0 0
      %3338 = vmatmul.mubr.bf16.gmra.mrb[0].mxu0 %v3151
      %v3339 = vpop.f32.mrb[0].mxu0
      %v3340 = vadd.f32 0.0, %v3339
      %v3341 = vpop.f32.mrb[0].mxu0
      %v3342 = vpop.f32.mrb[0].mxu0
      %v3343 = vadd.f32 0.0, %v3342
      %v3344 = vpop.f32.mrb[0].mxu0
      %3345 = vdwg.mxu0
      %v3346 = vadd.f32 %v3104, %v3236
      %v3347 = vadd.f32 %v3105, %v3239
      %v3348 = vadd.f32 %v3106, %v3244
      %v3349 = vadd.f32 %v3107, %v3247
      %v3350 = vadd.f32 %v3108, %v3252
      %v3351 = vadd.f32 %v3109, %v3255
      %v3352 = vadd.f32 %v3110, %v3260
      %v3353 = vadd.f32 %v3111, %v3263
      %v3354 = vadd.f32 %v3112, %v3268
      %v3355 = vadd.f32 %v3113, %v3271
      %v3356 = vadd.f32 %v3114, %v3276
      %v3357 = vadd.f32 %v3115, %v3279
      %v3358 = vadd.f32 %v3116, %v3284
      %v3359 = vadd.f32 %v3117, %v3287
      %v3360 = vadd.f32 %v3118, %v3292
      %v3361 = vadd.f32 %v3119, %v3295
      %v3362 = vadd.f32 %v3120, %v3300
      %v3363 = vadd.f32 %v3121, %v3303
      %v3364 = vadd.f32 %v3122, %v3308
      %v3365 = vadd.f32 %v3123, %v3311
      %v3366 = vadd.f32 %v3124, %v3316
      %v3367 = vadd.f32 %v3125, %v3319
      %v3368 = vadd.f32 %v3126, %v3324
      %v3369 = vadd.f32 %v3127, %v3327
      %v3370 = vadd.f32 %v3128, %v3332
      %v3371 = vadd.f32 %v3129, %v3335
      %v3372 = vadd.f32 %v3130, %v3340
      %v3373 = vadd.f32 %v3131, %v3343
      %3374 = vst [vmem:[#allocation2] sm:$0xff] %v3346
      %3375 = vst [vmem:[#allocation2 + $0x8] sm:$0xff] %v3347
      %3376 = vst [vmem:[#allocation2 + $0x10] sm:$0xff] %v3348
      %3377 = vst [vmem:[#allocation2 + $0x18] sm:$0xff] %v3349
      %3378 = vst [vmem:[#allocation2 + $0x20] sm:$0xff] %v3350
      %3379 = vst [vmem:[#allocation2 + $0x28] sm:$0xff] %v3351
      %3380 = vst [vmem:[#allocation2 + $0x30] sm:$0xff] %v3352
      %3381 = vst [vmem:[#allocation2 + $0x38] sm:$0xff] %v3353
      %3382 = vst [vmem:[#allocation2 + $0x40] sm:$0xff] %v3354
      %3383 = vst [vmem:[#allocation2 + $0x48] sm:$0xff] %v3355
      %3384 = vst [vmem:[#allocation2 + $0x50] sm:$0xff] %v3356
      %3385 = vst [vmem:[#allocation2 + $0x58] sm:$0xff] %v3357
      %3386 = vst [vmem:[#allocation2 + $0x60] sm:$0xff] %v3358
      %3387 = vst [vmem:[#allocation2 + $0x68] sm:$0xff] %v3359
      %3388 = vst [vmem:[#allocation2 + $0x70] sm:$0xff] %v3360
      %3389 = vst [vmem:[#allocation2 + $0x78] sm:$0xff] %v3361
      %3390 = vst [vmem:[#allocation2 + $0x80] sm:$0xff] %v3362
      %3391 = vst [vmem:[#allocation2 + $0x88] sm:$0xff] %v3363
      %3392 = vst [vmem:[#allocation2 + $0x90] sm:$0xff] %v3364
      %3393 = vst [vmem:[#allocation2 + $0x98] sm:$0xff] %v3365
      %3394 = vst [vmem:[#allocation2 + $0xa0] sm:$0xff] %v3366
      %3395 = vst [vmem:[#allocation2 + $0xa8] sm:$0xff] %v3367
      %3396 = vst [vmem:[#allocation2 + $0xb0] sm:$0xff] %v3368
      %3397 = vst [vmem:[#allocation2 + $0xb8] sm:$0xff] %v3369
      %3398 = vst [vmem:[#allocation2 + $0xc0] sm:$0xff] %v3370
      %3399 = vst [vmem:[#allocation2 + $0xc8] sm:$0xff] %v3371
      %3400 = vst [vmem:[#allocation2 + $0xd0] sm:$0xff] %v3372
      %3401 = vst [vmem:[#allocation2 + $0xd8] sm:$0xff] %v3373
      %v3402 = vld [vmem:[#allocation2] sm:$0xff]
      %v3403 = vld [vmem:[#allocation2 + $0x8] sm:$0xff]
      %v3404 = vld [vmem:[#allocation2 + $0x10] sm:$0xff]
      %v3405 = vld [vmem:[#allocation2 + $0x18] sm:$0xff]
      %v3406 = vld [vmem:[#allocation2 + $0x20] sm:$0xff]
      %v3407 = vld [vmem:[#allocation2 + $0x28] sm:$0xff]
      %v3408 = vld [vmem:[#allocation2 + $0x30] sm:$0xff]
      %v3409 = vld [vmem:[#allocation2 + $0x38] sm:$0xff]
      %v3410 = vld [vmem:[#allocation2 + $0x40] sm:$0xff]
      %v3411 = vld [vmem:[#allocation2 + $0x48] sm:$0xff]
      %v3412 = vld [vmem:[#allocation2 + $0x50] sm:$0xff]
      %v3413 = vld [vmem:[#allocation2 + $0x58] sm:$0xff]
      %v3414 = vld [vmem:[#allocation2 + $0x60] sm:$0xff]
      %v3415 = vld [vmem:[#allocation2 + $0x68] sm:$0xff]
      %v3416 = vld [vmem:[#allocation2 + $0x70] sm:$0xff]
      %v3417 = vld [vmem:[#allocation2 + $0x78] sm:$0xff]
      %v3418 = vld [vmem:[#allocation2 + $0x80] sm:$0xff]
      %v3419 = vld [vmem:[#allocation2 + $0x88] sm:$0xff]
      %v3420 = vld [vmem:[#allocation2 + $0x90] sm:$0xff]
      %v3421 = vld [vmem:[#allocation2 + $0x98] sm:$0xff]
      %v3422 = vld [vmem:[#allocation2 + $0xa0] sm:$0xff]
      %v3423 = vld [vmem:[#allocation2 + $0xa8] sm:$0xff]
      %v3424 = vld [vmem:[#allocation2 + $0xb0] sm:$0xff]
      %v3425 = vld [vmem:[#allocation2 + $0xb8] sm:$0xff]
      %v3426 = vld [vmem:[#allocation2 + $0xc0] sm:$0xff]
      %v3427 = vld [vmem:[#allocation2 + $0xc8] sm:$0xff]
      %v3428 = vld [vmem:[#allocation2 + $0xd0] sm:$0xff]
      %v3429 = vld [vmem:[#allocation2 + $0xd8] sm:$0xff]
      %v3430 = vld [vmem:[%s4] sm:$0x1]
      %v3432 = vlaneseq
      %v3433 = vshrl.u32 %v3432, 7
      %v3434 = vsub.s32 0, %v3433
      %v3435 = vrot.slane %v3430, %v3434
      %v3437 = vadd.f32 %v3402, %v3435
      %v3438 = vadd.f32 %v3403, %v3435
      %v3439 = vadd.f32 %v3404, %v3435
      %v3440 = vadd.f32 %v3405, %v3435
      %v3441 = vadd.f32 %v3406, %v3435
      %v3442 = vadd.f32 %v3407, %v3435
      %v3443 = vadd.f32 %v3408, %v3435
      %v3444 = vadd.f32 %v3409, %v3435
      %v3445 = vadd.f32 %v3410, %v3435
      %v3446 = vadd.f32 %v3411, %v3435
      %v3447 = vadd.f32 %v3412, %v3435
      %v3448 = vadd.f32 %v3413, %v3435
      %v3449 = vadd.f32 %v3414, %v3435
      %v3450 = vadd.f32 %v3415, %v3435
      %v3451 = vadd.f32 %v3416, %v3435
      %v3452 = vadd.f32 %v3417, %v3435
      %v3453 = vadd.f32 %v3418, %v3435
      %v3454 = vadd.f32 %v3419, %v3435
      %v3455 = vadd.f32 %v3420, %v3435
      %v3456 = vadd.f32 %v3421, %v3435
      %v3457 = vadd.f32 %v3422, %v3435
      %v3458 = vadd.f32 %v3423, %v3435
      %v3459 = vadd.f32 %v3424, %v3435
      %v3460 = vadd.f32 %v3425, %v3435
      %v3461 = vadd.f32 %v3426, %v3435
      %v3462 = vadd.f32 %v3427, %v3435
      %v3463 = vadd.f32 %v3428, %v3435
      %v3464 = vadd.f32 %v3429, %v3435
      %v3465 = vpack.c.bf16 %v3438, %v3437
      %v3466 = vpack.c.bf16 %v3440, %v3439
      %v3467 = vpack.c.bf16 %v3442, %v3441
      %v3468 = vpack.c.bf16 %v3444, %v3443
      %v3469 = vpack.c.bf16 %v3446, %v3445
      %v3470 = vpack.c.bf16 %v3448, %v3447
      %v3471 = vpack.c.bf16 %v3450, %v3449
      %v3472 = vpack.c.bf16 %v3452, %v3451
      %v3473 = vpack.c.bf16 %v3454, %v3453
      %v3474 = vpack.c.bf16 %v3456, %v3455
      %v3475 = vpack.c.bf16 %v3458, %v3457
      %v3476 = vpack.c.bf16 %v3460, %v3459
      %v3477 = vpack.c.bf16 %v3462, %v3461
      %v3478 = vpack.c.bf16 %v3464, %v3463
      %v3493 = vunpack.c.l.b16 %v3465
      %v3494 = vunpack.c.h.b16 %v3465
      %v3495 = vunpack.c.l.b16 %v3466
      %v3496 = vunpack.c.h.b16 %v3466
      %v3497 = vunpack.c.l.b16 %v3467
      %v3498 = vunpack.c.h.b16 %v3467
      %v3499 = vunpack.c.l.b16 %v3468
      %v3500 = vunpack.c.h.b16 %v3468
      %v3501 = vunpack.c.l.b16 %v3469
      %v3502 = vunpack.c.h.b16 %v3469
      %v3503 = vunpack.c.l.b16 %v3470
      %v3504 = vunpack.c.h.b16 %v3470
      %v3505 = vunpack.c.l.b16 %v3471
      %v3506 = vunpack.c.h.b16 %v3471
      %v3507 = vunpack.c.l.b16 %v3472
      %v3508 = vunpack.c.h.b16 %v3472
      %v3509 = vunpack.c.l.b16 %v3473
      %v3510 = vunpack.c.h.b16 %v3473
      %v3511 = vunpack.c.l.b16 %v3474
      %v3512 = vunpack.c.h.b16 %v3474
      %v3513 = vunpack.c.l.b16 %v3475
      %v3514 = vunpack.c.h.b16 %v3475
      %v3515 = vunpack.c.l.b16 %v3476
      %v3516 = vunpack.c.h.b16 %v3476
      %v3517 = vunpack.c.l.b16 %v3477
      %v3518 = vunpack.c.h.b16 %v3477
      %v3519 = vunpack.c.l.b16 %v3478
      %v3520 = vunpack.c.h.b16 %v3478
      %v3521 = vpack.c.b16 %v3493, %v3493
      %v3522 = vpack.c.b16 %v3494, %v3494
      %v3523 = vpack.c.b16 %v3495, %v3495
      %v3524 = vpack.c.b16 %v3496, %v3496
      %v3525 = vpack.c.b16 %v3497, %v3497
      %v3526 = vpack.c.b16 %v3498, %v3498
      %v3527 = vpack.c.b16 %v3499, %v3499
      %v3528 = vpack.c.b16 %v3500, %v3500
      %v3529 = vpack.c.b16 %v3501, %v3501
      %v3530 = vpack.c.b16 %v3502, %v3502
      %v3531 = vpack.c.b16 %v3503, %v3503
      %v3532 = vpack.c.b16 %v3504, %v3504
      %v3533 = vpack.c.b16 %v3505, %v3505
      %v3534 = vpack.c.b16 %v3506, %v3506
      %v3535 = vpack.c.b16 %v3507, %v3507
      %v3536 = vpack.c.b16 %v3508, %v3508
      %v3537 = vpack.c.b16 %v3509, %v3509
      %v3538 = vpack.c.b16 %v3510, %v3510
      %v3539 = vpack.c.b16 %v3511, %v3511
      %v3540 = vpack.c.b16 %v3512, %v3512
      %v3541 = vpack.c.b16 %v3513, %v3513
      %v3542 = vpack.c.b16 %v3514, %v3514
      %v3543 = vpack.c.b16 %v3515, %v3515
      %v3544 = vpack.c.b16 %v3516, %v3516
      %v3545 = vpack.c.b16 %v3517, %v3517
      %v3546 = vpack.c.b16 %v3518, %v3518
      %v3547 = vpack.c.b16 %v3519, %v3519
      %v3548 = vpack.c.b16 %v3520, %v3520
      %3577 = vst [vmem:[%s470] sm:$0xf] %v3521
      %3578 = vst [vmem:[%s470 + $0x4] sm:$0xf] %v3522
      %3579 = vst [vmem:[%s470 + $0x8] sm:$0xf] %v3523
      %3580 = vst [vmem:[%s470 + $0xc] sm:$0xf] %v3524
      %3581 = vst [vmem:[%s470 + $0x10] sm:$0xf] %v3525
      %3582 = vst [vmem:[%s470 + $0x14] sm:$0xf] %v3526
      %3583 = vst [vmem:[%s470 + $0x18] sm:$0xf] %v3527
      %3584 = vst [vmem:[%s470 + $0x1c] sm:$0xf] %v3528
      %3585 = vst [vmem:[%s470 + $0x20] sm:$0xf] %v3529
      %3586 = vst [vmem:[%s470 + $0x24] sm:$0xf] %v3530
      %3587 = vst [vmem:[%s470 + $0x28] sm:$0xf] %v3531
      %3588 = vst [vmem:[%s470 + $0x2c] sm:$0xf] %v3532
      %3589 = vst [vmem:[%s470 + $0x30] sm:$0xf] %v3533
      %3590 = vst [vmem:[%s470 + $0x34] sm:$0xf] %v3534
      %3591 = vst [vmem:[%s470 + $0x38] sm:$0xf] %v3535
      %3592 = vst [vmem:[%s470 + $0x3c] sm:$0xf] %v3536
      %3593 = vst [vmem:[%s470 + $0x40] sm:$0xf] %v3537
      %3594 = vst [vmem:[%s470 + $0x44] sm:$0xf] %v3538
      %3595 = vst [vmem:[%s470 + $0x48] sm:$0xf] %v3539
      %3596 = vst [vmem:[%s470 + $0x4c] sm:$0xf] %v3540
      %3597 = vst [vmem:[%s470 + $0x50] sm:$0xf] %v3541
      %3598 = vst [vmem:[%s470 + $0x54] sm:$0xf] %v3542
      %3599 = vst [vmem:[%s470 + $0x58] sm:$0xf] %v3543
      %3600 = vst [vmem:[%s470 + $0x5c] sm:$0xf] %v3544
      %3601 = vst [vmem:[%s470 + $0x60] sm:$0xf] %v3545
      %3602 = vst [vmem:[%s470 + $0x64] sm:$0xf] %v3546
      %3603 = vst [vmem:[%s470 + $0x68] sm:$0xf] %v3547
      %3604 = vst [vmem:[%s470 + $0x6c] sm:$0xf] %v3548
      %vm3605 = vcmask 1045504
      %v3606 = vsel %vm3605, %v3438, 0.0
      %v3607 = vadd.f32 %v3437, %v3606
      %v3608 = vadd.f32 %v3607, %v3439
      %v3609 = vsel %vm3605, %v3440, 0.0
      %v3610 = vadd.f32 %v3608, %v3609
      %v3611 = vadd.f32 %v3610, %v3441
      %v3612 = vsel %vm3605, %v3442, 0.0
      %v3613 = vadd.f32 %v3611, %v3612
      %v3614 = vadd.f32 %v3613, %v3443
      %v3615 = vsel %vm3605, %v3444, 0.0
      %v3616 = vadd.f32 %v3614, %v3615
      %v3617 = vadd.f32 %v3616, %v3445
      %v3618 = vsel %vm3605, %v3446, 0.0
      %v3619 = vadd.f32 %v3617, %v3618
      %v3620 = vadd.f32 %v3619, %v3447
      %v3621 = vsel %vm3605, %v3448, 0.0
      %v3622 = vadd.f32 %v3620, %v3621
      %v3623 = vadd.f32 %v3622, %v3449
      %v3624 = vsel %vm3605, %v3450, 0.0
      %v3625 = vadd.f32 %v3623, %v3624
      %v3626 = vadd.f32 %v3625, %v3451
      %v3627 = vsel %vm3605, %v3452, 0.0
      %v3628 = vadd.f32 %v3626, %v3627
      %v3629 = vadd.f32 %v3628, %v3453
      %v3630 = vsel %vm3605, %v3454, 0.0
      %v3631 = vadd.f32 %v3629, %v3630
      %v3632 = vadd.f32 %v3631, %v3455
      %v3633 = vsel %vm3605, %v3456, 0.0
      %v3634 = vadd.f32 %v3632, %v3633
      %v3635 = vadd.f32 %v3634, %v3457
      %v3636 = vsel %vm3605, %v3458, 0.0
      %v3637 = vadd.f32 %v3635, %v3636
      %v3638 = vadd.f32 %v3637, %v3459
      %v3639 = vsel %vm3605, %v3460, 0.0
      %v3640 = vadd.f32 %v3638, %v3639
      %v3641 = vadd.f32 %v3640, %v3461
      %v3642 = vsel %vm3605, %v3462, 0.0
      %v3643 = vadd.f32 %v3641, %v3642
      %v3644 = vadd.f32 %v3643, %v3463
      %v3645 = vsel %vm3605, %v3464, 0.0
      %v3646 = vadd.f32 %v3644, %v3645
      %v3647 = vrot.slane %v3646, 4
      %v3648 = vadd.f32 %v3646, %v3647
      %v3649 = vrot.slane %v3648, 2
      %v3650 = vadd.f32 %v3648, %v3649
      %v3651 = vrot.slane %v3650, 1
      %v3652 = vadd.f32 %v3650, %v3651
      %3653 = vst [vmem:[%s477] sm:$0x1] %v3652
      %v3654 = vmul.f32 %v3437, %v3437
      %v3655 = vmul.f32 %v3438, %v3438
      %v3656 = vmul.f32 %v3439, %v3439
      %v3657 = vmul.f32 %v3440, %v3440
      %v3658 = vmul.f32 %v3441, %v3441
      %v3659 = vmul.f32 %v3442, %v3442
      %v3660 = vmul.f32 %v3443, %v3443
      %v3661 = vmul.f32 %v3444, %v3444
      %v3662 = vmul.f32 %v3445, %v3445
      %v3663 = vmul.f32 %v3446, %v3446
      %v3664 = vmul.f32 %v3447, %v3447
      %v3665 = vmul.f32 %v3448, %v3448
      %v3666 = vmul.f32 %v3449, %v3449
      %v3667 = vmul.f32 %v3450, %v3450
      %v3668 = vmul.f32 %v3451, %v3451
      %v3669 = vmul.f32 %v3452, %v3452
      %v3670 = vmul.f32 %v3453, %v3453
      %v3671 = vmul.f32 %v3454, %v3454
      %v3672 = vmul.f32 %v3455, %v3455
      %v3673 = vmul.f32 %v3456, %v3456
      %v3674 = vmul.f32 %v3457, %v3457
      %v3675 = vmul.f32 %v3458, %v3458
      %v3676 = vmul.f32 %v3459, %v3459
      %v3677 = vmul.f32 %v3460, %v3460
      %v3678 = vmul.f32 %v3461, %v3461
      %v3679 = vmul.f32 %v3462, %v3462
      %v3680 = vmul.f32 %v3463, %v3463
      %v3681 = vmul.f32 %v3464, %v3464
      %v3682 = vsel %vm3605, %v3655, 0.0
      %v3683 = vadd.f32 %v3654, %v3682
      %v3684 = vadd.f32 %v3683, %v3656
      %v3685 = vsel %vm3605, %v3657, 0.0
      %v3686 = vadd.f32 %v3684, %v3685
      %v3687 = vadd.f32 %v3686, %v3658
      %v3688 = vsel %vm3605, %v3659, 0.0
      %v3689 = vadd.f32 %v3687, %v3688
      %v3690 = vadd.f32 %v3689, %v3660
      %v3691 = vsel %vm3605, %v3661, 0.0
      %v3692 = vadd.f32 %v3690, %v3691
      %v3693 = vadd.f32 %v3692, %v3662
      %v3694 = vsel %vm3605, %v3663, 0.0
      %v3695 = vadd.f32 %v3693, %v3694
      %v3696 = vadd.f32 %v3695, %v3664
      %v3697 = vsel %vm3605, %v3665, 0.0
      %v3698 = vadd.f32 %v3696, %v3697
      %v3699 = vadd.f32 %v3698, %v3666
      %v3700 = vsel %vm3605, %v3667, 0.0
      %v3701 = vadd.f32 %v3699, %v3700
      %v3702 = vadd.f32 %v3701, %v3668
      %v3703 = vsel %vm3605, %v3669, 0.0
      %v3704 = vadd.f32 %v3702, %v3703
      %v3705 = vadd.f32 %v3704, %v3670
      %v3706 = vsel %vm3605, %v3671, 0.0
      %v3707 = vadd.f32 %v3705, %v3706
      %v3708 = vadd.f32 %v3707, %v3672
      %v3709 = vsel %vm3605, %v3673, 0.0
      %v3710 = vadd.f32 %v3708, %v3709
      %v3711 = vadd.f32 %v3710, %v3674
      %v3712 = vsel %vm3605, %v3675, 0.0
      %v3713 = vadd.f32 %v3711, %v3712
      %v3714 = vadd.f32 %v3713, %v3676
      %v3715 = vsel %vm3605, %v3677, 0.0
      %v3716 = vadd.f32 %v3714, %v3715
      %v3717 = vadd.f32 %v3716, %v3678
      %v3718 = vsel %vm3605, %v3679, 0.0
      %v3719 = vadd.f32 %v3717, %v3718
      %v3720 = vadd.f32 %v3719, %v3680
      %v3721 = vsel %vm3605, %v3681, 0.0
      %v3722 = vadd.f32 %v3720, %v3721
      %v3723 = vrot.slane %v3722, 4
      %v3724 = vadd.f32 %v3722, %v3723
      %v3725 = vrot.slane %v3724, 2
      %v3726 = vadd.f32 %v3724, %v3725
      %v3727 = vrot.slane %v3726, 1
      %v3728 = vadd.f32 %v3726, %v3727
      %3729 = vst [vmem:[%s483] sm:$0x1] %v3728
      %s3730 = smul.u32 14, %s24
      %p3731 = scmp.lt.s32.totalorder %s23, 1
      %s3732 = scalar_select %p3731, %s23, 1
      %p3733 = scmp.lt.s32.totalorder %s3730, 13
      %s3734 = scalar_select %p3733, %s3730, 13
      %s3735 = smul.addr %s3734, 2
      %s3736 = smul.addr %s3732, 28
      %s3737 = sadd.s32 %s3735, %s3736
      %s3738 = smul.addr %s3737, 4
      %s3739 = scalar_lea.vmem %s5, %s3738
      %p3740 = scmp.lt.s32.totalorder %s23, 1
      %s3741 = scalar_select %p3740, %s23, 1
      %p3742 = scmp.lt.s32.totalorder %s24, 0
      %s3743 = scalar_select %p3742, %s24, 0
      %s3744 = sadd.s32 %s3743, %s3741
      %s3745 = scalar_lea.vmem %s6, %s3744
      %p3746 = scmp.lt.s32.totalorder %s23, 1
      %s3747 = scalar_select %p3746, %s23, 1
      %p3748 = scmp.lt.s32.totalorder %s24, 0
      %s3749 = scalar_select %p3748, %s24, 0
      %s3750 = sadd.s32 %s3749, %s3747
      %s3751 = scalar_lea.vmem %s7, %s3750
      // Predicated region
      $region41: #{decoder_block_forward.3} parent=39 // pred_check
        %p3752 = pneg %p187
      $region42: #{decoder_block_forward.3} parent=39 // pred_check_branch
        %3754 = sbr.rel (%p3752) target = $region44
      $region43: #{decoder_block_forward.3} parent=39 // pred_region
        %s3755 = smul.u32 14, %s24
      $region44: #{decoder_block_forward.3} parent=39 // pred_fallthru
        _
      // Predicated region
      $region45: #{decoder_block_forward.3} parent=39 // pred_check
        %p3756 = pneg %p215
      $region46: #{decoder_block_forward.3} parent=39 // pred_check_branch
        %3758 = sbr.rel (%p3756) target = $region48
      $region47: #{decoder_block_forward.3} parent=39 // pred_region
        _
      $region48: #{decoder_block_forward.3} parent=39 // pred_fallthru
        _
      // Predicated region
      $region49: #{decoder_block_forward.3} parent=39 // pred_check
        %p3759 = pneg %p243
      $region50: #{decoder_block_forward.3} parent=39 // pred_check_branch
        %3761 = sbr.rel (%p3759) target = $region52
      $region51: #{decoder_block_forward.3} parent=39 // pred_region
        _
      $region52: #{decoder_block_forward.3} parent=39 // pred_fallthru
        _
    $region40: #{decoder_block_forward.3} parent=5 // pred_fallthru
      _
    %p3762 = scmp.le.s32.totalorder 2, %s14
    // Predicated region
    $region53: #{decoder_block_forward.3} parent=5 // pred_check
      %p3763 = pneg %p3762
    $region54: #{decoder_block_forward.3} parent=5 // pred_check_branch
      %3765 = sbr.rel (%p3763) target = $region56
    $region55: #{decoder_block_forward.3} parent=5 // pred_region
      %s3766 = ssub.s32 %s14, 2
      // Predicated region
      $region57: #{decoder_block_forward.3} parent=55 // pred_check
        %p3767 = pneg %p193
      $region58: #{decoder_block_forward.3} parent=55 // pred_check_branch
        %3769 = sbr.rel (%p3767) target = $region60
      $region59: #{decoder_block_forward.3} parent=55 // pred_region
        %s3770 = smul.u32 14, %s26
        %p3771 = scmp.lt.s32.totalorder %s25, 1
        %s3772 = scalar_select %p3771, %s25, 1
        %p3773 = scmp.lt.s32.totalorder %s3770, 13
        %s3774 = scalar_select %p3773, %s3770, 13
        %s3775 = smul.addr %s3774, 2
        %s3776 = smul.addr %s3772, 28
        %s3777 = sadd.s32 %s3775, %s3776
        %s3778 = smul.addr %s3777, 4
        %s3779 = scalar_lea.vmem %s5, %s3778
      $region60: #{decoder_block_forward.3} parent=55 // pred_fallthru
        _
      // Predicated region
      $region61: #{decoder_block_forward.3} parent=55 // pred_check
        %p3780 = pneg %p221
      $region62: #{decoder_block_forward.3} parent=55 // pred_check_branch
        %3782 = sbr.rel (%p3780) target = $region64
      $region63: #{decoder_block_forward.3} parent=55 // pred_region
        %p3783 = scmp.lt.s32.totalorder %s25, 1
        %s3784 = scalar_select %p3783, %s25, 1
        %p3785 = scmp.lt.s32.totalorder %s26, 0
        %s3786 = scalar_select %p3785, %s26, 0
        %s3787 = sadd.s32 %s3786, %s3784
        %s3788 = scalar_lea.vmem %s6, %s3787
      $region64: #{decoder_block_forward.3} parent=55 // pred_fallthru
        _
      // Predicated region
      $region65: #{decoder_block_forward.3} parent=55 // pred_check
        %p3789 = pneg %p249
      $region66: #{decoder_block_forward.3} parent=55 // pred_check_branch
        %3791 = sbr.rel (%p3789) target = $region68
      $region67: #{decoder_block_forward.3} parent=55 // pred_region
        %p3792 = scmp.lt.s32.totalorder %s25, 1
        %s3793 = scalar_select %p3792, %s25, 1
        %p3794 = scmp.lt.s32.totalorder %s26, 0
        %s3795 = scalar_select %p3794, %s26, 0
        %s3796 = sadd.s32 %s3795, %s3793
        %s3797 = scalar_lea.vmem %s7, %s3796
      $region68: #{decoder_block_forward.3} parent=55 // pred_fallthru
        _
    $region56: #{decoder_block_forward.3} parent=5 // pred_fallthru
      _
  $region6: #{decoder_block_forward.3} parent=0 // loop_footer
    %s18 = sadd.s32 1, %s14
  $region7: #{decoder_block_forward.3} parent=0 // loop_footer_branch
    %13 = sbr.rel target = $region3
  $region8: #{decoder_block_forward.3} parent=0 // loop_exit
    _

</llo_original>
